<compile_context>
chip_gen: v6e
topology: v6e:2x2x1
jax: 0.10.0
libtpu: 0.0.40
codegen_flags: <defaults>
</compile_context>

<pallas_src>
import math

import jax
import jax.numpy as jnp
from jax import lax
from jax.experimental import pallas as pl
from jax.experimental.pallas import tpu as pltpu


# ----------------------------------------------------------------------------
# Tiling / VMEM helpers
# ----------------------------------------------------------------------------

def _round_up(v, m):
    return (v + m - 1) // m * m


def _vmem_limit_bytes(default=48 * 1024 * 1024):
    """Generation-aware scoped-VMEM limit (~3/4 of physical VMEM): ~96 MiB on
    v5e/v6e (128 MiB physical), ~48 MiB on v7x (64 MiB physical).  Falls back
    to a conservative constant if the query is unavailable."""
    try:
        cap = getattr(pltpu.get_tpu_info(), "vmem_capacity_bytes", None)
        if cap:
            cap = int(cap)
            return max(default, min(cap - 16 * 1024 * 1024, cap * 3 // 4))
    except Exception:
        pass
    return default


def _choose_adj_tiling(n_pad):
    """(row tile TM, #stream buffers) for the adjacency HBM stream.

    Budgets ~12 MiB of VMEM for the adjacency buffers so the (N, 2*nhid)
    activation scratch and pipelined I/O blocks still fit under v7x's 64 MiB
    physical VMEM; spare capacity (v5e/v6e) goes into a 3rd stream buffer
    (deeper prefetch) rather than an oversized tile.
    TODO(synk): for very large N also tile the contraction dim ((TM, TK)
    adjacency tiles with partial accumulation) instead of only shrinking TM.
    """
    budget = 12 * 1024 * 1024
    row_bytes = 2 * n_pad                                   # bf16 adjacency row
    candidates = [c for c in (256, 128, 64, 32, 16, 8) if n_pad % c == 0]
    tm = candidates[-1]
    for c in candidates:
        if 3 * c * row_bytes <= budget:
            tm = c
            break
    t = n_pad // tm
    nbuf = 3 if (t >= 3 and 3 * tm * row_bytes <= budget) else 2
    return tm, nbuf


def _pick_att_tile(n_pad):
    """Row tile for the cheap row-wise attention/MLP head: much larger than the
    snowball tile so per-grid-step pipeline overhead is amortized."""
    for c in (1024, 512, 256, 128, 64, 32, 16, 8):
        if n_pad % c == 0:
            return c
    return n_pad


# ----------------------------------------------------------------------------
# Kernel A: both adjacencies, both snowball parameter sets, fully fused
# ----------------------------------------------------------------------------

def _make_snowball_pair_kernel(num_hidden_layers, n_real, n_pad, tile_m, nbuf):
    """Positional refs:

        x, <P packed params (leading dim squeezed by BlockSpec)>, adj (HBM),
        out, adj_buf, dma_sem, xw_h, xw_o, y_h, h_0 ... h_{L-1}

    Packed params per pair (set A = SGCNk, set B = CGCN), flattened as
        [Wx_0, b_0, Wx_1, Wh_1_0, b_1, ..., Wx_out, Wh_out_0.., b_out]
    with Wx = [Wa_x | Wb_x] (F, 2H) and Wh_j = blockdiag(Wa_hj, Wb_hj), so the
    two snowballs sharing one adjacency run lane-interleaved.
    """
    L = num_hidden_layers
    P = sum(k + 2 for k in range(L)) + (L + 2)
    TM = tile_m
    T = n_pad // TM
    NPAD_EXTRA = n_pad - n_real
    UNROLL = True if T <= 8 else 2

    def kernel(*refs):
        x_ref = refs[0]
        params = refs[1:1 + P]
        adj_hbm = refs[1 + P]
        out_ref = refs[2 + P]
        adj_buf, dma_sem, xw_h, xw_o, y_h = refs[3 + P:8 + P]
        h_refs = refs[8 + P:8 + P + L]

        g = pl.program_id(0)                 # which adjacency / snowball pair
        H2 = xw_h.shape[1]                   # 2 * nhid (packed)
        H = H2 // 2
        O2 = xw_o.shape[1]                   # 2 * nout (packed)
        O = O2 // 2

        x_val = x_ref[...]                                   # (N_pad, F) bf16
        lane_h = lax.broadcasted_iota(jnp.int32, (1, H2), 1)
        lane_o = lax.broadcasted_iota(jnp.int32, (1, O2), 1)
        mask_o_a = lane_o < O

        def adj_copy(t, slot):
            r = pl.multiple_of(t * TM, TM)
            return pltpu.make_async_copy(adj_hbm.at[g, pl.ds(r, TM), :],
                                         adj_buf.at[slot],
                                         dma_sem.at[slot])

        def stream_adj(xw_ref, tile_fn, init_carry):
            """For every row tile t: carry = tile_fn(row0, adj_tile @ xw, carry),
            streaming adjacency row tiles HBM->VMEM with `nbuf` buffers."""
            xw = xw_ref[...]
            for s in range(min(nbuf - 1, T)):         # prime the pipeline
                adj_copy(s, s).start()

            def body(t, carry):
                slot = lax.rem(t, nbuf)
                nxt = t + nbuf - 1

                @pl.when(nxt < T)
                def _():
                    adj_copy(nxt, lax.rem(nxt, nbuf)).start()

                adj_copy(t, slot).wait()
                r = pl.multiple_of(t * TM, TM)
                tile = jnp.dot(adj_buf[slot], xw,
                               preferred_element_type=jnp.float32)
                return tile_fn(r, tile, carry)

            return lax.fori_loop(0, T, body, init_carry, unroll=UNROLL)

        def packed_xw(pieces):
            acc = jnp.dot(x_val, pieces[0][...],
                          preferred_element_type=jnp.float32)
            for j in range(len(pieces) - 1):
                acc = acc + jnp.dot(h_refs[j][...], pieces[j + 1][...],
                                    preferred_element_type=jnp.float32)
            return acc

        idx = 0
        inv_n = 1.0 / float(n_real)

        # ---- hidden layers: h_k = tanh(PairNorm(adj @ XW_k + b_k)) ----------
        for k in range(L):
            pieces = params[idx:idx + k + 1]
            b_ref = params[idx + k + 1]
            idx += k + 2

            xw_h[...] = packed_xw(pieces).astype(xw_h.dtype)
            bias = b_ref[...]                                  # (1, 2H) f32
            bias_tile = jnp.broadcast_to(bias, (TM, H2))       # hoisted

            def hidden_tile(r, tile, carry):
                y = tile + bias_tile
                y_h[pl.ds(r, TM), :] = y
                cs, cq = carry                 # fused PairNorm statistics
                return (cs + jnp.sum(y, axis=0, keepdims=True),
                        cq + jnp.sum(y * y, axis=0, keepdims=True))

            zero = jnp.zeros((1, H2), jnp.float32)
            colsum, colsq = stream_adj(xw_h, hidden_tile, (zero, zero))

            if NPAD_EXTRA:  # zero-padded adjacency rows contributed y == bias
                colsum = colsum - NPAD_EXTRA * bias
                colsq = colsq - NPAD_EXTRA * (bias * bias)

            # PairNorm 'PN' (scale 1): column-center, divide by mean row norm,
            # per parameter set (first H lanes = set A, last H = set B).
            mu = colsum * inv_n
            var = jnp.maximum(colsq * inv_n - mu * mu, 0.0)
            msq_a = jnp.sum(jnp.where(lane_h < H, var, 0.0))
            msq_b = jnp.sum(var) - msq_a
            inv_a = lax.rsqrt(1e-6 + msq_a)                    # rsqrt -> EUP
            inv_b = lax.rsqrt(1e-6 + msq_b)
            inv = jnp.where(lane_h < H, inv_a, inv_b)          # (1, 2H)
            h_refs[k][...] = jnp.tanh(
                (y_h[...] - mu) * inv).astype(h_refs[k].dtype)

        # ---- output layer: per-set L2-row-normalize(adj @ XW + b) -----------
        pieces = params[idx:idx + L + 1]
        b_ref = params[idx + L + 1]
        xw_o[...] = packed_xw(pieces).astype(xw_o.dtype)
        bias_o = jnp.broadcast_to(b_ref[...], (TM, O2))        # hoisted

        def out_tile(r, tile, carry):
            yo = tile + bias_o
            sq = yo * yo
            sq_a = jnp.sum(jnp.where(mask_o_a, sq, 0.0), axis=1, keepdims=True)
            sq_b = jnp.sum(sq, axis=1, keepdims=True) - sq_a
            inv_a = lax.rsqrt(jnp.maximum(sq_a, 1e-24))
            inv_b = lax.rsqrt(jnp.maximum(sq_b, 1e-24))
            out_ref[pl.ds(r, TM), :] = yo * jnp.where(mask_o_a, inv_a, inv_b)
            return carry

        stream_adj(xw_o, out_tile, 0)

    return kernel


def _pack_pair(sb_a, sb_b, nfeat, nhid):
    """Pack two snowball parameter sets into lane-interleaved split-weight form
    (see _make_snowball_pair_kernel docstring).  Weights -> bf16 (MXU inputs),
    biases stay f32 (added to f32 accumulators)."""
    def split(W, k):
        pts = [nfeat + j * nhid for j in range(k)]
        return jnp.split(W, pts, axis=0) if pts else [W]

    def blockdiag(a, b):
        top = jnp.concatenate(
            [a, jnp.zeros((a.shape[0], b.shape[1]), a.dtype)], axis=1)
        bot = jnp.concatenate(
            [jnp.zeros((b.shape[0], a.shape[1]), b.dtype), b], axis=1)
        return jnp.concatenate([top, bot], axis=0)

    flat = []
    L = len(sb_a["hidden"])
    for k in range(L):
        Wa, ba = sb_a["hidden"][k]
        Wb, bb = sb_b["hidden"][k]
        pa, pb = split(Wa, k), split(Wb, k)
        flat.append(jnp.concatenate([pa[0], pb[0]], axis=1).astype(jnp.bfloat16))
        for j in range(k):
            flat.append(blockdiag(pa[j + 1], pb[j + 1]).astype(jnp.bfloat16))
        flat.append(jnp.concatenate([ba, bb]).reshape(1, -1).astype(jnp.float32))
    Wa, ba = sb_a["out"]
    Wb, bb = sb_b["out"]
    pa, pb = split(Wa, L), split(Wb, L)
    flat.append(jnp.concatenate([pa[0], pb[0]], axis=1).astype(jnp.bfloat16))
    for j in range(L):
        flat.append(blockdiag(pa[j + 1], pb[j + 1]).astype(jnp.bfloat16))
    flat.append(jnp.concatenate([ba, bb]).reshape(1, -1).astype(jnp.float32))
    return flat


def snowball_pair(x, padj, fadj, params):
    """One fused pallas_call over BOTH adjacencies (grid=(2,), parallel).
    Returns a packed (2, N_pad, 2*OUT) slab: [:, :, :OUT] = SGCNk embedding,
    [:, :, OUT:] = CGCN embedding, index 0 = padj, index 1 = fadj."""
    n, nfeat = x.shape
    nhid = params["SGCN1"]["hidden"][0][0].shape[1]
    nout = params["SGCN1"]["out"][0].shape[1]
    L = len(params["SGCN1"]["hidden"])

    n_pad = _round_up(n, 8)
    if n_pad != n:
        pad = n_pad - n
        x = jnp.pad(x, ((0, pad), (0, 0)))
        padj = jnp.pad(padj, ((0, pad), (0, pad)))
        fadj = jnp.pad(fadj, ((0, pad), (0, pad)))

    # Adjacency cast to bf16 exactly once (fused with the stack); callers can
    # pass bf16 adjacencies to skip the cast entirely.
    adj = jnp.stack([padj, fadj])
    if adj.dtype != jnp.bfloat16:
        adj = adj.astype(jnp.bfloat16)
    x_bf = x.astype(jnp.bfloat16)

    pair0 = _pack_pair(params["SGCN1"], params["CGCN"], nfeat, nhid)
    pair1 = _pack_pair(params["SGCN2"], params["CGCN"], nfeat, nhid)
    packed = [jnp.stack([a, b]) for a, b in zip(pair0, pair1)]

    tm, nbuf = _choose_adj_tiling(n_pad)
    vmem_limit = _vmem_limit_bytes()

    param_specs = [pl.BlockSpec((None,) + p.shape[1:], lambda g: (g, 0, 0))
                   for p in packed]
    in_specs = ([pl.BlockSpec((n_pad, nfeat), lambda g: (0, 0))]
                + param_specs
                + [pl.BlockSpec(memory_space=pl.ANY)])     # adj stays in HBM

    return pl.pallas_call(
        _make_snowball_pair_kernel(L, n, n_pad, tm, nbuf),
        out_shape=jax.ShapeDtypeStruct((2, n_pad, 2 * nout), jnp.float32),
        grid=(2,),
        in_specs=in_specs,
        out_specs=pl.BlockSpec((None, n_pad, 2 * nout), lambda g: (g, 0, 0)),
        scratch_shapes=(
            [pltpu.VMEM((nbuf, tm, n_pad), jnp.bfloat16),   # adj stream buffers
             pltpu.SemaphoreType.DMA((nbuf,)),
             pltpu.VMEM((n_pad, 2 * nhid), jnp.bfloat16),   # packed XW (hidden)
             pltpu.VMEM((n_pad, 2 * nout), jnp.bfloat16),   # packed XW (output)
             pltpu.VMEM((n_pad, 2 * nhid), jnp.float32)]    # pre-norm activations
            + [pltpu.VMEM((n_pad, 2 * nhid), jnp.bfloat16)  # packed h_k
               for _ in range(L)]),
        compiler_params=pltpu.CompilerParams(
            dimension_semantics=("parallel",),               # 1 adjacency / core
            vmem_limit_bytes=vmem_limit),
    )(x_bf, *packed, adj)


# ----------------------------------------------------------------------------
# Kernel B: attention fusion + softmax MLP head (row-parallel, large tiles)
# ----------------------------------------------------------------------------

def _attention_mlp_kernel(slab_ref, w1t_ref, b1_ref, w2t_ref, wm_ref, bm_ref,
                          out_ref):
    """Per-row attention over the 3 embeddings + softmax MLP classifier.

    slab_ref: (2, TM, 2D) packed snowball outputs [emb | com] per adjacency.
    out_ref : (TM, OW) lane-dense slab [class probs (C) | beta (3) | zero pad].
    """
    D = slab_ref.shape[2] // 2
    Hh = w1t_ref.shape[0]
    C = wm_ref.shape[1]
    OW = out_ref.shape[1]

    slab_p = slab_ref[0]
    slab_f = slab_ref[1]
    z1 = slab_p[:, :D]                                   # emb1
    z2 = slab_f[:, :D]                                   # emb2
    z3 = (slab_p[:, D:] + slab_f[:, D:]) * 0.5           # Xcom = (com1+com2)/2

    w1t = w1t_ref[...]                                   # (Hh, D)

    def score(z):
        # D -> Hh -> 1 projection on the VPU (Hh == 2 is far too narrow for
        # the MXU): broadcast-multiply + lane reduction per hidden unit.
        cols = [jnp.sum(z * w1t[j:j + 1, :], axis=1, keepdims=True)
                for j in range(Hh)]
        h = jnp.tanh(jnp.concatenate(cols, axis=1) + b1_ref[...])
        return jnp.sum(h * w2t_ref[...], axis=1, keepdims=True)     # (TM, 1)

    s1, s2, s3 = score(z1), score(z2), score(z3)
    m = jnp.maximum(jnp.maximum(s1, s2), s3)
    e1 = jnp.exp(s1 - m)
    e2 = jnp.exp(s2 - m)
    e3 = jnp.exp(s3 - m)
    inv = 1.0 / (e1 + e2 + e3)        # exact: attention weights must sum to 1
    b1a, b2a, b3a = e1 * inv, e2 * inv, e3 * inv

    emb = b1a * z1 + b2a * z2 + b3a * z3
    logits = (jnp.dot(emb, wm_ref[...], preferred_element_type=jnp.float32)
              + bm_ref[...])
    le = jnp.exp(logits - jnp.max(logits, axis=1, keepdims=True))
    probs = le * (1.0 / jnp.sum(le, axis=1, keepdims=True))

    pieces = [probs, b1a, b2a, b3a]
    if OW > C + 3:
        pieces.append(jnp.zeros((probs.shape[0], OW - C - 3), jnp.float32))
    out_ref[...] = jnp.concatenate(pieces, axis=1)       # lane-dense store


def attention_mlp(slabs, att_params, mlp_params, n_real):
    _, n_pad, two_d = slabs.shape
    W1, b1, w2 = att_params                 # (D, Hh), (Hh,), (Hh, 1)
    Wm, bm = mlp_params                     # (D, C), (C,)
    D, Hh = W1.shape
    C = Wm.shape[1]
    ow = max(128, _round_up(C + 3, 128))    # lane-dense output slab width
    tm = _pick_att_tile(n_pad)

    def full(shape):
        return pl.BlockSpec(shape, lambda i: tuple(0 for _ in shape))

    slab_out = pl.pallas_call(
        _attention_mlp_kernel,
        out_shape=jax.ShapeDtypeStruct((n_pad, ow), jnp.float32),
        grid=(n_pad // tm,),
        in_specs=[pl.BlockSpec((2, tm, two_d), lambda i: (0, i, 0)),
                  full((Hh, D)), full((1, Hh)), full((1, Hh)),
                  full((D, C)), full((1, C))],
        out_specs=pl.BlockSpec((tm, ow), lambda i: (i, 0)),
        compiler_params=pltpu.CompilerParams(
            dimension_semantics=("parallel",),     # row tiles -> megacore
            vmem_limit_bytes=_vmem_limit_bytes()),
    )(slabs,
      W1.T.astype(jnp.float32), b1.reshape(1, -1).astype(jnp.float32),
      w2.reshape(1, -1).astype(jnp.float32),
      Wm.astype(jnp.float32), bm.reshape(1, -1).astype(jnp.float32))
    return slab_out[:n_real, :C], slab_out[:n_real, C:C + 3]


# ----------------------------------------------------------------------------
# Forward pass
# ----------------------------------------------------------------------------

def globalnet_forward(x, padj, fadj, params):
    nout = params["SGCN1"]["out"][0].shape[1]
    n = x.shape[0]

    # kernel A: both adjacencies, both snowballs per adjacency, fully fused
    slabs = snowball_pair(x, padj, fadj, params)      # (2, N_pad, 2*nout)

    # kernel B: attention fusion + MLP softmax head
    probs, beta = attention_mlp(slabs, params["attention"], params["MLP"], n)

    emb1 = slabs[0, :n, :nout]
    com1 = slabs[0, :n, nout:]
    emb2 = slabs[1, :n, :nout]
    com2 = slabs[1, :n, nout:]

    att = beta[:, :, None]                       # (N, 3, 1), torch softmax(dim=1)
    shift_loss = jnp.zeros((1,), jnp.float32)    # opt.shift_robust == False
    return probs, shift_loss, att, emb1, com1, com2, emb2


# ----------------------------------------------------------------------------
# Parameter init (matches snowball_layer / nn.Linear reset_parameters style)
# ----------------------------------------------------------------------------

def _uniform(key, shape, fan):
    stdv = 1.0 / math.sqrt(fan)
    return jax.random.uniform(key, shape, jnp.float32, -stdv, stdv)


def init_snowball(key, nfeat, nlayers, nhid, nout):
    hidden = []
    for k in range(nlayers):
        key, kw, kb = jax.random.split(key, 3)
        fan_in = k * nhid + nfeat
        hidden.append((_uniform(kw, (fan_in, nhid), nhid),
                       _uniform(kb, (nhid,), nhid)))
    key, kw, kb = jax.random.split(key, 3)
    fan_in = nlayers * nhid + nfeat
    out = (_uniform(kw, (fan_in, nout), nout), _uniform(kb, (nout,), nout))
    return {"hidden": hidden, "out": out}, key


def init_globalnet(key, nfeat, nhid, out, nclass, nlayers):
    params = {}
    params["SGCN1"], key = init_snowball(key, nfeat, nlayers, nhid, out)
    params["SGCN2"], key = init_snowball(key, nfeat, nlayers, nhid, out)
    params["CGCN"], key = init_snowball(key, nfeat, nlayers, nhid, out)
    # Attention(in_size=out, hidden_size=2)
    key, k1, k2, k3 = jax.random.split(key, 4)
    W1 = _uniform(k1, (out, 2), out)
    b1 = _uniform(k2, (2,), out)
    w2 = _uniform(k3, (2, 1), 2)
    params["attention"] = (W1, b1, w2)
    # MLP: Linear(out, nclass) + Softmax(dim=1)
    key, k1, k2 = jax.random.split(key, 3)
    Wm = _uniform(k1, (out, nclass), out)
    bm = _uniform(k2, (nclass,), out)
    params["MLP"] = (Wm, bm)
    # note: self.a (out, 1) parameter exists in __init__ but is unused in forward().
    return params


# ----------------------------------------------------------------------------
# main
# ----------------------------------------------------------------------------

if __name__ == "__main__":
    key = jax.random.PRNGKey(0)

    N, NFEAT, NHID, OUT, NCLASS = 256, 32, 16, 8, 4
    SNOWBALL_LAYERS = 2

    key, kx, ka1, ka2, kp = jax.random.split(key, 5)
    x = jax.random.normal(kx, (N, NFEAT), jnp.float32)

    def make_adj(k):
        a = jax.random.uniform(k, (N, N), jnp.float32)
        a = (a > 0.7).astype(jnp.float32)
        a = a + a.T + jnp.eye(N, dtype=jnp.float32)       # symmetric + self loops
        deg = jnp.sum(a, axis=1, keepdims=True)
        return a / deg                                     # row-normalized dense adjacency

    padj = make_adj(ka1)
    fadj = make_adj(ka2)

    params = init_globalnet(kp, NFEAT, NHID, OUT, NCLASS, SNOWBALL_LAYERS)

    fwd = jax.jit(globalnet_forward)
    output, shift_loss, att, emb1, com1, com2, emb2 = fwd(x, padj, fadj, params)
    jax.block_until_ready((output, shift_loss, att, emb1, com1, com2, emb2))

    assert output.shape == (N, NCLASS)
    assert shift_loss.shape == (1,)
    assert att.shape == (N, 3, 1)
    assert emb1.shape == (N, OUT) and emb2.shape == (N, OUT)
    assert com1.shape == (N, OUT) and com2.shape == (N, OUT)
    # class probabilities and attention weights must sum to 1
    assert jnp.allclose(jnp.sum(output, axis=1), 1.0, atol=1e-5)
    assert jnp.allclose(jnp.sum(att[:, :, 0], axis=1), 1.0, atol=1e-5)
    assert bool(jnp.all(jnp.isfinite(output)))

    print("KERNEL_OK")
</pallas_src>

<mosaic_0001>
module attributes {stable_mosaic.version = 11 : i64} {
  func.func @_attention_mlp_kernel(%arg0: i32, %arg1: memref<2x256x16xf32, #tpu.memory_space<vmem>>, %arg2: memref<2x8xf32, #tpu.memory_space<vmem>>, %arg3: memref<1x2xf32, #tpu.memory_space<vmem>>, %arg4: memref<1x2xf32, #tpu.memory_space<vmem>>, %arg5: memref<8x4xf32, #tpu.memory_space<vmem>>, %arg6: memref<1x4xf32, #tpu.memory_space<vmem>>, %arg7: memref<256x128xf32, #tpu.memory_space<vmem>>) attributes {dimension_semantics = [#tpu.dimension_semantics<parallel>], iteration_bounds = array<i64: 1>, scalar_prefetch = 0 : i64, scratch_operands = 0 : i64, tpu.core_type = #tpu.core_type<tc>, window_params = [{transform_indices = @transform_0, window_bounds = array<i64: 2, 256, 16>}, {pipeline_mode = #tpu.pipeline_mode<synchronous>, transform_indices = @transform_1, window_bounds = array<i64: 2, 8>}, {pipeline_mode = #tpu.pipeline_mode<synchronous>, transform_indices = @transform_2, window_bounds = array<i64: 1, 2>}, {pipeline_mode = #tpu.pipeline_mode<synchronous>, transform_indices = @transform_3, window_bounds = array<i64: 1, 2>}, {pipeline_mode = #tpu.pipeline_mode<synchronous>, transform_indices = @transform_4, window_bounds = array<i64: 8, 4>}, {pipeline_mode = #tpu.pipeline_mode<synchronous>, transform_indices = @transform_5, window_bounds = array<i64: 1, 4>}, {transform_indices = @transform_6, window_bounds = array<i64: 256, 128>}]} {
    %c0 = arith.constant 0 : index
    %c0_0 = arith.constant 0 : index
    %c0_1 = arith.constant 0 : index
    %0 = vector.load %arg1[%c0, %c0_0, %c0_1] : memref<2x256x16xf32, #tpu.memory_space<vmem>>, vector<1x256x16xf32>
    %1 = vector.shape_cast %0 : vector<1x256x16xf32> to vector<256x16xf32>
    %c1 = arith.constant 1 : index
    %c0_2 = arith.constant 0 : index
    %c0_3 = arith.constant 0 : index
    %2 = vector.load %arg1[%c1, %c0_2, %c0_3] : memref<2x256x16xf32, #tpu.memory_space<vmem>>, vector<1x256x16xf32>
    %3 = vector.shape_cast %2 : vector<1x256x16xf32> to vector<256x16xf32>
    %4 = vector.extract_strided_slice %1 {offsets = [0, 0], sizes = [256, 8], strides = [1, 1]} : vector<256x16xf32> to vector<256x8xf32>
    %5 = vector.extract_strided_slice %3 {offsets = [0, 0], sizes = [256, 8], strides = [1, 1]} : vector<256x16xf32> to vector<256x8xf32>
    %6 = vector.extract_strided_slice %1 {offsets = [0, 8], sizes = [256, 8], strides = [1, 1]} : vector<256x16xf32> to vector<256x8xf32>
    %7 = vector.extract_strided_slice %3 {offsets = [0, 8], sizes = [256, 8], strides = [1, 1]} : vector<256x16xf32> to vector<256x8xf32>
    %8 = arith.addf %6, %7 : vector<256x8xf32>
    %cst = arith.constant 5.000000e-01 : f32
    %9 = vector.broadcast %cst : f32 to vector<256x8xf32>
    %10 = arith.mulf %8, %9 : vector<256x8xf32>
    %c0_4 = arith.constant 0 : index
    %c0_5 = arith.constant 0 : index
    %11 = vector.load %arg2[%c0_4, %c0_5] : memref<2x8xf32, #tpu.memory_space<vmem>>, vector<2x8xf32>
    %12 = vector.extract_strided_slice %11 {offsets = [0, 0], sizes = [1, 8], strides = [1, 1]} : vector<2x8xf32> to vector<1x8xf32>
    %13 = vector.broadcast %12 : vector<1x8xf32> to vector<256x8xf32>
    %14 = arith.mulf %4, %13 : vector<256x8xf32>
    %cst_6 = arith.constant dense<0.000000e+00> : vector<256xf32>
    %15 = vector.multi_reduction <add>, %14, %cst_6 [1] : vector<256x8xf32> to vector<256xf32>
    %16 = vector.shape_cast %15 : vector<256xf32> to vector<256x1xf32>
    %17 = vector.extract_strided_slice %11 {offsets = [1, 0], sizes = [1, 8], strides = [1, 1]} : vector<2x8xf32> to vector<1x8xf32>
    %18 = vector.broadcast %17 : vector<1x8xf32> to vector<256x8xf32>
    %19 = arith.mulf %4, %18 : vector<256x8xf32>
    %cst_7 = arith.constant dense<0.000000e+00> : vector<256xf32>
    %20 = vector.multi_reduction <add>, %19, %cst_7 [1] : vector<256x8xf32> to vector<256xf32>
    %21 = vector.shape_cast %20 : vector<256xf32> to vector<256x1xf32>
    %22 = tpu.concatenate %16, %21 in 1 : vector<256x1xf32>, vector<256x1xf32> -> vector<256x2xf32>
    %c0_8 = arith.constant 0 : index
    %c0_9 = arith.constant 0 : index
    %23 = vector.load %arg3[%c0_8, %c0_9] : memref<1x2xf32, #tpu.memory_space<vmem>>, vector<1x2xf32>
    %24 = vector.broadcast %23 : vector<1x2xf32> to vector<256x2xf32>
    %25 = arith.addf %22, %24 : vector<256x2xf32>
    %26 = math.tanh %25 : vector<256x2xf32>
    %c0_10 = arith.constant 0 : index
    %c0_11 = arith.constant 0 : index
    %27 = vector.load %arg4[%c0_10, %c0_11] : memref<1x2xf32, #tpu.memory_space<vmem>>, vector<1x2xf32>
    %28 = vector.broadcast %27 : vector<1x2xf32> to vector<256x2xf32>
    %29 = arith.mulf %26, %28 : vector<256x2xf32>
    %cst_12 = arith.constant dense<0.000000e+00> : vector<256xf32>
    %30 = vector.multi_reduction <add>, %29, %cst_12 [1] : vector<256x2xf32> to vector<256xf32>
    %31 = vector.shape_cast %30 : vector<256xf32> to vector<256x1xf32>
    %32 = vector.extract_strided_slice %11 {offsets = [0, 0], sizes = [1, 8], strides = [1, 1]} : vector<2x8xf32> to vector<1x8xf32>
    %33 = vector.broadcast %32 : vector<1x8xf32> to vector<256x8xf32>
    %34 = arith.mulf %5, %33 : vector<256x8xf32>
    %cst_13 = arith.constant dense<0.000000e+00> : vector<256xf32>
    %35 = vector.multi_reduction <add>, %34, %cst_13 [1] : vector<256x8xf32> to vector<256xf32>
    %36 = vector.shape_cast %35 : vector<256xf32> to vector<256x1xf32>
    %37 = vector.extract_strided_slice %11 {offsets = [1, 0], sizes = [1, 8], strides = [1, 1]} : vector<2x8xf32> to vector<1x8xf32>
    %38 = vector.broadcast %37 : vector<1x8xf32> to vector<256x8xf32>
    %39 = arith.mulf %5, %38 : vector<256x8xf32>
    %cst_14 = arith.constant dense<0.000000e+00> : vector<256xf32>
    %40 = vector.multi_reduction <add>, %39, %cst_14 [1] : vector<256x8xf32> to vector<256xf32>
    %41 = vector.shape_cast %40 : vector<256xf32> to vector<256x1xf32>
    %42 = tpu.concatenate %36, %41 in 1 : vector<256x1xf32>, vector<256x1xf32> -> vector<256x2xf32>
    %c0_15 = arith.constant 0 : index
    %c0_16 = arith.constant 0 : index
    %43 = vector.load %arg3[%c0_15, %c0_16] : memref<1x2xf32, #tpu.memory_space<vmem>>, vector<1x2xf32>
    %44 = vector.broadcast %43 : vector<1x2xf32> to vector<256x2xf32>
    %45 = arith.addf %42, %44 : vector<256x2xf32>
    %46 = math.tanh %45 : vector<256x2xf32>
    %c0_17 = arith.constant 0 : index
    %c0_18 = arith.constant 0 : index
    %47 = vector.load %arg4[%c0_17, %c0_18] : memref<1x2xf32, #tpu.memory_space<vmem>>, vector<1x2xf32>
    %48 = vector.broadcast %47 : vector<1x2xf32> to vector<256x2xf32>
    %49 = arith.mulf %46, %48 : vector<256x2xf32>
    %cst_19 = arith.constant dense<0.000000e+00> : vector<256xf32>
    %50 = vector.multi_reduction <add>, %49, %cst_19 [1] : vector<256x2xf32> to vector<256xf32>
    %51 = vector.shape_cast %50 : vector<256xf32> to vector<256x1xf32>
    %52 = vector.extract_strided_slice %11 {offsets = [0, 0], sizes = [1, 8], strides = [1, 1]} : vector<2x8xf32> to vector<1x8xf32>
    %53 = vector.broadcast %52 : vector<1x8xf32> to vector<256x8xf32>
    %54 = arith.mulf %10, %53 : vector<256x8xf32>
    %cst_20 = arith.constant dense<0.000000e+00> : vector<256xf32>
    %55 = vector.multi_reduction <add>, %54, %cst_20 [1] : vector<256x8xf32> to vector<256xf32>
    %56 = vector.shape_cast %55 : vector<256xf32> to vector<256x1xf32>
    %57 = vector.extract_strided_slice %11 {offsets = [1, 0], sizes = [1, 8], strides = [1, 1]} : vector<2x8xf32> to vector<1x8xf32>
    %58 = vector.broadcast %57 : vector<1x8xf32> to vector<256x8xf32>
    %59 = arith.mulf %10, %58 : vector<256x8xf32>
    %cst_21 = arith.constant dense<0.000000e+00> : vector<256xf32>
    %60 = vector.multi_reduction <add>, %59, %cst_21 [1] : vector<256x8xf32> to vector<256xf32>
    %61 = vector.shape_cast %60 : vector<256xf32> to vector<256x1xf32>
    %62 = tpu.concatenate %56, %61 in 1 : vector<256x1xf32>, vector<256x1xf32> -> vector<256x2xf32>
    %c0_22 = arith.constant 0 : index
    %c0_23 = arith.constant 0 : index
    %63 = vector.load %arg3[%c0_22, %c0_23] : memref<1x2xf32, #tpu.memory_space<vmem>>, vector<1x2xf32>
    %64 = vector.broadcast %63 : vector<1x2xf32> to vector<256x2xf32>
    %65 = arith.addf %62, %64 : vector<256x2xf32>
    %66 = math.tanh %65 : vector<256x2xf32>
    %c0_24 = arith.constant 0 : index
    %c0_25 = arith.constant 0 : index
    %67 = vector.load %arg4[%c0_24, %c0_25] : memref<1x2xf32, #tpu.memory_space<vmem>>, vector<1x2xf32>
    %68 = vector.broadcast %67 : vector<1x2xf32> to vector<256x2xf32>
    %69 = arith.mulf %66, %68 : vector<256x2xf32>
    %cst_26 = arith.constant dense<0.000000e+00> : vector<256xf32>
    %70 = vector.multi_reduction <add>, %69, %cst_26 [1] : vector<256x2xf32> to vector<256xf32>
    %71 = vector.shape_cast %70 : vector<256xf32> to vector<256x1xf32>
    %72 = arith.maximumf %31, %51 : vector<256x1xf32>
    %73 = arith.maximumf %72, %71 : vector<256x1xf32>
    %74 = arith.subf %31, %73 : vector<256x1xf32>
    %75 = math.exp %74 : vector<256x1xf32>
    %76 = arith.subf %51, %73 : vector<256x1xf32>
    %77 = math.exp %76 : vector<256x1xf32>
    %78 = arith.subf %71, %73 : vector<256x1xf32>
    %79 = math.exp %78 : vector<256x1xf32>
    %80 = arith.addf %75, %77 : vector<256x1xf32>
    %81 = arith.addf %80, %79 : vector<256x1xf32>
    %cst_27 = arith.constant 1.000000e+00 : f32
    %82 = vector.broadcast %cst_27 : f32 to vector<256x1xf32>
    %83 = arith.divf %82, %81 : vector<256x1xf32>
    %84 = arith.mulf %75, %83 : vector<256x1xf32>
    %85 = arith.mulf %77, %83 : vector<256x1xf32>
    %86 = arith.mulf %79, %83 : vector<256x1xf32>
    %87 = vector.broadcast %84 : vector<256x1xf32> to vector<256x8xf32>
    %88 = arith.mulf %87, %4 : vector<256x8xf32>
    %89 = vector.broadcast %85 : vector<256x1xf32> to vector<256x8xf32>
    %90 = arith.mulf %89, %5 : vector<256x8xf32>
    %91 = arith.addf %88, %90 : vector<256x8xf32>
    %92 = vector.broadcast %86 : vector<256x1xf32> to vector<256x8xf32>
    %93 = arith.mulf %92, %10 : vector<256x8xf32>
    %94 = arith.addf %91, %93 : vector<256x8xf32>
    %c0_28 = arith.constant 0 : index
    %c0_29 = arith.constant 0 : index
    %95 = vector.load %arg5[%c0_28, %c0_29] : memref<8x4xf32, #tpu.memory_space<vmem>>, vector<8x4xf32>
    %cst_30 = arith.constant dense<0.000000e+00> : vector<256x4xf32>
    %96 = tpu.matmul %94, %95, %cst_30 {dimension_numbers = #tpu.dot_dimension_numbers<[1], [0], [0], [1], [0, 0, 1, 1], [], []>} : vector<256x8xf32>, vector<8x4xf32>, vector<256x4xf32> -> vector<256x4xf32>
    %c0_31 = arith.constant 0 : index
    %c0_32 = arith.constant 0 : index
    %97 = vector.load %arg6[%c0_31, %c0_32] : memref<1x4xf32, #tpu.memory_space<vmem>>, vector<1x4xf32>
    %98 = vector.broadcast %97 : vector<1x4xf32> to vector<256x4xf32>
    %99 = arith.addf %96, %98 : vector<256x4xf32>
    %cst_33 = arith.constant dense<0xFF800000> : vector<256xf32>
    %100 = vector.multi_reduction <maximumf>, %99, %cst_33 [1] : vector<256x4xf32> to vector<256xf32>
    %101 = vector.shape_cast %100 : vector<256xf32> to vector<256x1xf32>
    %102 = vector.broadcast %101 : vector<256x1xf32> to vector<256x4xf32>
    %103 = arith.subf %99, %102 : vector<256x4xf32>
    %104 = math.exp %103 : vector<256x4xf32>
    %cst_34 = arith.constant dense<0.000000e+00> : vector<256xf32>
    %105 = vector.multi_reduction <add>, %104, %cst_34 [1] : vector<256x4xf32> to vector<256xf32>
    %106 = vector.shape_cast %105 : vector<256xf32> to vector<256x1xf32>
    %cst_35 = arith.constant 1.000000e+00 : f32
    %107 = vector.broadcast %cst_35 : f32 to vector<256x1xf32>
    %108 = arith.divf %107, %106 : vector<256x1xf32>
    %109 = vector.broadcast %108 : vector<256x1xf32> to vector<256x4xf32>
    %110 = arith.mulf %104, %109 : vector<256x4xf32>
    %cst_36 = arith.constant 0.000000e+00 : f32
    %111 = vector.broadcast %cst_36 : f32 to vector<256x121xf32>
    %112 = tpu.concatenate %110, %84, %85, %86, %111 in 1 : vector<256x4xf32>, vector<256x1xf32>, vector<256x1xf32>, vector<256x1xf32>, vector<256x121xf32> -> vector<256x128xf32>
    %c0_37 = arith.constant 0 : index
    %c0_38 = arith.constant 0 : index
    %113 = vector.load %arg7[%c0_37, %c0_38] : memref<256x128xf32, #tpu.memory_space<vmem>>, vector<256x128xf32>
    tpu.vector_store %arg7[%c0_37, %c0_38], %112 {strides = array<i32>} : memref<256x128xf32, #tpu.memory_space<vmem>>, vector<256x128xf32>,
    return
  }
  func.func @transform_0(%arg0: i32) -> (i32, i32, i32) {
    %c0_i32 = arith.constant 0 : i32
    %c0_i32_0 = arith.constant 0 : i32
    %c0_i32_1 = arith.constant 0 : i32
    return %c0_i32, %arg0, %c0_i32_0 : i32, i32, i32
  }
  func.func @transform_1(%arg0: i32) -> (i32, i32) {
    %c0_i32 = arith.constant 0 : i32
    %c0_i32_0 = arith.constant 0 : i32
    %c0_i32_1 = arith.constant 0 : i32
    return %c0_i32, %c0_i32_0 : i32, i32
  }
  func.func @transform_2(%arg0: i32) -> (i32, i32) {
    %c0_i32 = arith.constant 0 : i32
    %c0_i32_0 = arith.constant 0 : i32
    %c0_i32_1 = arith.constant 0 : i32
    return %c0_i32, %c0_i32_0 : i32, i32
  }
  func.func @transform_3(%arg0: i32) -> (i32, i32) {
    %c0_i32 = arith.constant 0 : i32
    %c0_i32_0 = arith.constant 0 : i32
    %c0_i32_1 = arith.constant 0 : i32
    return %c0_i32, %c0_i32_0 : i32, i32
  }
  func.func @transform_4(%arg0: i32) -> (i32, i32) {
    %c0_i32 = arith.constant 0 : i32
    %c0_i32_0 = arith.constant 0 : i32
    %c0_i32_1 = arith.constant 0 : i32
    return %c0_i32, %c0_i32_0 : i32, i32
  }
  func.func @transform_5(%arg0: i32) -> (i32, i32) {
    %c0_i32 = arith.constant 0 : i32
    %c0_i32_0 = arith.constant 0 : i32
    %c0_i32_1 = arith.constant 0 : i32
    return %c0_i32, %c0_i32_0 : i32, i32
  }
  func.func @transform_6(%arg0: i32) -> (i32, i32) {
    %c0_i32 = arith.constant 0 : i32
    %c0_i32_0 = arith.constant 0 : i32
    return %arg0, %c0_i32 : i32, i32
  }
}

module attributes {stable_mosaic.version = 11 : i64} {
  func.func @kernel(%arg0: i32, %arg1: memref<256x32xbf16, #tpu.memory_space<vmem>>, %arg2: memref<1x32x32xbf16, #tpu.memory_space<vmem>>, %arg3: memref<1x1x32xf32, #tpu.memory_space<vmem>>, %arg4: memref<1x32x32xbf16, #tpu.memory_space<vmem>>, %arg5: memref<1x32x32xbf16, #tpu.memory_space<vmem>>, %arg6: memref<1x1x32xf32, #tpu.memory_space<vmem>>, %arg7: memref<1x32x16xbf16, #tpu.memory_space<vmem>>, %arg8: memref<1x32x16xbf16, #tpu.memory_space<vmem>>, %arg9: memref<1x32x16xbf16, #tpu.memory_space<vmem>>, %arg10: memref<1x1x16xf32, #tpu.memory_space<vmem>>, %arg11: memref<2x256x256xbf16, #tpu.memory_space<any>>, %arg12: memref<1x256x16xf32, #tpu.memory_space<vmem>>, %arg13: memref<2x256x256xbf16, #tpu.memory_space<vmem>>, %arg14: memref<2x!tpu.dma_semaphore, #tpu.memory_space<semaphore_mem>>, %arg15: memref<256x32xbf16, #tpu.memory_space<vmem>>, %arg16: memref<256x16xbf16, #tpu.memory_space<vmem>>, %arg17: memref<256x32xf32, #tpu.memory_space<vmem>>, %arg18: memref<256x32xbf16, #tpu.memory_space<vmem>>, %arg19: memref<256x32xbf16, #tpu.memory_space<vmem>>) attributes {dimension_semantics = [#tpu.dimension_semantics<parallel>], iteration_bounds = array<i64: 2>, scalar_prefetch = 0 : i64, scratch_operands = 7 : i64, tpu.core_type = #tpu.core_type<tc>, window_params = [{pipeline_mode = #tpu.pipeline_mode<synchronous>, transform_indices = @transform_0, window_bounds = array<i64: 256, 32>}, {transform_indices = @transform_1, window_bounds = array<i64: 1, 32, 32>}, {transform_indices = @transform_2, window_bounds = array<i64: 1, 1, 32>}, {transform_indices = @transform_3, window_bounds = array<i64: 1, 32, 32>}, {transform_indices = @transform_4, window_bounds = array<i64: 1, 32, 32>}, {transform_indices = @transform_5, window_bounds = array<i64: 1, 1, 32>}, {transform_indices = @transform_6, window_bounds = array<i64: 1, 32, 16>}, {transform_indices = @transform_7, window_bounds = array<i64: 1, 32, 16>}, {transform_indices = @transform_8, window_bounds = array<i64: 1, 32, 16>}, {transform_indices = @transform_9, window_bounds = array<i64: 1, 1, 16>}, {}, {transform_indices = @transform_11, window_bounds = array<i64: 1, 256, 16>}]} {
    %c0 = arith.constant 0 : index
    %c0_0 = arith.constant 0 : index
    %0 = vector.load %arg1[%c0, %c0_0] : memref<256x32xbf16, #tpu.memory_space<vmem>>, vector<256x32xbf16>
    %1 = tpu.iota {dimensions = array<i32: 1>} : vector<1x32xi32>
    %2 = tpu.iota {dimensions = array<i32: 1>} : vector<1x16xi32>
    %c8_i32 = arith.constant 8 : i32
    %3 = vector.broadcast %c8_i32 : i32 to vector<1x16xi32>
    %4 = arith.cmpi slt, %2, %3 : vector<1x16xi32>
    %c0_1 = arith.constant 0 : index
    %c0_2 = arith.constant 0 : index
    %c0_3 = arith.constant 0 : index
    %5 = vector.load %arg2[%c0_1, %c0_2, %c0_3] : memref<1x32x32xbf16, #tpu.memory_space<vmem>>, vector<1x32x32xbf16>
    %6 = vector.shape_cast %5 : vector<1x32x32xbf16> to vector<32x32xbf16>
    %cst = arith.constant dense<0.000000e+00> : vector<256x32xf32>
    %7 = tpu.matmul %0, %6, %cst {dimension_numbers = #tpu.dot_dimension_numbers<[1], [0], [0], [1], [0, 0, 1, 1], [], []>} : vector<256x32xbf16>, vector<32x32xbf16>, vector<256x32xf32> -> vector<256x32xf32>
    %8 = arith.truncf %7 : vector<256x32xf32> to vector<256x32xbf16>
    %c0_4 = arith.constant 0 : index
    %c0_5 = arith.constant 0 : index
    %9 = vector.load %arg15[%c0_4, %c0_5] : memref<256x32xbf16, #tpu.memory_space<vmem>>, vector<256x32xbf16>
    tpu.vector_store %arg15[%c0_4, %c0_5], %8 {strides = array<i32>} : memref<256x32xbf16, #tpu.memory_space<vmem>>, vector<256x32xbf16>,
    %c0_6 = arith.constant 0 : index
    %c0_7 = arith.constant 0 : index
    %c0_8 = arith.constant 0 : index
    %10 = vector.load %arg3[%c0_6, %c0_7, %c0_8] : memref<1x1x32xf32, #tpu.memory_space<vmem>>, vector<1x1x32xf32>
    %11 = vector.shape_cast %10 : vector<1x1x32xf32> to vector<1x32xf32>
    %12 = vector.shape_cast %11 : vector<1x32xf32> to vector<1x32xf32>
    %13 = vector.broadcast %12 : vector<1x32xf32> to vector<256x32xf32>
    %cst_9 = arith.constant 0.000000e+00 : f32
    %14 = vector.broadcast %cst_9 : f32 to vector<1x32xf32>
    %c0_10 = arith.constant 0 : index
    %c0_11 = arith.constant 0 : index
    %15 = vector.load %arg15[%c0_10, %c0_11] : memref<256x32xbf16, #tpu.memory_space<vmem>>, vector<256x32xbf16>
    %c0_i32 = arith.constant 0 : i32
    %16 = tpu.assume_multiple %c0_i32, 256 : i32
    %c0_i32_12 = arith.constant 0 : i32
    %c0_i32_13 = arith.constant 0 : i32
    %c0_i32_14 = arith.constant 0 : i32
    %17 = tpu.memref_slice %arg11[%arg0, %16, %c0_i32_14] : memref<2x256x256xbf16, #tpu.memory_space<any>> -> memref<1x256x256xbf16, #tpu.memory_space<any>>
    %18 = tpu.memref_squeeze %17 : memref<1x256x256xbf16, #tpu.memory_space<any>> -> memref<256x256xbf16, #tpu.memory_space<any>>
    %c0_i32_15 = arith.constant 0 : i32
    %c0_i32_16 = arith.constant 0 : i32
    %19 = tpu.memref_slice %arg13[%c0_i32_12, %c0_i32_15, %c0_i32_16] : memref<2x256x256xbf16, #tpu.memory_space<vmem>> -> memref<1x256x256xbf16, #tpu.memory_space<vmem>>
    %20 = tpu.memref_squeeze %19 : memref<1x256x256xbf16, #tpu.memory_space<vmem>> -> memref<256x256xbf16, #tpu.memory_space<vmem>>
    %21 = tpu.memref_slice %arg14[%c0_i32_13] : memref<2x!tpu.dma_semaphore, #tpu.memory_space<semaphore_mem>> -> memref<1x!tpu.dma_semaphore, #tpu.memory_space<semaphore_mem>>
    %22 = tpu.memref_squeeze %21 : memref<1x!tpu.dma_semaphore, #tpu.memory_space<semaphore_mem>> -> memref<!tpu.dma_semaphore, #tpu.memory_space<semaphore_mem>>
    tpu.enqueue_dma source(%18 : memref<256x256xbf16, #tpu.memory_space<any>>) target(%20 : memref<256x256xbf16, #tpu.memory_space<vmem>>) target_semaphore(%22 : memref<!tpu.dma_semaphore, #tpu.memory_space<semaphore_mem>>)
    %c0_i32_17 = arith.constant 0 : i32
    %c2_i32 = arith.constant 2 : i32
    %23 = arith.remsi %c0_i32_17, %c2_i32 : i32
    %c2_i32_18 = arith.constant 2 : i32
    %24 = arith.addi %c0_i32_17, %c2_i32_18 : i32
    %c1_i32 = arith.constant 1 : i32
    %25 = arith.subi %24, %c1_i32 : i32
    %c1_i32_19 = arith.constant 1 : i32
    %26 = arith.cmpi slt, %25, %c1_i32_19 : i32
    %27 = arith.extui %26 : i1 to i32
    %c0_i32_20 = arith.constant 0 : i32
    %28 = arith.cmpi ne, %27, %c0_i32_20 : i32
    scf.if %28 {
      %c2_i32_152 = arith.constant 2 : i32
      %258 = arith.remsi %25, %c2_i32_152 : i32
      %c256_i32_153 = arith.constant 256 : i32
      %259 = arith.muli %25, %c256_i32_153 : i32
      %260 = tpu.assume_multiple %259, 256 : i32
      %c0_i32_154 = arith.constant 0 : i32
      %261 = tpu.memref_slice %arg11[%arg0, %260, %c0_i32_154] : memref<2x256x256xbf16, #tpu.memory_space<any>> -> memref<1x256x256xbf16, #tpu.memory_space<any>>
      %262 = tpu.memref_squeeze %261 : memref<1x256x256xbf16, #tpu.memory_space<any>> -> memref<256x256xbf16, #tpu.memory_space<any>>
      %c0_i32_155 = arith.constant 0 : i32
      %c0_i32_156 = arith.constant 0 : i32
      %263 = tpu.memref_slice %arg13[%258, %c0_i32_155, %c0_i32_156] : memref<2x256x256xbf16, #tpu.memory_space<vmem>> -> memref<1x256x256xbf16, #tpu.memory_space<vmem>>
      %264 = tpu.memref_squeeze %263 : memref<1x256x256xbf16, #tpu.memory_space<vmem>> -> memref<256x256xbf16, #tpu.memory_space<vmem>>
      %265 = tpu.memref_slice %arg14[%258] : memref<2x!tpu.dma_semaphore, #tpu.memory_space<semaphore_mem>> -> memref<1x!tpu.dma_semaphore, #tpu.memory_space<semaphore_mem>>
      %266 = tpu.memref_squeeze %265 : memref<1x!tpu.dma_semaphore, #tpu.memory_space<semaphore_mem>> -> memref<!tpu.dma_semaphore, #tpu.memory_space<semaphore_mem>>
      tpu.enqueue_dma source(%262 : memref<256x256xbf16, #tpu.memory_space<any>>) target(%264 : memref<256x256xbf16, #tpu.memory_space<vmem>>) target_semaphore(%266 : memref<!tpu.dma_semaphore, #tpu.memory_space<semaphore_mem>>)
    } else {
    }
    %c256_i32 = arith.constant 256 : i32
    %29 = arith.muli %c0_i32_17, %c256_i32 : i32
    %30 = tpu.assume_multiple %29, 256 : i32
    %c0_i32_21 = arith.constant 0 : i32
    %31 = tpu.memref_slice %arg11[%arg0, %30, %c0_i32_21] : memref<2x256x256xbf16, #tpu.memory_space<any>> -> memref<1x256x256xbf16, #tpu.memory_space<any>>
    %32 = tpu.memref_squeeze %31 : memref<1x256x256xbf16, #tpu.memory_space<any>> -> memref<256x256xbf16, #tpu.memory_space<any>>
    %c0_i32_22 = arith.constant 0 : i32
    %c0_i32_23 = arith.constant 0 : i32
    %33 = tpu.memref_slice %arg13[%23, %c0_i32_22, %c0_i32_23] : memref<2x256x256xbf16, #tpu.memory_space<vmem>> -> memref<1x256x256xbf16, #tpu.memory_space<vmem>>
    %34 = tpu.memref_squeeze %33 : memref<1x256x256xbf16, #tpu.memory_space<vmem>> -> memref<256x256xbf16, #tpu.memory_space<vmem>>
    %35 = tpu.memref_slice %arg14[%23] : memref<2x!tpu.dma_semaphore, #tpu.memory_space<semaphore_mem>> -> memref<1x!tpu.dma_semaphore, #tpu.memory_space<semaphore_mem>>
    %36 = tpu.memref_squeeze %35 : memref<1x!tpu.dma_semaphore, #tpu.memory_space<semaphore_mem>> -> memref<!tpu.dma_semaphore, #tpu.memory_space<semaphore_mem>>
    tpu.wait_dma2 semaphore(%36 : memref<!tpu.dma_semaphore, #tpu.memory_space<semaphore_mem>>) src(%32 : memref<256x256xbf16, #tpu.memory_space<any>>) dst(%34 : memref<256x256xbf16, #tpu.memory_space<vmem>>)
    %c256_i32_24 = arith.constant 256 : i32
    %37 = arith.muli %c0_i32_17, %c256_i32_24 : i32
    %38 = tpu.assume_multiple %37, 256 : i32
    %39 = arith.index_cast %23 : i32 to index
    %c0_25 = arith.constant 0 : index
    %c0_26 = arith.constant 0 : index
    %40 = vector.load %arg13[%39, %c0_25, %c0_26] : memref<2x256x256xbf16, #tpu.memory_space<vmem>>, vector<1x256x256xbf16>
    %41 = vector.shape_cast %40 : vector<1x256x256xbf16> to vector<256x256xbf16>
    %cst_27 = arith.constant dense<0.000000e+00> : vector<256x32xf32>
    %42 = tpu.matmul %41, %15, %cst_27 {dimension_numbers = #tpu.dot_dimension_numbers<[1], [0], [0], [1], [0, 0, 1, 1], [], []>} : vector<256x256xbf16>, vector<256x32xbf16>, vector<256x32xf32> -> vector<256x32xf32>
    %43 = arith.addf %42, %13 : vector<256x32xf32>
    %44 = arith.index_cast %38 : i32 to index
    %c0_28 = arith.constant 0 : index
    %45 = vector.load %arg17[%44, %c0_28] : memref<256x32xf32, #tpu.memory_space<vmem>>, vector<256x32xf32>
    tpu.vector_store %arg17[%44, %c0_28], %43 {strides = array<i32>} : memref<256x32xf32, #tpu.memory_space<vmem>>, vector<256x32xf32>,
    %cst_29 = arith.constant dense<0.000000e+00> : vector<32xf32>
    %46 = vector.multi_reduction <add>, %43, %cst_29 [0] : vector<256x32xf32> to vector<32xf32>
    %47 = vector.shape_cast %46 : vector<32xf32> to vector<1x32xf32>
    %48 = arith.addf %14, %47 : vector<1x32xf32>
    %49 = arith.mulf %43, %43 : vector<256x32xf32>
    %cst_30 = arith.constant dense<0.000000e+00> : vector<32xf32>
    %50 = vector.multi_reduction <add>, %49, %cst_30 [0] : vector<256x32xf32> to vector<32xf32>
    %51 = vector.shape_cast %50 : vector<32xf32> to vector<1x32xf32>
    %52 = arith.addf %14, %51 : vector<1x32xf32>
    %c1_i32_31 = arith.constant 1 : i32
    %cst_32 = arith.constant 3.906250e-03 : f32
    %53 = vector.broadcast %cst_32 : f32 to vector<1x32xf32>
    %54 = arith.mulf %48, %53 : vector<1x32xf32>
    %cst_33 = arith.constant 3.906250e-03 : f32
    %55 = vector.broadcast %cst_33 : f32 to vector<1x32xf32>
    %56 = arith.mulf %52, %55 : vector<1x32xf32>
    %57 = arith.mulf %54, %54 : vector<1x32xf32>
    %58 = arith.subf %56, %57 : vector<1x32xf32>
    %cst_34 = arith.constant 0.000000e+00 : f32
    %59 = vector.broadcast %cst_34 : f32 to vector<1x32xf32>
    %60 = arith.maximumf %58, %59 : vector<1x32xf32>
    %c16_i32 = arith.constant 16 : i32
    %61 = vector.broadcast %c16_i32 : i32 to vector<1x32xi32>
    %62 = arith.cmpi slt, %1, %61 : vector<1x32xi32>
    %cst_35 = arith.constant 0.000000e+00 : f32
    %63 = vector.broadcast %cst_35 : f32 to vector<1x32xf32>
    %64 = arith.select %62, %60, %63 : vector<1x32xi1>, vector<1x32xf32>
    %65 = vector.shape_cast %64 : vector<1x32xf32> to vector<1x1x32xf32>
    %cst_36 = arith.constant dense<0.000000e+00> : vector<1xf32>
    %66 = vector.multi_reduction <add>, %65, %cst_36 [1, 2] : vector<1x1x32xf32> to vector<1xf32>
    %67 = vector.shape_cast %66 : vector<1xf32> to vector<1x1x1xf32>
    %68 = vector.extract %67[0, 0, 0] : f32 from vector<1x1x1xf32>
    %69 = vector.shape_cast %60 : vector<1x32xf32> to vector<1x1x32xf32>
    %cst_37 = arith.constant dense<0.000000e+00> : vector<1xf32>
    %70 = vector.multi_reduction <add>, %69, %cst_37 [1, 2] : vector<1x1x32xf32> to vector<1xf32>
    %71 = vector.shape_cast %70 : vector<1xf32> to vector<1x1x1xf32>
    %72 = vector.extract %71[0, 0, 0] : f32 from vector<1x1x1xf32>
    %73 = arith.subf %72, %68 : f32
    %cst_38 = arith.constant 9.99999997E-7 : f32
    %74 = arith.addf %cst_38, %68 : f32
    %75 = math.rsqrt %74 : f32
    %cst_39 = arith.constant 9.99999997E-7 : f32
    %76 = arith.addf %cst_39, %73 : f32
    %77 = math.rsqrt %76 : f32
    %c16_i32_40 = arith.constant 16 : i32
    %78 = vector.broadcast %c16_i32_40 : i32 to vector<1x32xi32>
    %79 = arith.cmpi slt, %1, %78 : vector<1x32xi32>
    %80 = vector.broadcast %75 : f32 to vector<1x32xf32>
    %81 = vector.broadcast %77 : f32 to vector<1x32xf32>
    %82 = arith.select %79, %80, %81 : vector<1x32xi1>, vector<1x32xf32>
    %c0_41 = arith.constant 0 : index
    %c0_42 = arith.constant 0 : index
    %83 = vector.load %arg17[%c0_41, %c0_42] : memref<256x32xf32, #tpu.memory_space<vmem>>, vector<256x32xf32>
    %84 = vector.broadcast %54 : vector<1x32xf32> to vector<256x32xf32>
    %85 = arith.subf %83, %84 : vector<256x32xf32>
    %86 = vector.broadcast %82 : vector<1x32xf32> to vector<256x32xf32>
    %87 = arith.mulf %85, %86 : vector<256x32xf32>
    %88 = math.tanh %87 : vector<256x32xf32>
    %89 = arith.truncf %88 : vector<256x32xf32> to vector<256x32xbf16>
    %c0_43 = arith.constant 0 : index
    %c0_44 = arith.constant 0 : index
    %90 = vector.load %arg18[%c0_43, %c0_44] : memref<256x32xbf16, #tpu.memory_space<vmem>>, vector<256x32xbf16>
    tpu.vector_store %arg18[%c0_43, %c0_44], %89 {strides = array<i32>} : memref<256x32xbf16, #tpu.memory_space<vmem>>, vector<256x32xbf16>,
    %c0_45 = arith.constant 0 : index
    %c0_46 = arith.constant 0 : index
    %c0_47 = arith.constant 0 : index
    %91 = vector.load %arg4[%c0_45, %c0_46, %c0_47] : memref<1x32x32xbf16, #tpu.memory_space<vmem>>, vector<1x32x32xbf16>
    %92 = vector.shape_cast %91 : vector<1x32x32xbf16> to vector<32x32xbf16>
    %cst_48 = arith.constant dense<0.000000e+00> : vector<256x32xf32>
    %93 = tpu.matmul %0, %92, %cst_48 {dimension_numbers = #tpu.dot_dimension_numbers<[1], [0], [0], [1], [0, 0, 1, 1], [], []>} : vector<256x32xbf16>, vector<32x32xbf16>, vector<256x32xf32> -> vector<256x32xf32>
    %c0_49 = arith.constant 0 : index
    %c0_50 = arith.constant 0 : index
    %94 = vector.load %arg18[%c0_49, %c0_50] : memref<256x32xbf16, #tpu.memory_space<vmem>>, vector<256x32xbf16>
    %c0_51 = arith.constant 0 : index
    %c0_52 = arith.constant 0 : index
    %c0_53 = arith.constant 0 : index
    %95 = vector.load %arg5[%c0_51, %c0_52, %c0_53] : memref<1x32x32xbf16, #tpu.memory_space<vmem>>, vector<1x32x32xbf16>
    %96 = vector.shape_cast %95 : vector<1x32x32xbf16> to vector<32x32xbf16>
    %cst_54 = arith.constant dense<0.000000e+00> : vector<256x32xf32>
    %97 = tpu.matmul %94, %96, %cst_54 {dimension_numbers = #tpu.dot_dimension_numbers<[1], [0], [0], [1], [0, 0, 1, 1], [], []>} : vector<256x32xbf16>, vector<32x32xbf16>, vector<256x32xf32> -> vector<256x32xf32>
    %98 = arith.addf %93, %97 : vector<256x32xf32>
    %99 = arith.truncf %98 : vector<256x32xf32> to vector<256x32xbf16>
    %c0_55 = arith.constant 0 : index
    %c0_56 = arith.constant 0 : index
    %100 = vector.load %arg15[%c0_55, %c0_56] : memref<256x32xbf16, #tpu.memory_space<vmem>>, vector<256x32xbf16>
    tpu.vector_store %arg15[%c0_55, %c0_56], %99 {strides = array<i32>} : memref<256x32xbf16, #tpu.memory_space<vmem>>, vector<256x32xbf16>,
    %c0_57 = arith.constant 0 : index
    %c0_58 = arith.constant 0 : index
    %c0_59 = arith.constant 0 : index
    %101 = vector.load %arg6[%c0_57, %c0_58, %c0_59] : memref<1x1x32xf32, #tpu.memory_space<vmem>>, vector<1x1x32xf32>
    %102 = vector.shape_cast %101 : vector<1x1x32xf32> to vector<1x32xf32>
    %103 = vector.shape_cast %102 : vector<1x32xf32> to vector<1x32xf32>
    %104 = vector.broadcast %103 : vector<1x32xf32> to vector<256x32xf32>
    %cst_60 = arith.constant 0.000000e+00 : f32
    %105 = vector.broadcast %cst_60 : f32 to vector<1x32xf32>
    %c0_61 = arith.constant 0 : index
    %c0_62 = arith.constant 0 : index
    %106 = vector.load %arg15[%c0_61, %c0_62] : memref<256x32xbf16, #tpu.memory_space<vmem>>, vector<256x32xbf16>
    %c0_i32_63 = arith.constant 0 : i32
    %107 = tpu.assume_multiple %c0_i32_63, 256 : i32
    %c0_i32_64 = arith.constant 0 : i32
    %c0_i32_65 = arith.constant 0 : i32
    %c0_i32_66 = arith.constant 0 : i32
    %108 = tpu.memref_slice %arg11[%arg0, %107, %c0_i32_66] : memref<2x256x256xbf16, #tpu.memory_space<any>> -> memref<1x256x256xbf16, #tpu.memory_space<any>>
    %109 = tpu.memref_squeeze %108 : memref<1x256x256xbf16, #tpu.memory_space<any>> -> memref<256x256xbf16, #tpu.memory_space<any>>
    %c0_i32_67 = arith.constant 0 : i32
    %c0_i32_68 = arith.constant 0 : i32
    %110 = tpu.memref_slice %arg13[%c0_i32_64, %c0_i32_67, %c0_i32_68] : memref<2x256x256xbf16, #tpu.memory_space<vmem>> -> memref<1x256x256xbf16, #tpu.memory_space<vmem>>
    %111 = tpu.memref_squeeze %110 : memref<1x256x256xbf16, #tpu.memory_space<vmem>> -> memref<256x256xbf16, #tpu.memory_space<vmem>>
    %112 = tpu.memref_slice %arg14[%c0_i32_65] : memref<2x!tpu.dma_semaphore, #tpu.memory_space<semaphore_mem>> -> memref<1x!tpu.dma_semaphore, #tpu.memory_space<semaphore_mem>>
    %113 = tpu.memref_squeeze %112 : memref<1x!tpu.dma_semaphore, #tpu.memory_space<semaphore_mem>> -> memref<!tpu.dma_semaphore, #tpu.memory_space<semaphore_mem>>
    tpu.enqueue_dma source(%109 : memref<256x256xbf16, #tpu.memory_space<any>>) target(%111 : memref<256x256xbf16, #tpu.memory_space<vmem>>) target_semaphore(%113 : memref<!tpu.dma_semaphore, #tpu.memory_space<semaphore_mem>>)
    %c0_i32_69 = arith.constant 0 : i32
    %c2_i32_70 = arith.constant 2 : i32
    %114 = arith.remsi %c0_i32_69, %c2_i32_70 : i32
    %c2_i32_71 = arith.constant 2 : i32
    %115 = arith.addi %c0_i32_69, %c2_i32_71 : i32
    %c1_i32_72 = arith.constant 1 : i32
    %116 = arith.subi %115, %c1_i32_72 : i32
    %c1_i32_73 = arith.constant 1 : i32
    %117 = arith.cmpi slt, %116, %c1_i32_73 : i32
    %118 = arith.extui %117 : i1 to i32
    %c0_i32_74 = arith.constant 0 : i32
    %119 = arith.cmpi ne, %118, %c0_i32_74 : i32
    scf.if %119 {
      %c2_i32_152 = arith.constant 2 : i32
      %258 = arith.remsi %116, %c2_i32_152 : i32
      %c256_i32_153 = arith.constant 256 : i32
      %259 = arith.muli %116, %c256_i32_153 : i32
      %260 = tpu.assume_multiple %259, 256 : i32
      %c0_i32_154 = arith.constant 0 : i32
      %261 = tpu.memref_slice %arg11[%arg0, %260, %c0_i32_154] : memref<2x256x256xbf16, #tpu.memory_space<any>> -> memref<1x256x256xbf16, #tpu.memory_space<any>>
      %262 = tpu.memref_squeeze %261 : memref<1x256x256xbf16, #tpu.memory_space<any>> -> memref<256x256xbf16, #tpu.memory_space<any>>
      %c0_i32_155 = arith.constant 0 : i32
      %c0_i32_156 = arith.constant 0 : i32
      %263 = tpu.memref_slice %arg13[%258, %c0_i32_155, %c0_i32_156] : memref<2x256x256xbf16, #tpu.memory_space<vmem>> -> memref<1x256x256xbf16, #tpu.memory_space<vmem>>
      %264 = tpu.memref_squeeze %263 : memref<1x256x256xbf16, #tpu.memory_space<vmem>> -> memref<256x256xbf16, #tpu.memory_space<vmem>>
      %265 = tpu.memref_slice %arg14[%258] : memref<2x!tpu.dma_semaphore, #tpu.memory_space<semaphore_mem>> -> memref<1x!tpu.dma_semaphore, #tpu.memory_space<semaphore_mem>>
      %266 = tpu.memref_squeeze %265 : memref<1x!tpu.dma_semaphore, #tpu.memory_space<semaphore_mem>> -> memref<!tpu.dma_semaphore, #tpu.memory_space<semaphore_mem>>
      tpu.enqueue_dma source(%262 : memref<256x256xbf16, #tpu.memory_space<any>>) target(%264 : memref<256x256xbf16, #tpu.memory_space<vmem>>) target_semaphore(%266 : memref<!tpu.dma_semaphore, #tpu.memory_space<semaphore_mem>>)
    } else {
    }
    %c256_i32_75 = arith.constant 256 : i32
    %120 = arith.muli %c0_i32_69, %c256_i32_75 : i32
    %121 = tpu.assume_multiple %120, 256 : i32
    %c0_i32_76 = arith.constant 0 : i32
    %122 = tpu.memref_slice %arg11[%arg0, %121, %c0_i32_76] : memref<2x256x256xbf16, #tpu.memory_space<any>> -> memref<1x256x256xbf16, #tpu.memory_space<any>>
    %123 = tpu.memref_squeeze %122 : memref<1x256x256xbf16, #tpu.memory_space<any>> -> memref<256x256xbf16, #tpu.memory_space<any>>
    %c0_i32_77 = arith.constant 0 : i32
    %c0_i32_78 = arith.constant 0 : i32
    %124 = tpu.memref_slice %arg13[%114, %c0_i32_77, %c0_i32_78] : memref<2x256x256xbf16, #tpu.memory_space<vmem>> -> memref<1x256x256xbf16, #tpu.memory_space<vmem>>
    %125 = tpu.memref_squeeze %124 : memref<1x256x256xbf16, #tpu.memory_space<vmem>> -> memref<256x256xbf16, #tpu.memory_space<vmem>>
    %126 = tpu.memref_slice %arg14[%114] : memref<2x!tpu.dma_semaphore, #tpu.memory_space<semaphore_mem>> -> memref<1x!tpu.dma_semaphore, #tpu.memory_space<semaphore_mem>>
    %127 = tpu.memref_squeeze %126 : memref<1x!tpu.dma_semaphore, #tpu.memory_space<semaphore_mem>> -> memref<!tpu.dma_semaphore, #tpu.memory_space<semaphore_mem>>
    tpu.wait_dma2 semaphore(%127 : memref<!tpu.dma_semaphore, #tpu.memory_space<semaphore_mem>>) src(%123 : memref<256x256xbf16, #tpu.memory_space<any>>) dst(%125 : memref<256x256xbf16, #tpu.memory_space<vmem>>)
    %c256_i32_79 = arith.constant 256 : i32
    %128 = arith.muli %c0_i32_69, %c256_i32_79 : i32
    %129 = tpu.assume_multiple %128, 256 : i32
    %130 = arith.index_cast %114 : i32 to index
    %c0_80 = arith.constant 0 : index
    %c0_81 = arith.constant 0 : index
    %131 = vector.load %arg13[%130, %c0_80, %c0_81] : memref<2x256x256xbf16, #tpu.memory_space<vmem>>, vector<1x256x256xbf16>
    %132 = vector.shape_cast %131 : vector<1x256x256xbf16> to vector<256x256xbf16>
    %cst_82 = arith.constant dense<0.000000e+00> : vector<256x32xf32>
    %133 = tpu.matmul %132, %106, %cst_82 {dimension_numbers = #tpu.dot_dimension_numbers<[1], [0], [0], [1], [0, 0, 1, 1], [], []>} : vector<256x256xbf16>, vector<256x32xbf16>, vector<256x32xf32> -> vector<256x32xf32>
    %134 = arith.addf %133, %104 : vector<256x32xf32>
    %135 = arith.index_cast %129 : i32 to index
    %c0_83 = arith.constant 0 : index
    %136 = vector.load %arg17[%135, %c0_83] : memref<256x32xf32, #tpu.memory_space<vmem>>, vector<256x32xf32>
    tpu.vector_store %arg17[%135, %c0_83], %134 {strides = array<i32>} : memref<256x32xf32, #tpu.memory_space<vmem>>, vector<256x32xf32>,
    %cst_84 = arith.constant dense<0.000000e+00> : vector<32xf32>
    %137 = vector.multi_reduction <add>, %134, %cst_84 [0] : vector<256x32xf32> to vector<32xf32>
    %138 = vector.shape_cast %137 : vector<32xf32> to vector<1x32xf32>
    %139 = arith.addf %105, %138 : vector<1x32xf32>
    %140 = arith.mulf %134, %134 : vector<256x32xf32>
    %cst_85 = arith.constant dense<0.000000e+00> : vector<32xf32>
    %141 = vector.multi_reduction <add>, %140, %cst_85 [0] : vector<256x32xf32> to vector<32xf32>
    %142 = vector.shape_cast %141 : vector<32xf32> to vector<1x32xf32>
    %143 = arith.addf %105, %142 : vector<1x32xf32>
    %c1_i32_86 = arith.constant 1 : i32
    %cst_87 = arith.constant 3.906250e-03 : f32
    %144 = vector.broadcast %cst_87 : f32 to vector<1x32xf32>
    %145 = arith.mulf %139, %144 : vector<1x32xf32>
    %cst_88 = arith.constant 3.906250e-03 : f32
    %146 = vector.broadcast %cst_88 : f32 to vector<1x32xf32>
    %147 = arith.mulf %143, %146 : vector<1x32xf32>
    %148 = arith.mulf %145, %145 : vector<1x32xf32>
    %149 = arith.subf %147, %148 : vector<1x32xf32>
    %cst_89 = arith.constant 0.000000e+00 : f32
    %150 = vector.broadcast %cst_89 : f32 to vector<1x32xf32>
    %151 = arith.maximumf %149, %150 : vector<1x32xf32>
    %c16_i32_90 = arith.constant 16 : i32
    %152 = vector.broadcast %c16_i32_90 : i32 to vector<1x32xi32>
    %153 = arith.cmpi slt, %1, %152 : vector<1x32xi32>
    %cst_91 = arith.constant 0.000000e+00 : f32
    %154 = vector.broadcast %cst_91 : f32 to vector<1x32xf32>
    %155 = arith.select %153, %151, %154 : vector<1x32xi1>, vector<1x32xf32>
    %156 = vector.shape_cast %155 : vector<1x32xf32> to vector<1x1x32xf32>
    %cst_92 = arith.constant dense<0.000000e+00> : vector<1xf32>
    %157 = vector.multi_reduction <add>, %156, %cst_92 [1, 2] : vector<1x1x32xf32> to vector<1xf32>
    %158 = vector.shape_cast %157 : vector<1xf32> to vector<1x1x1xf32>
    %159 = vector.extract %158[0, 0, 0] : f32 from vector<1x1x1xf32>
    %160 = vector.shape_cast %151 : vector<1x32xf32> to vector<1x1x32xf32>
    %cst_93 = arith.constant dense<0.000000e+00> : vector<1xf32>
    %161 = vector.multi_reduction <add>, %160, %cst_93 [1, 2] : vector<1x1x32xf32> to vector<1xf32>
    %162 = vector.shape_cast %161 : vector<1xf32> to vector<1x1x1xf32>
    %163 = vector.extract %162[0, 0, 0] : f32 from vector<1x1x1xf32>
    %164 = arith.subf %163, %159 : f32
    %cst_94 = arith.constant 9.99999997E-7 : f32
    %165 = arith.addf %cst_94, %159 : f32
    %166 = math.rsqrt %165 : f32
    %cst_95 = arith.constant 9.99999997E-7 : f32
    %167 = arith.addf %cst_95, %164 : f32
    %168 = math.rsqrt %167 : f32
    %c16_i32_96 = arith.constant 16 : i32
    %169 = vector.broadcast %c16_i32_96 : i32 to vector<1x32xi32>
    %170 = arith.cmpi slt, %1, %169 : vector<1x32xi32>
    %171 = vector.broadcast %166 : f32 to vector<1x32xf32>
    %172 = vector.broadcast %168 : f32 to vector<1x32xf32>
    %173 = arith.select %170, %171, %172 : vector<1x32xi1>, vector<1x32xf32>
    %c0_97 = arith.constant 0 : index
    %c0_98 = arith.constant 0 : index
    %174 = vector.load %arg17[%c0_97, %c0_98] : memref<256x32xf32, #tpu.memory_space<vmem>>, vector<256x32xf32>
    %175 = vector.broadcast %145 : vector<1x32xf32> to vector<256x32xf32>
    %176 = arith.subf %174, %175 : vector<256x32xf32>
    %177 = vector.broadcast %173 : vector<1x32xf32> to vector<256x32xf32>
    %178 = arith.mulf %176, %177 : vector<256x32xf32>
    %179 = math.tanh %178 : vector<256x32xf32>
    %180 = arith.truncf %179 : vector<256x32xf32> to vector<256x32xbf16>
    %c0_99 = arith.constant 0 : index
    %c0_100 = arith.constant 0 : index
    %181 = vector.load %arg19[%c0_99, %c0_100] : memref<256x32xbf16, #tpu.memory_space<vmem>>, vector<256x32xbf16>
    tpu.vector_store %arg19[%c0_99, %c0_100], %180 {strides = array<i32>} : memref<256x32xbf16, #tpu.memory_space<vmem>>, vector<256x32xbf16>,
    %c0_101 = arith.constant 0 : index
    %c0_102 = arith.constant 0 : index
    %c0_103 = arith.constant 0 : index
    %182 = vector.load %arg7[%c0_101, %c0_102, %c0_103] : memref<1x32x16xbf16, #tpu.memory_space<vmem>>, vector<1x32x16xbf16>
    %183 = vector.shape_cast %182 : vector<1x32x16xbf16> to vector<32x16xbf16>
    %cst_104 = arith.constant dense<0.000000e+00> : vector<256x16xf32>
    %184 = tpu.matmul %0, %183, %cst_104 {dimension_numbers = #tpu.dot_dimension_numbers<[1], [0], [0], [1], [0, 0, 1, 1], [], []>} : vector<256x32xbf16>, vector<32x16xbf16>, vector<256x16xf32> -> vector<256x16xf32>
    %c0_105 = arith.constant 0 : index
    %c0_106 = arith.constant 0 : index
    %185 = vector.load %arg18[%c0_105, %c0_106] : memref<256x32xbf16, #tpu.memory_space<vmem>>, vector<256x32xbf16>
    %c0_107 = arith.constant 0 : index
    %c0_108 = arith.constant 0 : index
    %c0_109 = arith.constant 0 : index
    %186 = vector.load %arg8[%c0_107, %c0_108, %c0_109] : memref<1x32x16xbf16, #tpu.memory_space<vmem>>, vector<1x32x16xbf16>
    %187 = vector.shape_cast %186 : vector<1x32x16xbf16> to vector<32x16xbf16>
    %cst_110 = arith.constant dense<0.000000e+00> : vector<256x16xf32>
    %188 = tpu.matmul %185, %187, %cst_110 {dimension_numbers = #tpu.dot_dimension_numbers<[1], [0], [0], [1], [0, 0, 1, 1], [], []>} : vector<256x32xbf16>, vector<32x16xbf16>, vector<256x16xf32> -> vector<256x16xf32>
    %189 = arith.addf %184, %188 : vector<256x16xf32>
    %c0_111 = arith.constant 0 : index
    %c0_112 = arith.constant 0 : index
    %190 = vector.load %arg19[%c0_111, %c0_112] : memref<256x32xbf16, #tpu.memory_space<vmem>>, vector<256x32xbf16>
    %c0_113 = arith.constant 0 : index
    %c0_114 = arith.constant 0 : index
    %c0_115 = arith.constant 0 : index
    %191 = vector.load %arg9[%c0_113, %c0_114, %c0_115] : memref<1x32x16xbf16, #tpu.memory_space<vmem>>, vector<1x32x16xbf16>
    %192 = vector.shape_cast %191 : vector<1x32x16xbf16> to vector<32x16xbf16>
    %cst_116 = arith.constant dense<0.000000e+00> : vector<256x16xf32>
    %193 = tpu.matmul %190, %192, %cst_116 {dimension_numbers = #tpu.dot_dimension_numbers<[1], [0], [0], [1], [0, 0, 1, 1], [], []>} : vector<256x32xbf16>, vector<32x16xbf16>, vector<256x16xf32> -> vector<256x16xf32>
    %194 = arith.addf %189, %193 : vector<256x16xf32>
    %195 = arith.truncf %194 : vector<256x16xf32> to vector<256x16xbf16>
    %c0_117 = arith.constant 0 : index
    %c0_118 = arith.constant 0 : index
    %196 = vector.load %arg16[%c0_117, %c0_118] : memref<256x16xbf16, #tpu.memory_space<vmem>>, vector<256x16xbf16>
    tpu.vector_store %arg16[%c0_117, %c0_118], %195 {strides = array<i32>} : memref<256x16xbf16, #tpu.memory_space<vmem>>, vector<256x16xbf16>,
    %c0_119 = arith.constant 0 : index
    %c0_120 = arith.constant 0 : index
    %c0_121 = arith.constant 0 : index
    %197 = vector.load %arg10[%c0_119, %c0_120, %c0_121] : memref<1x1x16xf32, #tpu.memory_space<vmem>>, vector<1x1x16xf32>
    %198 = vector.shape_cast %197 : vector<1x1x16xf32> to vector<1x16xf32>
    %199 = vector.shape_cast %198 : vector<1x16xf32> to vector<1x16xf32>
    %200 = vector.broadcast %199 : vector<1x16xf32> to vector<256x16xf32>
    %c0_122 = arith.constant 0 : index
    %c0_123 = arith.constant 0 : index
    %201 = vector.load %arg16[%c0_122, %c0_123] : memref<256x16xbf16, #tpu.memory_space<vmem>>, vector<256x16xbf16>
    %c0_i32_124 = arith.constant 0 : i32
    %202 = tpu.assume_multiple %c0_i32_124, 256 : i32
    %c0_i32_125 = arith.constant 0 : i32
    %c0_i32_126 = arith.constant 0 : i32
    %c0_i32_127 = arith.constant 0 : i32
    %203 = tpu.memref_slice %arg11[%arg0, %202, %c0_i32_127] : memref<2x256x256xbf16, #tpu.memory_space<any>> -> memref<1x256x256xbf16, #tpu.memory_space<any>>
    %204 = tpu.memref_squeeze %203 : memref<1x256x256xbf16, #tpu.memory_space<any>> -> memref<256x256xbf16, #tpu.memory_space<any>>
    %c0_i32_128 = arith.constant 0 : i32
    %c0_i32_129 = arith.constant 0 : i32
    %205 = tpu.memref_slice %arg13[%c0_i32_125, %c0_i32_128, %c0_i32_129] : memref<2x256x256xbf16, #tpu.memory_space<vmem>> -> memref<1x256x256xbf16, #tpu.memory_space<vmem>>
    %206 = tpu.memref_squeeze %205 : memref<1x256x256xbf16, #tpu.memory_space<vmem>> -> memref<256x256xbf16, #tpu.memory_space<vmem>>
    %207 = tpu.memref_slice %arg14[%c0_i32_126] : memref<2x!tpu.dma_semaphore, #tpu.memory_space<semaphore_mem>> -> memref<1x!tpu.dma_semaphore, #tpu.memory_space<semaphore_mem>>
    %208 = tpu.memref_squeeze %207 : memref<1x!tpu.dma_semaphore, #tpu.memory_space<semaphore_mem>> -> memref<!tpu.dma_semaphore, #tpu.memory_space<semaphore_mem>>
    tpu.enqueue_dma source(%204 : memref<256x256xbf16, #tpu.memory_space<any>>) target(%206 : memref<256x256xbf16, #tpu.memory_space<vmem>>) target_semaphore(%208 : memref<!tpu.dma_semaphore, #tpu.memory_space<semaphore_mem>>)
    %c0_i32_130 = arith.constant 0 : i32
    %c2_i32_131 = arith.constant 2 : i32
    %209 = arith.remsi %c0_i32_130, %c2_i32_131 : i32
    %c2_i32_132 = arith.constant 2 : i32
    %210 = arith.addi %c0_i32_130, %c2_i32_132 : i32
    %c1_i32_133 = arith.constant 1 : i32
    %211 = arith.subi %210, %c1_i32_133 : i32
    %c1_i32_134 = arith.constant 1 : i32
    %212 = arith.cmpi slt, %211, %c1_i32_134 : i32
    %213 = arith.extui %212 : i1 to i32
    %c0_i32_135 = arith.constant 0 : i32
    %214 = arith.cmpi ne, %213, %c0_i32_135 : i32
    scf.if %214 {
      %c2_i32_152 = arith.constant 2 : i32
      %258 = arith.remsi %211, %c2_i32_152 : i32
      %c256_i32_153 = arith.constant 256 : i32
      %259 = arith.muli %211, %c256_i32_153 : i32
      %260 = tpu.assume_multiple %259, 256 : i32
      %c0_i32_154 = arith.constant 0 : i32
      %261 = tpu.memref_slice %arg11[%arg0, %260, %c0_i32_154] : memref<2x256x256xbf16, #tpu.memory_space<any>> -> memref<1x256x256xbf16, #tpu.memory_space<any>>
      %262 = tpu.memref_squeeze %261 : memref<1x256x256xbf16, #tpu.memory_space<any>> -> memref<256x256xbf16, #tpu.memory_space<any>>
      %c0_i32_155 = arith.constant 0 : i32
      %c0_i32_156 = arith.constant 0 : i32
      %263 = tpu.memref_slice %arg13[%258, %c0_i32_155, %c0_i32_156] : memref<2x256x256xbf16, #tpu.memory_space<vmem>> -> memref<1x256x256xbf16, #tpu.memory_space<vmem>>
      %264 = tpu.memref_squeeze %263 : memref<1x256x256xbf16, #tpu.memory_space<vmem>> -> memref<256x256xbf16, #tpu.memory_space<vmem>>
      %265 = tpu.memref_slice %arg14[%258] : memref<2x!tpu.dma_semaphore, #tpu.memory_space<semaphore_mem>> -> memref<1x!tpu.dma_semaphore, #tpu.memory_space<semaphore_mem>>
      %266 = tpu.memref_squeeze %265 : memref<1x!tpu.dma_semaphore, #tpu.memory_space<semaphore_mem>> -> memref<!tpu.dma_semaphore, #tpu.memory_space<semaphore_mem>>
      tpu.enqueue_dma source(%262 : memref<256x256xbf16, #tpu.memory_space<any>>) target(%264 : memref<256x256xbf16, #tpu.memory_space<vmem>>) target_semaphore(%266 : memref<!tpu.dma_semaphore, #tpu.memory_space<semaphore_mem>>)
    } else {
    }
    %c256_i32_136 = arith.constant 256 : i32
    %215 = arith.muli %c0_i32_130, %c256_i32_136 : i32
    %216 = tpu.assume_multiple %215, 256 : i32
    %c0_i32_137 = arith.constant 0 : i32
    %217 = tpu.memref_slice %arg11[%arg0, %216, %c0_i32_137] : memref<2x256x256xbf16, #tpu.memory_space<any>> -> memref<1x256x256xbf16, #tpu.memory_space<any>>
    %218 = tpu.memref_squeeze %217 : memref<1x256x256xbf16, #tpu.memory_space<any>> -> memref<256x256xbf16, #tpu.memory_space<any>>
    %c0_i32_138 = arith.constant 0 : i32
    %c0_i32_139 = arith.constant 0 : i32
    %219 = tpu.memref_slice %arg13[%209, %c0_i32_138, %c0_i32_139] : memref<2x256x256xbf16, #tpu.memory_space<vmem>> -> memref<1x256x256xbf16, #tpu.memory_space<vmem>>
    %220 = tpu.memref_squeeze %219 : memref<1x256x256xbf16, #tpu.memory_space<vmem>> -> memref<256x256xbf16, #tpu.memory_space<vmem>>
    %221 = tpu.memref_slice %arg14[%209] : memref<2x!tpu.dma_semaphore, #tpu.memory_space<semaphore_mem>> -> memref<1x!tpu.dma_semaphore, #tpu.memory_space<semaphore_mem>>
    %222 = tpu.memref_squeeze %221 : memref<1x!tpu.dma_semaphore, #tpu.memory_space<semaphore_mem>> -> memref<!tpu.dma_semaphore, #tpu.memory_space<semaphore_mem>>
    tpu.wait_dma2 semaphore(%222 : memref<!tpu.dma_semaphore, #tpu.memory_space<semaphore_mem>>) src(%218 : memref<256x256xbf16, #tpu.memory_space<any>>) dst(%220 : memref<256x256xbf16, #tpu.memory_space<vmem>>)
    %c256_i32_140 = arith.constant 256 : i32
    %223 = arith.muli %c0_i32_130, %c256_i32_140 : i32
    %224 = tpu.assume_multiple %223, 256 : i32
    %225 = arith.index_cast %209 : i32 to index
    %c0_141 = arith.constant 0 : index
    %c0_142 = arith.constant 0 : index
    %226 = vector.load %arg13[%225, %c0_141, %c0_142] : memref<2x256x256xbf16, #tpu.memory_space<vmem>>, vector<1x256x256xbf16>
    %227 = vector.shape_cast %226 : vector<1x256x256xbf16> to vector<256x256xbf16>
    %cst_143 = arith.constant dense<0.000000e+00> : vector<256x16xf32>
    %228 = tpu.matmul %227, %201, %cst_143 {dimension_numbers = #tpu.dot_dimension_numbers<[1], [0], [0], [1], [0, 0, 1, 1], [], []>} : vector<256x256xbf16>, vector<256x16xbf16>, vector<256x16xf32> -> vector<256x16xf32>
    %229 = arith.addf %228, %200 : vector<256x16xf32>
    %230 = arith.mulf %229, %229 : vector<256x16xf32>
    %cst_144 = arith.constant 0.000000e+00 : f32
    %231 = vector.shape_cast %4 : vector<1x16xi1> to vector<1x16xi1>
    %232 = vector.broadcast %231 : vector<1x16xi1> to vector<256x16xi1>
    %233 = vector.broadcast %cst_144 : f32 to vector<256x16xf32>
    %234 = arith.select %232, %230, %233 : vector<256x16xi1>, vector<256x16xf32>
    %cst_145 = arith.constant dense<0.000000e+00> : vector<256xf32>
    %235 = vector.multi_reduction <add>, %234, %cst_145 [1] : vector<256x16xf32> to vector<256xf32>
    %236 = vector.shape_cast %235 : vector<256xf32> to vector<256x1xf32>
    %cst_146 = arith.constant dense<0.000000e+00> : vector<256xf32>
    %237 = vector.multi_reduction <add>, %230, %cst_146 [1] : vector<256x16xf32> to vector<256xf32>
    %238 = vector.shape_cast %237 : vector<256xf32> to vector<256x1xf32>
    %239 = arith.subf %238, %236 : vector<256x1xf32>
    %cst_147 = arith.constant 1.000000e-24 : f32
    %240 = vector.broadcast %cst_147 : f32 to vector<256x1xf32>
    %241 = arith.maximumf %236, %240 : vector<256x1xf32>
    %242 = math.rsqrt %241 : vector<256x1xf32>
    %cst_148 = arith.constant 1.000000e-24 : f32
    %243 = vector.broadcast %cst_148 : f32 to vector<256x1xf32>
    %244 = arith.maximumf %239, %243 : vector<256x1xf32>
    %245 = math.rsqrt %244 : vector<256x1xf32>
    %246 = vector.shape_cast %4 : vector<1x16xi1> to vector<1x16xi1>
    %247 = vector.broadcast %246 : vector<1x16xi1> to vector<256x16xi1>
    %248 = vector.shape_cast %242 : vector<256x1xf32> to vector<256x1xf32>
    %249 = vector.broadcast %248 : vector<256x1xf32> to vector<256x16xf32>
    %250 = vector.shape_cast %245 : vector<256x1xf32> to vector<256x1xf32>
    %251 = vector.broadcast %250 : vector<256x1xf32> to vector<256x16xf32>
    %252 = arith.select %247, %249, %251 : vector<256x16xi1>, vector<256x16xf32>
    %253 = arith.mulf %229, %252 : vector<256x16xf32>
    %c0_149 = arith.constant 0 : index
    %254 = arith.index_cast %224 : i32 to index
    %c0_150 = arith.constant 0 : index
    %255 = vector.load %arg12[%c0_149, %254, %c0_150] : memref<1x256x16xf32, #tpu.memory_space<vmem>>, vector<1x256x16xf32>
    %256 = vector.shape_cast %255 : vector<1x256x16xf32> to vector<256x16xf32>
    %257 = vector.shape_cast %253 : vector<256x16xf32> to vector<1x256x16xf32>
    tpu.vector_store %arg12[%c0_149, %254, %c0_150], %257 {strides = array<i32>} : memref<1x256x16xf32, #tpu.memory_space<vmem>>, vector<1x256x16xf32>,
    %c1_i32_151 = arith.constant 1 : i32
    return
  }
  func.func @transform_0(%arg0: i32) -> (i32, i32) {
    %c0_i32 = arith.constant 0 : i32
    %c0_i32_0 = arith.constant 0 : i32
    %c0_i32_1 = arith.constant 0 : i32
    return %c0_i32, %c0_i32_0 : i32, i32
  }
  func.func @transform_1(%arg0: i32) -> (i32, i32, i32) {
    %c0_i32 = arith.constant 0 : i32
    %c0_i32_0 = arith.constant 0 : i32
    %c0_i32_1 = arith.constant 0 : i32
    return %arg0, %c0_i32, %c0_i32_0 : i32, i32, i32
  }
  func.func @transform_2(%arg0: i32) -> (i32, i32, i32) {
    %c0_i32 = arith.constant 0 : i32
    %c0_i32_0 = arith.constant 0 : i32
    %c0_i32_1 = arith.constant 0 : i32
    return %arg0, %c0_i32, %c0_i32_0 : i32, i32, i32
  }
  func.func @transform_3(%arg0: i32) -> (i32, i32, i32) {
    %c0_i32 = arith.constant 0 : i32
    %c0_i32_0 = arith.constant 0 : i32
    %c0_i32_1 = arith.constant 0 : i32
    return %arg0, %c0_i32, %c0_i32_0 : i32, i32, i32
  }
  func.func @transform_4(%arg0: i32) -> (i32, i32, i32) {
    %c0_i32 = arith.constant 0 : i32
    %c0_i32_0 = arith.constant 0 : i32
    %c0_i32_1 = arith.constant 0 : i32
    return %arg0, %c0_i32, %c0_i32_0 : i32, i32, i32
  }
  func.func @transform_5(%arg0: i32) -> (i32, i32, i32) {
    %c0_i32 = arith.constant 0 : i32
    %c0_i32_0 = arith.constant 0 : i32
    %c0_i32_1 = arith.constant 0 : i32
    return %arg0, %c0_i32, %c0_i32_0 : i32, i32, i32
  }
  func.func @transform_6(%arg0: i32) -> (i32, i32, i32) {
    %c0_i32 = arith.constant 0 : i32
    %c0_i32_0 = arith.constant 0 : i32
    %c0_i32_1 = arith.constant 0 : i32
    return %arg0, %c0_i32, %c0_i32_0 : i32, i32, i32
  }
  func.func @transform_7(%arg0: i32) -> (i32, i32, i32) {
    %c0_i32 = arith.constant 0 : i32
    %c0_i32_0 = arith.constant 0 : i32
    %c0_i32_1 = arith.constant 0 : i32
    return %arg0, %c0_i32, %c0_i32_0 : i32, i32, i32
  }
  func.func @transform_8(%arg0: i32) -> (i32, i32, i32) {
    %c0_i32 = arith.constant 0 : i32
    %c0_i32_0 = arith.constant 0 : i32
    %c0_i32_1 = arith.constant 0 : i32
    return %arg0, %c0_i32, %c0_i32_0 : i32, i32, i32
  }
  func.func @transform_9(%arg0: i32) -> (i32, i32, i32) {
    %c0_i32 = arith.constant 0 : i32
    %c0_i32_0 = arith.constant 0 : i32
    %c0_i32_1 = arith.constant 0 : i32
    return %arg0, %c0_i32, %c0_i32_0 : i32, i32, i32
  }
  func.func @transform_11(%arg0: i32) -> (i32, i32, i32) {
    %c0_i32 = arith.constant 0 : i32
    %c0_i32_0 = arith.constant 0 : i32
    %c0_i32_1 = arith.constant 0 : i32
    return %arg0, %c0_i32, %c0_i32_0 : i32, i32, i32
  }
}

</mosaic_0001>

<llo_original>
// kernel: split.22
$region0: #{split.22}
  #allocation0 [shape = 'u32[2048]{0}', space=vmem, size = 0x2000, scoped, tag = 'scoped memory for split.22']
  #allocation1 [shape = 'u32[2048]{0}', space=vmem, size = 0x2000, scoped, tag = 'scoped memory for split.22']
  #allocation2 [shape = 'u32[2048]{0}', space=vmem, size = 0x2000, scoped, tag = 'scoped memory for split.22']
  #allocation3 [shape = 'u32[2048]{0}', space=vmem, size = 0x2000, scoped, tag = 'scoped memory for split.22']
  #allocation4 [shape = 'u32[2048]{0}', space=vmem, size = 0x2000, scoped, tag = 'scoped memory for split.22']
  #allocation5 [shape = 's32[1]{0}', space=sflag, size = 0x4, scoped, tag = 'scoped memory for split.22']
  %s0 = inlined_call_operand.vmem [shape: f32[48,16], index: 0, kind: input, shape index: {}]
  %s1 = inlined_call_operand.vmem [shape: bf16[32,16], index: 1, kind: output, shape index: {}]
  %v2 = vld [vmem:[%s0] sm:$0xff]
  %v3 = vpack.c.bf16 0.0, %v2
  %4 = vst [vmem:[%s1] sm:$0xf] %v3
  %s5 = scalar_lea.vmem %s0, 8
  %v6 = vld [vmem:[%s5] sm:$0xff]
  %s7 = scalar_lea.vmem %s1, 4
  %v8 = vpack.c.bf16 0.0, %v6
  %9 = vst [vmem:[%s7] sm:$0xf] %v8

// kernel: split.27
$region0: #{split.27}
  #allocation0 [shape = 'u32[2048]{0}', space=vmem, size = 0x2000, scoped, tag = 'scoped memory for split.27']
  #allocation1 [shape = 'u32[2048]{0}', space=vmem, size = 0x2000, scoped, tag = 'scoped memory for split.27']
  #allocation2 [shape = 'u32[2048]{0}', space=vmem, size = 0x2000, scoped, tag = 'scoped memory for split.27']
  #allocation3 [shape = 'u32[2048]{0}', space=vmem, size = 0x2000, scoped, tag = 'scoped memory for split.27']
  #allocation4 [shape = 'u32[2048]{0}', space=vmem, size = 0x2000, scoped, tag = 'scoped memory for split.27']
  #allocation5 [shape = 's32[1]{0}', space=sflag, size = 0x4, scoped, tag = 'scoped memory for split.27']
  %s0 = inlined_call_operand.vmem [shape: f32[64,8], index: 0, kind: input, shape index: {}]
  %s1 = inlined_call_operand.vmem [shape: bf16[32,8], index: 1, kind: output, shape index: {}]
  %v2 = vld [vmem:[%s0] sm:$0xff]
  %v3 = vpack.c.bf16 0.0, %v2
  %4 = vst [vmem:[%s1] sm:$0xf] %v3

// kernel: split.23
$region0: #{split.23}
  #allocation0 [shape = 'u32[2048]{0}', space=vmem, size = 0x2000, scoped, tag = 'scoped memory for split.23']
  #allocation1 [shape = 'u32[2048]{0}', space=vmem, size = 0x2000, scoped, tag = 'scoped memory for split.23']
  #allocation2 [shape = 'u32[2048]{0}', space=vmem, size = 0x2000, scoped, tag = 'scoped memory for split.23']
  #allocation3 [shape = 'u32[2048]{0}', space=vmem, size = 0x2000, scoped, tag = 'scoped memory for split.23']
  #allocation4 [shape = 'u32[2048]{0}', space=vmem, size = 0x2000, scoped, tag = 'scoped memory for split.23']
  #allocation5 [shape = 's32[1]{0}', space=sflag, size = 0x4, scoped, tag = 'scoped memory for split.23']
  %s0 = inlined_call_operand.vmem [shape: f32[48,16], index: 0, kind: input, shape index: {}]
  %s1 = inlined_call_operand.vmem [shape: bf16[16,16], index: 1, kind: output, shape index: {}]
  %v2 = vld [vmem:[%s0] sm:$0xff]
  %v3 = vlaneseq
  %v4 = vand.u32 %v3, 127
  %vm5 = vcmp.lt.s32.totalorder %v4, 32
  %v6 = vsel %vm5, 0, %v2
  %7 = vrot.lane.b32.xlu0 %v6, 96
  %v8 = vpop.permute.xlu0 %7
  %v9 = vpack.i.bf16 %v8, 0.0
  %v10 = vpack.c.bf16 0.0, %v9
  %11 = vst [vmem:[%s1] sm:$0xf] %v10
  %s12 = scalar_lea.vmem %s0, 8
  %v13 = vld [vmem:[%s12] sm:$0xff]
  %v14 = vlaneseq
  %v15 = vand.u32 %v14, 127
  %vm16 = vcmp.lt.s32.totalorder %v15, 32
  %v17 = vsel %vm16, 0, %v13
  %18 = vrot.lane.b32.xlu0 %v17, 96
  %v19 = vpop.permute.xlu0 %18
  %v20 = vpack.i.bf16 %v19, 0.0
  %s21 = scalar_lea.vmem %s1, 4
  %v22 = vpack.c.bf16 0.0, %v20
  %23 = vst [vmem:[%s21] sm:$0xf] %v22

// kernel: split.12
$region0: #{split.12}
  #allocation0 [shape = 'u32[2048]{0}', space=vmem, size = 0x2000, scoped, tag = 'scoped memory for split.12']
  #allocation1 [shape = 'u32[2048]{0}', space=vmem, size = 0x2000, scoped, tag = 'scoped memory for split.12']
  #allocation2 [shape = 'u32[2048]{0}', space=vmem, size = 0x2000, scoped, tag = 'scoped memory for split.12']
  #allocation3 [shape = 'u32[2048]{0}', space=vmem, size = 0x2000, scoped, tag = 'scoped memory for split.12']
  #allocation4 [shape = 'u32[2048]{0}', space=vmem, size = 0x2000, scoped, tag = 'scoped memory for split.12']
  #allocation5 [shape = 's32[1]{0}', space=sflag, size = 0x4, scoped, tag = 'scoped memory for split.12']
  %s0 = inlined_call_operand.vmem [shape: bf16[48,16], index: 0, kind: input, shape index: {}]
  %s1 = inlined_call_operand.vmem [shape: bf16[16,16], index: 1, kind: output, shape index: {}]
  %s2 = scalar_lea.vmem %s0, 16
  %s3 = scalar_lea.vmem %s0, 16
  %s4 = scalar_lea.vmem %s0, 16
  %v5 = vld [vmem:[%s4] sm:$0xf]
  %v6 = vunpack.c.l.bf16 %v5
  %v7 = vunpack.c.h.bf16 %v5
  %v8 = vpack.c.bf16 0.0, %v6
  %9 = vst [vmem:[%s1] sm:$0xf] %v8
  %s10 = scalar_lea.vmem %s4, 4
  %v11 = vld [vmem:[%s10] sm:$0xf]
  %v12 = vunpack.c.l.bf16 %v11
  %v13 = vunpack.c.h.bf16 %v11
  %s14 = scalar_lea.vmem %s1, 4
  %v15 = vpack.c.bf16 0.0, %v12
  %16 = vst [vmem:[%s14] sm:$0xf] %v15

// kernel: globalnet_forward.3
$region0: #{globalnet_forward.3}
  #allocation0 [shape = 'u32[]', space=smem, size = 0x4, offset = 0x4, fixed_abs, tag = 'smem constant byte address 0x4 - core index']
  #allocation1 [shape = 'u32[144,128]{1,0:T(1,128)}', space=vmem, size = 0x12000, scoped, tag = 'internal scratch']
  %s0 = inlined_call_operand.vmem [shape: f32[2,256,16], index: 0, kind: input, shape index: {}]
  %s1 = inlined_call_operand.vmem [shape: f32[2,8], index: 1, kind: input, shape index: {}]
  %s2 = inlined_call_operand.vmem [shape: f32[1,2], index: 2, kind: input, shape index: {}]
  %s3 = inlined_call_operand.vmem [shape: f32[1,2], index: 3, kind: input, shape index: {}]
  %s4 = inlined_call_operand.vmem [shape: f32[8,4], index: 4, kind: input, shape index: {}]
  %s5 = inlined_call_operand.vmem [shape: f32[1,4], index: 5, kind: input, shape index: {}]
  %s6 = inlined_call_operand.vmem [shape: f32[256,128], index: 6, kind: output, shape index: {}]
  %s7 = sld [smem:[#allocation0]]
  $region34: #{globalnet_forward.3} parent=0
    _
  %s9 = ssub.s32 1, %s7
  %s10 = scalar_select 0, %s9, %s7
  // Predicated region
  $region2: #{globalnet_forward.3} parent=0 // pred_check
    _
  $region3: #{globalnet_forward.3} parent=0 // pred_check_branch
    %12 = sbr.rel (0) target = $region5
  $region4: #{globalnet_forward.3} parent=0 // pred_region
    _
  $region5: #{globalnet_forward.3} parent=0 // pred_fallthru
    _
  // Predicated region
  $region6: #{globalnet_forward.3} parent=0 // pred_check
    _
  $region7: #{globalnet_forward.3} parent=0 // pred_check_branch
    %14 = sbr.rel (0) target = $region9
  $region8: #{globalnet_forward.3} parent=0 // pred_region
    _
  $region9: #{globalnet_forward.3} parent=0 // pred_fallthru
    _
  // Predicated region
  $region10: #{globalnet_forward.3} parent=0 // pred_check
    _
  $region11: #{globalnet_forward.3} parent=0 // pred_check_branch
    %16 = sbr.rel (0) target = $region13
  $region12: #{globalnet_forward.3} parent=0 // pred_region
    _
  $region13: #{globalnet_forward.3} parent=0 // pred_fallthru
    _
  // Predicated region
  $region14: #{globalnet_forward.3} parent=0 // pred_check
    _
  $region15: #{globalnet_forward.3} parent=0 // pred_check_branch
    %18 = sbr.rel (0) target = $region17
  $region16: #{globalnet_forward.3} parent=0 // pred_region
    _
  $region17: #{globalnet_forward.3} parent=0 // pred_fallthru
    _
  // Predicated region
  $region18: #{globalnet_forward.3} parent=0 // pred_check
    _
  $region19: #{globalnet_forward.3} parent=0 // pred_check_branch
    %20 = sbr.rel (0) target = $region21
  $region20: #{globalnet_forward.3} parent=0 // pred_region
    _
  $region21: #{globalnet_forward.3} parent=0 // pred_fallthru
    _
  // Predicated region
  $region22: #{globalnet_forward.3} parent=0 // pred_check
    _
  $region23: #{globalnet_forward.3} parent=0 // pred_check_branch
    %22 = sbr.rel (0) target = $region25
  $region24: #{globalnet_forward.3} parent=0 // pred_region
    _
  $region25: #{globalnet_forward.3} parent=0 // pred_fallthru
    _
  %v23 = vld [vmem:[%s0] sm:$0xff]
  %v24 = vld [vmem:[%s0 + $0x8] sm:$0xff]
  %v25 = vld [vmem:[%s0 + $0x10] sm:$0xff]
  %v26 = vld [vmem:[%s0 + $0x18] sm:$0xff]
  %v27 = vld [vmem:[%s0 + $0x20] sm:$0xff]
  %v28 = vld [vmem:[%s0 + $0x28] sm:$0xff]
  %v29 = vld [vmem:[%s0 + $0x30] sm:$0xff]
  %v30 = vld [vmem:[%s0 + $0x38] sm:$0xff]
  %v31 = vld [vmem:[%s0 + $0x40] sm:$0xff]
  %v32 = vld [vmem:[%s0 + $0x48] sm:$0xff]
  %v33 = vld [vmem:[%s0 + $0x50] sm:$0xff]
  %v34 = vld [vmem:[%s0 + $0x58] sm:$0xff]
  %v35 = vld [vmem:[%s0 + $0x60] sm:$0xff]
  %v36 = vld [vmem:[%s0 + $0x68] sm:$0xff]
  %v37 = vld [vmem:[%s0 + $0x70] sm:$0xff]
  %v38 = vld [vmem:[%s0 + $0x78] sm:$0xff]
  %v39 = vld [vmem:[%s0 + $0x80] sm:$0xff]
  %v40 = vld [vmem:[%s0 + $0x88] sm:$0xff]
  %v41 = vld [vmem:[%s0 + $0x90] sm:$0xff]
  %v42 = vld [vmem:[%s0 + $0x98] sm:$0xff]
  %v43 = vld [vmem:[%s0 + $0xa0] sm:$0xff]
  %v44 = vld [vmem:[%s0 + $0xa8] sm:$0xff]
  %v45 = vld [vmem:[%s0 + $0xb0] sm:$0xff]
  %v46 = vld [vmem:[%s0 + $0xb8] sm:$0xff]
  %v47 = vld [vmem:[%s0 + $0xc0] sm:$0xff]
  %v48 = vld [vmem:[%s0 + $0xc8] sm:$0xff]
  %v49 = vld [vmem:[%s0 + $0xd0] sm:$0xff]
  %v50 = vld [vmem:[%s0 + $0xd8] sm:$0xff]
  %v51 = vld [vmem:[%s0 + $0xe0] sm:$0xff]
  %v52 = vld [vmem:[%s0 + $0xe8] sm:$0xff]
  %v53 = vld [vmem:[%s0 + $0xf0] sm:$0xff]
  %v54 = vld [vmem:[%s0 + $0xf8] sm:$0xff]
  %s55 = scalar_lea.vmem %s0, 256
  %v56 = vld [vmem:[%s55] sm:$0xff]
  %v57 = vld [vmem:[%s55 + $0x8] sm:$0xff]
  %v58 = vld [vmem:[%s55 + $0x10] sm:$0xff]
  %v59 = vld [vmem:[%s55 + $0x18] sm:$0xff]
  %v60 = vld [vmem:[%s55 + $0x20] sm:$0xff]
  %v61 = vld [vmem:[%s55 + $0x28] sm:$0xff]
  %v62 = vld [vmem:[%s55 + $0x30] sm:$0xff]
  %v63 = vld [vmem:[%s55 + $0x38] sm:$0xff]
  %v64 = vld [vmem:[%s55 + $0x40] sm:$0xff]
  %v65 = vld [vmem:[%s55 + $0x48] sm:$0xff]
  %v66 = vld [vmem:[%s55 + $0x50] sm:$0xff]
  %v67 = vld [vmem:[%s55 + $0x58] sm:$0xff]
  %v68 = vld [vmem:[%s55 + $0x60] sm:$0xff]
  %v69 = vld [vmem:[%s55 + $0x68] sm:$0xff]
  %v70 = vld [vmem:[%s55 + $0x70] sm:$0xff]
  %v71 = vld [vmem:[%s55 + $0x78] sm:$0xff]
  %v72 = vld [vmem:[%s55 + $0x80] sm:$0xff]
  %v73 = vld [vmem:[%s55 + $0x88] sm:$0xff]
  %v74 = vld [vmem:[%s55 + $0x90] sm:$0xff]
  %v75 = vld [vmem:[%s55 + $0x98] sm:$0xff]
  %v76 = vld [vmem:[%s55 + $0xa0] sm:$0xff]
  %v77 = vld [vmem:[%s55 + $0xa8] sm:$0xff]
  %v78 = vld [vmem:[%s55 + $0xb0] sm:$0xff]
  %v79 = vld [vmem:[%s55 + $0xb8] sm:$0xff]
  %v80 = vld [vmem:[%s55 + $0xc0] sm:$0xff]
  %v81 = vld [vmem:[%s55 + $0xc8] sm:$0xff]
  %v82 = vld [vmem:[%s55 + $0xd0] sm:$0xff]
  %v83 = vld [vmem:[%s55 + $0xd8] sm:$0xff]
  %v84 = vld [vmem:[%s55 + $0xe0] sm:$0xff]
  %v85 = vld [vmem:[%s55 + $0xe8] sm:$0xff]
  %v86 = vld [vmem:[%s55 + $0xf0] sm:$0xff]
  %v87 = vld [vmem:[%s55 + $0xf8] sm:$0xff]
  %v88 = vadd.f32 %v23, %v56
  %v89 = vadd.f32 %v24, %v57
  %v90 = vadd.f32 %v25, %v58
  %v91 = vadd.f32 %v26, %v59
  %v92 = vadd.f32 %v27, %v60
  %v93 = vadd.f32 %v28, %v61
  %v94 = vadd.f32 %v29, %v62
  %v95 = vadd.f32 %v30, %v63
  %v96 = vadd.f32 %v31, %v64
  %v97 = vadd.f32 %v32, %v65
  %v98 = vadd.f32 %v33, %v66
  %v99 = vadd.f32 %v34, %v67
  %v100 = vadd.f32 %v35, %v68
  %v101 = vadd.f32 %v36, %v69
  %v102 = vadd.f32 %v37, %v70
  %v103 = vadd.f32 %v38, %v71
  %v104 = vadd.f32 %v39, %v72
  %v105 = vadd.f32 %v40, %v73
  %v106 = vadd.f32 %v41, %v74
  %v107 = vadd.f32 %v42, %v75
  %v108 = vadd.f32 %v43, %v76
  %v109 = vadd.f32 %v44, %v77
  %v110 = vadd.f32 %v45, %v78
  %v111 = vadd.f32 %v46, %v79
  %v112 = vadd.f32 %v47, %v80
  %v113 = vadd.f32 %v48, %v81
  %v114 = vadd.f32 %v49, %v82
  %v115 = vadd.f32 %v50, %v83
  %v116 = vadd.f32 %v51, %v84
  %v117 = vadd.f32 %v52, %v85
  %v118 = vadd.f32 %v53, %v86
  %v119 = vadd.f32 %v54, %v87
  %v120 = vmul.f32 %v88, 0.5
  %v121 = vmul.f32 %v89, 0.5
  %v122 = vmul.f32 %v90, 0.5
  %v123 = vmul.f32 %v91, 0.5
  %v124 = vmul.f32 %v92, 0.5
  %v125 = vmul.f32 %v93, 0.5
  %v126 = vmul.f32 %v94, 0.5
  %v127 = vmul.f32 %v95, 0.5
  %v128 = vmul.f32 %v96, 0.5
  %v129 = vmul.f32 %v97, 0.5
  %v130 = vmul.f32 %v98, 0.5
  %v131 = vmul.f32 %v99, 0.5
  %v132 = vmul.f32 %v100, 0.5
  %v133 = vmul.f32 %v101, 0.5
  %v134 = vmul.f32 %v102, 0.5
  %v135 = vmul.f32 %v103, 0.5
  %v136 = vmul.f32 %v104, 0.5
  %v137 = vmul.f32 %v105, 0.5
  %v138 = vmul.f32 %v106, 0.5
  %v139 = vmul.f32 %v107, 0.5
  %v140 = vmul.f32 %v108, 0.5
  %v141 = vmul.f32 %v109, 0.5
  %v142 = vmul.f32 %v110, 0.5
  %v143 = vmul.f32 %v111, 0.5
  %v144 = vmul.f32 %v112, 0.5
  %v145 = vmul.f32 %v113, 0.5
  %v146 = vmul.f32 %v114, 0.5
  %v147 = vmul.f32 %v115, 0.5
  %v148 = vmul.f32 %v116, 0.5
  %v149 = vmul.f32 %v117, 0.5
  %v150 = vmul.f32 %v118, 0.5
  %v151 = vmul.f32 %v119, 0.5
  %v152 = vld [vmem:[%s1] sm:$0x3]
  %v153 = vlaneseq
  %v154 = vshrl.u32 %v153, 7
  %v155 = vsub.s32 0, %v154
  %v156 = vrot.slane %v152, %v155
  %v157 = vmul.f32 %v23, %v156
  %v158 = vmul.f32 %v24, %v156
  %v159 = vmul.f32 %v25, %v156
  %v160 = vmul.f32 %v26, %v156
  %v161 = vmul.f32 %v27, %v156
  %v162 = vmul.f32 %v28, %v156
  %v163 = vmul.f32 %v29, %v156
  %v164 = vmul.f32 %v30, %v156
  %v165 = vmul.f32 %v31, %v156
  %v166 = vmul.f32 %v32, %v156
  %v167 = vmul.f32 %v33, %v156
  %v168 = vmul.f32 %v34, %v156
  %v169 = vmul.f32 %v35, %v156
  %v170 = vmul.f32 %v36, %v156
  %v171 = vmul.f32 %v37, %v156
  %v172 = vmul.f32 %v38, %v156
  %v173 = vmul.f32 %v39, %v156
  %v174 = vmul.f32 %v40, %v156
  %v175 = vmul.f32 %v41, %v156
  %v176 = vmul.f32 %v42, %v156
  %v177 = vmul.f32 %v43, %v156
  %v178 = vmul.f32 %v44, %v156
  %v179 = vmul.f32 %v45, %v156
  %v180 = vmul.f32 %v46, %v156
  %v181 = vmul.f32 %v47, %v156
  %v182 = vmul.f32 %v48, %v156
  %v183 = vmul.f32 %v49, %v156
  %v184 = vmul.f32 %v50, %v156
  %v185 = vmul.f32 %v51, %v156
  %v186 = vmul.f32 %v52, %v156
  %v187 = vmul.f32 %v53, %v156
  %v188 = vmul.f32 %v54, %v156
  %vm189 = vcmask 64512
  %v190 = vsel %vm189, %v157, 0.0
  %191 = vadd.xlane.f32.xlu0 %v190
  %v192 = vpop.xlane.xlu0 %191
  %v193 = vsel %vm189, %v158, 0.0
  %194 = vadd.xlane.f32.xlu0 %v193
  %v195 = vpop.xlane.xlu0 %194
  %v196 = vsel %vm189, %v159, 0.0
  %197 = vadd.xlane.f32.xlu0 %v196
  %v198 = vpop.xlane.xlu0 %197
  %v199 = vsel %vm189, %v160, 0.0
  %200 = vadd.xlane.f32.xlu0 %v199
  %v201 = vpop.xlane.xlu0 %200
  %v202 = vsel %vm189, %v161, 0.0
  %203 = vadd.xlane.f32.xlu0 %v202
  %v204 = vpop.xlane.xlu0 %203
  %v205 = vsel %vm189, %v162, 0.0
  %206 = vadd.xlane.f32.xlu0 %v205
  %v207 = vpop.xlane.xlu0 %206
  %v208 = vsel %vm189, %v163, 0.0
  %209 = vadd.xlane.f32.xlu0 %v208
  %v210 = vpop.xlane.xlu0 %209
  %v211 = vsel %vm189, %v164, 0.0
  %212 = vadd.xlane.f32.xlu0 %v211
  %v213 = vpop.xlane.xlu0 %212
  %v214 = vsel %vm189, %v165, 0.0
  %215 = vadd.xlane.f32.xlu0 %v214
  %v216 = vpop.xlane.xlu0 %215
  %v217 = vsel %vm189, %v166, 0.0
  %218 = vadd.xlane.f32.xlu0 %v217
  %v219 = vpop.xlane.xlu0 %218
  %v220 = vsel %vm189, %v167, 0.0
  %221 = vadd.xlane.f32.xlu0 %v220
  %v222 = vpop.xlane.xlu0 %221
  %v223 = vsel %vm189, %v168, 0.0
  %224 = vadd.xlane.f32.xlu0 %v223
  %v225 = vpop.xlane.xlu0 %224
  %v226 = vsel %vm189, %v169, 0.0
  %227 = vadd.xlane.f32.xlu0 %v226
  %v228 = vpop.xlane.xlu0 %227
  %v229 = vsel %vm189, %v170, 0.0
  %230 = vadd.xlane.f32.xlu0 %v229
  %v231 = vpop.xlane.xlu0 %230
  %v232 = vsel %vm189, %v171, 0.0
  %233 = vadd.xlane.f32.xlu0 %v232
  %v234 = vpop.xlane.xlu0 %233
  %v235 = vsel %vm189, %v172, 0.0
  %236 = vadd.xlane.f32.xlu0 %v235
  %v237 = vpop.xlane.xlu0 %236
  %v238 = vsel %vm189, %v173, 0.0
  %239 = vadd.xlane.f32.xlu0 %v238
  %v240 = vpop.xlane.xlu0 %239
  %v241 = vsel %vm189, %v174, 0.0
  %242 = vadd.xlane.f32.xlu0 %v241
  %v243 = vpop.xlane.xlu0 %242
  %v244 = vsel %vm189, %v175, 0.0
  %245 = vadd.xlane.f32.xlu0 %v244
  %v246 = vpop.xlane.xlu0 %245
  %v247 = vsel %vm189, %v176, 0.0
  %248 = vadd.xlane.f32.xlu0 %v247
  %v249 = vpop.xlane.xlu0 %248
  %v250 = vsel %vm189, %v177, 0.0
  %251 = vadd.xlane.f32.xlu0 %v250
  %v252 = vpop.xlane.xlu0 %251
  %v253 = vsel %vm189, %v178, 0.0
  %254 = vadd.xlane.f32.xlu0 %v253
  %v255 = vpop.xlane.xlu0 %254
  %v256 = vsel %vm189, %v179, 0.0
  %257 = vadd.xlane.f32.xlu0 %v256
  %v258 = vpop.xlane.xlu0 %257
  %v259 = vsel %vm189, %v180, 0.0
  %260 = vadd.xlane.f32.xlu0 %v259
  %v261 = vpop.xlane.xlu0 %260
  %v262 = vsel %vm189, %v181, 0.0
  %263 = vadd.xlane.f32.xlu0 %v262
  %v264 = vpop.xlane.xlu0 %263
  %v265 = vsel %vm189, %v182, 0.0
  %266 = vadd.xlane.f32.xlu0 %v265
  %v267 = vpop.xlane.xlu0 %266
  %v268 = vsel %vm189, %v183, 0.0
  %269 = vadd.xlane.f32.xlu0 %v268
  %v270 = vpop.xlane.xlu0 %269
  %v271 = vsel %vm189, %v184, 0.0
  %272 = vadd.xlane.f32.xlu0 %v271
  %v273 = vpop.xlane.xlu0 %272
  %v274 = vsel %vm189, %v185, 0.0
  %275 = vadd.xlane.f32.xlu0 %v274
  %v276 = vpop.xlane.xlu0 %275
  %v277 = vsel %vm189, %v186, 0.0
  %278 = vadd.xlane.f32.xlu0 %v277
  %v279 = vpop.xlane.xlu0 %278
  %v280 = vsel %vm189, %v187, 0.0
  %281 = vadd.xlane.f32.xlu0 %v280
  %v282 = vpop.xlane.xlu0 %281
  %v283 = vsel %vm189, %v188, 0.0
  %284 = vadd.xlane.f32.xlu0 %v283
  %v285 = vpop.xlane.xlu0 %284
  %v286 = vlaneseq
  %v287 = vshrl.u32 %v286, 7
  %v288 = vsub.s32 1, %v287
  %v289 = vrot.slane %v152, %v288
  %v290 = vmul.f32 %v23, %v289
  %v291 = vmul.f32 %v24, %v289
  %v292 = vmul.f32 %v25, %v289
  %v293 = vmul.f32 %v26, %v289
  %v294 = vmul.f32 %v27, %v289
  %v295 = vmul.f32 %v28, %v289
  %v296 = vmul.f32 %v29, %v289
  %v297 = vmul.f32 %v30, %v289
  %v298 = vmul.f32 %v31, %v289
  %v299 = vmul.f32 %v32, %v289
  %v300 = vmul.f32 %v33, %v289
  %v301 = vmul.f32 %v34, %v289
  %v302 = vmul.f32 %v35, %v289
  %v303 = vmul.f32 %v36, %v289
  %v304 = vmul.f32 %v37, %v289
  %v305 = vmul.f32 %v38, %v289
  %v306 = vmul.f32 %v39, %v289
  %v307 = vmul.f32 %v40, %v289
  %v308 = vmul.f32 %v41, %v289
  %v309 = vmul.f32 %v42, %v289
  %v310 = vmul.f32 %v43, %v289
  %v311 = vmul.f32 %v44, %v289
  %v312 = vmul.f32 %v45, %v289
  %v313 = vmul.f32 %v46, %v289
  %v314 = vmul.f32 %v47, %v289
  %v315 = vmul.f32 %v48, %v289
  %v316 = vmul.f32 %v49, %v289
  %v317 = vmul.f32 %v50, %v289
  %v318 = vmul.f32 %v51, %v289
  %v319 = vmul.f32 %v52, %v289
  %v320 = vmul.f32 %v53, %v289
  %v321 = vmul.f32 %v54, %v289
  %v322 = vsel %vm189, %v290, 0.0
  %323 = vadd.xlane.f32.xlu0 %v322
  %v324 = vpop.xlane.xlu0 %323
  %v325 = vsel %vm189, %v291, 0.0
  %326 = vadd.xlane.f32.xlu0 %v325
  %v327 = vpop.xlane.xlu0 %326
  %v328 = vsel %vm189, %v292, 0.0
  %329 = vadd.xlane.f32.xlu0 %v328
  %v330 = vpop.xlane.xlu0 %329
  %v331 = vsel %vm189, %v293, 0.0
  %332 = vadd.xlane.f32.xlu0 %v331
  %v333 = vpop.xlane.xlu0 %332
  %v334 = vsel %vm189, %v294, 0.0
  %335 = vadd.xlane.f32.xlu0 %v334
  %v336 = vpop.xlane.xlu0 %335
  %v337 = vsel %vm189, %v295, 0.0
  %338 = vadd.xlane.f32.xlu0 %v337
  %v339 = vpop.xlane.xlu0 %338
  %v340 = vsel %vm189, %v296, 0.0
  %341 = vadd.xlane.f32.xlu0 %v340
  %v342 = vpop.xlane.xlu0 %341
  %v343 = vsel %vm189, %v297, 0.0
  %344 = vadd.xlane.f32.xlu0 %v343
  %v345 = vpop.xlane.xlu0 %344
  %v346 = vsel %vm189, %v298, 0.0
  %347 = vadd.xlane.f32.xlu0 %v346
  %v348 = vpop.xlane.xlu0 %347
  %v349 = vsel %vm189, %v299, 0.0
  %350 = vadd.xlane.f32.xlu0 %v349
  %v351 = vpop.xlane.xlu0 %350
  %v352 = vsel %vm189, %v300, 0.0
  %353 = vadd.xlane.f32.xlu0 %v352
  %v354 = vpop.xlane.xlu0 %353
  %v355 = vsel %vm189, %v301, 0.0
  %356 = vadd.xlane.f32.xlu0 %v355
  %v357 = vpop.xlane.xlu0 %356
  %v358 = vsel %vm189, %v302, 0.0
  %359 = vadd.xlane.f32.xlu0 %v358
  %v360 = vpop.xlane.xlu0 %359
  %v361 = vsel %vm189, %v303, 0.0
  %362 = vadd.xlane.f32.xlu0 %v361
  %v363 = vpop.xlane.xlu0 %362
  %v364 = vsel %vm189, %v304, 0.0
  %365 = vadd.xlane.f32.xlu0 %v364
  %v366 = vpop.xlane.xlu0 %365
  %v367 = vsel %vm189, %v305, 0.0
  %368 = vadd.xlane.f32.xlu0 %v367
  %v369 = vpop.xlane.xlu0 %368
  %v370 = vsel %vm189, %v306, 0.0
  %371 = vadd.xlane.f32.xlu0 %v370
  %v372 = vpop.xlane.xlu0 %371
  %v373 = vsel %vm189, %v307, 0.0
  %374 = vadd.xlane.f32.xlu0 %v373
  %v375 = vpop.xlane.xlu0 %374
  %v376 = vsel %vm189, %v308, 0.0
  %377 = vadd.xlane.f32.xlu0 %v376
  %v378 = vpop.xlane.xlu0 %377
  %v379 = vsel %vm189, %v309, 0.0
  %380 = vadd.xlane.f32.xlu0 %v379
  %v381 = vpop.xlane.xlu0 %380
  %v382 = vsel %vm189, %v310, 0.0
  %383 = vadd.xlane.f32.xlu0 %v382
  %v384 = vpop.xlane.xlu0 %383
  %v385 = vsel %vm189, %v311, 0.0
  %386 = vadd.xlane.f32.xlu0 %v385
  %v387 = vpop.xlane.xlu0 %386
  %v388 = vsel %vm189, %v312, 0.0
  %389 = vadd.xlane.f32.xlu0 %v388
  %v390 = vpop.xlane.xlu0 %389
  %v391 = vsel %vm189, %v313, 0.0
  %392 = vadd.xlane.f32.xlu0 %v391
  %v393 = vpop.xlane.xlu0 %392
  %v394 = vsel %vm189, %v314, 0.0
  %395 = vadd.xlane.f32.xlu0 %v394
  %v396 = vpop.xlane.xlu0 %395
  %v397 = vsel %vm189, %v315, 0.0
  %398 = vadd.xlane.f32.xlu0 %v397
  %v399 = vpop.xlane.xlu0 %398
  %v400 = vsel %vm189, %v316, 0.0
  %401 = vadd.xlane.f32.xlu0 %v400
  %v402 = vpop.xlane.xlu0 %401
  %v403 = vsel %vm189, %v317, 0.0
  %404 = vadd.xlane.f32.xlu0 %v403
  %v405 = vpop.xlane.xlu0 %404
  %v406 = vsel %vm189, %v318, 0.0
  %407 = vadd.xlane.f32.xlu0 %v406
  %v408 = vpop.xlane.xlu0 %407
  %v409 = vsel %vm189, %v319, 0.0
  %410 = vadd.xlane.f32.xlu0 %v409
  %v411 = vpop.xlane.xlu0 %410
  %v412 = vsel %vm189, %v320, 0.0
  %413 = vadd.xlane.f32.xlu0 %v412
  %v414 = vpop.xlane.xlu0 %413
  %v415 = vsel %vm189, %v321, 0.0
  %416 = vadd.xlane.f32.xlu0 %v415
  %v417 = vpop.xlane.xlu0 %416
  %vm418 = vcmask 7168
  %v419 = vsel %vm418, %v192, %v324
  %v420 = vsel %vm418, %v195, %v327
  %v421 = vsel %vm418, %v198, %v330
  %v422 = vsel %vm418, %v201, %v333
  %v423 = vsel %vm418, %v204, %v336
  %v424 = vsel %vm418, %v207, %v339
  %v425 = vsel %vm418, %v210, %v342
  %v426 = vsel %vm418, %v213, %v345
  %v427 = vsel %vm418, %v216, %v348
  %v428 = vsel %vm418, %v219, %v351
  %v429 = vsel %vm418, %v222, %v354
  %v430 = vsel %vm418, %v225, %v357
  %v431 = vsel %vm418, %v228, %v360
  %v432 = vsel %vm418, %v231, %v363
  %v433 = vsel %vm418, %v234, %v366
  %v434 = vsel %vm418, %v237, %v369
  %v435 = vsel %vm418, %v240, %v372
  %v436 = vsel %vm418, %v243, %v375
  %v437 = vsel %vm418, %v246, %v378
  %v438 = vsel %vm418, %v249, %v381
  %v439 = vsel %vm418, %v252, %v384
  %v440 = vsel %vm418, %v255, %v387
  %v441 = vsel %vm418, %v258, %v390
  %v442 = vsel %vm418, %v261, %v393
  %v443 = vsel %vm418, %v264, %v396
  %v444 = vsel %vm418, %v267, %v399
  %v445 = vsel %vm418, %v270, %v402
  %v446 = vsel %vm418, %v273, %v405
  %v447 = vsel %vm418, %v276, %v408
  %v448 = vsel %vm418, %v279, %v411
  %v449 = vsel %vm418, %v282, %v414
  %v450 = vsel %vm418, %v285, %v417
  %v451 = vld [vmem:[%s2] sm:$0x1]
  %v453 = vlaneseq
  %v454 = vshrl.u32 %v453, 7
  %v455 = vsub.s32 0, %v454
  %v456 = vrot.slane %v451, %v455
  %v458 = vadd.f32 %v419, %v456
  %v459 = vadd.f32 %v420, %v456
  %v460 = vadd.f32 %v421, %v456
  %v461 = vadd.f32 %v422, %v456
  %v462 = vadd.f32 %v423, %v456
  %v463 = vadd.f32 %v424, %v456
  %v464 = vadd.f32 %v425, %v456
  %v465 = vadd.f32 %v426, %v456
  %v466 = vadd.f32 %v427, %v456
  %v467 = vadd.f32 %v428, %v456
  %v468 = vadd.f32 %v429, %v456
  %v469 = vadd.f32 %v430, %v456
  %v470 = vadd.f32 %v431, %v456
  %v471 = vadd.f32 %v432, %v456
  %v472 = vadd.f32 %v433, %v456
  %v473 = vadd.f32 %v434, %v456
  %v474 = vadd.f32 %v435, %v456
  %v475 = vadd.f32 %v436, %v456
  %v476 = vadd.f32 %v437, %v456
  %v477 = vadd.f32 %v438, %v456
  %v478 = vadd.f32 %v439, %v456
  %v479 = vadd.f32 %v440, %v456
  %v480 = vadd.f32 %v441, %v456
  %v481 = vadd.f32 %v442, %v456
  %v482 = vadd.f32 %v443, %v456
  %v483 = vadd.f32 %v444, %v456
  %v484 = vadd.f32 %v445, %v456
  %v485 = vadd.f32 %v446, %v456
  %v486 = vadd.f32 %v447, %v456
  %v487 = vadd.f32 %v448, %v456
  %v488 = vadd.f32 %v449, %v456
  %v489 = vadd.f32 %v450, %v456
  %v490 = vtanh.pop %v458
  %v491 = vtanh.pop %v459
  %v492 = vtanh.pop %v460
  %v493 = vtanh.pop %v461
  %v494 = vtanh.pop %v462
  %v495 = vtanh.pop %v463
  %v496 = vtanh.pop %v464
  %v497 = vtanh.pop %v465
  %v498 = vtanh.pop %v466
  %v499 = vtanh.pop %v467
  %v500 = vtanh.pop %v468
  %v501 = vtanh.pop %v469
  %v502 = vtanh.pop %v470
  %v503 = vtanh.pop %v471
  %v504 = vtanh.pop %v472
  %v505 = vtanh.pop %v473
  %v506 = vtanh.pop %v474
  %v507 = vtanh.pop %v475
  %v508 = vtanh.pop %v476
  %v509 = vtanh.pop %v477
  %v510 = vtanh.pop %v478
  %v511 = vtanh.pop %v479
  %v512 = vtanh.pop %v480
  %v513 = vtanh.pop %v481
  %v514 = vtanh.pop %v482
  %v515 = vtanh.pop %v483
  %v516 = vtanh.pop %v484
  %v517 = vtanh.pop %v485
  %v518 = vtanh.pop %v486
  %v519 = vtanh.pop %v487
  %v520 = vtanh.pop %v488
  %v521 = vtanh.pop %v489
  %v522 = vld [vmem:[%s3] sm:$0x1]
  %v524 = vlaneseq
  %v525 = vshrl.u32 %v524, 7
  %v526 = vsub.s32 0, %v525
  %v527 = vrot.slane %v522, %v526
  %v529 = vmul.f32 %v490, %v527
  %v530 = vmul.f32 %v491, %v527
  %v531 = vmul.f32 %v492, %v527
  %v532 = vmul.f32 %v493, %v527
  %v533 = vmul.f32 %v494, %v527
  %v534 = vmul.f32 %v495, %v527
  %v535 = vmul.f32 %v496, %v527
  %v536 = vmul.f32 %v497, %v527
  %v537 = vmul.f32 %v498, %v527
  %v538 = vmul.f32 %v499, %v527
  %v539 = vmul.f32 %v500, %v527
  %v540 = vmul.f32 %v501, %v527
  %v541 = vmul.f32 %v502, %v527
  %v542 = vmul.f32 %v503, %v527
  %v543 = vmul.f32 %v504, %v527
  %v544 = vmul.f32 %v505, %v527
  %v545 = vmul.f32 %v506, %v527
  %v546 = vmul.f32 %v507, %v527
  %v547 = vmul.f32 %v508, %v527
  %v548 = vmul.f32 %v509, %v527
  %v549 = vmul.f32 %v510, %v527
  %v550 = vmul.f32 %v511, %v527
  %v551 = vmul.f32 %v512, %v527
  %v552 = vmul.f32 %v513, %v527
  %v553 = vmul.f32 %v514, %v527
  %v554 = vmul.f32 %v515, %v527
  %v555 = vmul.f32 %v516, %v527
  %v556 = vmul.f32 %v517, %v527
  %v557 = vmul.f32 %v518, %v527
  %v558 = vmul.f32 %v519, %v527
  %v559 = vmul.f32 %v520, %v527
  %v560 = vmul.f32 %v521, %v527
  %vm561 = vcmask 15360
  %v562 = vsel %vm561, %v529, 0.0
  %563 = vadd.xlane.f32.xlu0 %v562
  %v564 = vpop.xlane.xlu0 %563
  %v565 = vsel %vm561, %v530, 0.0
  %566 = vadd.xlane.f32.xlu0 %v565
  %v567 = vpop.xlane.xlu0 %566
  %v568 = vsel %vm561, %v531, 0.0
  %569 = vadd.xlane.f32.xlu0 %v568
  %v570 = vpop.xlane.xlu0 %569
  %v571 = vsel %vm561, %v532, 0.0
  %572 = vadd.xlane.f32.xlu0 %v571
  %v573 = vpop.xlane.xlu0 %572
  %v574 = vsel %vm561, %v533, 0.0
  %575 = vadd.xlane.f32.xlu0 %v574
  %v576 = vpop.xlane.xlu0 %575
  %v577 = vsel %vm561, %v534, 0.0
  %578 = vadd.xlane.f32.xlu0 %v577
  %v579 = vpop.xlane.xlu0 %578
  %v580 = vsel %vm561, %v535, 0.0
  %581 = vadd.xlane.f32.xlu0 %v580
  %v582 = vpop.xlane.xlu0 %581
  %v583 = vsel %vm561, %v536, 0.0
  %584 = vadd.xlane.f32.xlu0 %v583
  %v585 = vpop.xlane.xlu0 %584
  %v586 = vsel %vm561, %v537, 0.0
  %587 = vadd.xlane.f32.xlu0 %v586
  %v588 = vpop.xlane.xlu0 %587
  %v589 = vsel %vm561, %v538, 0.0
  %590 = vadd.xlane.f32.xlu0 %v589
  %v591 = vpop.xlane.xlu0 %590
  %v592 = vsel %vm561, %v539, 0.0
  %593 = vadd.xlane.f32.xlu0 %v592
  %v594 = vpop.xlane.xlu0 %593
  %v595 = vsel %vm561, %v540, 0.0
  %596 = vadd.xlane.f32.xlu0 %v595
  %v597 = vpop.xlane.xlu0 %596
  %v598 = vsel %vm561, %v541, 0.0
  %599 = vadd.xlane.f32.xlu0 %v598
  %v600 = vpop.xlane.xlu0 %599
  %v601 = vsel %vm561, %v542, 0.0
  %602 = vadd.xlane.f32.xlu0 %v601
  %v603 = vpop.xlane.xlu0 %602
  %v604 = vsel %vm561, %v543, 0.0
  %605 = vadd.xlane.f32.xlu0 %v604
  %v606 = vpop.xlane.xlu0 %605
  %v607 = vsel %vm561, %v544, 0.0
  %608 = vadd.xlane.f32.xlu0 %v607
  %v609 = vpop.xlane.xlu0 %608
  %v610 = vsel %vm561, %v545, 0.0
  %611 = vadd.xlane.f32.xlu0 %v610
  %v612 = vpop.xlane.xlu0 %611
  %v613 = vsel %vm561, %v546, 0.0
  %614 = vadd.xlane.f32.xlu0 %v613
  %v615 = vpop.xlane.xlu0 %614
  %v616 = vsel %vm561, %v547, 0.0
  %617 = vadd.xlane.f32.xlu0 %v616
  %v618 = vpop.xlane.xlu0 %617
  %v619 = vsel %vm561, %v548, 0.0
  %620 = vadd.xlane.f32.xlu0 %v619
  %v621 = vpop.xlane.xlu0 %620
  %v622 = vsel %vm561, %v549, 0.0
  %623 = vadd.xlane.f32.xlu0 %v622
  %v624 = vpop.xlane.xlu0 %623
  %v625 = vsel %vm561, %v550, 0.0
  %626 = vadd.xlane.f32.xlu0 %v625
  %v627 = vpop.xlane.xlu0 %626
  %v628 = vsel %vm561, %v551, 0.0
  %629 = vadd.xlane.f32.xlu0 %v628
  %v630 = vpop.xlane.xlu0 %629
  %v631 = vsel %vm561, %v552, 0.0
  %632 = vadd.xlane.f32.xlu0 %v631
  %v633 = vpop.xlane.xlu0 %632
  %v634 = vsel %vm561, %v553, 0.0
  %635 = vadd.xlane.f32.xlu0 %v634
  %v636 = vpop.xlane.xlu0 %635
  %v637 = vsel %vm561, %v554, 0.0
  %638 = vadd.xlane.f32.xlu0 %v637
  %v639 = vpop.xlane.xlu0 %638
  %v640 = vsel %vm561, %v555, 0.0
  %641 = vadd.xlane.f32.xlu0 %v640
  %v642 = vpop.xlane.xlu0 %641
  %v643 = vsel %vm561, %v556, 0.0
  %644 = vadd.xlane.f32.xlu0 %v643
  %v645 = vpop.xlane.xlu0 %644
  %v646 = vsel %vm561, %v557, 0.0
  %647 = vadd.xlane.f32.xlu0 %v646
  %v648 = vpop.xlane.xlu0 %647
  %v649 = vsel %vm561, %v558, 0.0
  %650 = vadd.xlane.f32.xlu0 %v649
  %v651 = vpop.xlane.xlu0 %650
  %v652 = vsel %vm561, %v559, 0.0
  %653 = vadd.xlane.f32.xlu0 %v652
  %v654 = vpop.xlane.xlu0 %653
  %v655 = vsel %vm561, %v560, 0.0
  %656 = vadd.xlane.f32.xlu0 %v655
  %v657 = vpop.xlane.xlu0 %656
  %v658 = vmul.f32 %v56, %v156
  %v659 = vmul.f32 %v57, %v156
  %v660 = vmul.f32 %v58, %v156
  %v661 = vmul.f32 %v59, %v156
  %v662 = vmul.f32 %v60, %v156
  %v663 = vmul.f32 %v61, %v156
  %v664 = vmul.f32 %v62, %v156
  %v665 = vmul.f32 %v63, %v156
  %v666 = vmul.f32 %v64, %v156
  %v667 = vmul.f32 %v65, %v156
  %v668 = vmul.f32 %v66, %v156
  %v669 = vmul.f32 %v67, %v156
  %v670 = vmul.f32 %v68, %v156
  %v671 = vmul.f32 %v69, %v156
  %v672 = vmul.f32 %v70, %v156
  %v673 = vmul.f32 %v71, %v156
  %v674 = vmul.f32 %v72, %v156
  %v675 = vmul.f32 %v73, %v156
  %v676 = vmul.f32 %v74, %v156
  %v677 = vmul.f32 %v75, %v156
  %v678 = vmul.f32 %v76, %v156
  %v679 = vmul.f32 %v77, %v156
  %v680 = vmul.f32 %v78, %v156
  %v681 = vmul.f32 %v79, %v156
  %v682 = vmul.f32 %v80, %v156
  %v683 = vmul.f32 %v81, %v156
  %v684 = vmul.f32 %v82, %v156
  %v685 = vmul.f32 %v83, %v156
  %v686 = vmul.f32 %v84, %v156
  %v687 = vmul.f32 %v85, %v156
  %v688 = vmul.f32 %v86, %v156
  %v689 = vmul.f32 %v87, %v156
  %v690 = vsel %vm189, %v658, 0.0
  %691 = vadd.xlane.f32.xlu0 %v690
  %v692 = vpop.xlane.xlu0 %691
  %v693 = vsel %vm189, %v659, 0.0
  %694 = vadd.xlane.f32.xlu0 %v693
  %v695 = vpop.xlane.xlu0 %694
  %v696 = vsel %vm189, %v660, 0.0
  %697 = vadd.xlane.f32.xlu0 %v696
  %v698 = vpop.xlane.xlu0 %697
  %v699 = vsel %vm189, %v661, 0.0
  %700 = vadd.xlane.f32.xlu0 %v699
  %v701 = vpop.xlane.xlu0 %700
  %v702 = vsel %vm189, %v662, 0.0
  %703 = vadd.xlane.f32.xlu0 %v702
  %v704 = vpop.xlane.xlu0 %703
  %v705 = vsel %vm189, %v663, 0.0
  %706 = vadd.xlane.f32.xlu0 %v705
  %v707 = vpop.xlane.xlu0 %706
  %v708 = vsel %vm189, %v664, 0.0
  %709 = vadd.xlane.f32.xlu0 %v708
  %v710 = vpop.xlane.xlu0 %709
  %v711 = vsel %vm189, %v665, 0.0
  %712 = vadd.xlane.f32.xlu0 %v711
  %v713 = vpop.xlane.xlu0 %712
  %v714 = vsel %vm189, %v666, 0.0
  %715 = vadd.xlane.f32.xlu0 %v714
  %v716 = vpop.xlane.xlu0 %715
  %v717 = vsel %vm189, %v667, 0.0
  %718 = vadd.xlane.f32.xlu0 %v717
  %v719 = vpop.xlane.xlu0 %718
  %v720 = vsel %vm189, %v668, 0.0
  %721 = vadd.xlane.f32.xlu0 %v720
  %v722 = vpop.xlane.xlu0 %721
  %v723 = vsel %vm189, %v669, 0.0
  %724 = vadd.xlane.f32.xlu0 %v723
  %v725 = vpop.xlane.xlu0 %724
  %v726 = vsel %vm189, %v670, 0.0
  %727 = vadd.xlane.f32.xlu0 %v726
  %v728 = vpop.xlane.xlu0 %727
  %v729 = vsel %vm189, %v671, 0.0
  %730 = vadd.xlane.f32.xlu0 %v729
  %v731 = vpop.xlane.xlu0 %730
  %v732 = vsel %vm189, %v672, 0.0
  %733 = vadd.xlane.f32.xlu0 %v732
  %v734 = vpop.xlane.xlu0 %733
  %v735 = vsel %vm189, %v673, 0.0
  %736 = vadd.xlane.f32.xlu0 %v735
  %v737 = vpop.xlane.xlu0 %736
  %v738 = vsel %vm189, %v674, 0.0
  %739 = vadd.xlane.f32.xlu0 %v738
  %v740 = vpop.xlane.xlu0 %739
  %v741 = vsel %vm189, %v675, 0.0
  %742 = vadd.xlane.f32.xlu0 %v741
  %v743 = vpop.xlane.xlu0 %742
  %v744 = vsel %vm189, %v676, 0.0
  %745 = vadd.xlane.f32.xlu0 %v744
  %v746 = vpop.xlane.xlu0 %745
  %v747 = vsel %vm189, %v677, 0.0
  %748 = vadd.xlane.f32.xlu0 %v747
  %v749 = vpop.xlane.xlu0 %748
  %v750 = vsel %vm189, %v678, 0.0
  %751 = vadd.xlane.f32.xlu0 %v750
  %v752 = vpop.xlane.xlu0 %751
  %v753 = vsel %vm189, %v679, 0.0
  %754 = vadd.xlane.f32.xlu0 %v753
  %v755 = vpop.xlane.xlu0 %754
  %v756 = vsel %vm189, %v680, 0.0
  %757 = vadd.xlane.f32.xlu0 %v756
  %v758 = vpop.xlane.xlu0 %757
  %v759 = vsel %vm189, %v681, 0.0
  %760 = vadd.xlane.f32.xlu0 %v759
  %v761 = vpop.xlane.xlu0 %760
  %v762 = vsel %vm189, %v682, 0.0
  %763 = vadd.xlane.f32.xlu0 %v762
  %v764 = vpop.xlane.xlu0 %763
  %v765 = vsel %vm189, %v683, 0.0
  %766 = vadd.xlane.f32.xlu0 %v765
  %v767 = vpop.xlane.xlu0 %766
  %v768 = vsel %vm189, %v684, 0.0
  %769 = vadd.xlane.f32.xlu0 %v768
  %v770 = vpop.xlane.xlu0 %769
  %v771 = vsel %vm189, %v685, 0.0
  %772 = vadd.xlane.f32.xlu0 %v771
  %v773 = vpop.xlane.xlu0 %772
  %v774 = vsel %vm189, %v686, 0.0
  %775 = vadd.xlane.f32.xlu0 %v774
  %v776 = vpop.xlane.xlu0 %775
  %v777 = vsel %vm189, %v687, 0.0
  %778 = vadd.xlane.f32.xlu0 %v777
  %v779 = vpop.xlane.xlu0 %778
  %v780 = vsel %vm189, %v688, 0.0
  %781 = vadd.xlane.f32.xlu0 %v780
  %v782 = vpop.xlane.xlu0 %781
  %v783 = vsel %vm189, %v689, 0.0
  %784 = vadd.xlane.f32.xlu0 %v783
  %v785 = vpop.xlane.xlu0 %784
  %v786 = vmul.f32 %v56, %v289
  %v787 = vmul.f32 %v57, %v289
  %v788 = vmul.f32 %v58, %v289
  %v789 = vmul.f32 %v59, %v289
  %v790 = vmul.f32 %v60, %v289
  %v791 = vmul.f32 %v61, %v289
  %v792 = vmul.f32 %v62, %v289
  %v793 = vmul.f32 %v63, %v289
  %v794 = vmul.f32 %v64, %v289
  %v795 = vmul.f32 %v65, %v289
  %v796 = vmul.f32 %v66, %v289
  %v797 = vmul.f32 %v67, %v289
  %v798 = vmul.f32 %v68, %v289
  %v799 = vmul.f32 %v69, %v289
  %v800 = vmul.f32 %v70, %v289
  %v801 = vmul.f32 %v71, %v289
  %v802 = vmul.f32 %v72, %v289
  %v803 = vmul.f32 %v73, %v289
  %v804 = vmul.f32 %v74, %v289
  %v805 = vmul.f32 %v75, %v289
  %v806 = vmul.f32 %v76, %v289
  %v807 = vmul.f32 %v77, %v289
  %v808 = vmul.f32 %v78, %v289
  %v809 = vmul.f32 %v79, %v289
  %v810 = vmul.f32 %v80, %v289
  %v811 = vmul.f32 %v81, %v289
  %v812 = vmul.f32 %v82, %v289
  %v813 = vmul.f32 %v83, %v289
  %v814 = vmul.f32 %v84, %v289
  %v815 = vmul.f32 %v85, %v289
  %v816 = vmul.f32 %v86, %v289
  %v817 = vmul.f32 %v87, %v289
  %v818 = vsel %vm189, %v786, 0.0
  %819 = vadd.xlane.f32.xlu0 %v818
  %v820 = vpop.xlane.xlu0 %819
  %v821 = vsel %vm189, %v787, 0.0
  %822 = vadd.xlane.f32.xlu0 %v821
  %v823 = vpop.xlane.xlu0 %822
  %v824 = vsel %vm189, %v788, 0.0
  %825 = vadd.xlane.f32.xlu0 %v824
  %v826 = vpop.xlane.xlu0 %825
  %v827 = vsel %vm189, %v789, 0.0
  %828 = vadd.xlane.f32.xlu0 %v827
  %v829 = vpop.xlane.xlu0 %828
  %v830 = vsel %vm189, %v790, 0.0
  %831 = vadd.xlane.f32.xlu0 %v830
  %v832 = vpop.xlane.xlu0 %831
  %v833 = vsel %vm189, %v791, 0.0
  %834 = vadd.xlane.f32.xlu0 %v833
  %v835 = vpop.xlane.xlu0 %834
  %v836 = vsel %vm189, %v792, 0.0
  %837 = vadd.xlane.f32.xlu0 %v836
  %v838 = vpop.xlane.xlu0 %837
  %v839 = vsel %vm189, %v793, 0.0
  %840 = vadd.xlane.f32.xlu0 %v839
  %v841 = vpop.xlane.xlu0 %840
  %v842 = vsel %vm189, %v794, 0.0
  %843 = vadd.xlane.f32.xlu0 %v842
  %v844 = vpop.xlane.xlu0 %843
  %v845 = vsel %vm189, %v795, 0.0
  %846 = vadd.xlane.f32.xlu0 %v845
  %v847 = vpop.xlane.xlu0 %846
  %v848 = vsel %vm189, %v796, 0.0
  %849 = vadd.xlane.f32.xlu0 %v848
  %v850 = vpop.xlane.xlu0 %849
  %v851 = vsel %vm189, %v797, 0.0
  %852 = vadd.xlane.f32.xlu0 %v851
  %v853 = vpop.xlane.xlu0 %852
  %v854 = vsel %vm189, %v798, 0.0
  %855 = vadd.xlane.f32.xlu0 %v854
  %v856 = vpop.xlane.xlu0 %855
  %v857 = vsel %vm189, %v799, 0.0
  %858 = vadd.xlane.f32.xlu0 %v857
  %v859 = vpop.xlane.xlu0 %858
  %v860 = vsel %vm189, %v800, 0.0
  %861 = vadd.xlane.f32.xlu0 %v860
  %v862 = vpop.xlane.xlu0 %861
  %v863 = vsel %vm189, %v801, 0.0
  %864 = vadd.xlane.f32.xlu0 %v863
  %v865 = vpop.xlane.xlu0 %864
  %v866 = vsel %vm189, %v802, 0.0
  %867 = vadd.xlane.f32.xlu0 %v866
  %v868 = vpop.xlane.xlu0 %867
  %v869 = vsel %vm189, %v803, 0.0
  %870 = vadd.xlane.f32.xlu0 %v869
  %v871 = vpop.xlane.xlu0 %870
  %v872 = vsel %vm189, %v804, 0.0
  %873 = vadd.xlane.f32.xlu0 %v872
  %v874 = vpop.xlane.xlu0 %873
  %v875 = vsel %vm189, %v805, 0.0
  %876 = vadd.xlane.f32.xlu0 %v875
  %v877 = vpop.xlane.xlu0 %876
  %v878 = vsel %vm189, %v806, 0.0
  %879 = vadd.xlane.f32.xlu0 %v878
  %v880 = vpop.xlane.xlu0 %879
  %v881 = vsel %vm189, %v807, 0.0
  %882 = vadd.xlane.f32.xlu0 %v881
  %v883 = vpop.xlane.xlu0 %882
  %v884 = vsel %vm189, %v808, 0.0
  %885 = vadd.xlane.f32.xlu0 %v884
  %v886 = vpop.xlane.xlu0 %885
  %v887 = vsel %vm189, %v809, 0.0
  %888 = vadd.xlane.f32.xlu0 %v887
  %v889 = vpop.xlane.xlu0 %888
  %v890 = vsel %vm189, %v810, 0.0
  %891 = vadd.xlane.f32.xlu0 %v890
  %v892 = vpop.xlane.xlu0 %891
  %v893 = vsel %vm189, %v811, 0.0
  %894 = vadd.xlane.f32.xlu0 %v893
  %v895 = vpop.xlane.xlu0 %894
  %v896 = vsel %vm189, %v812, 0.0
  %897 = vadd.xlane.f32.xlu0 %v896
  %v898 = vpop.xlane.xlu0 %897
  %v899 = vsel %vm189, %v813, 0.0
  %900 = vadd.xlane.f32.xlu0 %v899
  %v901 = vpop.xlane.xlu0 %900
  %v902 = vsel %vm189, %v814, 0.0
  %903 = vadd.xlane.f32.xlu0 %v902
  %v904 = vpop.xlane.xlu0 %903
  %v905 = vsel %vm189, %v815, 0.0
  %906 = vadd.xlane.f32.xlu0 %v905
  %v907 = vpop.xlane.xlu0 %906
  %v908 = vsel %vm189, %v816, 0.0
  %909 = vadd.xlane.f32.xlu0 %v908
  %v910 = vpop.xlane.xlu0 %909
  %v911 = vsel %vm189, %v817, 0.0
  %912 = vadd.xlane.f32.xlu0 %v911
  %v913 = vpop.xlane.xlu0 %912
  %v914 = vsel %vm418, %v692, %v820
  %v915 = vsel %vm418, %v695, %v823
  %v916 = vsel %vm418, %v698, %v826
  %v917 = vsel %vm418, %v701, %v829
  %v918 = vsel %vm418, %v704, %v832
  %v919 = vsel %vm418, %v707, %v835
  %v920 = vsel %vm418, %v710, %v838
  %v921 = vsel %vm418, %v713, %v841
  %v922 = vsel %vm418, %v716, %v844
  %v923 = vsel %vm418, %v719, %v847
  %v924 = vsel %vm418, %v722, %v850
  %v925 = vsel %vm418, %v725, %v853
  %v926 = vsel %vm418, %v728, %v856
  %v927 = vsel %vm418, %v731, %v859
  %v928 = vsel %vm418, %v734, %v862
  %v929 = vsel %vm418, %v737, %v865
  %v930 = vsel %vm418, %v740, %v868
  %v931 = vsel %vm418, %v743, %v871
  %v932 = vsel %vm418, %v746, %v874
  %v933 = vsel %vm418, %v749, %v877
  %v934 = vsel %vm418, %v752, %v880
  %v935 = vsel %vm418, %v755, %v883
  %v936 = vsel %vm418, %v758, %v886
  %v937 = vsel %vm418, %v761, %v889
  %v938 = vsel %vm418, %v764, %v892
  %v939 = vsel %vm418, %v767, %v895
  %v940 = vsel %vm418, %v770, %v898
  %v941 = vsel %vm418, %v773, %v901
  %v942 = vsel %vm418, %v776, %v904
  %v943 = vsel %vm418, %v779, %v907
  %v944 = vsel %vm418, %v782, %v910
  %v945 = vsel %vm418, %v785, %v913
  %v946 = vadd.f32 %v914, %v456
  %v947 = vadd.f32 %v915, %v456
  %v948 = vadd.f32 %v916, %v456
  %v949 = vadd.f32 %v917, %v456
  %v950 = vadd.f32 %v918, %v456
  %v951 = vadd.f32 %v919, %v456
  %v952 = vadd.f32 %v920, %v456
  %v953 = vadd.f32 %v921, %v456
  %v954 = vadd.f32 %v922, %v456
  %v955 = vadd.f32 %v923, %v456
  %v956 = vadd.f32 %v924, %v456
  %v957 = vadd.f32 %v925, %v456
  %v958 = vadd.f32 %v926, %v456
  %v959 = vadd.f32 %v927, %v456
  %v960 = vadd.f32 %v928, %v456
  %v961 = vadd.f32 %v929, %v456
  %v962 = vadd.f32 %v930, %v456
  %v963 = vadd.f32 %v931, %v456
  %v964 = vadd.f32 %v932, %v456
  %v965 = vadd.f32 %v933, %v456
  %v966 = vadd.f32 %v934, %v456
  %v967 = vadd.f32 %v935, %v456
  %v968 = vadd.f32 %v936, %v456
  %v969 = vadd.f32 %v937, %v456
  %v970 = vadd.f32 %v938, %v456
  %v971 = vadd.f32 %v939, %v456
  %v972 = vadd.f32 %v940, %v456
  %v973 = vadd.f32 %v941, %v456
  %v974 = vadd.f32 %v942, %v456
  %v975 = vadd.f32 %v943, %v456
  %v976 = vadd.f32 %v944, %v456
  %v977 = vadd.f32 %v945, %v456
  %v978 = vtanh.pop %v946
  %v979 = vtanh.pop %v947
  %v980 = vtanh.pop %v948
  %v981 = vtanh.pop %v949
  %v982 = vtanh.pop %v950
  %v983 = vtanh.pop %v951
  %v984 = vtanh.pop %v952
  %v985 = vtanh.pop %v953
  %v986 = vtanh.pop %v954
  %v987 = vtanh.pop %v955
  %v988 = vtanh.pop %v956
  %v989 = vtanh.pop %v957
  %v990 = vtanh.pop %v958
  %v991 = vtanh.pop %v959
  %v992 = vtanh.pop %v960
  %v993 = vtanh.pop %v961
  %v994 = vtanh.pop %v962
  %v995 = vtanh.pop %v963
  %v996 = vtanh.pop %v964
  %v997 = vtanh.pop %v965
  %v998 = vtanh.pop %v966
  %v999 = vtanh.pop %v967
  %v1000 = vtanh.pop %v968
  %v1001 = vtanh.pop %v969
  %v1002 = vtanh.pop %v970
  %v1003 = vtanh.pop %v971
  %v1004 = vtanh.pop %v972
  %v1005 = vtanh.pop %v973
  %v1006 = vtanh.pop %v974
  %v1007 = vtanh.pop %v975
  %v1008 = vtanh.pop %v976
  %v1009 = vtanh.pop %v977
  %v1010 = vmul.f32 %v978, %v527
  %v1011 = vmul.f32 %v979, %v527
  %v1012 = vmul.f32 %v980, %v527
  %v1013 = vmul.f32 %v981, %v527
  %v1014 = vmul.f32 %v982, %v527
  %v1015 = vmul.f32 %v983, %v527
  %v1016 = vmul.f32 %v984, %v527
  %v1017 = vmul.f32 %v985, %v527
  %v1018 = vmul.f32 %v986, %v527
  %v1019 = vmul.f32 %v987, %v527
  %v1020 = vmul.f32 %v988, %v527
  %v1021 = vmul.f32 %v989, %v527
  %v1022 = vmul.f32 %v990, %v527
  %v1023 = vmul.f32 %v991, %v527
  %v1024 = vmul.f32 %v992, %v527
  %v1025 = vmul.f32 %v993, %v527
  %v1026 = vmul.f32 %v994, %v527
  %v1027 = vmul.f32 %v995, %v527
  %v1028 = vmul.f32 %v996, %v527
  %v1029 = vmul.f32 %v997, %v527
  %v1030 = vmul.f32 %v998, %v527
  %v1031 = vmul.f32 %v999, %v527
  %v1032 = vmul.f32 %v1000, %v527
  %v1033 = vmul.f32 %v1001, %v527
  %v1034 = vmul.f32 %v1002, %v527
  %v1035 = vmul.f32 %v1003, %v527
  %v1036 = vmul.f32 %v1004, %v527
  %v1037 = vmul.f32 %v1005, %v527
  %v1038 = vmul.f32 %v1006, %v527
  %v1039 = vmul.f32 %v1007, %v527
  %v1040 = vmul.f32 %v1008, %v527
  %v1041 = vmul.f32 %v1009, %v527
  %v1042 = vsel %vm561, %v1010, 0.0
  %1043 = vadd.xlane.f32.xlu0 %v1042
  %v1044 = vpop.xlane.xlu0 %1043
  %v1045 = vsel %vm561, %v1011, 0.0
  %1046 = vadd.xlane.f32.xlu0 %v1045
  %v1047 = vpop.xlane.xlu0 %1046
  %v1048 = vsel %vm561, %v1012, 0.0
  %1049 = vadd.xlane.f32.xlu0 %v1048
  %v1050 = vpop.xlane.xlu0 %1049
  %v1051 = vsel %vm561, %v1013, 0.0
  %1052 = vadd.xlane.f32.xlu0 %v1051
  %v1053 = vpop.xlane.xlu0 %1052
  %v1054 = vsel %vm561, %v1014, 0.0
  %1055 = vadd.xlane.f32.xlu0 %v1054
  %v1056 = vpop.xlane.xlu0 %1055
  %v1057 = vsel %vm561, %v1015, 0.0
  %1058 = vadd.xlane.f32.xlu0 %v1057
  %v1059 = vpop.xlane.xlu0 %1058
  %v1060 = vsel %vm561, %v1016, 0.0
  %1061 = vadd.xlane.f32.xlu0 %v1060
  %v1062 = vpop.xlane.xlu0 %1061
  %v1063 = vsel %vm561, %v1017, 0.0
  %1064 = vadd.xlane.f32.xlu0 %v1063
  %v1065 = vpop.xlane.xlu0 %1064
  %v1066 = vsel %vm561, %v1018, 0.0
  %1067 = vadd.xlane.f32.xlu0 %v1066
  %v1068 = vpop.xlane.xlu0 %1067
  %v1069 = vsel %vm561, %v1019, 0.0
  %1070 = vadd.xlane.f32.xlu0 %v1069
  %v1071 = vpop.xlane.xlu0 %1070
  %v1072 = vsel %vm561, %v1020, 0.0
  %1073 = vadd.xlane.f32.xlu0 %v1072
  %v1074 = vpop.xlane.xlu0 %1073
  %v1075 = vsel %vm561, %v1021, 0.0
  %1076 = vadd.xlane.f32.xlu0 %v1075
  %v1077 = vpop.xlane.xlu0 %1076
  %v1078 = vsel %vm561, %v1022, 0.0
  %1079 = vadd.xlane.f32.xlu0 %v1078
  %v1080 = vpop.xlane.xlu0 %1079
  %v1081 = vsel %vm561, %v1023, 0.0
  %1082 = vadd.xlane.f32.xlu0 %v1081
  %v1083 = vpop.xlane.xlu0 %1082
  %v1084 = vsel %vm561, %v1024, 0.0
  %1085 = vadd.xlane.f32.xlu0 %v1084
  %v1086 = vpop.xlane.xlu0 %1085
  %v1087 = vsel %vm561, %v1025, 0.0
  %1088 = vadd.xlane.f32.xlu0 %v1087
  %v1089 = vpop.xlane.xlu0 %1088
  %v1090 = vsel %vm561, %v1026, 0.0
  %1091 = vadd.xlane.f32.xlu0 %v1090
  %v1092 = vpop.xlane.xlu0 %1091
  %v1093 = vsel %vm561, %v1027, 0.0
  %1094 = vadd.xlane.f32.xlu0 %v1093
  %v1095 = vpop.xlane.xlu0 %1094
  %v1096 = vsel %vm561, %v1028, 0.0
  %1097 = vadd.xlane.f32.xlu0 %v1096
  %v1098 = vpop.xlane.xlu0 %1097
  %v1099 = vsel %vm561, %v1029, 0.0
  %1100 = vadd.xlane.f32.xlu0 %v1099
  %v1101 = vpop.xlane.xlu0 %1100
  %v1102 = vsel %vm561, %v1030, 0.0
  %1103 = vadd.xlane.f32.xlu0 %v1102
  %v1104 = vpop.xlane.xlu0 %1103
  %v1105 = vsel %vm561, %v1031, 0.0
  %1106 = vadd.xlane.f32.xlu0 %v1105
  %v1107 = vpop.xlane.xlu0 %1106
  %v1108 = vsel %vm561, %v1032, 0.0
  %1109 = vadd.xlane.f32.xlu0 %v1108
  %v1110 = vpop.xlane.xlu0 %1109
  %v1111 = vsel %vm561, %v1033, 0.0
  %1112 = vadd.xlane.f32.xlu0 %v1111
  %v1113 = vpop.xlane.xlu0 %1112
  %v1114 = vsel %vm561, %v1034, 0.0
  %1115 = vadd.xlane.f32.xlu0 %v1114
  %v1116 = vpop.xlane.xlu0 %1115
  %v1117 = vsel %vm561, %v1035, 0.0
  %1118 = vadd.xlane.f32.xlu0 %v1117
  %v1119 = vpop.xlane.xlu0 %1118
  %v1120 = vsel %vm561, %v1036, 0.0
  %1121 = vadd.xlane.f32.xlu0 %v1120
  %v1122 = vpop.xlane.xlu0 %1121
  %v1123 = vsel %vm561, %v1037, 0.0
  %1124 = vadd.xlane.f32.xlu0 %v1123
  %v1125 = vpop.xlane.xlu0 %1124
  %v1126 = vsel %vm561, %v1038, 0.0
  %1127 = vadd.xlane.f32.xlu0 %v1126
  %v1128 = vpop.xlane.xlu0 %1127
  %v1129 = vsel %vm561, %v1039, 0.0
  %1130 = vadd.xlane.f32.xlu0 %v1129
  %v1131 = vpop.xlane.xlu0 %1130
  %v1132 = vsel %vm561, %v1040, 0.0
  %1133 = vadd.xlane.f32.xlu0 %v1132
  %v1134 = vpop.xlane.xlu0 %1133
  %v1135 = vsel %vm561, %v1041, 0.0
  %1136 = vadd.xlane.f32.xlu0 %v1135
  %v1137 = vpop.xlane.xlu0 %1136
  %1139 = vrot.lane.b32.xlu0 %v156, 8
  %v1140 = vpop.permute.xlu0 %1139
  %v1142 = vmul.f32 %v120, %v1140
  %v1143 = vmul.f32 %v121, %v1140
  %v1144 = vmul.f32 %v122, %v1140
  %v1145 = vmul.f32 %v123, %v1140
  %v1146 = vmul.f32 %v124, %v1140
  %v1147 = vmul.f32 %v125, %v1140
  %v1148 = vmul.f32 %v126, %v1140
  %v1149 = vmul.f32 %v127, %v1140
  %v1150 = vmul.f32 %v128, %v1140
  %v1151 = vmul.f32 %v129, %v1140
  %v1152 = vmul.f32 %v130, %v1140
  %v1153 = vmul.f32 %v131, %v1140
  %v1154 = vmul.f32 %v132, %v1140
  %v1155 = vmul.f32 %v133, %v1140
  %v1156 = vmul.f32 %v134, %v1140
  %v1157 = vmul.f32 %v135, %v1140
  %v1158 = vmul.f32 %v136, %v1140
  %v1159 = vmul.f32 %v137, %v1140
  %v1160 = vmul.f32 %v138, %v1140
  %v1161 = vmul.f32 %v139, %v1140
  %v1162 = vmul.f32 %v140, %v1140
  %v1163 = vmul.f32 %v141, %v1140
  %v1164 = vmul.f32 %v142, %v1140
  %v1165 = vmul.f32 %v143, %v1140
  %v1166 = vmul.f32 %v144, %v1140
  %v1167 = vmul.f32 %v145, %v1140
  %v1168 = vmul.f32 %v146, %v1140
  %v1169 = vmul.f32 %v147, %v1140
  %v1170 = vmul.f32 %v148, %v1140
  %v1171 = vmul.f32 %v149, %v1140
  %v1172 = vmul.f32 %v150, %v1140
  %v1173 = vmul.f32 %v151, %v1140
  %1206 = vrot.lane.b32.xlu0 %v1142, 120
  %v1207 = vpop.permute.xlu0 %1206
  %1208 = vrot.lane.b32.xlu0 %v1143, 120
  %v1209 = vpop.permute.xlu0 %1208
  %1210 = vrot.lane.b32.xlu0 %v1144, 120
  %v1211 = vpop.permute.xlu0 %1210
  %1212 = vrot.lane.b32.xlu0 %v1145, 120
  %v1213 = vpop.permute.xlu0 %1212
  %1214 = vrot.lane.b32.xlu0 %v1146, 120
  %v1215 = vpop.permute.xlu0 %1214
  %1216 = vrot.lane.b32.xlu0 %v1147, 120
  %v1217 = vpop.permute.xlu0 %1216
  %1218 = vrot.lane.b32.xlu0 %v1148, 120
  %v1219 = vpop.permute.xlu0 %1218
  %1220 = vrot.lane.b32.xlu0 %v1149, 120
  %v1221 = vpop.permute.xlu0 %1220
  %1222 = vrot.lane.b32.xlu0 %v1150, 120
  %v1223 = vpop.permute.xlu0 %1222
  %1224 = vrot.lane.b32.xlu0 %v1151, 120
  %v1225 = vpop.permute.xlu0 %1224
  %1226 = vrot.lane.b32.xlu0 %v1152, 120
  %v1227 = vpop.permute.xlu0 %1226
  %1228 = vrot.lane.b32.xlu0 %v1153, 120
  %v1229 = vpop.permute.xlu0 %1228
  %1230 = vrot.lane.b32.xlu0 %v1154, 120
  %v1231 = vpop.permute.xlu0 %1230
  %1232 = vrot.lane.b32.xlu0 %v1155, 120
  %v1233 = vpop.permute.xlu0 %1232
  %1234 = vrot.lane.b32.xlu0 %v1156, 120
  %v1235 = vpop.permute.xlu0 %1234
  %1236 = vrot.lane.b32.xlu0 %v1157, 120
  %v1237 = vpop.permute.xlu0 %1236
  %1238 = vrot.lane.b32.xlu0 %v1158, 120
  %v1239 = vpop.permute.xlu0 %1238
  %1240 = vrot.lane.b32.xlu0 %v1159, 120
  %v1241 = vpop.permute.xlu0 %1240
  %1242 = vrot.lane.b32.xlu0 %v1160, 120
  %v1243 = vpop.permute.xlu0 %1242
  %1244 = vrot.lane.b32.xlu0 %v1161, 120
  %v1245 = vpop.permute.xlu0 %1244
  %1246 = vrot.lane.b32.xlu0 %v1162, 120
  %v1247 = vpop.permute.xlu0 %1246
  %1248 = vrot.lane.b32.xlu0 %v1163, 120
  %v1249 = vpop.permute.xlu0 %1248
  %1250 = vrot.lane.b32.xlu0 %v1164, 120
  %v1251 = vpop.permute.xlu0 %1250
  %1252 = vrot.lane.b32.xlu0 %v1165, 120
  %v1253 = vpop.permute.xlu0 %1252
  %1254 = vrot.lane.b32.xlu0 %v1166, 120
  %v1255 = vpop.permute.xlu0 %1254
  %1256 = vrot.lane.b32.xlu0 %v1167, 120
  %v1257 = vpop.permute.xlu0 %1256
  %1258 = vrot.lane.b32.xlu0 %v1168, 120
  %v1259 = vpop.permute.xlu0 %1258
  %1260 = vrot.lane.b32.xlu0 %v1169, 120
  %v1261 = vpop.permute.xlu0 %1260
  %1262 = vrot.lane.b32.xlu0 %v1170, 120
  %v1263 = vpop.permute.xlu0 %1262
  %1264 = vrot.lane.b32.xlu0 %v1171, 120
  %v1265 = vpop.permute.xlu0 %1264
  %1266 = vrot.lane.b32.xlu0 %v1172, 120
  %v1267 = vpop.permute.xlu0 %1266
  %1268 = vrot.lane.b32.xlu0 %v1173, 120
  %v1269 = vpop.permute.xlu0 %1268
  %v1302 = vsel %vm189, %v1207, 0.0
  %1303 = vadd.xlane.f32.xlu0 %v1302
  %v1304 = vpop.xlane.xlu0 %1303
  %v1305 = vsel %vm189, %v1209, 0.0
  %1306 = vadd.xlane.f32.xlu0 %v1305
  %v1307 = vpop.xlane.xlu0 %1306
  %v1308 = vsel %vm189, %v1211, 0.0
  %1309 = vadd.xlane.f32.xlu0 %v1308
  %v1310 = vpop.xlane.xlu0 %1309
  %v1311 = vsel %vm189, %v1213, 0.0
  %1312 = vadd.xlane.f32.xlu0 %v1311
  %v1313 = vpop.xlane.xlu0 %1312
  %v1314 = vsel %vm189, %v1215, 0.0
  %1315 = vadd.xlane.f32.xlu0 %v1314
  %v1316 = vpop.xlane.xlu0 %1315
  %v1317 = vsel %vm189, %v1217, 0.0
  %1318 = vadd.xlane.f32.xlu0 %v1317
  %v1319 = vpop.xlane.xlu0 %1318
  %v1320 = vsel %vm189, %v1219, 0.0
  %1321 = vadd.xlane.f32.xlu0 %v1320
  %v1322 = vpop.xlane.xlu0 %1321
  %v1323 = vsel %vm189, %v1221, 0.0
  %1324 = vadd.xlane.f32.xlu0 %v1323
  %v1325 = vpop.xlane.xlu0 %1324
  %v1326 = vsel %vm189, %v1223, 0.0
  %1327 = vadd.xlane.f32.xlu0 %v1326
  %v1328 = vpop.xlane.xlu0 %1327
  %v1329 = vsel %vm189, %v1225, 0.0
  %1330 = vadd.xlane.f32.xlu0 %v1329
  %v1331 = vpop.xlane.xlu0 %1330
  %v1332 = vsel %vm189, %v1227, 0.0
  %1333 = vadd.xlane.f32.xlu0 %v1332
  %v1334 = vpop.xlane.xlu0 %1333
  %v1335 = vsel %vm189, %v1229, 0.0
  %1336 = vadd.xlane.f32.xlu0 %v1335
  %v1337 = vpop.xlane.xlu0 %1336
  %v1338 = vsel %vm189, %v1231, 0.0
  %1339 = vadd.xlane.f32.xlu0 %v1338
  %v1340 = vpop.xlane.xlu0 %1339
  %v1341 = vsel %vm189, %v1233, 0.0
  %1342 = vadd.xlane.f32.xlu0 %v1341
  %v1343 = vpop.xlane.xlu0 %1342
  %v1344 = vsel %vm189, %v1235, 0.0
  %1345 = vadd.xlane.f32.xlu0 %v1344
  %v1346 = vpop.xlane.xlu0 %1345
  %v1347 = vsel %vm189, %v1237, 0.0
  %1348 = vadd.xlane.f32.xlu0 %v1347
  %v1349 = vpop.xlane.xlu0 %1348
  %v1350 = vsel %vm189, %v1239, 0.0
  %1351 = vadd.xlane.f32.xlu0 %v1350
  %v1352 = vpop.xlane.xlu0 %1351
  %v1353 = vsel %vm189, %v1241, 0.0
  %1354 = vadd.xlane.f32.xlu0 %v1353
  %v1355 = vpop.xlane.xlu0 %1354
  %v1356 = vsel %vm189, %v1243, 0.0
  %1357 = vadd.xlane.f32.xlu0 %v1356
  %v1358 = vpop.xlane.xlu0 %1357
  %v1359 = vsel %vm189, %v1245, 0.0
  %1360 = vadd.xlane.f32.xlu0 %v1359
  %v1361 = vpop.xlane.xlu0 %1360
  %v1362 = vsel %vm189, %v1247, 0.0
  %1363 = vadd.xlane.f32.xlu0 %v1362
  %v1364 = vpop.xlane.xlu0 %1363
  %v1365 = vsel %vm189, %v1249, 0.0
  %1366 = vadd.xlane.f32.xlu0 %v1365
  %v1367 = vpop.xlane.xlu0 %1366
  %v1368 = vsel %vm189, %v1251, 0.0
  %1369 = vadd.xlane.f32.xlu0 %v1368
  %v1370 = vpop.xlane.xlu0 %1369
  %v1371 = vsel %vm189, %v1253, 0.0
  %1372 = vadd.xlane.f32.xlu0 %v1371
  %v1373 = vpop.xlane.xlu0 %1372
  %v1374 = vsel %vm189, %v1255, 0.0
  %1375 = vadd.xlane.f32.xlu0 %v1374
  %v1376 = vpop.xlane.xlu0 %1375
  %v1377 = vsel %vm189, %v1257, 0.0
  %1378 = vadd.xlane.f32.xlu0 %v1377
  %v1379 = vpop.xlane.xlu0 %1378
  %v1380 = vsel %vm189, %v1259, 0.0
  %1381 = vadd.xlane.f32.xlu0 %v1380
  %v1382 = vpop.xlane.xlu0 %1381
  %v1383 = vsel %vm189, %v1261, 0.0
  %1384 = vadd.xlane.f32.xlu0 %v1383
  %v1385 = vpop.xlane.xlu0 %1384
  %v1386 = vsel %vm189, %v1263, 0.0
  %1387 = vadd.xlane.f32.xlu0 %v1386
  %v1388 = vpop.xlane.xlu0 %1387
  %v1389 = vsel %vm189, %v1265, 0.0
  %1390 = vadd.xlane.f32.xlu0 %v1389
  %v1391 = vpop.xlane.xlu0 %1390
  %v1392 = vsel %vm189, %v1267, 0.0
  %1393 = vadd.xlane.f32.xlu0 %v1392
  %v1394 = vpop.xlane.xlu0 %1393
  %v1395 = vsel %vm189, %v1269, 0.0
  %1396 = vadd.xlane.f32.xlu0 %v1395
  %v1397 = vpop.xlane.xlu0 %1396
  %1399 = vrot.lane.b32.xlu0 %v289, 8
  %v1400 = vpop.permute.xlu0 %1399
  %v1402 = vmul.f32 %v120, %v1400
  %v1403 = vmul.f32 %v121, %v1400
  %v1404 = vmul.f32 %v122, %v1400
  %v1405 = vmul.f32 %v123, %v1400
  %v1406 = vmul.f32 %v124, %v1400
  %v1407 = vmul.f32 %v125, %v1400
  %v1408 = vmul.f32 %v126, %v1400
  %v1409 = vmul.f32 %v127, %v1400
  %v1410 = vmul.f32 %v128, %v1400
  %v1411 = vmul.f32 %v129, %v1400
  %v1412 = vmul.f32 %v130, %v1400
  %v1413 = vmul.f32 %v131, %v1400
  %v1414 = vmul.f32 %v132, %v1400
  %v1415 = vmul.f32 %v133, %v1400
  %v1416 = vmul.f32 %v134, %v1400
  %v1417 = vmul.f32 %v135, %v1400
  %v1418 = vmul.f32 %v136, %v1400
  %v1419 = vmul.f32 %v137, %v1400
  %v1420 = vmul.f32 %v138, %v1400
  %v1421 = vmul.f32 %v139, %v1400
  %v1422 = vmul.f32 %v140, %v1400
  %v1423 = vmul.f32 %v141, %v1400
  %v1424 = vmul.f32 %v142, %v1400
  %v1425 = vmul.f32 %v143, %v1400
  %v1426 = vmul.f32 %v144, %v1400
  %v1427 = vmul.f32 %v145, %v1400
  %v1428 = vmul.f32 %v146, %v1400
  %v1429 = vmul.f32 %v147, %v1400
  %v1430 = vmul.f32 %v148, %v1400
  %v1431 = vmul.f32 %v149, %v1400
  %v1432 = vmul.f32 %v150, %v1400
  %v1433 = vmul.f32 %v151, %v1400
  %1466 = vrot.lane.b32.xlu0 %v1402, 120
  %v1467 = vpop.permute.xlu0 %1466
  %1468 = vrot.lane.b32.xlu0 %v1403, 120
  %v1469 = vpop.permute.xlu0 %1468
  %1470 = vrot.lane.b32.xlu0 %v1404, 120
  %v1471 = vpop.permute.xlu0 %1470
  %1472 = vrot.lane.b32.xlu0 %v1405, 120
  %v1473 = vpop.permute.xlu0 %1472
  %1474 = vrot.lane.b32.xlu0 %v1406, 120
  %v1475 = vpop.permute.xlu0 %1474
  %1476 = vrot.lane.b32.xlu0 %v1407, 120
  %v1477 = vpop.permute.xlu0 %1476
  %1478 = vrot.lane.b32.xlu0 %v1408, 120
  %v1479 = vpop.permute.xlu0 %1478
  %1480 = vrot.lane.b32.xlu0 %v1409, 120
  %v1481 = vpop.permute.xlu0 %1480
  %1482 = vrot.lane.b32.xlu0 %v1410, 120
  %v1483 = vpop.permute.xlu0 %1482
  %1484 = vrot.lane.b32.xlu0 %v1411, 120
  %v1485 = vpop.permute.xlu0 %1484
  %1486 = vrot.lane.b32.xlu0 %v1412, 120
  %v1487 = vpop.permute.xlu0 %1486
  %1488 = vrot.lane.b32.xlu0 %v1413, 120
  %v1489 = vpop.permute.xlu0 %1488
  %1490 = vrot.lane.b32.xlu0 %v1414, 120
  %v1491 = vpop.permute.xlu0 %1490
  %1492 = vrot.lane.b32.xlu0 %v1415, 120
  %v1493 = vpop.permute.xlu0 %1492
  %1494 = vrot.lane.b32.xlu0 %v1416, 120
  %v1495 = vpop.permute.xlu0 %1494
  %1496 = vrot.lane.b32.xlu0 %v1417, 120
  %v1497 = vpop.permute.xlu0 %1496
  %1498 = vrot.lane.b32.xlu0 %v1418, 120
  %v1499 = vpop.permute.xlu0 %1498
  %1500 = vrot.lane.b32.xlu0 %v1419, 120
  %v1501 = vpop.permute.xlu0 %1500
  %1502 = vrot.lane.b32.xlu0 %v1420, 120
  %v1503 = vpop.permute.xlu0 %1502
  %1504 = vrot.lane.b32.xlu0 %v1421, 120
  %v1505 = vpop.permute.xlu0 %1504
  %1506 = vrot.lane.b32.xlu0 %v1422, 120
  %v1507 = vpop.permute.xlu0 %1506
  %1508 = vrot.lane.b32.xlu0 %v1423, 120
  %v1509 = vpop.permute.xlu0 %1508
  %1510 = vrot.lane.b32.xlu0 %v1424, 120
  %v1511 = vpop.permute.xlu0 %1510
  %1512 = vrot.lane.b32.xlu0 %v1425, 120
  %v1513 = vpop.permute.xlu0 %1512
  %1514 = vrot.lane.b32.xlu0 %v1426, 120
  %v1515 = vpop.permute.xlu0 %1514
  %1516 = vrot.lane.b32.xlu0 %v1427, 120
  %v1517 = vpop.permute.xlu0 %1516
  %1518 = vrot.lane.b32.xlu0 %v1428, 120
  %v1519 = vpop.permute.xlu0 %1518
  %1520 = vrot.lane.b32.xlu0 %v1429, 120
  %v1521 = vpop.permute.xlu0 %1520
  %1522 = vrot.lane.b32.xlu0 %v1430, 120
  %v1523 = vpop.permute.xlu0 %1522
  %1524 = vrot.lane.b32.xlu0 %v1431, 120
  %v1525 = vpop.permute.xlu0 %1524
  %1526 = vrot.lane.b32.xlu0 %v1432, 120
  %v1527 = vpop.permute.xlu0 %1526
  %1528 = vrot.lane.b32.xlu0 %v1433, 120
  %v1529 = vpop.permute.xlu0 %1528
  %v1562 = vsel %vm189, %v1467, 0.0
  %1563 = vadd.xlane.f32.xlu0 %v1562
  %v1564 = vpop.xlane.xlu0 %1563
  %v1565 = vsel %vm189, %v1469, 0.0
  %1566 = vadd.xlane.f32.xlu0 %v1565
  %v1567 = vpop.xlane.xlu0 %1566
  %v1568 = vsel %vm189, %v1471, 0.0
  %1569 = vadd.xlane.f32.xlu0 %v1568
  %v1570 = vpop.xlane.xlu0 %1569
  %v1571 = vsel %vm189, %v1473, 0.0
  %1572 = vadd.xlane.f32.xlu0 %v1571
  %v1573 = vpop.xlane.xlu0 %1572
  %v1574 = vsel %vm189, %v1475, 0.0
  %1575 = vadd.xlane.f32.xlu0 %v1574
  %v1576 = vpop.xlane.xlu0 %1575
  %v1577 = vsel %vm189, %v1477, 0.0
  %1578 = vadd.xlane.f32.xlu0 %v1577
  %v1579 = vpop.xlane.xlu0 %1578
  %v1580 = vsel %vm189, %v1479, 0.0
  %1581 = vadd.xlane.f32.xlu0 %v1580
  %v1582 = vpop.xlane.xlu0 %1581
  %v1583 = vsel %vm189, %v1481, 0.0
  %1584 = vadd.xlane.f32.xlu0 %v1583
  %v1585 = vpop.xlane.xlu0 %1584
  %v1586 = vsel %vm189, %v1483, 0.0
  %1587 = vadd.xlane.f32.xlu0 %v1586
  %v1588 = vpop.xlane.xlu0 %1587
  %v1589 = vsel %vm189, %v1485, 0.0
  %1590 = vadd.xlane.f32.xlu0 %v1589
  %v1591 = vpop.xlane.xlu0 %1590
  %v1592 = vsel %vm189, %v1487, 0.0
  %1593 = vadd.xlane.f32.xlu0 %v1592
  %v1594 = vpop.xlane.xlu0 %1593
  %v1595 = vsel %vm189, %v1489, 0.0
  %1596 = vadd.xlane.f32.xlu0 %v1595
  %v1597 = vpop.xlane.xlu0 %1596
  %v1598 = vsel %vm189, %v1491, 0.0
  %1599 = vadd.xlane.f32.xlu0 %v1598
  %v1600 = vpop.xlane.xlu0 %1599
  %v1601 = vsel %vm189, %v1493, 0.0
  %1602 = vadd.xlane.f32.xlu0 %v1601
  %v1603 = vpop.xlane.xlu0 %1602
  %v1604 = vsel %vm189, %v1495, 0.0
  %1605 = vadd.xlane.f32.xlu0 %v1604
  %v1606 = vpop.xlane.xlu0 %1605
  %v1607 = vsel %vm189, %v1497, 0.0
  %1608 = vadd.xlane.f32.xlu0 %v1607
  %v1609 = vpop.xlane.xlu0 %1608
  %v1610 = vsel %vm189, %v1499, 0.0
  %1611 = vadd.xlane.f32.xlu0 %v1610
  %v1612 = vpop.xlane.xlu0 %1611
  %v1613 = vsel %vm189, %v1501, 0.0
  %1614 = vadd.xlane.f32.xlu0 %v1613
  %v1615 = vpop.xlane.xlu0 %1614
  %v1616 = vsel %vm189, %v1503, 0.0
  %1617 = vadd.xlane.f32.xlu0 %v1616
  %v1618 = vpop.xlane.xlu0 %1617
  %v1619 = vsel %vm189, %v1505, 0.0
  %1620 = vadd.xlane.f32.xlu0 %v1619
  %v1621 = vpop.xlane.xlu0 %1620
  %v1622 = vsel %vm189, %v1507, 0.0
  %1623 = vadd.xlane.f32.xlu0 %v1622
  %v1624 = vpop.xlane.xlu0 %1623
  %v1625 = vsel %vm189, %v1509, 0.0
  %1626 = vadd.xlane.f32.xlu0 %v1625
  %v1627 = vpop.xlane.xlu0 %1626
  %v1628 = vsel %vm189, %v1511, 0.0
  %1629 = vadd.xlane.f32.xlu0 %v1628
  %v1630 = vpop.xlane.xlu0 %1629
  %v1631 = vsel %vm189, %v1513, 0.0
  %1632 = vadd.xlane.f32.xlu0 %v1631
  %v1633 = vpop.xlane.xlu0 %1632
  %v1634 = vsel %vm189, %v1515, 0.0
  %1635 = vadd.xlane.f32.xlu0 %v1634
  %v1636 = vpop.xlane.xlu0 %1635
  %v1637 = vsel %vm189, %v1517, 0.0
  %1638 = vadd.xlane.f32.xlu0 %v1637
  %v1639 = vpop.xlane.xlu0 %1638
  %v1640 = vsel %vm189, %v1519, 0.0
  %1641 = vadd.xlane.f32.xlu0 %v1640
  %v1642 = vpop.xlane.xlu0 %1641
  %v1643 = vsel %vm189, %v1521, 0.0
  %1644 = vadd.xlane.f32.xlu0 %v1643
  %v1645 = vpop.xlane.xlu0 %1644
  %v1646 = vsel %vm189, %v1523, 0.0
  %1647 = vadd.xlane.f32.xlu0 %v1646
  %v1648 = vpop.xlane.xlu0 %1647
  %v1649 = vsel %vm189, %v1525, 0.0
  %1650 = vadd.xlane.f32.xlu0 %v1649
  %v1651 = vpop.xlane.xlu0 %1650
  %v1652 = vsel %vm189, %v1527, 0.0
  %1653 = vadd.xlane.f32.xlu0 %v1652
  %v1654 = vpop.xlane.xlu0 %1653
  %v1655 = vsel %vm189, %v1529, 0.0
  %1656 = vadd.xlane.f32.xlu0 %v1655
  %v1657 = vpop.xlane.xlu0 %1656
  %v1658 = vsel %vm418, %v1304, %v1564
  %v1659 = vsel %vm418, %v1307, %v1567
  %v1660 = vsel %vm418, %v1310, %v1570
  %v1661 = vsel %vm418, %v1313, %v1573
  %v1662 = vsel %vm418, %v1316, %v1576
  %v1663 = vsel %vm418, %v1319, %v1579
  %v1664 = vsel %vm418, %v1322, %v1582
  %v1665 = vsel %vm418, %v1325, %v1585
  %v1666 = vsel %vm418, %v1328, %v1588
  %v1667 = vsel %vm418, %v1331, %v1591
  %v1668 = vsel %vm418, %v1334, %v1594
  %v1669 = vsel %vm418, %v1337, %v1597
  %v1670 = vsel %vm418, %v1340, %v1600
  %v1671 = vsel %vm418, %v1343, %v1603
  %v1672 = vsel %vm418, %v1346, %v1606
  %v1673 = vsel %vm418, %v1349, %v1609
  %v1674 = vsel %vm418, %v1352, %v1612
  %v1675 = vsel %vm418, %v1355, %v1615
  %v1676 = vsel %vm418, %v1358, %v1618
  %v1677 = vsel %vm418, %v1361, %v1621
  %v1678 = vsel %vm418, %v1364, %v1624
  %v1679 = vsel %vm418, %v1367, %v1627
  %v1680 = vsel %vm418, %v1370, %v1630
  %v1681 = vsel %vm418, %v1373, %v1633
  %v1682 = vsel %vm418, %v1376, %v1636
  %v1683 = vsel %vm418, %v1379, %v1639
  %v1684 = vsel %vm418, %v1382, %v1642
  %v1685 = vsel %vm418, %v1385, %v1645
  %v1686 = vsel %vm418, %v1388, %v1648
  %v1687 = vsel %vm418, %v1391, %v1651
  %v1688 = vsel %vm418, %v1394, %v1654
  %v1689 = vsel %vm418, %v1397, %v1657
  %v1690 = vadd.f32 %v1658, %v456
  %v1691 = vadd.f32 %v1659, %v456
  %v1692 = vadd.f32 %v1660, %v456
  %v1693 = vadd.f32 %v1661, %v456
  %v1694 = vadd.f32 %v1662, %v456
  %v1695 = vadd.f32 %v1663, %v456
  %v1696 = vadd.f32 %v1664, %v456
  %v1697 = vadd.f32 %v1665, %v456
  %v1698 = vadd.f32 %v1666, %v456
  %v1699 = vadd.f32 %v1667, %v456
  %v1700 = vadd.f32 %v1668, %v456
  %v1701 = vadd.f32 %v1669, %v456
  %v1702 = vadd.f32 %v1670, %v456
  %v1703 = vadd.f32 %v1671, %v456
  %v1704 = vadd.f32 %v1672, %v456
  %v1705 = vadd.f32 %v1673, %v456
  %v1706 = vadd.f32 %v1674, %v456
  %v1707 = vadd.f32 %v1675, %v456
  %v1708 = vadd.f32 %v1676, %v456
  %v1709 = vadd.f32 %v1677, %v456
  %v1710 = vadd.f32 %v1678, %v456
  %v1711 = vadd.f32 %v1679, %v456
  %v1712 = vadd.f32 %v1680, %v456
  %v1713 = vadd.f32 %v1681, %v456
  %v1714 = vadd.f32 %v1682, %v456
  %v1715 = vadd.f32 %v1683, %v456
  %v1716 = vadd.f32 %v1684, %v456
  %v1717 = vadd.f32 %v1685, %v456
  %v1718 = vadd.f32 %v1686, %v456
  %v1719 = vadd.f32 %v1687, %v456
  %v1720 = vadd.f32 %v1688, %v456
  %v1721 = vadd.f32 %v1689, %v456
  %v1722 = vtanh.pop %v1690
  %v1723 = vtanh.pop %v1691
  %v1724 = vtanh.pop %v1692
  %v1725 = vtanh.pop %v1693
  %v1726 = vtanh.pop %v1694
  %v1727 = vtanh.pop %v1695
  %v1728 = vtanh.pop %v1696
  %v1729 = vtanh.pop %v1697
  %v1730 = vtanh.pop %v1698
  %v1731 = vtanh.pop %v1699
  %v1732 = vtanh.pop %v1700
  %v1733 = vtanh.pop %v1701
  %v1734 = vtanh.pop %v1702
  %v1735 = vtanh.pop %v1703
  %v1736 = vtanh.pop %v1704
  %v1737 = vtanh.pop %v1705
  %v1738 = vtanh.pop %v1706
  %v1739 = vtanh.pop %v1707
  %v1740 = vtanh.pop %v1708
  %v1741 = vtanh.pop %v1709
  %v1742 = vtanh.pop %v1710
  %v1743 = vtanh.pop %v1711
  %v1744 = vtanh.pop %v1712
  %v1745 = vtanh.pop %v1713
  %v1746 = vtanh.pop %v1714
  %v1747 = vtanh.pop %v1715
  %v1748 = vtanh.pop %v1716
  %v1749 = vtanh.pop %v1717
  %v1750 = vtanh.pop %v1718
  %v1751 = vtanh.pop %v1719
  %v1752 = vtanh.pop %v1720
  %v1753 = vtanh.pop %v1721
  %v1754 = vmul.f32 %v1722, %v527
  %v1755 = vmul.f32 %v1723, %v527
  %v1756 = vmul.f32 %v1724, %v527
  %v1757 = vmul.f32 %v1725, %v527
  %v1758 = vmul.f32 %v1726, %v527
  %v1759 = vmul.f32 %v1727, %v527
  %v1760 = vmul.f32 %v1728, %v527
  %v1761 = vmul.f32 %v1729, %v527
  %v1762 = vmul.f32 %v1730, %v527
  %v1763 = vmul.f32 %v1731, %v527
  %v1764 = vmul.f32 %v1732, %v527
  %v1765 = vmul.f32 %v1733, %v527
  %v1766 = vmul.f32 %v1734, %v527
  %v1767 = vmul.f32 %v1735, %v527
  %v1768 = vmul.f32 %v1736, %v527
  %v1769 = vmul.f32 %v1737, %v527
  %v1770 = vmul.f32 %v1738, %v527
  %v1771 = vmul.f32 %v1739, %v527
  %v1772 = vmul.f32 %v1740, %v527
  %v1773 = vmul.f32 %v1741, %v527
  %v1774 = vmul.f32 %v1742, %v527
  %v1775 = vmul.f32 %v1743, %v527
  %v1776 = vmul.f32 %v1744, %v527
  %v1777 = vmul.f32 %v1745, %v527
  %v1778 = vmul.f32 %v1746, %v527
  %v1779 = vmul.f32 %v1747, %v527
  %v1780 = vmul.f32 %v1748, %v527
  %v1781 = vmul.f32 %v1749, %v527
  %v1782 = vmul.f32 %v1750, %v527
  %v1783 = vmul.f32 %v1751, %v527
  %v1784 = vmul.f32 %v1752, %v527
  %v1785 = vmul.f32 %v1753, %v527
  %v1786 = vsel %vm561, %v1754, 0.0
  %1787 = vadd.xlane.f32.xlu0 %v1786
  %v1788 = vpop.xlane.xlu0 %1787
  %v1789 = vsel %vm561, %v1755, 0.0
  %1790 = vadd.xlane.f32.xlu0 %v1789
  %v1791 = vpop.xlane.xlu0 %1790
  %v1792 = vsel %vm561, %v1756, 0.0
  %1793 = vadd.xlane.f32.xlu0 %v1792
  %v1794 = vpop.xlane.xlu0 %1793
  %v1795 = vsel %vm561, %v1757, 0.0
  %1796 = vadd.xlane.f32.xlu0 %v1795
  %v1797 = vpop.xlane.xlu0 %1796
  %v1798 = vsel %vm561, %v1758, 0.0
  %1799 = vadd.xlane.f32.xlu0 %v1798
  %v1800 = vpop.xlane.xlu0 %1799
  %v1801 = vsel %vm561, %v1759, 0.0
  %1802 = vadd.xlane.f32.xlu0 %v1801
  %v1803 = vpop.xlane.xlu0 %1802
  %v1804 = vsel %vm561, %v1760, 0.0
  %1805 = vadd.xlane.f32.xlu0 %v1804
  %v1806 = vpop.xlane.xlu0 %1805
  %v1807 = vsel %vm561, %v1761, 0.0
  %1808 = vadd.xlane.f32.xlu0 %v1807
  %v1809 = vpop.xlane.xlu0 %1808
  %v1810 = vsel %vm561, %v1762, 0.0
  %1811 = vadd.xlane.f32.xlu0 %v1810
  %v1812 = vpop.xlane.xlu0 %1811
  %v1813 = vsel %vm561, %v1763, 0.0
  %1814 = vadd.xlane.f32.xlu0 %v1813
  %v1815 = vpop.xlane.xlu0 %1814
  %v1816 = vsel %vm561, %v1764, 0.0
  %1817 = vadd.xlane.f32.xlu0 %v1816
  %v1818 = vpop.xlane.xlu0 %1817
  %v1819 = vsel %vm561, %v1765, 0.0
  %1820 = vadd.xlane.f32.xlu0 %v1819
  %v1821 = vpop.xlane.xlu0 %1820
  %v1822 = vsel %vm561, %v1766, 0.0
  %1823 = vadd.xlane.f32.xlu0 %v1822
  %v1824 = vpop.xlane.xlu0 %1823
  %v1825 = vsel %vm561, %v1767, 0.0
  %1826 = vadd.xlane.f32.xlu0 %v1825
  %v1827 = vpop.xlane.xlu0 %1826
  %v1828 = vsel %vm561, %v1768, 0.0
  %1829 = vadd.xlane.f32.xlu0 %v1828
  %v1830 = vpop.xlane.xlu0 %1829
  %v1831 = vsel %vm561, %v1769, 0.0
  %1832 = vadd.xlane.f32.xlu0 %v1831
  %v1833 = vpop.xlane.xlu0 %1832
  %v1834 = vsel %vm561, %v1770, 0.0
  %1835 = vadd.xlane.f32.xlu0 %v1834
  %v1836 = vpop.xlane.xlu0 %1835
  %v1837 = vsel %vm561, %v1771, 0.0
  %1838 = vadd.xlane.f32.xlu0 %v1837
  %v1839 = vpop.xlane.xlu0 %1838
  %v1840 = vsel %vm561, %v1772, 0.0
  %1841 = vadd.xlane.f32.xlu0 %v1840
  %v1842 = vpop.xlane.xlu0 %1841
  %v1843 = vsel %vm561, %v1773, 0.0
  %1844 = vadd.xlane.f32.xlu0 %v1843
  %v1845 = vpop.xlane.xlu0 %1844
  %v1846 = vsel %vm561, %v1774, 0.0
  %1847 = vadd.xlane.f32.xlu0 %v1846
  %v1848 = vpop.xlane.xlu0 %1847
  %v1849 = vsel %vm561, %v1775, 0.0
  %1850 = vadd.xlane.f32.xlu0 %v1849
  %v1851 = vpop.xlane.xlu0 %1850
  %v1852 = vsel %vm561, %v1776, 0.0
  %1853 = vadd.xlane.f32.xlu0 %v1852
  %v1854 = vpop.xlane.xlu0 %1853
  %v1855 = vsel %vm561, %v1777, 0.0
  %1856 = vadd.xlane.f32.xlu0 %v1855
  %v1857 = vpop.xlane.xlu0 %1856
  %v1858 = vsel %vm561, %v1778, 0.0
  %1859 = vadd.xlane.f32.xlu0 %v1858
  %v1860 = vpop.xlane.xlu0 %1859
  %v1861 = vsel %vm561, %v1779, 0.0
  %1862 = vadd.xlane.f32.xlu0 %v1861
  %v1863 = vpop.xlane.xlu0 %1862
  %v1864 = vsel %vm561, %v1780, 0.0
  %1865 = vadd.xlane.f32.xlu0 %v1864
  %v1866 = vpop.xlane.xlu0 %1865
  %v1867 = vsel %vm561, %v1781, 0.0
  %1868 = vadd.xlane.f32.xlu0 %v1867
  %v1869 = vpop.xlane.xlu0 %1868
  %v1870 = vsel %vm561, %v1782, 0.0
  %1871 = vadd.xlane.f32.xlu0 %v1870
  %v1872 = vpop.xlane.xlu0 %1871
  %v1873 = vsel %vm561, %v1783, 0.0
  %1874 = vadd.xlane.f32.xlu0 %v1873
  %v1875 = vpop.xlane.xlu0 %1874
  %v1876 = vsel %vm561, %v1784, 0.0
  %1877 = vadd.xlane.f32.xlu0 %v1876
  %v1878 = vpop.xlane.xlu0 %1877
  %v1879 = vsel %vm561, %v1785, 0.0
  %1880 = vadd.xlane.f32.xlu0 %v1879
  %v1881 = vpop.xlane.xlu0 %1880
  %v1882 = vmax.f32 %v564, %v1044
  %v1883 = vmax.f32 %v567, %v1047
  %v1884 = vmax.f32 %v570, %v1050
  %v1885 = vmax.f32 %v573, %v1053
  %v1886 = vmax.f32 %v576, %v1056
  %v1887 = vmax.f32 %v579, %v1059
  %v1888 = vmax.f32 %v582, %v1062
  %v1889 = vmax.f32 %v585, %v1065
  %v1890 = vmax.f32 %v588, %v1068
  %v1891 = vmax.f32 %v591, %v1071
  %v1892 = vmax.f32 %v594, %v1074
  %v1893 = vmax.f32 %v597, %v1077
  %v1894 = vmax.f32 %v600, %v1080
  %v1895 = vmax.f32 %v603, %v1083
  %v1896 = vmax.f32 %v606, %v1086
  %v1897 = vmax.f32 %v609, %v1089
  %v1898 = vmax.f32 %v612, %v1092
  %v1899 = vmax.f32 %v615, %v1095
  %v1900 = vmax.f32 %v618, %v1098
  %v1901 = vmax.f32 %v621, %v1101
  %v1902 = vmax.f32 %v624, %v1104
  %v1903 = vmax.f32 %v627, %v1107
  %v1904 = vmax.f32 %v630, %v1110
  %v1905 = vmax.f32 %v633, %v1113
  %v1906 = vmax.f32 %v636, %v1116
  %v1907 = vmax.f32 %v639, %v1119
  %v1908 = vmax.f32 %v642, %v1122
  %v1909 = vmax.f32 %v645, %v1125
  %v1910 = vmax.f32 %v648, %v1128
  %v1911 = vmax.f32 %v651, %v1131
  %v1912 = vmax.f32 %v654, %v1134
  %v1913 = vmax.f32 %v657, %v1137
  %v1914 = vmax.f32 %v1882, %v1788
  %v1915 = vmax.f32 %v1883, %v1791
  %v1916 = vmax.f32 %v1884, %v1794
  %v1917 = vmax.f32 %v1885, %v1797
  %v1918 = vmax.f32 %v1886, %v1800
  %v1919 = vmax.f32 %v1887, %v1803
  %v1920 = vmax.f32 %v1888, %v1806
  %v1921 = vmax.f32 %v1889, %v1809
  %v1922 = vmax.f32 %v1890, %v1812
  %v1923 = vmax.f32 %v1891, %v1815
  %v1924 = vmax.f32 %v1892, %v1818
  %v1925 = vmax.f32 %v1893, %v1821
  %v1926 = vmax.f32 %v1894, %v1824
  %v1927 = vmax.f32 %v1895, %v1827
  %v1928 = vmax.f32 %v1896, %v1830
  %v1929 = vmax.f32 %v1897, %v1833
  %v1930 = vmax.f32 %v1898, %v1836
  %v1931 = vmax.f32 %v1899, %v1839
  %v1932 = vmax.f32 %v1900, %v1842
  %v1933 = vmax.f32 %v1901, %v1845
  %v1934 = vmax.f32 %v1902, %v1848
  %v1935 = vmax.f32 %v1903, %v1851
  %v1936 = vmax.f32 %v1904, %v1854
  %v1937 = vmax.f32 %v1905, %v1857
  %v1938 = vmax.f32 %v1906, %v1860
  %v1939 = vmax.f32 %v1907, %v1863
  %v1940 = vmax.f32 %v1908, %v1866
  %v1941 = vmax.f32 %v1909, %v1869
  %v1942 = vmax.f32 %v1910, %v1872
  %v1943 = vmax.f32 %v1911, %v1875
  %v1944 = vmax.f32 %v1912, %v1878
  %v1945 = vmax.f32 %v1913, %v1881
  %v1946 = vsub.f32 %v564, %v1914
  %v1947 = vsub.f32 %v567, %v1915
  %v1948 = vsub.f32 %v570, %v1916
  %v1949 = vsub.f32 %v573, %v1917
  %v1950 = vsub.f32 %v576, %v1918
  %v1951 = vsub.f32 %v579, %v1919
  %v1952 = vsub.f32 %v582, %v1920
  %v1953 = vsub.f32 %v585, %v1921
  %v1954 = vsub.f32 %v588, %v1922
  %v1955 = vsub.f32 %v591, %v1923
  %v1956 = vsub.f32 %v594, %v1924
  %v1957 = vsub.f32 %v597, %v1925
  %v1958 = vsub.f32 %v600, %v1926
  %v1959 = vsub.f32 %v603, %v1927
  %v1960 = vsub.f32 %v606, %v1928
  %v1961 = vsub.f32 %v609, %v1929
  %v1962 = vsub.f32 %v612, %v1930
  %v1963 = vsub.f32 %v615, %v1931
  %v1964 = vsub.f32 %v618, %v1932
  %v1965 = vsub.f32 %v621, %v1933
  %v1966 = vsub.f32 %v624, %v1934
  %v1967 = vsub.f32 %v627, %v1935
  %v1968 = vsub.f32 %v630, %v1936
  %v1969 = vsub.f32 %v633, %v1937
  %v1970 = vsub.f32 %v636, %v1938
  %v1971 = vsub.f32 %v639, %v1939
  %v1972 = vsub.f32 %v642, %v1940
  %v1973 = vsub.f32 %v645, %v1941
  %v1974 = vsub.f32 %v648, %v1942
  %v1975 = vsub.f32 %v651, %v1943
  %v1976 = vsub.f32 %v654, %v1944
  %v1977 = vsub.f32 %v657, %v1945
  %v1978 = vmul.f32 %v1946, 1.442695
  %v1979 = vpow.pop %v1978
  %v1980 = vmul.f32 %v1947, 1.442695
  %v1981 = vpow.pop %v1980
  %v1982 = vmul.f32 %v1948, 1.442695
  %v1983 = vpow.pop %v1982
  %v1984 = vmul.f32 %v1949, 1.442695
  %v1985 = vpow.pop %v1984
  %v1986 = vmul.f32 %v1950, 1.442695
  %v1987 = vpow.pop %v1986
  %v1988 = vmul.f32 %v1951, 1.442695
  %v1989 = vpow.pop %v1988
  %v1990 = vmul.f32 %v1952, 1.442695
  %v1991 = vpow.pop %v1990
  %v1992 = vmul.f32 %v1953, 1.442695
  %v1993 = vpow.pop %v1992
  %v1994 = vmul.f32 %v1954, 1.442695
  %v1995 = vpow.pop %v1994
  %v1996 = vmul.f32 %v1955, 1.442695
  %v1997 = vpow.pop %v1996
  %v1998 = vmul.f32 %v1956, 1.442695
  %v1999 = vpow.pop %v1998
  %v2000 = vmul.f32 %v1957, 1.442695
  %v2001 = vpow.pop %v2000
  %v2002 = vmul.f32 %v1958, 1.442695
  %v2003 = vpow.pop %v2002
  %v2004 = vmul.f32 %v1959, 1.442695
  %v2005 = vpow.pop %v2004
  %v2006 = vmul.f32 %v1960, 1.442695
  %v2007 = vpow.pop %v2006
  %v2008 = vmul.f32 %v1961, 1.442695
  %v2009 = vpow.pop %v2008
  %v2010 = vmul.f32 %v1962, 1.442695
  %v2011 = vpow.pop %v2010
  %v2012 = vmul.f32 %v1963, 1.442695
  %v2013 = vpow.pop %v2012
  %v2014 = vmul.f32 %v1964, 1.442695
  %v2015 = vpow.pop %v2014
  %v2016 = vmul.f32 %v1965, 1.442695
  %v2017 = vpow.pop %v2016
  %v2018 = vmul.f32 %v1966, 1.442695
  %v2019 = vpow.pop %v2018
  %v2020 = vmul.f32 %v1967, 1.442695
  %v2021 = vpow.pop %v2020
  %v2022 = vmul.f32 %v1968, 1.442695
  %v2023 = vpow.pop %v2022
  %v2024 = vmul.f32 %v1969, 1.442695
  %v2025 = vpow.pop %v2024
  %v2026 = vmul.f32 %v1970, 1.442695
  %v2027 = vpow.pop %v2026
  %v2028 = vmul.f32 %v1971, 1.442695
  %v2029 = vpow.pop %v2028
  %v2030 = vmul.f32 %v1972, 1.442695
  %v2031 = vpow.pop %v2030
  %v2032 = vmul.f32 %v1973, 1.442695
  %v2033 = vpow.pop %v2032
  %v2034 = vmul.f32 %v1974, 1.442695
  %v2035 = vpow.pop %v2034
  %v2036 = vmul.f32 %v1975, 1.442695
  %v2037 = vpow.pop %v2036
  %v2038 = vmul.f32 %v1976, 1.442695
  %v2039 = vpow.pop %v2038
  %v2040 = vmul.f32 %v1977, 1.442695
  %v2041 = vpow.pop %v2040
  %v2042 = vsub.f32 %v1044, %v1914
  %v2043 = vsub.f32 %v1047, %v1915
  %v2044 = vsub.f32 %v1050, %v1916
  %v2045 = vsub.f32 %v1053, %v1917
  %v2046 = vsub.f32 %v1056, %v1918
  %v2047 = vsub.f32 %v1059, %v1919
  %v2048 = vsub.f32 %v1062, %v1920
  %v2049 = vsub.f32 %v1065, %v1921
  %v2050 = vsub.f32 %v1068, %v1922
  %v2051 = vsub.f32 %v1071, %v1923
  %v2052 = vsub.f32 %v1074, %v1924
  %v2053 = vsub.f32 %v1077, %v1925
  %v2054 = vsub.f32 %v1080, %v1926
  %v2055 = vsub.f32 %v1083, %v1927
  %v2056 = vsub.f32 %v1086, %v1928
  %v2057 = vsub.f32 %v1089, %v1929
  %v2058 = vsub.f32 %v1092, %v1930
  %v2059 = vsub.f32 %v1095, %v1931
  %v2060 = vsub.f32 %v1098, %v1932
  %v2061 = vsub.f32 %v1101, %v1933
  %v2062 = vsub.f32 %v1104, %v1934
  %v2063 = vsub.f32 %v1107, %v1935
  %v2064 = vsub.f32 %v1110, %v1936
  %v2065 = vsub.f32 %v1113, %v1937
  %v2066 = vsub.f32 %v1116, %v1938
  %v2067 = vsub.f32 %v1119, %v1939
  %v2068 = vsub.f32 %v1122, %v1940
  %v2069 = vsub.f32 %v1125, %v1941
  %v2070 = vsub.f32 %v1128, %v1942
  %v2071 = vsub.f32 %v1131, %v1943
  %v2072 = vsub.f32 %v1134, %v1944
  %v2073 = vsub.f32 %v1137, %v1945
  %v2074 = vmul.f32 %v2042, 1.442695
  %v2075 = vpow.pop %v2074
  %v2076 = vmul.f32 %v2043, 1.442695
  %v2077 = vpow.pop %v2076
  %v2078 = vmul.f32 %v2044, 1.442695
  %v2079 = vpow.pop %v2078
  %v2080 = vmul.f32 %v2045, 1.442695
  %v2081 = vpow.pop %v2080
  %v2082 = vmul.f32 %v2046, 1.442695
  %v2083 = vpow.pop %v2082
  %v2084 = vmul.f32 %v2047, 1.442695
  %v2085 = vpow.pop %v2084
  %v2086 = vmul.f32 %v2048, 1.442695
  %v2087 = vpow.pop %v2086
  %v2088 = vmul.f32 %v2049, 1.442695
  %v2089 = vpow.pop %v2088
  %v2090 = vmul.f32 %v2050, 1.442695
  %v2091 = vpow.pop %v2090
  %v2092 = vmul.f32 %v2051, 1.442695
  %v2093 = vpow.pop %v2092
  %v2094 = vmul.f32 %v2052, 1.442695
  %v2095 = vpow.pop %v2094
  %v2096 = vmul.f32 %v2053, 1.442695
  %v2097 = vpow.pop %v2096
  %v2098 = vmul.f32 %v2054, 1.442695
  %v2099 = vpow.pop %v2098
  %v2100 = vmul.f32 %v2055, 1.442695
  %v2101 = vpow.pop %v2100
  %v2102 = vmul.f32 %v2056, 1.442695
  %v2103 = vpow.pop %v2102
  %v2104 = vmul.f32 %v2057, 1.442695
  %v2105 = vpow.pop %v2104
  %v2106 = vmul.f32 %v2058, 1.442695
  %v2107 = vpow.pop %v2106
  %v2108 = vmul.f32 %v2059, 1.442695
  %v2109 = vpow.pop %v2108
  %v2110 = vmul.f32 %v2060, 1.442695
  %v2111 = vpow.pop %v2110
  %v2112 = vmul.f32 %v2061, 1.442695
  %v2113 = vpow.pop %v2112
  %v2114 = vmul.f32 %v2062, 1.442695
  %v2115 = vpow.pop %v2114
  %v2116 = vmul.f32 %v2063, 1.442695
  %v2117 = vpow.pop %v2116
  %v2118 = vmul.f32 %v2064, 1.442695
  %v2119 = vpow.pop %v2118
  %v2120 = vmul.f32 %v2065, 1.442695
  %v2121 = vpow.pop %v2120
  %v2122 = vmul.f32 %v2066, 1.442695
  %v2123 = vpow.pop %v2122
  %v2124 = vmul.f32 %v2067, 1.442695
  %v2125 = vpow.pop %v2124
  %v2126 = vmul.f32 %v2068, 1.442695
  %v2127 = vpow.pop %v2126
  %v2128 = vmul.f32 %v2069, 1.442695
  %v2129 = vpow.pop %v2128
  %v2130 = vmul.f32 %v2070, 1.442695
  %v2131 = vpow.pop %v2130
  %v2132 = vmul.f32 %v2071, 1.442695
  %v2133 = vpow.pop %v2132
  %v2134 = vmul.f32 %v2072, 1.442695
  %v2135 = vpow.pop %v2134
  %v2136 = vmul.f32 %v2073, 1.442695
  %v2137 = vpow.pop %v2136
  %v2138 = vsub.f32 %v1788, %v1914
  %v2139 = vsub.f32 %v1791, %v1915
  %v2140 = vsub.f32 %v1794, %v1916
  %v2141 = vsub.f32 %v1797, %v1917
  %v2142 = vsub.f32 %v1800, %v1918
  %v2143 = vsub.f32 %v1803, %v1919
  %v2144 = vsub.f32 %v1806, %v1920
  %v2145 = vsub.f32 %v1809, %v1921
  %v2146 = vsub.f32 %v1812, %v1922
  %v2147 = vsub.f32 %v1815, %v1923
  %v2148 = vsub.f32 %v1818, %v1924
  %v2149 = vsub.f32 %v1821, %v1925
  %v2150 = vsub.f32 %v1824, %v1926
  %v2151 = vsub.f32 %v1827, %v1927
  %v2152 = vsub.f32 %v1830, %v1928
  %v2153 = vsub.f32 %v1833, %v1929
  %v2154 = vsub.f32 %v1836, %v1930
  %v2155 = vsub.f32 %v1839, %v1931
  %v2156 = vsub.f32 %v1842, %v1932
  %v2157 = vsub.f32 %v1845, %v1933
  %v2158 = vsub.f32 %v1848, %v1934
  %v2159 = vsub.f32 %v1851, %v1935
  %v2160 = vsub.f32 %v1854, %v1936
  %v2161 = vsub.f32 %v1857, %v1937
  %v2162 = vsub.f32 %v1860, %v1938
  %v2163 = vsub.f32 %v1863, %v1939
  %v2164 = vsub.f32 %v1866, %v1940
  %v2165 = vsub.f32 %v1869, %v1941
  %v2166 = vsub.f32 %v1872, %v1942
  %v2167 = vsub.f32 %v1875, %v1943
  %v2168 = vsub.f32 %v1878, %v1944
  %v2169 = vsub.f32 %v1881, %v1945
  %v2170 = vmul.f32 %v2138, 1.442695
  %v2171 = vpow.pop %v2170
  %v2172 = vmul.f32 %v2139, 1.442695
  %v2173 = vpow.pop %v2172
  %v2174 = vmul.f32 %v2140, 1.442695
  %v2175 = vpow.pop %v2174
  %v2176 = vmul.f32 %v2141, 1.442695
  %v2177 = vpow.pop %v2176
  %v2178 = vmul.f32 %v2142, 1.442695
  %v2179 = vpow.pop %v2178
  %v2180 = vmul.f32 %v2143, 1.442695
  %v2181 = vpow.pop %v2180
  %v2182 = vmul.f32 %v2144, 1.442695
  %v2183 = vpow.pop %v2182
  %v2184 = vmul.f32 %v2145, 1.442695
  %v2185 = vpow.pop %v2184
  %v2186 = vmul.f32 %v2146, 1.442695
  %v2187 = vpow.pop %v2186
  %v2188 = vmul.f32 %v2147, 1.442695
  %v2189 = vpow.pop %v2188
  %v2190 = vmul.f32 %v2148, 1.442695
  %v2191 = vpow.pop %v2190
  %v2192 = vmul.f32 %v2149, 1.442695
  %v2193 = vpow.pop %v2192
  %v2194 = vmul.f32 %v2150, 1.442695
  %v2195 = vpow.pop %v2194
  %v2196 = vmul.f32 %v2151, 1.442695
  %v2197 = vpow.pop %v2196
  %v2198 = vmul.f32 %v2152, 1.442695
  %v2199 = vpow.pop %v2198
  %v2200 = vmul.f32 %v2153, 1.442695
  %v2201 = vpow.pop %v2200
  %v2202 = vmul.f32 %v2154, 1.442695
  %v2203 = vpow.pop %v2202
  %v2204 = vmul.f32 %v2155, 1.442695
  %v2205 = vpow.pop %v2204
  %v2206 = vmul.f32 %v2156, 1.442695
  %v2207 = vpow.pop %v2206
  %v2208 = vmul.f32 %v2157, 1.442695
  %v2209 = vpow.pop %v2208
  %v2210 = vmul.f32 %v2158, 1.442695
  %v2211 = vpow.pop %v2210
  %v2212 = vmul.f32 %v2159, 1.442695
  %v2213 = vpow.pop %v2212
  %v2214 = vmul.f32 %v2160, 1.442695
  %v2215 = vpow.pop %v2214
  %v2216 = vmul.f32 %v2161, 1.442695
  %v2217 = vpow.pop %v2216
  %v2218 = vmul.f32 %v2162, 1.442695
  %v2219 = vpow.pop %v2218
  %v2220 = vmul.f32 %v2163, 1.442695
  %v2221 = vpow.pop %v2220
  %v2222 = vmul.f32 %v2164, 1.442695
  %v2223 = vpow.pop %v2222
  %v2224 = vmul.f32 %v2165, 1.442695
  %v2225 = vpow.pop %v2224
  %v2226 = vmul.f32 %v2166, 1.442695
  %v2227 = vpow.pop %v2226
  %v2228 = vmul.f32 %v2167, 1.442695
  %v2229 = vpow.pop %v2228
  %v2230 = vmul.f32 %v2168, 1.442695
  %v2231 = vpow.pop %v2230
  %v2232 = vmul.f32 %v2169, 1.442695
  %v2233 = vpow.pop %v2232
  %v2234 = vadd.f32 %v1979, %v2075
  %v2235 = vadd.f32 %v1981, %v2077
  %v2236 = vadd.f32 %v1983, %v2079
  %v2237 = vadd.f32 %v1985, %v2081
  %v2238 = vadd.f32 %v1987, %v2083
  %v2239 = vadd.f32 %v1989, %v2085
  %v2240 = vadd.f32 %v1991, %v2087
  %v2241 = vadd.f32 %v1993, %v2089
  %v2242 = vadd.f32 %v1995, %v2091
  %v2243 = vadd.f32 %v1997, %v2093
  %v2244 = vadd.f32 %v1999, %v2095
  %v2245 = vadd.f32 %v2001, %v2097
  %v2246 = vadd.f32 %v2003, %v2099
  %v2247 = vadd.f32 %v2005, %v2101
  %v2248 = vadd.f32 %v2007, %v2103
  %v2249 = vadd.f32 %v2009, %v2105
  %v2250 = vadd.f32 %v2011, %v2107
  %v2251 = vadd.f32 %v2013, %v2109
  %v2252 = vadd.f32 %v2015, %v2111
  %v2253 = vadd.f32 %v2017, %v2113
  %v2254 = vadd.f32 %v2019, %v2115
  %v2255 = vadd.f32 %v2021, %v2117
  %v2256 = vadd.f32 %v2023, %v2119
  %v2257 = vadd.f32 %v2025, %v2121
  %v2258 = vadd.f32 %v2027, %v2123
  %v2259 = vadd.f32 %v2029, %v2125
  %v2260 = vadd.f32 %v2031, %v2127
  %v2261 = vadd.f32 %v2033, %v2129
  %v2262 = vadd.f32 %v2035, %v2131
  %v2263 = vadd.f32 %v2037, %v2133
  %v2264 = vadd.f32 %v2039, %v2135
  %v2265 = vadd.f32 %v2041, %v2137
  %v2266 = vadd.f32 %v2234, %v2171
  %v2267 = vadd.f32 %v2235, %v2173
  %v2268 = vadd.f32 %v2236, %v2175
  %v2269 = vadd.f32 %v2237, %v2177
  %v2270 = vadd.f32 %v2238, %v2179
  %v2271 = vadd.f32 %v2239, %v2181
  %v2272 = vadd.f32 %v2240, %v2183
  %v2273 = vadd.f32 %v2241, %v2185
  %v2274 = vadd.f32 %v2242, %v2187
  %v2275 = vadd.f32 %v2243, %v2189
  %v2276 = vadd.f32 %v2244, %v2191
  %v2277 = vadd.f32 %v2245, %v2193
  %v2278 = vadd.f32 %v2246, %v2195
  %v2279 = vadd.f32 %v2247, %v2197
  %v2280 = vadd.f32 %v2248, %v2199
  %v2281 = vadd.f32 %v2249, %v2201
  %v2282 = vadd.f32 %v2250, %v2203
  %v2283 = vadd.f32 %v2251, %v2205
  %v2284 = vadd.f32 %v2252, %v2207
  %v2285 = vadd.f32 %v2253, %v2209
  %v2286 = vadd.f32 %v2254, %v2211
  %v2287 = vadd.f32 %v2255, %v2213
  %v2288 = vadd.f32 %v2256, %v2215
  %v2289 = vadd.f32 %v2257, %v2217
  %v2290 = vadd.f32 %v2258, %v2219
  %v2291 = vadd.f32 %v2259, %v2221
  %v2292 = vadd.f32 %v2260, %v2223
  %v2293 = vadd.f32 %v2261, %v2225
  %v2294 = vadd.f32 %v2262, %v2227
  %v2295 = vadd.f32 %v2263, %v2229
  %v2296 = vadd.f32 %v2264, %v2231
  %v2297 = vadd.f32 %v2265, %v2233
  %v2298 = vrcp.pop %v2266
  %v2299 = vmul.f32 1.0, %v2298
  %v2300 = vrcp.pop %v2267
  %v2301 = vmul.f32 1.0, %v2300
  %v2302 = vrcp.pop %v2268
  %v2303 = vmul.f32 1.0, %v2302
  %v2304 = vrcp.pop %v2269
  %v2305 = vmul.f32 1.0, %v2304
  %v2306 = vrcp.pop %v2270
  %v2307 = vmul.f32 1.0, %v2306
  %v2308 = vrcp.pop %v2271
  %v2309 = vmul.f32 1.0, %v2308
  %v2310 = vrcp.pop %v2272
  %v2311 = vmul.f32 1.0, %v2310
  %v2312 = vrcp.pop %v2273
  %v2313 = vmul.f32 1.0, %v2312
  %v2314 = vrcp.pop %v2274
  %v2315 = vmul.f32 1.0, %v2314
  %v2316 = vrcp.pop %v2275
  %v2317 = vmul.f32 1.0, %v2316
  %v2318 = vrcp.pop %v2276
  %v2319 = vmul.f32 1.0, %v2318
  %v2320 = vrcp.pop %v2277
  %v2321 = vmul.f32 1.0, %v2320
  %v2322 = vrcp.pop %v2278
  %v2323 = vmul.f32 1.0, %v2322
  %v2324 = vrcp.pop %v2279
  %v2325 = vmul.f32 1.0, %v2324
  %v2326 = vrcp.pop %v2280
  %v2327 = vmul.f32 1.0, %v2326
  %v2328 = vrcp.pop %v2281
  %v2329 = vmul.f32 1.0, %v2328
  %v2330 = vrcp.pop %v2282
  %v2331 = vmul.f32 1.0, %v2330
  %v2332 = vrcp.pop %v2283
  %v2333 = vmul.f32 1.0, %v2332
  %v2334 = vrcp.pop %v2284
  %v2335 = vmul.f32 1.0, %v2334
  %v2336 = vrcp.pop %v2285
  %v2337 = vmul.f32 1.0, %v2336
  %v2338 = vrcp.pop %v2286
  %v2339 = vmul.f32 1.0, %v2338
  %v2340 = vrcp.pop %v2287
  %v2341 = vmul.f32 1.0, %v2340
  %v2342 = vrcp.pop %v2288
  %v2343 = vmul.f32 1.0, %v2342
  %v2344 = vrcp.pop %v2289
  %v2345 = vmul.f32 1.0, %v2344
  %v2346 = vrcp.pop %v2290
  %v2347 = vmul.f32 1.0, %v2346
  %v2348 = vrcp.pop %v2291
  %v2349 = vmul.f32 1.0, %v2348
  %v2350 = vrcp.pop %v2292
  %v2351 = vmul.f32 1.0, %v2350
  %v2352 = vrcp.pop %v2293
  %v2353 = vmul.f32 1.0, %v2352
  %v2354 = vrcp.pop %v2294
  %v2355 = vmul.f32 1.0, %v2354
  %v2356 = vrcp.pop %v2295
  %v2357 = vmul.f32 1.0, %v2356
  %v2358 = vrcp.pop %v2296
  %v2359 = vmul.f32 1.0, %v2358
  %v2360 = vrcp.pop %v2297
  %v2361 = vmul.f32 1.0, %v2360
  %v2362 = vmul.f32 %v1979, %v2299
  %v2363 = vmul.f32 %v1981, %v2301
  %v2364 = vmul.f32 %v1983, %v2303
  %v2365 = vmul.f32 %v1985, %v2305
  %v2366 = vmul.f32 %v1987, %v2307
  %v2367 = vmul.f32 %v1989, %v2309
  %v2368 = vmul.f32 %v1991, %v2311
  %v2369 = vmul.f32 %v1993, %v2313
  %v2370 = vmul.f32 %v1995, %v2315
  %v2371 = vmul.f32 %v1997, %v2317
  %v2372 = vmul.f32 %v1999, %v2319
  %v2373 = vmul.f32 %v2001, %v2321
  %v2374 = vmul.f32 %v2003, %v2323
  %v2375 = vmul.f32 %v2005, %v2325
  %v2376 = vmul.f32 %v2007, %v2327
  %v2377 = vmul.f32 %v2009, %v2329
  %v2378 = vmul.f32 %v2011, %v2331
  %v2379 = vmul.f32 %v2013, %v2333
  %v2380 = vmul.f32 %v2015, %v2335
  %v2381 = vmul.f32 %v2017, %v2337
  %v2382 = vmul.f32 %v2019, %v2339
  %v2383 = vmul.f32 %v2021, %v2341
  %v2384 = vmul.f32 %v2023, %v2343
  %v2385 = vmul.f32 %v2025, %v2345
  %v2386 = vmul.f32 %v2027, %v2347
  %v2387 = vmul.f32 %v2029, %v2349
  %v2388 = vmul.f32 %v2031, %v2351
  %v2389 = vmul.f32 %v2033, %v2353
  %v2390 = vmul.f32 %v2035, %v2355
  %v2391 = vmul.f32 %v2037, %v2357
  %v2392 = vmul.f32 %v2039, %v2359
  %v2393 = vmul.f32 %v2041, %v2361
  %v2394 = vmul.f32 %v2075, %v2299
  %v2395 = vmul.f32 %v2077, %v2301
  %v2396 = vmul.f32 %v2079, %v2303
  %v2397 = vmul.f32 %v2081, %v2305
  %v2398 = vmul.f32 %v2083, %v2307
  %v2399 = vmul.f32 %v2085, %v2309
  %v2400 = vmul.f32 %v2087, %v2311
  %v2401 = vmul.f32 %v2089, %v2313
  %v2402 = vmul.f32 %v2091, %v2315
  %v2403 = vmul.f32 %v2093, %v2317
  %v2404 = vmul.f32 %v2095, %v2319
  %v2405 = vmul.f32 %v2097, %v2321
  %v2406 = vmul.f32 %v2099, %v2323
  %v2407 = vmul.f32 %v2101, %v2325
  %v2408 = vmul.f32 %v2103, %v2327
  %v2409 = vmul.f32 %v2105, %v2329
  %v2410 = vmul.f32 %v2107, %v2331
  %v2411 = vmul.f32 %v2109, %v2333
  %v2412 = vmul.f32 %v2111, %v2335
  %v2413 = vmul.f32 %v2113, %v2337
  %v2414 = vmul.f32 %v2115, %v2339
  %v2415 = vmul.f32 %v2117, %v2341
  %v2416 = vmul.f32 %v2119, %v2343
  %v2417 = vmul.f32 %v2121, %v2345
  %v2418 = vmul.f32 %v2123, %v2347
  %v2419 = vmul.f32 %v2125, %v2349
  %v2420 = vmul.f32 %v2127, %v2351
  %v2421 = vmul.f32 %v2129, %v2353
  %v2422 = vmul.f32 %v2131, %v2355
  %v2423 = vmul.f32 %v2133, %v2357
  %v2424 = vmul.f32 %v2135, %v2359
  %v2425 = vmul.f32 %v2137, %v2361
  %v2426 = vmul.f32 %v2171, %v2299
  %v2427 = vmul.f32 %v2173, %v2301
  %v2428 = vmul.f32 %v2175, %v2303
  %v2429 = vmul.f32 %v2177, %v2305
  %v2430 = vmul.f32 %v2179, %v2307
  %v2431 = vmul.f32 %v2181, %v2309
  %v2432 = vmul.f32 %v2183, %v2311
  %v2433 = vmul.f32 %v2185, %v2313
  %v2434 = vmul.f32 %v2187, %v2315
  %v2435 = vmul.f32 %v2189, %v2317
  %v2436 = vmul.f32 %v2191, %v2319
  %v2437 = vmul.f32 %v2193, %v2321
  %v2438 = vmul.f32 %v2195, %v2323
  %v2439 = vmul.f32 %v2197, %v2325
  %v2440 = vmul.f32 %v2199, %v2327
  %v2441 = vmul.f32 %v2201, %v2329
  %v2442 = vmul.f32 %v2203, %v2331
  %v2443 = vmul.f32 %v2205, %v2333
  %v2444 = vmul.f32 %v2207, %v2335
  %v2445 = vmul.f32 %v2209, %v2337
  %v2446 = vmul.f32 %v2211, %v2339
  %v2447 = vmul.f32 %v2213, %v2341
  %v2448 = vmul.f32 %v2215, %v2343
  %v2449 = vmul.f32 %v2217, %v2345
  %v2450 = vmul.f32 %v2219, %v2347
  %v2451 = vmul.f32 %v2221, %v2349
  %v2452 = vmul.f32 %v2223, %v2351
  %v2453 = vmul.f32 %v2225, %v2353
  %v2454 = vmul.f32 %v2227, %v2355
  %v2455 = vmul.f32 %v2229, %v2357
  %v2456 = vmul.f32 %v2231, %v2359
  %v2457 = vmul.f32 %v2233, %v2361
  %v2458 = vmul.f32 %v2362, %v23
  %v2459 = vmul.f32 %v2363, %v24
  %v2460 = vmul.f32 %v2364, %v25
  %v2461 = vmul.f32 %v2365, %v26
  %v2462 = vmul.f32 %v2366, %v27
  %v2463 = vmul.f32 %v2367, %v28
  %v2464 = vmul.f32 %v2368, %v29
  %v2465 = vmul.f32 %v2369, %v30
  %v2466 = vmul.f32 %v2370, %v31
  %v2467 = vmul.f32 %v2371, %v32
  %v2468 = vmul.f32 %v2372, %v33
  %v2469 = vmul.f32 %v2373, %v34
  %v2470 = vmul.f32 %v2374, %v35
  %v2471 = vmul.f32 %v2375, %v36
  %v2472 = vmul.f32 %v2376, %v37
  %v2473 = vmul.f32 %v2377, %v38
  %v2474 = vmul.f32 %v2378, %v39
  %v2475 = vmul.f32 %v2379, %v40
  %v2476 = vmul.f32 %v2380, %v41
  %v2477 = vmul.f32 %v2381, %v42
  %v2478 = vmul.f32 %v2382, %v43
  %v2479 = vmul.f32 %v2383, %v44
  %v2480 = vmul.f32 %v2384, %v45
  %v2481 = vmul.f32 %v2385, %v46
  %v2482 = vmul.f32 %v2386, %v47
  %v2483 = vmul.f32 %v2387, %v48
  %v2484 = vmul.f32 %v2388, %v49
  %v2485 = vmul.f32 %v2389, %v50
  %v2486 = vmul.f32 %v2390, %v51
  %v2487 = vmul.f32 %v2391, %v52
  %v2488 = vmul.f32 %v2392, %v53
  %v2489 = vmul.f32 %v2393, %v54
  %v2490 = vmul.f32 %v2394, %v56
  %v2491 = vmul.f32 %v2395, %v57
  %v2492 = vmul.f32 %v2396, %v58
  %v2493 = vmul.f32 %v2397, %v59
  %v2494 = vmul.f32 %v2398, %v60
  %v2495 = vmul.f32 %v2399, %v61
  %v2496 = vmul.f32 %v2400, %v62
  %v2497 = vmul.f32 %v2401, %v63
  %v2498 = vmul.f32 %v2402, %v64
  %v2499 = vmul.f32 %v2403, %v65
  %v2500 = vmul.f32 %v2404, %v66
  %v2501 = vmul.f32 %v2405, %v67
  %v2502 = vmul.f32 %v2406, %v68
  %v2503 = vmul.f32 %v2407, %v69
  %v2504 = vmul.f32 %v2408, %v70
  %v2505 = vmul.f32 %v2409, %v71
  %v2506 = vmul.f32 %v2410, %v72
  %v2507 = vmul.f32 %v2411, %v73
  %v2508 = vmul.f32 %v2412, %v74
  %v2509 = vmul.f32 %v2413, %v75
  %v2510 = vmul.f32 %v2414, %v76
  %v2511 = vmul.f32 %v2415, %v77
  %v2512 = vmul.f32 %v2416, %v78
  %v2513 = vmul.f32 %v2417, %v79
  %v2514 = vmul.f32 %v2418, %v80
  %v2515 = vmul.f32 %v2419, %v81
  %v2516 = vmul.f32 %v2420, %v82
  %v2517 = vmul.f32 %v2421, %v83
  %v2518 = vmul.f32 %v2422, %v84
  %v2519 = vmul.f32 %v2423, %v85
  %v2520 = vmul.f32 %v2424, %v86
  %v2521 = vmul.f32 %v2425, %v87
  %v2522 = vadd.f32 %v2458, %v2490
  %v2523 = vadd.f32 %v2459, %v2491
  %v2524 = vadd.f32 %v2460, %v2492
  %v2525 = vadd.f32 %v2461, %v2493
  %v2526 = vadd.f32 %v2462, %v2494
  %v2527 = vadd.f32 %v2463, %v2495
  %v2528 = vadd.f32 %v2464, %v2496
  %v2529 = vadd.f32 %v2465, %v2497
  %v2530 = vadd.f32 %v2466, %v2498
  %v2531 = vadd.f32 %v2467, %v2499
  %v2532 = vadd.f32 %v2468, %v2500
  %v2533 = vadd.f32 %v2469, %v2501
  %v2534 = vadd.f32 %v2470, %v2502
  %v2535 = vadd.f32 %v2471, %v2503
  %v2536 = vadd.f32 %v2472, %v2504
  %v2537 = vadd.f32 %v2473, %v2505
  %v2538 = vadd.f32 %v2474, %v2506
  %v2539 = vadd.f32 %v2475, %v2507
  %v2540 = vadd.f32 %v2476, %v2508
  %v2541 = vadd.f32 %v2477, %v2509
  %v2542 = vadd.f32 %v2478, %v2510
  %v2543 = vadd.f32 %v2479, %v2511
  %v2544 = vadd.f32 %v2480, %v2512
  %v2545 = vadd.f32 %v2481, %v2513
  %v2546 = vadd.f32 %v2482, %v2514
  %v2547 = vadd.f32 %v2483, %v2515
  %v2548 = vadd.f32 %v2484, %v2516
  %v2549 = vadd.f32 %v2485, %v2517
  %v2550 = vadd.f32 %v2486, %v2518
  %v2551 = vadd.f32 %v2487, %v2519
  %v2552 = vadd.f32 %v2488, %v2520
  %v2553 = vadd.f32 %v2489, %v2521
  %v2554 = vmul.f32 %v2426, %v120
  %v2555 = vmul.f32 %v2427, %v121
  %v2556 = vmul.f32 %v2428, %v122
  %v2557 = vmul.f32 %v2429, %v123
  %v2558 = vmul.f32 %v2430, %v124
  %v2559 = vmul.f32 %v2431, %v125
  %v2560 = vmul.f32 %v2432, %v126
  %v2561 = vmul.f32 %v2433, %v127
  %v2562 = vmul.f32 %v2434, %v128
  %v2563 = vmul.f32 %v2435, %v129
  %v2564 = vmul.f32 %v2436, %v130
  %v2565 = vmul.f32 %v2437, %v131
  %v2566 = vmul.f32 %v2438, %v132
  %v2567 = vmul.f32 %v2439, %v133
  %v2568 = vmul.f32 %v2440, %v134
  %v2569 = vmul.f32 %v2441, %v135
  %v2570 = vmul.f32 %v2442, %v136
  %v2571 = vmul.f32 %v2443, %v137
  %v2572 = vmul.f32 %v2444, %v138
  %v2573 = vmul.f32 %v2445, %v139
  %v2574 = vmul.f32 %v2446, %v140
  %v2575 = vmul.f32 %v2447, %v141
  %v2576 = vmul.f32 %v2448, %v142
  %v2577 = vmul.f32 %v2449, %v143
  %v2578 = vmul.f32 %v2450, %v144
  %v2579 = vmul.f32 %v2451, %v145
  %v2580 = vmul.f32 %v2452, %v146
  %v2581 = vmul.f32 %v2453, %v147
  %v2582 = vmul.f32 %v2454, %v148
  %v2583 = vmul.f32 %v2455, %v149
  %v2584 = vmul.f32 %v2456, %v150
  %v2585 = vmul.f32 %v2457, %v151
  %2618 = vrot.lane.b32.xlu0 %v2554, 120
  %v2619 = vpop.permute.xlu0 %2618
  %2620 = vrot.lane.b32.xlu0 %v2555, 120
  %v2621 = vpop.permute.xlu0 %2620
  %2622 = vrot.lane.b32.xlu0 %v2556, 120
  %v2623 = vpop.permute.xlu0 %2622
  %2624 = vrot.lane.b32.xlu0 %v2557, 120
  %v2625 = vpop.permute.xlu0 %2624
  %2626 = vrot.lane.b32.xlu0 %v2558, 120
  %v2627 = vpop.permute.xlu0 %2626
  %2628 = vrot.lane.b32.xlu0 %v2559, 120
  %v2629 = vpop.permute.xlu0 %2628
  %2630 = vrot.lane.b32.xlu0 %v2560, 120
  %v2631 = vpop.permute.xlu0 %2630
  %2632 = vrot.lane.b32.xlu0 %v2561, 120
  %v2633 = vpop.permute.xlu0 %2632
  %2634 = vrot.lane.b32.xlu0 %v2562, 120
  %v2635 = vpop.permute.xlu0 %2634
  %2636 = vrot.lane.b32.xlu0 %v2563, 120
  %v2637 = vpop.permute.xlu0 %2636
  %2638 = vrot.lane.b32.xlu0 %v2564, 120
  %v2639 = vpop.permute.xlu0 %2638
  %2640 = vrot.lane.b32.xlu0 %v2565, 120
  %v2641 = vpop.permute.xlu0 %2640
  %2642 = vrot.lane.b32.xlu0 %v2566, 120
  %v2643 = vpop.permute.xlu0 %2642
  %2644 = vrot.lane.b32.xlu0 %v2567, 120
  %v2645 = vpop.permute.xlu0 %2644
  %2646 = vrot.lane.b32.xlu0 %v2568, 120
  %v2647 = vpop.permute.xlu0 %2646
  %2648 = vrot.lane.b32.xlu0 %v2569, 120
  %v2649 = vpop.permute.xlu0 %2648
  %2650 = vrot.lane.b32.xlu0 %v2570, 120
  %v2651 = vpop.permute.xlu0 %2650
  %2652 = vrot.lane.b32.xlu0 %v2571, 120
  %v2653 = vpop.permute.xlu0 %2652
  %2654 = vrot.lane.b32.xlu0 %v2572, 120
  %v2655 = vpop.permute.xlu0 %2654
  %2656 = vrot.lane.b32.xlu0 %v2573, 120
  %v2657 = vpop.permute.xlu0 %2656
  %2658 = vrot.lane.b32.xlu0 %v2574, 120
  %v2659 = vpop.permute.xlu0 %2658
  %2660 = vrot.lane.b32.xlu0 %v2575, 120
  %v2661 = vpop.permute.xlu0 %2660
  %2662 = vrot.lane.b32.xlu0 %v2576, 120
  %v2663 = vpop.permute.xlu0 %2662
  %2664 = vrot.lane.b32.xlu0 %v2577, 120
  %v2665 = vpop.permute.xlu0 %2664
  %2666 = vrot.lane.b32.xlu0 %v2578, 120
  %v2667 = vpop.permute.xlu0 %2666
  %2668 = vrot.lane.b32.xlu0 %v2579, 120
  %v2669 = vpop.permute.xlu0 %2668
  %2670 = vrot.lane.b32.xlu0 %v2580, 120
  %v2671 = vpop.permute.xlu0 %2670
  %2672 = vrot.lane.b32.xlu0 %v2581, 120
  %v2673 = vpop.permute.xlu0 %2672
  %2674 = vrot.lane.b32.xlu0 %v2582, 120
  %v2675 = vpop.permute.xlu0 %2674
  %2676 = vrot.lane.b32.xlu0 %v2583, 120
  %v2677 = vpop.permute.xlu0 %2676
  %2678 = vrot.lane.b32.xlu0 %v2584, 120
  %v2679 = vpop.permute.xlu0 %2678
  %2680 = vrot.lane.b32.xlu0 %v2585, 120
  %v2681 = vpop.permute.xlu0 %2680
  %v2714 = vadd.f32 %v2522, %v2619
  %v2715 = vadd.f32 %v2523, %v2621
  %v2716 = vadd.f32 %v2524, %v2623
  %v2717 = vadd.f32 %v2525, %v2625
  %v2718 = vadd.f32 %v2526, %v2627
  %v2719 = vadd.f32 %v2527, %v2629
  %v2720 = vadd.f32 %v2528, %v2631
  %v2721 = vadd.f32 %v2529, %v2633
  %v2722 = vadd.f32 %v2530, %v2635
  %v2723 = vadd.f32 %v2531, %v2637
  %v2724 = vadd.f32 %v2532, %v2639
  %v2725 = vadd.f32 %v2533, %v2641
  %v2726 = vadd.f32 %v2534, %v2643
  %v2727 = vadd.f32 %v2535, %v2645
  %v2728 = vadd.f32 %v2536, %v2647
  %v2729 = vadd.f32 %v2537, %v2649
  %v2730 = vadd.f32 %v2538, %v2651
  %v2731 = vadd.f32 %v2539, %v2653
  %v2732 = vadd.f32 %v2540, %v2655
  %v2733 = vadd.f32 %v2541, %v2657
  %v2734 = vadd.f32 %v2542, %v2659
  %v2735 = vadd.f32 %v2543, %v2661
  %v2736 = vadd.f32 %v2544, %v2663
  %v2737 = vadd.f32 %v2545, %v2665
  %v2738 = vadd.f32 %v2546, %v2667
  %v2739 = vadd.f32 %v2547, %v2669
  %v2740 = vadd.f32 %v2548, %v2671
  %v2741 = vadd.f32 %v2549, %v2673
  %v2742 = vadd.f32 %v2550, %v2675
  %v2743 = vadd.f32 %v2551, %v2677
  %v2744 = vadd.f32 %v2552, %v2679
  %v2745 = vadd.f32 %v2553, %v2681
  %v2746 = vld [vmem:[%s4] sm:$0xff]
  %v2747 = vld [vmem:[%s5] sm:$0x1]
  %v2749 = vlaneseq
  %v2750 = vshrl.u32 %v2749, 7
  %v2751 = vsub.s32 0, %v2750
  %v2752 = vrot.slane %v2747, %v2751
  %v2755 = vsel %vm189, %v2714, 0
  %v2758 = vsel %vm189, %v2715, 0
  %v2761 = vsel %vm189, %v2716, 0
  %v2764 = vsel %vm189, %v2717, 0
  %v2767 = vsel %vm189, %v2718, 0
  %v2770 = vsel %vm189, %v2719, 0
  %v2773 = vsel %vm189, %v2720, 0
  %v2776 = vsel %vm189, %v2721, 0
  %v2779 = vsel %vm189, %v2722, 0
  %v2782 = vsel %vm189, %v2723, 0
  %v2785 = vsel %vm189, %v2724, 0
  %v2788 = vsel %vm189, %v2725, 0
  %v2791 = vsel %vm189, %v2726, 0
  %v2794 = vsel %vm189, %v2727, 0
  %v2797 = vsel %vm189, %v2728, 0
  %v2800 = vsel %vm189, %v2729, 0
  %v2803 = vsel %vm189, %v2730, 0
  %v2806 = vsel %vm189, %v2731, 0
  %v2809 = vsel %vm189, %v2732, 0
  %v2812 = vsel %vm189, %v2733, 0
  %v2815 = vsel %vm189, %v2734, 0
  %v2818 = vsel %vm189, %v2735, 0
  %v2821 = vsel %vm189, %v2736, 0
  %v2824 = vsel %vm189, %v2737, 0
  %v2827 = vsel %vm189, %v2738, 0
  %v2830 = vsel %vm189, %v2739, 0
  %v2833 = vsel %vm189, %v2740, 0
  %v2836 = vsel %vm189, %v2741, 0
  %v2839 = vsel %vm189, %v2742, 0
  %v2842 = vsel %vm189, %v2743, 0
  %v2845 = vsel %vm189, %v2744, 0
  %v2848 = vsel %vm189, %v2745, 0
  %2850 = vmatprep.subr.mxu0 0.0
  %2851 = vmatpush1.msra.mxu0 0.0
  %2852 = vmatprep.subr.mxu0 0.0
  %2853 = vmatpush1.msra.mxu0 0.0
  %2854 = vmatprep.subr.mxu0 0.0
  %2855 = vmatpush1.msra.mxu0 0.0
  %2856 = vmatprep.subr.mxu0 0.0
  %2857 = vmatpush1.msra.mxu0 0.0
  %2858 = vmatprep.subr.mxu0 0.0
  %2859 = vmatpush1.msra.mxu0 0.0
  %2860 = vmatprep.subr.mxu0 0.0
  %2861 = vmatpush1.msra.mxu0 0.0
  %2862 = vmatprep.subr.mxu0 0.0
  %2863 = vmatpush1.msra.mxu0 0.0
  %2864 = vmatprep.subr.mxu0 0.0
  %2865 = vmatpush1.msra.mxu0 0.0
  %2866 = vmatprep.subr.mxu0 0.0
  %2867 = vmatpush1.msra.mxu0 0.0
  %2868 = vmatprep.subr.mxu0 0.0
  %2869 = vmatpush1.msra.mxu0 0.0
  %2870 = vmatprep.subr.mxu0 0.0
  %2871 = vmatpush1.msra.mxu0 0.0
  %2872 = vmatprep.subr.mxu0 0.0
  %2873 = vmatpush1.msra.mxu0 0.0
  %2874 = vmatprep.subr.mxu0 0.0
  %2875 = vmatpush1.msra.mxu0 0.0
  %2876 = vmatprep.subr.mxu0 0.0
  %2877 = vmatpush1.msra.mxu0 0.0
  %2878 = vmatprep.subr.mxu0 0.0
  %2879 = vmatpush1.msra.mxu0 0.0
  %2880 = vmatprep.subr.mxu0 0.0
  %2881 = vmatpush1.msra.mxu0 %v2746
  %2882 = vmatprep.subr.mxu0 0.0
  %2883 = vmatpush2.msra.mxu0 0.0
  %2884 = vmatprep.subr.mxu0 0.0
  %2885 = vmatpush2.msra.mxu0 0.0
  %2886 = vmatprep.subr.mxu0 0.0
  %2887 = vmatpush2.msra.mxu0 0.0
  %2888 = vmatprep.subr.mxu0 0.0
  %2889 = vmatpush2.msra.mxu0 0.0
  %2890 = vmatprep.subr.mxu0 0.0
  %2891 = vmatpush2.msra.mxu0 0.0
  %2892 = vmatprep.subr.mxu0 0.0
  %2893 = vmatpush2.msra.mxu0 0.0
  %2894 = vmatprep.subr.mxu0 0.0
  %2895 = vmatpush2.msra.mxu0 0.0
  %2896 = vmatprep.subr.mxu0 0.0
  %2897 = vmatpush2.msra.mxu0 0.0
  %2898 = vmatprep.subr.mxu0 0.0
  %2899 = vmatpush2.msra.mxu0 0.0
  %2900 = vmatprep.subr.mxu0 0.0
  %2901 = vmatpush2.msra.mxu0 0.0
  %2902 = vmatprep.subr.mxu0 0.0
  %2903 = vmatpush2.msra.mxu0 0.0
  %2904 = vmatprep.subr.mxu0 0.0
  %2905 = vmatpush2.msra.mxu0 0.0
  %2906 = vmatprep.subr.mxu0 0.0
  %2907 = vmatpush2.msra.mxu0 0.0
  %2908 = vmatprep.subr.mxu0 0.0
  %2909 = vmatpush2.msra.mxu0 0.0
  %2910 = vmatprep.subr.mxu0 0.0
  %2911 = vmatpush2.msra.mxu0 0.0
  %2912 = vmatprep.subr.mxu0 0.0
  %2913 = vmatpush2.msra.mxu0 0.0
  %2914 = vmatprep.mubr.f32.mxu0 0.0
  %2915 = vmatmul.mubr.f32.gmra.mxu0 %v2755
  %v2916 = vpop.f32.mrf.mxu0
  %v2917 = vadd.f32 %v2752, %v2916
  %v2918 = vpop.f32.mrf.mxu0
  %2919 = vmatprep.mubr.f32.mxu0 0.0
  %2920 = vmatmul.mubr.f32.gmra.mxu0 %v2758
  %v2921 = vpop.f32.mrf.mxu0
  %v2922 = vadd.f32 %v2752, %v2921
  %v2923 = vpop.f32.mrf.mxu0
  %2924 = vmatprep.mubr.f32.mxu0 0.0
  %2925 = vmatmul.mubr.f32.gmra.mxu0 %v2761
  %v2926 = vpop.f32.mrf.mxu0
  %v2927 = vadd.f32 %v2752, %v2926
  %v2928 = vpop.f32.mrf.mxu0
  %2929 = vmatprep.mubr.f32.mxu0 0.0
  %2930 = vmatmul.mubr.f32.gmra.mxu0 %v2764
  %v2931 = vpop.f32.mrf.mxu0
  %v2932 = vadd.f32 %v2752, %v2931
  %v2933 = vpop.f32.mrf.mxu0
  %2934 = vmatprep.mubr.f32.mxu0 0.0
  %2935 = vmatmul.mubr.f32.gmra.mxu0 %v2767
  %v2936 = vpop.f32.mrf.mxu0
  %v2937 = vadd.f32 %v2752, %v2936
  %v2938 = vpop.f32.mrf.mxu0
  %2939 = vmatprep.mubr.f32.mxu0 0.0
  %2940 = vmatmul.mubr.f32.gmra.mxu0 %v2770
  %v2941 = vpop.f32.mrf.mxu0
  %v2942 = vadd.f32 %v2752, %v2941
  %v2943 = vpop.f32.mrf.mxu0
  %2944 = vmatprep.mubr.f32.mxu0 0.0
  %2945 = vmatmul.mubr.f32.gmra.mxu0 %v2773
  %v2946 = vpop.f32.mrf.mxu0
  %v2947 = vadd.f32 %v2752, %v2946
  %v2948 = vpop.f32.mrf.mxu0
  %2949 = vmatprep.mubr.f32.mxu0 0.0
  %2950 = vmatmul.mubr.f32.gmra.mxu0 %v2776
  %v2951 = vpop.f32.mrf.mxu0
  %v2952 = vadd.f32 %v2752, %v2951
  %v2953 = vpop.f32.mrf.mxu0
  %2954 = vmatprep.mubr.f32.mxu0 0.0
  %2955 = vmatmul.mubr.f32.gmra.mxu0 %v2779
  %v2956 = vpop.f32.mrf.mxu0
  %v2957 = vadd.f32 %v2752, %v2956
  %v2958 = vpop.f32.mrf.mxu0
  %2959 = vmatprep.mubr.f32.mxu0 0.0
  %2960 = vmatmul.mubr.f32.gmra.mxu0 %v2782
  %v2961 = vpop.f32.mrf.mxu0
  %v2962 = vadd.f32 %v2752, %v2961
  %v2963 = vpop.f32.mrf.mxu0
  %2964 = vmatprep.mubr.f32.mxu0 0.0
  %2965 = vmatmul.mubr.f32.gmra.mxu0 %v2785
  %v2966 = vpop.f32.mrf.mxu0
  %v2967 = vadd.f32 %v2752, %v2966
  %v2968 = vpop.f32.mrf.mxu0
  %2969 = vmatprep.mubr.f32.mxu0 0.0
  %2970 = vmatmul.mubr.f32.gmra.mxu0 %v2788
  %v2971 = vpop.f32.mrf.mxu0
  %v2972 = vadd.f32 %v2752, %v2971
  %v2973 = vpop.f32.mrf.mxu0
  %2974 = vmatprep.mubr.f32.mxu0 0.0
  %2975 = vmatmul.mubr.f32.gmra.mxu0 %v2791
  %v2976 = vpop.f32.mrf.mxu0
  %v2977 = vadd.f32 %v2752, %v2976
  %v2978 = vpop.f32.mrf.mxu0
  %2979 = vmatprep.mubr.f32.mxu0 0.0
  %2980 = vmatmul.mubr.f32.gmra.mxu0 %v2794
  %v2981 = vpop.f32.mrf.mxu0
  %v2982 = vadd.f32 %v2752, %v2981
  %v2983 = vpop.f32.mrf.mxu0
  %2984 = vmatprep.mubr.f32.mxu0 0.0
  %2985 = vmatmul.mubr.f32.gmra.mxu0 %v2797
  %v2986 = vpop.f32.mrf.mxu0
  %v2987 = vadd.f32 %v2752, %v2986
  %v2988 = vpop.f32.mrf.mxu0
  %2989 = vmatprep.mubr.f32.mxu0 0.0
  %2990 = vmatmul.mubr.f32.gmra.mxu0 %v2800
  %v2991 = vpop.f32.mrf.mxu0
  %v2992 = vadd.f32 %v2752, %v2991
  %v2993 = vpop.f32.mrf.mxu0
  %2994 = vmatprep.mubr.f32.mxu0 0.0
  %2995 = vmatmul.mubr.f32.gmra.mxu0 %v2803
  %v2996 = vpop.f32.mrf.mxu0
  %v2997 = vadd.f32 %v2752, %v2996
  %v2998 = vpop.f32.mrf.mxu0
  %2999 = vmatprep.mubr.f32.mxu0 0.0
  %3000 = vmatmul.mubr.f32.gmra.mxu0 %v2806
  %v3001 = vpop.f32.mrf.mxu0
  %v3002 = vadd.f32 %v2752, %v3001
  %v3003 = vpop.f32.mrf.mxu0
  %3004 = vmatprep.mubr.f32.mxu0 0.0
  %3005 = vmatmul.mubr.f32.gmra.mxu0 %v2809
  %v3006 = vpop.f32.mrf.mxu0
  %v3007 = vadd.f32 %v2752, %v3006
  %v3008 = vpop.f32.mrf.mxu0
  %3009 = vmatprep.mubr.f32.mxu0 0.0
  %3010 = vmatmul.mubr.f32.gmra.mxu0 %v2812
  %v3011 = vpop.f32.mrf.mxu0
  %v3012 = vadd.f32 %v2752, %v3011
  %v3013 = vpop.f32.mrf.mxu0
  %3014 = vmatprep.mubr.f32.mxu0 0.0
  %3015 = vmatmul.mubr.f32.gmra.mxu0 %v2815
  %v3016 = vpop.f32.mrf.mxu0
  %v3017 = vadd.f32 %v2752, %v3016
  %v3018 = vpop.f32.mrf.mxu0
  %3019 = vmatprep.mubr.f32.mxu0 0.0
  %3020 = vmatmul.mubr.f32.gmra.mxu0 %v2818
  %v3021 = vpop.f32.mrf.mxu0
  %v3022 = vadd.f32 %v2752, %v3021
  %v3023 = vpop.f32.mrf.mxu0
  %3024 = vmatprep.mubr.f32.mxu0 0.0
  %3025 = vmatmul.mubr.f32.gmra.mxu0 %v2821
  %v3026 = vpop.f32.mrf.mxu0
  %v3027 = vadd.f32 %v2752, %v3026
  %v3028 = vpop.f32.mrf.mxu0
  %3029 = vmatprep.mubr.f32.mxu0 0.0
  %3030 = vmatmul.mubr.f32.gmra.mxu0 %v2824
  %v3031 = vpop.f32.mrf.mxu0
  %v3032 = vadd.f32 %v2752, %v3031
  %v3033 = vpop.f32.mrf.mxu0
  %3034 = vmatprep.mubr.f32.mxu0 0.0
  %3035 = vmatmul.mubr.f32.gmra.mxu0 %v2827
  %v3036 = vpop.f32.mrf.mxu0
  %v3037 = vadd.f32 %v2752, %v3036
  %v3038 = vpop.f32.mrf.mxu0
  %3039 = vmatprep.mubr.f32.mxu0 0.0
  %3040 = vmatmul.mubr.f32.gmra.mxu0 %v2830
  %v3041 = vpop.f32.mrf.mxu0
  %v3042 = vadd.f32 %v2752, %v3041
  %v3043 = vpop.f32.mrf.mxu0
  %3044 = vmatprep.mubr.f32.mxu0 0.0
  %3045 = vmatmul.mubr.f32.gmra.mxu0 %v2833
  %v3046 = vpop.f32.mrf.mxu0
  %v3047 = vadd.f32 %v2752, %v3046
  %v3048 = vpop.f32.mrf.mxu0
  %3049 = vmatprep.mubr.f32.mxu0 0.0
  %3050 = vmatmul.mubr.f32.gmra.mxu0 %v2836
  %v3051 = vpop.f32.mrf.mxu0
  %v3052 = vadd.f32 %v2752, %v3051
  %v3053 = vpop.f32.mrf.mxu0
  %3054 = vmatprep.mubr.f32.mxu0 0.0
  %3055 = vmatmul.mubr.f32.gmra.mxu0 %v2839
  %v3056 = vpop.f32.mrf.mxu0
  %v3057 = vadd.f32 %v2752, %v3056
  %v3058 = vpop.f32.mrf.mxu0
  %3059 = vmatprep.mubr.f32.mxu0 0.0
  %3060 = vmatmul.mubr.f32.gmra.mxu0 %v2842
  %v3061 = vpop.f32.mrf.mxu0
  %v3062 = vadd.f32 %v2752, %v3061
  %v3063 = vpop.f32.mrf.mxu0
  %3064 = vmatprep.mubr.f32.mxu0 0.0
  %3065 = vmatmul.mubr.f32.gmra.mxu0 %v2845
  %v3066 = vpop.f32.mrf.mxu0
  %v3067 = vadd.f32 %v2752, %v3066
  %v3068 = vpop.f32.mrf.mxu0
  %3069 = vmatprep.mubr.f32.mxu0 0.0
  %3070 = vmatmul.mubr.f32.gmra.mxu0 %v2848
  %v3071 = vpop.f32.mrf.mxu0
  %v3072 = vadd.f32 %v2752, %v3071
  %v3073 = vpop.f32.mrf.mxu0
  %3074 = vdwg.mxu0
  %vm3075 = vcmask 31744
  %v3076 = vsel %vm3075, %v2917, -inf
  %3077 = vmax.xlane.f32.xlu0 %v3076
  %v3078 = vpop.xlane.xlu0 %3077
  %v3079 = vsel %vm3075, %v2922, -inf
  %3080 = vmax.xlane.f32.xlu0 %v3079
  %v3081 = vpop.xlane.xlu0 %3080
  %v3082 = vsel %vm3075, %v2927, -inf
  %3083 = vmax.xlane.f32.xlu0 %v3082
  %v3084 = vpop.xlane.xlu0 %3083
  %v3085 = vsel %vm3075, %v2932, -inf
  %3086 = vmax.xlane.f32.xlu0 %v3085
  %v3087 = vpop.xlane.xlu0 %3086
  %v3088 = vsel %vm3075, %v2937, -inf
  %3089 = vmax.xlane.f32.xlu0 %v3088
  %v3090 = vpop.xlane.xlu0 %3089
  %v3091 = vsel %vm3075, %v2942, -inf
  %3092 = vmax.xlane.f32.xlu0 %v3091
  %v3093 = vpop.xlane.xlu0 %3092
  %v3094 = vsel %vm3075, %v2947, -inf
  %3095 = vmax.xlane.f32.xlu0 %v3094
  %v3096 = vpop.xlane.xlu0 %3095
  %v3097 = vsel %vm3075, %v2952, -inf
  %3098 = vmax.xlane.f32.xlu0 %v3097
  %v3099 = vpop.xlane.xlu0 %3098
  %v3100 = vsel %vm3075, %v2957, -inf
  %3101 = vmax.xlane.f32.xlu0 %v3100
  %v3102 = vpop.xlane.xlu0 %3101
  %v3103 = vsel %vm3075, %v2962, -inf
  %3104 = vmax.xlane.f32.xlu0 %v3103
  %v3105 = vpop.xlane.xlu0 %3104
  %v3106 = vsel %vm3075, %v2967, -inf
  %3107 = vmax.xlane.f32.xlu0 %v3106
  %v3108 = vpop.xlane.xlu0 %3107
  %v3109 = vsel %vm3075, %v2972, -inf
  %3110 = vmax.xlane.f32.xlu0 %v3109
  %v3111 = vpop.xlane.xlu0 %3110
  %v3112 = vsel %vm3075, %v2977, -inf
  %3113 = vmax.xlane.f32.xlu0 %v3112
  %v3114 = vpop.xlane.xlu0 %3113
  %v3115 = vsel %vm3075, %v2982, -inf
  %3116 = vmax.xlane.f32.xlu0 %v3115
  %v3117 = vpop.xlane.xlu0 %3116
  %v3118 = vsel %vm3075, %v2987, -inf
  %3119 = vmax.xlane.f32.xlu0 %v3118
  %v3120 = vpop.xlane.xlu0 %3119
  %v3121 = vsel %vm3075, %v2992, -inf
  %3122 = vmax.xlane.f32.xlu0 %v3121
  %v3123 = vpop.xlane.xlu0 %3122
  %v3124 = vsel %vm3075, %v2997, -inf
  %3125 = vmax.xlane.f32.xlu0 %v3124
  %v3126 = vpop.xlane.xlu0 %3125
  %v3127 = vsel %vm3075, %v3002, -inf
  %3128 = vmax.xlane.f32.xlu0 %v3127
  %v3129 = vpop.xlane.xlu0 %3128
  %v3130 = vsel %vm3075, %v3007, -inf
  %3131 = vmax.xlane.f32.xlu0 %v3130
  %v3132 = vpop.xlane.xlu0 %3131
  %v3133 = vsel %vm3075, %v3012, -inf
  %3134 = vmax.xlane.f32.xlu0 %v3133
  %v3135 = vpop.xlane.xlu0 %3134
  %v3136 = vsel %vm3075, %v3017, -inf
  %3137 = vmax.xlane.f32.xlu0 %v3136
  %v3138 = vpop.xlane.xlu0 %3137
  %v3139 = vsel %vm3075, %v3022, -inf
  %3140 = vmax.xlane.f32.xlu0 %v3139
  %v3141 = vpop.xlane.xlu0 %3140
  %v3142 = vsel %vm3075, %v3027, -inf
  %3143 = vmax.xlane.f32.xlu0 %v3142
  %v3144 = vpop.xlane.xlu0 %3143
  %v3145 = vsel %vm3075, %v3032, -inf
  %3146 = vmax.xlane.f32.xlu0 %v3145
  %v3147 = vpop.xlane.xlu0 %3146
  %v3148 = vsel %vm3075, %v3037, -inf
  %3149 = vmax.xlane.f32.xlu0 %v3148
  %v3150 = vpop.xlane.xlu0 %3149
  %v3151 = vsel %vm3075, %v3042, -inf
  %3152 = vmax.xlane.f32.xlu0 %v3151
  %v3153 = vpop.xlane.xlu0 %3152
  %v3154 = vsel %vm3075, %v3047, -inf
  %3155 = vmax.xlane.f32.xlu0 %v3154
  %v3156 = vpop.xlane.xlu0 %3155
  %v3157 = vsel %vm3075, %v3052, -inf
  %3158 = vmax.xlane.f32.xlu0 %v3157
  %v3159 = vpop.xlane.xlu0 %3158
  %v3160 = vsel %vm3075, %v3057, -inf
  %3161 = vmax.xlane.f32.xlu0 %v3160
  %v3162 = vpop.xlane.xlu0 %3161
  %v3163 = vsel %vm3075, %v3062, -inf
  %3164 = vmax.xlane.f32.xlu0 %v3163
  %v3165 = vpop.xlane.xlu0 %3164
  %v3166 = vsel %vm3075, %v3067, -inf
  %3167 = vmax.xlane.f32.xlu0 %v3166
  %v3168 = vpop.xlane.xlu0 %3167
  %v3169 = vsel %vm3075, %v3072, -inf
  %3170 = vmax.xlane.f32.xlu0 %v3169
  %v3171 = vpop.xlane.xlu0 %3170
  %v3172 = vsub.f32 %v2917, %v3078
  %v3173 = vsub.f32 %v2922, %v3081
  %v3174 = vsub.f32 %v2927, %v3084
  %v3175 = vsub.f32 %v2932, %v3087
  %v3176 = vsub.f32 %v2937, %v3090
  %v3177 = vsub.f32 %v2942, %v3093
  %v3178 = vsub.f32 %v2947, %v3096
  %v3179 = vsub.f32 %v2952, %v3099
  %v3180 = vsub.f32 %v2957, %v3102
  %v3181 = vsub.f32 %v2962, %v3105
  %v3182 = vsub.f32 %v2967, %v3108
  %v3183 = vsub.f32 %v2972, %v3111
  %v3184 = vsub.f32 %v2977, %v3114
  %v3185 = vsub.f32 %v2982, %v3117
  %v3186 = vsub.f32 %v2987, %v3120
  %v3187 = vsub.f32 %v2992, %v3123
  %v3188 = vsub.f32 %v2997, %v3126
  %v3189 = vsub.f32 %v3002, %v3129
  %v3190 = vsub.f32 %v3007, %v3132
  %v3191 = vsub.f32 %v3012, %v3135
  %v3192 = vsub.f32 %v3017, %v3138
  %v3193 = vsub.f32 %v3022, %v3141
  %v3194 = vsub.f32 %v3027, %v3144
  %v3195 = vsub.f32 %v3032, %v3147
  %v3196 = vsub.f32 %v3037, %v3150
  %v3197 = vsub.f32 %v3042, %v3153
  %v3198 = vsub.f32 %v3047, %v3156
  %v3199 = vsub.f32 %v3052, %v3159
  %v3200 = vsub.f32 %v3057, %v3162
  %v3201 = vsub.f32 %v3062, %v3165
  %v3202 = vsub.f32 %v3067, %v3168
  %v3203 = vsub.f32 %v3072, %v3171
  %v3204 = vmul.f32 %v3172, 1.442695
  %v3205 = vpow.pop %v3204
  %v3206 = vmul.f32 %v3173, 1.442695
  %v3207 = vpow.pop %v3206
  %v3208 = vmul.f32 %v3174, 1.442695
  %v3209 = vpow.pop %v3208
  %v3210 = vmul.f32 %v3175, 1.442695
  %v3211 = vpow.pop %v3210
  %v3212 = vmul.f32 %v3176, 1.442695
  %v3213 = vpow.pop %v3212
  %v3214 = vmul.f32 %v3177, 1.442695
  %v3215 = vpow.pop %v3214
  %v3216 = vmul.f32 %v3178, 1.442695
  %v3217 = vpow.pop %v3216
  %v3218 = vmul.f32 %v3179, 1.442695
  %v3219 = vpow.pop %v3218
  %v3220 = vmul.f32 %v3180, 1.442695
  %v3221 = vpow.pop %v3220
  %v3222 = vmul.f32 %v3181, 1.442695
  %v3223 = vpow.pop %v3222
  %v3224 = vmul.f32 %v3182, 1.442695
  %v3225 = vpow.pop %v3224
  %v3226 = vmul.f32 %v3183, 1.442695
  %v3227 = vpow.pop %v3226
  %v3228 = vmul.f32 %v3184, 1.442695
  %v3229 = vpow.pop %v3228
  %v3230 = vmul.f32 %v3185, 1.442695
  %v3231 = vpow.pop %v3230
  %v3232 = vmul.f32 %v3186, 1.442695
  %v3233 = vpow.pop %v3232
  %v3234 = vmul.f32 %v3187, 1.442695
  %v3235 = vpow.pop %v3234
  %v3236 = vmul.f32 %v3188, 1.442695
  %v3237 = vpow.pop %v3236
  %v3238 = vmul.f32 %v3189, 1.442695
  %v3239 = vpow.pop %v3238
  %v3240 = vmul.f32 %v3190, 1.442695
  %v3241 = vpow.pop %v3240
  %v3242 = vmul.f32 %v3191, 1.442695
  %v3243 = vpow.pop %v3242
  %v3244 = vmul.f32 %v3192, 1.442695
  %v3245 = vpow.pop %v3244
  %v3246 = vmul.f32 %v3193, 1.442695
  %v3247 = vpow.pop %v3246
  %v3248 = vmul.f32 %v3194, 1.442695
  %v3249 = vpow.pop %v3248
  %v3250 = vmul.f32 %v3195, 1.442695
  %v3251 = vpow.pop %v3250
  %v3252 = vmul.f32 %v3196, 1.442695
  %v3253 = vpow.pop %v3252
  %v3254 = vmul.f32 %v3197, 1.442695
  %v3255 = vpow.pop %v3254
  %v3256 = vmul.f32 %v3198, 1.442695
  %v3257 = vpow.pop %v3256
  %v3258 = vmul.f32 %v3199, 1.442695
  %v3259 = vpow.pop %v3258
  %v3260 = vmul.f32 %v3200, 1.442695
  %v3261 = vpow.pop %v3260
  %v3262 = vmul.f32 %v3201, 1.442695
  %v3263 = vpow.pop %v3262
  %v3264 = vmul.f32 %v3202, 1.442695
  %v3265 = vpow.pop %v3264
  %v3266 = vmul.f32 %v3203, 1.442695
  %v3267 = vpow.pop %v3266
  %v3268 = vsel %vm3075, %v3205, 0.0
  %3269 = vadd.xlane.f32.xlu0 %v3268
  %v3270 = vpop.xlane.xlu0 %3269
  %v3271 = vsel %vm3075, %v3207, 0.0
  %3272 = vadd.xlane.f32.xlu0 %v3271
  %v3273 = vpop.xlane.xlu0 %3272
  %v3274 = vsel %vm3075, %v3209, 0.0
  %3275 = vadd.xlane.f32.xlu0 %v3274
  %v3276 = vpop.xlane.xlu0 %3275
  %v3277 = vsel %vm3075, %v3211, 0.0
  %3278 = vadd.xlane.f32.xlu0 %v3277
  %v3279 = vpop.xlane.xlu0 %3278
  %v3280 = vsel %vm3075, %v3213, 0.0
  %3281 = vadd.xlane.f32.xlu0 %v3280
  %v3282 = vpop.xlane.xlu0 %3281
  %v3283 = vsel %vm3075, %v3215, 0.0
  %3284 = vadd.xlane.f32.xlu0 %v3283
  %v3285 = vpop.xlane.xlu0 %3284
  %v3286 = vsel %vm3075, %v3217, 0.0
  %3287 = vadd.xlane.f32.xlu0 %v3286
  %v3288 = vpop.xlane.xlu0 %3287
  %v3289 = vsel %vm3075, %v3219, 0.0
  %3290 = vadd.xlane.f32.xlu0 %v3289
  %v3291 = vpop.xlane.xlu0 %3290
  %v3292 = vsel %vm3075, %v3221, 0.0
  %3293 = vadd.xlane.f32.xlu0 %v3292
  %v3294 = vpop.xlane.xlu0 %3293
  %v3295 = vsel %vm3075, %v3223, 0.0
  %3296 = vadd.xlane.f32.xlu0 %v3295
  %v3297 = vpop.xlane.xlu0 %3296
  %v3298 = vsel %vm3075, %v3225, 0.0
  %3299 = vadd.xlane.f32.xlu0 %v3298
  %v3300 = vpop.xlane.xlu0 %3299
  %v3301 = vsel %vm3075, %v3227, 0.0
  %3302 = vadd.xlane.f32.xlu0 %v3301
  %v3303 = vpop.xlane.xlu0 %3302
  %v3304 = vsel %vm3075, %v3229, 0.0
  %3305 = vadd.xlane.f32.xlu0 %v3304
  %v3306 = vpop.xlane.xlu0 %3305
  %v3307 = vsel %vm3075, %v3231, 0.0
  %3308 = vadd.xlane.f32.xlu0 %v3307
  %v3309 = vpop.xlane.xlu0 %3308
  %v3310 = vsel %vm3075, %v3233, 0.0
  %3311 = vadd.xlane.f32.xlu0 %v3310
  %v3312 = vpop.xlane.xlu0 %3311
  %v3313 = vsel %vm3075, %v3235, 0.0
  %3314 = vadd.xlane.f32.xlu0 %v3313
  %v3315 = vpop.xlane.xlu0 %3314
  %v3316 = vsel %vm3075, %v3237, 0.0
  %3317 = vadd.xlane.f32.xlu0 %v3316
  %v3318 = vpop.xlane.xlu0 %3317
  %v3319 = vsel %vm3075, %v3239, 0.0
  %3320 = vadd.xlane.f32.xlu0 %v3319
  %v3321 = vpop.xlane.xlu0 %3320
  %v3322 = vsel %vm3075, %v3241, 0.0
  %3323 = vadd.xlane.f32.xlu0 %v3322
  %v3324 = vpop.xlane.xlu0 %3323
  %v3325 = vsel %vm3075, %v3243, 0.0
  %3326 = vadd.xlane.f32.xlu0 %v3325
  %v3327 = vpop.xlane.xlu0 %3326
  %v3328 = vsel %vm3075, %v3245, 0.0
  %3329 = vadd.xlane.f32.xlu0 %v3328
  %v3330 = vpop.xlane.xlu0 %3329
  %v3331 = vsel %vm3075, %v3247, 0.0
  %3332 = vadd.xlane.f32.xlu0 %v3331
  %v3333 = vpop.xlane.xlu0 %3332
  %v3334 = vsel %vm3075, %v3249, 0.0
  %3335 = vadd.xlane.f32.xlu0 %v3334
  %v3336 = vpop.xlane.xlu0 %3335
  %v3337 = vsel %vm3075, %v3251, 0.0
  %3338 = vadd.xlane.f32.xlu0 %v3337
  %v3339 = vpop.xlane.xlu0 %3338
  %v3340 = vsel %vm3075, %v3253, 0.0
  %3341 = vadd.xlane.f32.xlu0 %v3340
  %v3342 = vpop.xlane.xlu0 %3341
  %v3343 = vsel %vm3075, %v3255, 0.0
  %3344 = vadd.xlane.f32.xlu0 %v3343
  %v3345 = vpop.xlane.xlu0 %3344
  %v3346 = vsel %vm3075, %v3257, 0.0
  %3347 = vadd.xlane.f32.xlu0 %v3346
  %v3348 = vpop.xlane.xlu0 %3347
  %v3349 = vsel %vm3075, %v3259, 0.0
  %3350 = vadd.xlane.f32.xlu0 %v3349
  %v3351 = vpop.xlane.xlu0 %3350
  %v3352 = vsel %vm3075, %v3261, 0.0
  %3353 = vadd.xlane.f32.xlu0 %v3352
  %v3354 = vpop.xlane.xlu0 %3353
  %v3355 = vsel %vm3075, %v3263, 0.0
  %3356 = vadd.xlane.f32.xlu0 %v3355
  %v3357 = vpop.xlane.xlu0 %3356
  %v3358 = vsel %vm3075, %v3265, 0.0
  %3359 = vadd.xlane.f32.xlu0 %v3358
  %v3360 = vpop.xlane.xlu0 %3359
  %v3361 = vsel %vm3075, %v3267, 0.0
  %3362 = vadd.xlane.f32.xlu0 %v3361
  %v3363 = vpop.xlane.xlu0 %3362
  %v3364 = vrcp.pop %v3270
  %v3365 = vmul.f32 1.0, %v3364
  %v3366 = vrcp.pop %v3273
  %v3367 = vmul.f32 1.0, %v3366
  %v3368 = vrcp.pop %v3276
  %v3369 = vmul.f32 1.0, %v3368
  %v3370 = vrcp.pop %v3279
  %v3371 = vmul.f32 1.0, %v3370
  %v3372 = vrcp.pop %v3282
  %v3373 = vmul.f32 1.0, %v3372
  %v3374 = vrcp.pop %v3285
  %v3375 = vmul.f32 1.0, %v3374
  %v3376 = vrcp.pop %v3288
  %v3377 = vmul.f32 1.0, %v3376
  %v3378 = vrcp.pop %v3291
  %v3379 = vmul.f32 1.0, %v3378
  %v3380 = vrcp.pop %v3294
  %v3381 = vmul.f32 1.0, %v3380
  %v3382 = vrcp.pop %v3297
  %v3383 = vmul.f32 1.0, %v3382
  %v3384 = vrcp.pop %v3300
  %v3385 = vmul.f32 1.0, %v3384
  %v3386 = vrcp.pop %v3303
  %v3387 = vmul.f32 1.0, %v3386
  %v3388 = vrcp.pop %v3306
  %v3389 = vmul.f32 1.0, %v3388
  %v3390 = vrcp.pop %v3309
  %v3391 = vmul.f32 1.0, %v3390
  %v3392 = vrcp.pop %v3312
  %v3393 = vmul.f32 1.0, %v3392
  %v3394 = vrcp.pop %v3315
  %v3395 = vmul.f32 1.0, %v3394
  %v3396 = vrcp.pop %v3318
  %v3397 = vmul.f32 1.0, %v3396
  %v3398 = vrcp.pop %v3321
  %v3399 = vmul.f32 1.0, %v3398
  %v3400 = vrcp.pop %v3324
  %v3401 = vmul.f32 1.0, %v3400
  %v3402 = vrcp.pop %v3327
  %v3403 = vmul.f32 1.0, %v3402
  %v3404 = vrcp.pop %v3330
  %v3405 = vmul.f32 1.0, %v3404
  %v3406 = vrcp.pop %v3333
  %v3407 = vmul.f32 1.0, %v3406
  %v3408 = vrcp.pop %v3336
  %v3409 = vmul.f32 1.0, %v3408
  %v3410 = vrcp.pop %v3339
  %v3411 = vmul.f32 1.0, %v3410
  %v3412 = vrcp.pop %v3342
  %v3413 = vmul.f32 1.0, %v3412
  %v3414 = vrcp.pop %v3345
  %v3415 = vmul.f32 1.0, %v3414
  %v3416 = vrcp.pop %v3348
  %v3417 = vmul.f32 1.0, %v3416
  %v3418 = vrcp.pop %v3351
  %v3419 = vmul.f32 1.0, %v3418
  %v3420 = vrcp.pop %v3354
  %v3421 = vmul.f32 1.0, %v3420
  %v3422 = vrcp.pop %v3357
  %v3423 = vmul.f32 1.0, %v3422
  %v3424 = vrcp.pop %v3360
  %v3425 = vmul.f32 1.0, %v3424
  %v3426 = vrcp.pop %v3363
  %v3427 = vmul.f32 1.0, %v3426
  %v3428 = vmul.f32 %v3205, %v3365
  %v3429 = vmul.f32 %v3207, %v3367
  %v3430 = vmul.f32 %v3209, %v3369
  %v3431 = vmul.f32 %v3211, %v3371
  %v3432 = vmul.f32 %v3213, %v3373
  %v3433 = vmul.f32 %v3215, %v3375
  %v3434 = vmul.f32 %v3217, %v3377
  %v3435 = vmul.f32 %v3219, %v3379
  %v3436 = vmul.f32 %v3221, %v3381
  %v3437 = vmul.f32 %v3223, %v3383
  %v3438 = vmul.f32 %v3225, %v3385
  %v3439 = vmul.f32 %v3227, %v3387
  %v3440 = vmul.f32 %v3229, %v3389
  %v3441 = vmul.f32 %v3231, %v3391
  %v3442 = vmul.f32 %v3233, %v3393
  %v3443 = vmul.f32 %v3235, %v3395
  %v3444 = vmul.f32 %v3237, %v3397
  %v3445 = vmul.f32 %v3239, %v3399
  %v3446 = vmul.f32 %v3241, %v3401
  %v3447 = vmul.f32 %v3243, %v3403
  %v3448 = vmul.f32 %v3245, %v3405
  %v3449 = vmul.f32 %v3247, %v3407
  %v3450 = vmul.f32 %v3249, %v3409
  %v3451 = vmul.f32 %v3251, %v3411
  %v3452 = vmul.f32 %v3253, %v3413
  %v3453 = vmul.f32 %v3255, %v3415
  %v3454 = vmul.f32 %v3257, %v3417
  %v3455 = vmul.f32 %v3259, %v3419
  %v3456 = vmul.f32 %v3261, %v3421
  %v3457 = vmul.f32 %v3263, %v3423
  %v3458 = vmul.f32 %v3265, %v3425
  %v3459 = vmul.f32 %v3267, %v3427
  %v3460 = vsel %vm3075, %v3428, %v2362
  %v3461 = vsel %vm3075, %v3429, %v2363
  %v3462 = vsel %vm3075, %v3430, %v2364
  %v3463 = vsel %vm3075, %v3431, %v2365
  %v3464 = vsel %vm3075, %v3432, %v2366
  %v3465 = vsel %vm3075, %v3433, %v2367
  %v3466 = vsel %vm3075, %v3434, %v2368
  %v3467 = vsel %vm3075, %v3435, %v2369
  %v3468 = vsel %vm3075, %v3436, %v2370
  %v3469 = vsel %vm3075, %v3437, %v2371
  %v3470 = vsel %vm3075, %v3438, %v2372
  %v3471 = vsel %vm3075, %v3439, %v2373
  %v3472 = vsel %vm3075, %v3440, %v2374
  %v3473 = vsel %vm3075, %v3441, %v2375
  %v3474 = vsel %vm3075, %v3442, %v2376
  %v3475 = vsel %vm3075, %v3443, %v2377
  %v3476 = vsel %vm3075, %v3444, %v2378
  %v3477 = vsel %vm3075, %v3445, %v2379
  %v3478 = vsel %vm3075, %v3446, %v2380
  %v3479 = vsel %vm3075, %v3447, %v2381
  %v3480 = vsel %vm3075, %v3448, %v2382
  %v3481 = vsel %vm3075, %v3449, %v2383
  %v3482 = vsel %vm3075, %v3450, %v2384
  %v3483 = vsel %vm3075, %v3451, %v2385
  %v3484 = vsel %vm3075, %v3452, %v2386
  %v3485 = vsel %vm3075, %v3453, %v2387
  %v3486 = vsel %vm3075, %v3454, %v2388
  %v3487 = vsel %vm3075, %v3455, %v2389
  %v3488 = vsel %vm3075, %v3456, %v2390
  %v3489 = vsel %vm3075, %v3457, %v2391
  %v3490 = vsel %vm3075, %v3458, %v2392
  %v3491 = vsel %vm3075, %v3459, %v2393
  %vm3492 = vcmask 39936
  %v3493 = vsel %vm3492, %v3460, %v2394
  %v3494 = vsel %vm3492, %v3461, %v2395
  %v3495 = vsel %vm3492, %v3462, %v2396
  %v3496 = vsel %vm3492, %v3463, %v2397
  %v3497 = vsel %vm3492, %v3464, %v2398
  %v3498 = vsel %vm3492, %v3465, %v2399
  %v3499 = vsel %vm3492, %v3466, %v2400
  %v3500 = vsel %vm3492, %v3467, %v2401
  %v3501 = vsel %vm3492, %v3468, %v2402
  %v3502 = vsel %vm3492, %v3469, %v2403
  %v3503 = vsel %vm3492, %v3470, %v2404
  %v3504 = vsel %vm3492, %v3471, %v2405
  %v3505 = vsel %vm3492, %v3472, %v2406
  %v3506 = vsel %vm3492, %v3473, %v2407
  %v3507 = vsel %vm3492, %v3474, %v2408
  %v3508 = vsel %vm3492, %v3475, %v2409
  %v3509 = vsel %vm3492, %v3476, %v2410
  %v3510 = vsel %vm3492, %v3477, %v2411
  %v3511 = vsel %vm3492, %v3478, %v2412
  %v3512 = vsel %vm3492, %v3479, %v2413
  %v3513 = vsel %vm3492, %v3480, %v2414
  %v3514 = vsel %vm3492, %v3481, %v2415
  %v3515 = vsel %vm3492, %v3482, %v2416
  %v3516 = vsel %vm3492, %v3483, %v2417
  %v3517 = vsel %vm3492, %v3484, %v2418
  %v3518 = vsel %vm3492, %v3485, %v2419
  %v3519 = vsel %vm3492, %v3486, %v2420
  %v3520 = vsel %vm3492, %v3487, %v2421
  %v3521 = vsel %vm3492, %v3488, %v2422
  %v3522 = vsel %vm3492, %v3489, %v2423
  %v3523 = vsel %vm3492, %v3490, %v2424
  %v3524 = vsel %vm3492, %v3491, %v2425
  %vm3525 = vcmask 48128
  %v3526 = vsel %vm3525, %v3493, %v2426
  %v3527 = vsel %vm3525, %v3494, %v2427
  %v3528 = vsel %vm3525, %v3495, %v2428
  %v3529 = vsel %vm3525, %v3496, %v2429
  %v3530 = vsel %vm3525, %v3497, %v2430
  %v3531 = vsel %vm3525, %v3498, %v2431
  %v3532 = vsel %vm3525, %v3499, %v2432
  %v3533 = vsel %vm3525, %v3500, %v2433
  %v3534 = vsel %vm3525, %v3501, %v2434
  %v3535 = vsel %vm3525, %v3502, %v2435
  %v3536 = vsel %vm3525, %v3503, %v2436
  %v3537 = vsel %vm3525, %v3504, %v2437
  %v3538 = vsel %vm3525, %v3505, %v2438
  %v3539 = vsel %vm3525, %v3506, %v2439
  %v3540 = vsel %vm3525, %v3507, %v2440
  %v3541 = vsel %vm3525, %v3508, %v2441
  %v3542 = vsel %vm3525, %v3509, %v2442
  %v3543 = vsel %vm3525, %v3510, %v2443
  %v3544 = vsel %vm3525, %v3511, %v2444
  %v3545 = vsel %vm3525, %v3512, %v2445
  %v3546 = vsel %vm3525, %v3513, %v2446
  %v3547 = vsel %vm3525, %v3514, %v2447
  %v3548 = vsel %vm3525, %v3515, %v2448
  %v3549 = vsel %vm3525, %v3516, %v2449
  %v3550 = vsel %vm3525, %v3517, %v2450
  %v3551 = vsel %vm3525, %v3518, %v2451
  %v3552 = vsel %vm3525, %v3519, %v2452
  %v3553 = vsel %vm3525, %v3520, %v2453
  %v3554 = vsel %vm3525, %v3521, %v2454
  %v3555 = vsel %vm3525, %v3522, %v2455
  %v3556 = vsel %vm3525, %v3523, %v2456
  %v3557 = vsel %vm3525, %v3524, %v2457
  %vm3558 = vcmask 56320
  %v3559 = vsel %vm3558, %v3526, 0.0
  %v3560 = vsel %vm3558, %v3527, 0.0
  %v3561 = vsel %vm3558, %v3528, 0.0
  %v3562 = vsel %vm3558, %v3529, 0.0
  %v3563 = vsel %vm3558, %v3530, 0.0
  %v3564 = vsel %vm3558, %v3531, 0.0
  %v3565 = vsel %vm3558, %v3532, 0.0
  %v3566 = vsel %vm3558, %v3533, 0.0
  %v3567 = vsel %vm3558, %v3534, 0.0
  %v3568 = vsel %vm3558, %v3535, 0.0
  %v3569 = vsel %vm3558, %v3536, 0.0
  %v3570 = vsel %vm3558, %v3537, 0.0
  %v3571 = vsel %vm3558, %v3538, 0.0
  %v3572 = vsel %vm3558, %v3539, 0.0
  %v3573 = vsel %vm3558, %v3540, 0.0
  %v3574 = vsel %vm3558, %v3541, 0.0
  %v3575 = vsel %vm3558, %v3542, 0.0
  %v3576 = vsel %vm3558, %v3543, 0.0
  %v3577 = vsel %vm3558, %v3544, 0.0
  %v3578 = vsel %vm3558, %v3545, 0.0
  %v3579 = vsel %vm3558, %v3546, 0.0
  %v3580 = vsel %vm3558, %v3547, 0.0
  %v3581 = vsel %vm3558, %v3548, 0.0
  %v3582 = vsel %vm3558, %v3549, 0.0
  %v3583 = vsel %vm3558, %v3550, 0.0
  %v3584 = vsel %vm3558, %v3551, 0.0
  %v3585 = vsel %vm3558, %v3552, 0.0
  %v3586 = vsel %vm3558, %v3553, 0.0
  %v3587 = vsel %vm3558, %v3554, 0.0
  %v3588 = vsel %vm3558, %v3555, 0.0
  %v3589 = vsel %vm3558, %v3556, 0.0
  %v3590 = vsel %vm3558, %v3557, 0.0
  %3591 = vst [vmem:[%s6] sm:$0xff] %v3559
  %3592 = vst [vmem:[%s6 + $0x8] sm:$0xff] %v3560
  %3593 = vst [vmem:[%s6 + $0x10] sm:$0xff] %v3561
  %3594 = vst [vmem:[%s6 + $0x18] sm:$0xff] %v3562
  %3595 = vst [vmem:[%s6 + $0x20] sm:$0xff] %v3563
  %3596 = vst [vmem:[%s6 + $0x28] sm:$0xff] %v3564
  %3597 = vst [vmem:[%s6 + $0x30] sm:$0xff] %v3565
  %3598 = vst [vmem:[%s6 + $0x38] sm:$0xff] %v3566
  %3599 = vst [vmem:[%s6 + $0x40] sm:$0xff] %v3567
  %3600 = vst [vmem:[%s6 + $0x48] sm:$0xff] %v3568
  %3601 = vst [vmem:[%s6 + $0x50] sm:$0xff] %v3569
  %3602 = vst [vmem:[%s6 + $0x58] sm:$0xff] %v3570
  %3603 = vst [vmem:[%s6 + $0x60] sm:$0xff] %v3571
  %3604 = vst [vmem:[%s6 + $0x68] sm:$0xff] %v3572
  %3605 = vst [vmem:[%s6 + $0x70] sm:$0xff] %v3573
  %3606 = vst [vmem:[%s6 + $0x78] sm:$0xff] %v3574
  %3607 = vst [vmem:[%s6 + $0x80] sm:$0xff] %v3575
  %3608 = vst [vmem:[%s6 + $0x88] sm:$0xff] %v3576
  %3609 = vst [vmem:[%s6 + $0x90] sm:$0xff] %v3577
  %3610 = vst [vmem:[%s6 + $0x98] sm:$0xff] %v3578
  %3611 = vst [vmem:[%s6 + $0xa0] sm:$0xff] %v3579
  %3612 = vst [vmem:[%s6 + $0xa8] sm:$0xff] %v3580
  %3613 = vst [vmem:[%s6 + $0xb0] sm:$0xff] %v3581
  %3614 = vst [vmem:[%s6 + $0xb8] sm:$0xff] %v3582
  %3615 = vst [vmem:[%s6 + $0xc0] sm:$0xff] %v3583
  %3616 = vst [vmem:[%s6 + $0xc8] sm:$0xff] %v3584
  %3617 = vst [vmem:[%s6 + $0xd0] sm:$0xff] %v3585
  %3618 = vst [vmem:[%s6 + $0xd8] sm:$0xff] %v3586
  %3619 = vst [vmem:[%s6 + $0xe0] sm:$0xff] %v3587
  %3620 = vst [vmem:[%s6 + $0xe8] sm:$0xff] %v3588
  %3621 = vst [vmem:[%s6 + $0xf0] sm:$0xff] %v3589
  %3622 = vst [vmem:[%s6 + $0xf8] sm:$0xff] %v3590
  // Predicated region
  $region26: #{globalnet_forward.3} parent=0 // pred_check
    _
  $region27: #{globalnet_forward.3} parent=0 // pred_check_branch
    %3624 = sbr.rel (0) target = $region29
  $region28: #{globalnet_forward.3} parent=0 // pred_region
    _
  $region29: #{globalnet_forward.3} parent=0 // pred_fallthru
    _
  // Predicated region
  $region30: #{globalnet_forward.3} parent=0 // pred_check
    _
  $region31: #{globalnet_forward.3} parent=0 // pred_check_branch
    %3626 = sbr.rel (0) target = $region33
  $region32: #{globalnet_forward.3} parent=0 // pred_region
    _
  $region33: #{globalnet_forward.3} parent=0 // pred_fallthru
    _

// kernel: globalnet_forward.2
$region0: #{globalnet_forward.2}
  #allocation0 [shape = 'u32[]', space=smem, size = 0x4, offset = 0x4, fixed_abs, tag = 'smem constant byte address 0x4 - core index']
  #allocation1 [shape = 'u32[144,128]{1,0:T(1,128)}', space=vmem, size = 0x12000, scoped, tag = 'internal scratch']
  #allocation2 [shape = 'bf16[2,256,256]{2,1,0:T(8,128)(2,1)}', space=vmem, size = 0x40000, scoped, tag = 'scratch operand']
  #allocation3 [shape = 's32[2]{0}', space=sflag, size = 0x8, scoped, tag = 'scratch operand']
  #allocation4 [shape = 'bf16[256,32]{1,0:T(8,128)(2,1)}', space=vmem, size = 0x10000, scoped, tag = 'scratch operand']
  #allocation5 [shape = 'bf16[256,16]{1,0:T(8,128)(2,1)}', space=vmem, size = 0x10000, scoped, tag = 'scratch operand']
  #allocation6 [shape = 'f32[256,32]{1,0:T(8,128)}', space=vmem, size = 0x20000, scoped, tag = 'scratch operand']
  #allocation7 [shape = 'bf16[256,32]{1,0:T(8,128)(2,1)}', space=vmem, size = 0x10000, scoped, tag = 'scratch operand']
  #allocation8 [shape = 'bf16[256,32]{1,0:T(8,128)(2,1)}', space=vmem, size = 0x10000, scoped, tag = 'scratch operand']
  #allocation9 [shape = 's32[]', space=sflag, size = 0x4, offset = 0, fixed_abs, tag = 'sflag constant byte address 0x0 - dummy sync flag']
  #allocation10 [shape = 's32[]', space=sflag, size = 0x4, offset = 0, fixed_abs, tag = 'sflag constant byte address 0x0 - dummy sync flag']
  #allocation11 [shape = 's32[]', space=sflag, size = 0x4, offset = 0, fixed_abs, tag = 'sflag constant byte address 0x0 - dummy sync flag']
  %s0 = inlined_call_operand.vmem [shape: bf16[256,32], index: 0, kind: input, shape index: {}]
  %s1 = inlined_call_operand.vmem [shape: bf16[2,32,32], index: 1, kind: input, shape index: {}]
  %s2 = inlined_call_operand.vmem [shape: f32[2,1,32], index: 2, kind: input, shape index: {}]
  %s3 = inlined_call_operand.vmem [shape: bf16[2,32,32], index: 3, kind: input, shape index: {}]
  %s4 = inlined_call_operand.vmem [shape: bf16[2,32,32], index: 4, kind: input, shape index: {}]
  %s5 = inlined_call_operand.vmem [shape: f32[2,1,32], index: 5, kind: input, shape index: {}]
  %s6 = inlined_call_operand.vmem [shape: bf16[2,32,16], index: 6, kind: input, shape index: {}]
  %s7 = inlined_call_operand.vmem [shape: bf16[2,32,16], index: 7, kind: input, shape index: {}]
  %s8 = inlined_call_operand.vmem [shape: bf16[2,32,16], index: 8, kind: input, shape index: {}]
  %s9 = inlined_call_operand.vmem [shape: f32[2,1,16], index: 9, kind: input, shape index: {}]
  %s10 = inlined_call_operand.vmem [shape: bf16[2,256,256], index: 10, kind: input, shape index: {}]
  %s11 = inlined_call_operand.vmem [shape: f32[2,256,16], index: 11, kind: output, shape index: {}]
  %s12 = sld [smem:[#allocation0]]
  $region175: #{globalnet_forward.2} parent=0
    _
  %s14 = ssub.s32 1, %s12
  %s15 = scalar_select 0, %s14, %s12
  loop: start=0, step=1, limit=4
  $region2: #{globalnet_forward.2} parent=0 // loop_pre_header
    _
  $region3: #{globalnet_forward.2} parent=0 // loop_header
    %s17 = sphi 0, %s21
    %p18 = scmp.ge.s32.totalorder %s17, 4
    %s25 = sphi 0, %s25
    %s27 = sphi 0, %s25
    %s28 = sphi 0, %s27
    %s42 = sphi 0, %s28
    %s48 = sphi 0, %s50
    %s51 = sphi 0, %s48
    %s52 = sphi 0, %s51
    %s68 = sphi 0, %s52
    %s74 = sphi 0, %s76
    %s77 = sphi 0, %s74
    %s78 = sphi 0, %s77
    %s94 = sphi 0, %s78
    %s100 = sphi 0, %s102
    %s103 = sphi 0, %s100
    %s104 = sphi 0, %s103
    %s120 = sphi 0, %s104
    %s126 = sphi 0, %s128
    %s129 = sphi 0, %s126
    %s130 = sphi 0, %s129
    %s146 = sphi 0, %s130
    %s152 = sphi 0, %s154
    %s155 = sphi 0, %s152
    %s156 = sphi 0, %s155
    %s172 = sphi 0, %s156
    %s178 = sphi 0, %s180
    %s181 = sphi 0, %s178
    %s182 = sphi 0, %s181
    %s198 = sphi 0, %s182
    %s204 = sphi 0, %s206
    %s207 = sphi 0, %s204
    %s208 = sphi 0, %s207
    %s224 = sphi 0, %s208
    %s230 = sphi 0, %s232
    %s233 = sphi 0, %s230
    %s234 = sphi 0, %s233
    %s250 = sphi 0, %s234
    %s256 = sphi 0, %s258
    %s259 = sphi 0, %s256
    %s260 = sphi 0, %s259
    %s276 = sphi 0, %s260
    %s282 = sphi 0, %s284
    %s285 = sphi 0, %s282
    %s286 = sphi 0, %s285
    %s302 = sphi 0, %s286
  $region4: #{globalnet_forward.2} parent=0 // loop_header_branch
    %20 = sbr.rel (%p18) target = $region8
  $region5: #{globalnet_forward.2} parent=0 // loop_body
    %s22 = ssub.s32 %s17, 1
    %s23 = ssub.s32 %s17, 2
    %s24 = sadd.s32 %s17, 1
    %s26 = sadd.s32 %s25, 1
    %p29 = scmp.eq.s32.totalorder %s17, 1
    %p30 = scmp.ne.s32.totalorder %s25, %s27
    %p31 = scmp.eq.s32.totalorder %s17, 0
    %p32 = por %p30, %p31
    %p33 = scmp.ne.s32.totalorder %s25, %s27
    %p34 = scmp.eq.s32.totalorder %s22, 1
    %p35 = por %p33, %p34
    %p36 = scmp.ne.s32.totalorder %s27, %s28
    %p37 = scmp.eq.s32.totalorder %s22, 0
    %p38 = por %p36, %p37
    %p39 = scmp.ne.s32.totalorder %s27, %s28
    %p40 = scmp.eq.s32.totalorder %s23, 1
    %p41 = por %p39, %p40
    %p43 = scmp.ne.s32.totalorder %s28, %s42
    %p44 = scmp.eq.s32.totalorder %s23, 0
    %p45 = por %p43, %p44
    %s46 = ssub.s32 %s17, %s24
    %p47 = scmp.eq.s32.totalorder %s46, 0
    %s49 = sadd.s32 %s48, 1
    %s50 = scalar_select %p47, %s48, %s49
    %p53 = pneg %p47
    %p54 = scmp.eq.s32.totalorder %s17, 1
    %p55 = por %p53, %p54
    %p56 = scmp.ne.s32.totalorder %s48, %s51
    %p57 = scmp.eq.s32.totalorder %s17, 0
    %p58 = por %p56, %p57
    %p59 = scmp.ne.s32.totalorder %s48, %s51
    %p60 = scmp.eq.s32.totalorder %s22, 1
    %p61 = por %p59, %p60
    %p62 = scmp.ne.s32.totalorder %s51, %s52
    %p63 = scmp.eq.s32.totalorder %s22, 0
    %p64 = por %p62, %p63
    %p65 = scmp.ne.s32.totalorder %s51, %s52
    %p66 = scmp.eq.s32.totalorder %s23, 1
    %p67 = por %p65, %p66
    %p69 = scmp.ne.s32.totalorder %s52, %s68
    %p70 = scmp.eq.s32.totalorder %s23, 0
    %p71 = por %p69, %p70
    %s72 = ssub.s32 %s17, %s24
    %p73 = scmp.eq.s32.totalorder %s72, 0
    %s75 = sadd.s32 %s74, 1
    %s76 = scalar_select %p73, %s74, %s75
    %p79 = pneg %p73
    %p80 = scmp.eq.s32.totalorder %s17, 1
    %p81 = por %p79, %p80
    %p82 = scmp.ne.s32.totalorder %s74, %s77
    %p83 = scmp.eq.s32.totalorder %s17, 0
    %p84 = por %p82, %p83
    %p85 = scmp.ne.s32.totalorder %s74, %s77
    %p86 = scmp.eq.s32.totalorder %s22, 1
    %p87 = por %p85, %p86
    %p88 = scmp.ne.s32.totalorder %s77, %s78
    %p89 = scmp.eq.s32.totalorder %s22, 0
    %p90 = por %p88, %p89
    %p91 = scmp.ne.s32.totalorder %s77, %s78
    %p92 = scmp.eq.s32.totalorder %s23, 1
    %p93 = por %p91, %p92
    %p95 = scmp.ne.s32.totalorder %s78, %s94
    %p96 = scmp.eq.s32.totalorder %s23, 0
    %p97 = por %p95, %p96
    %s98 = ssub.s32 %s17, %s24
    %p99 = scmp.eq.s32.totalorder %s98, 0
    %s101 = sadd.s32 %s100, 1
    %s102 = scalar_select %p99, %s100, %s101
    %p105 = pneg %p99
    %p106 = scmp.eq.s32.totalorder %s17, 1
    %p107 = por %p105, %p106
    %p108 = scmp.ne.s32.totalorder %s100, %s103
    %p109 = scmp.eq.s32.totalorder %s17, 0
    %p110 = por %p108, %p109
    %p111 = scmp.ne.s32.totalorder %s100, %s103
    %p112 = scmp.eq.s32.totalorder %s22, 1
    %p113 = por %p111, %p112
    %p114 = scmp.ne.s32.totalorder %s103, %s104
    %p115 = scmp.eq.s32.totalorder %s22, 0
    %p116 = por %p114, %p115
    %p117 = scmp.ne.s32.totalorder %s103, %s104
    %p118 = scmp.eq.s32.totalorder %s23, 1
    %p119 = por %p117, %p118
    %p121 = scmp.ne.s32.totalorder %s104, %s120
    %p122 = scmp.eq.s32.totalorder %s23, 0
    %p123 = por %p121, %p122
    %s124 = ssub.s32 %s17, %s24
    %p125 = scmp.eq.s32.totalorder %s124, 0
    %s127 = sadd.s32 %s126, 1
    %s128 = scalar_select %p125, %s126, %s127
    %p131 = pneg %p125
    %p132 = scmp.eq.s32.totalorder %s17, 1
    %p133 = por %p131, %p132
    %p134 = scmp.ne.s32.totalorder %s126, %s129
    %p135 = scmp.eq.s32.totalorder %s17, 0
    %p136 = por %p134, %p135
    %p137 = scmp.ne.s32.totalorder %s126, %s129
    %p138 = scmp.eq.s32.totalorder %s22, 1
    %p139 = por %p137, %p138
    %p140 = scmp.ne.s32.totalorder %s129, %s130
    %p141 = scmp.eq.s32.totalorder %s22, 0
    %p142 = por %p140, %p141
    %p143 = scmp.ne.s32.totalorder %s129, %s130
    %p144 = scmp.eq.s32.totalorder %s23, 1
    %p145 = por %p143, %p144
    %p147 = scmp.ne.s32.totalorder %s130, %s146
    %p148 = scmp.eq.s32.totalorder %s23, 0
    %p149 = por %p147, %p148
    %s150 = ssub.s32 %s17, %s24
    %p151 = scmp.eq.s32.totalorder %s150, 0
    %s153 = sadd.s32 %s152, 1
    %s154 = scalar_select %p151, %s152, %s153
    %p157 = pneg %p151
    %p158 = scmp.eq.s32.totalorder %s17, 1
    %p159 = por %p157, %p158
    %p160 = scmp.ne.s32.totalorder %s152, %s155
    %p161 = scmp.eq.s32.totalorder %s17, 0
    %p162 = por %p160, %p161
    %p163 = scmp.ne.s32.totalorder %s152, %s155
    %p164 = scmp.eq.s32.totalorder %s22, 1
    %p165 = por %p163, %p164
    %p166 = scmp.ne.s32.totalorder %s155, %s156
    %p167 = scmp.eq.s32.totalorder %s22, 0
    %p168 = por %p166, %p167
    %p169 = scmp.ne.s32.totalorder %s155, %s156
    %p170 = scmp.eq.s32.totalorder %s23, 1
    %p171 = por %p169, %p170
    %p173 = scmp.ne.s32.totalorder %s156, %s172
    %p174 = scmp.eq.s32.totalorder %s23, 0
    %p175 = por %p173, %p174
    %s176 = ssub.s32 %s17, %s24
    %p177 = scmp.eq.s32.totalorder %s176, 0
    %s179 = sadd.s32 %s178, 1
    %s180 = scalar_select %p177, %s178, %s179
    %p183 = pneg %p177
    %p184 = scmp.eq.s32.totalorder %s17, 1
    %p185 = por %p183, %p184
    %p186 = scmp.ne.s32.totalorder %s178, %s181
    %p187 = scmp.eq.s32.totalorder %s17, 0
    %p188 = por %p186, %p187
    %p189 = scmp.ne.s32.totalorder %s178, %s181
    %p190 = scmp.eq.s32.totalorder %s22, 1
    %p191 = por %p189, %p190
    %p192 = scmp.ne.s32.totalorder %s181, %s182
    %p193 = scmp.eq.s32.totalorder %s22, 0
    %p194 = por %p192, %p193
    %p195 = scmp.ne.s32.totalorder %s181, %s182
    %p196 = scmp.eq.s32.totalorder %s23, 1
    %p197 = por %p195, %p196
    %p199 = scmp.ne.s32.totalorder %s182, %s198
    %p200 = scmp.eq.s32.totalorder %s23, 0
    %p201 = por %p199, %p200
    %s202 = ssub.s32 %s17, %s24
    %p203 = scmp.eq.s32.totalorder %s202, 0
    %s205 = sadd.s32 %s204, 1
    %s206 = scalar_select %p203, %s204, %s205
    %p209 = pneg %p203
    %p210 = scmp.eq.s32.totalorder %s17, 1
    %p211 = por %p209, %p210
    %p212 = scmp.ne.s32.totalorder %s204, %s207
    %p213 = scmp.eq.s32.totalorder %s17, 0
    %p214 = por %p212, %p213
    %p215 = scmp.ne.s32.totalorder %s204, %s207
    %p216 = scmp.eq.s32.totalorder %s22, 1
    %p217 = por %p215, %p216
    %p218 = scmp.ne.s32.totalorder %s207, %s208
    %p219 = scmp.eq.s32.totalorder %s22, 0
    %p220 = por %p218, %p219
    %p221 = scmp.ne.s32.totalorder %s207, %s208
    %p222 = scmp.eq.s32.totalorder %s23, 1
    %p223 = por %p221, %p222
    %p225 = scmp.ne.s32.totalorder %s208, %s224
    %p226 = scmp.eq.s32.totalorder %s23, 0
    %p227 = por %p225, %p226
    %s228 = ssub.s32 %s17, %s24
    %p229 = scmp.eq.s32.totalorder %s228, 0
    %s231 = sadd.s32 %s230, 1
    %s232 = scalar_select %p229, %s230, %s231
    %p235 = pneg %p229
    %p236 = scmp.eq.s32.totalorder %s17, 1
    %p237 = por %p235, %p236
    %p238 = scmp.ne.s32.totalorder %s230, %s233
    %p239 = scmp.eq.s32.totalorder %s17, 0
    %p240 = por %p238, %p239
    %p241 = scmp.ne.s32.totalorder %s230, %s233
    %p242 = scmp.eq.s32.totalorder %s22, 1
    %p243 = por %p241, %p242
    %p244 = scmp.ne.s32.totalorder %s233, %s234
    %p245 = scmp.eq.s32.totalorder %s22, 0
    %p246 = por %p244, %p245
    %p247 = scmp.ne.s32.totalorder %s233, %s234
    %p248 = scmp.eq.s32.totalorder %s23, 1
    %p249 = por %p247, %p248
    %p251 = scmp.ne.s32.totalorder %s234, %s250
    %p252 = scmp.eq.s32.totalorder %s23, 0
    %p253 = por %p251, %p252
    %s254 = ssub.s32 %s17, %s24
    %p255 = scmp.eq.s32.totalorder %s254, 0
    %s257 = sadd.s32 %s256, 1
    %s258 = scalar_select %p255, %s256, %s257
    %p261 = pneg %p255
    %p262 = scmp.eq.s32.totalorder %s17, 1
    %p263 = por %p261, %p262
    %p264 = scmp.ne.s32.totalorder %s256, %s259
    %p265 = scmp.eq.s32.totalorder %s17, 0
    %p266 = por %p264, %p265
    %p267 = scmp.ne.s32.totalorder %s256, %s259
    %p268 = scmp.eq.s32.totalorder %s22, 1
    %p269 = por %p267, %p268
    %p270 = scmp.ne.s32.totalorder %s259, %s260
    %p271 = scmp.eq.s32.totalorder %s22, 0
    %p272 = por %p270, %p271
    %p273 = scmp.ne.s32.totalorder %s259, %s260
    %p274 = scmp.eq.s32.totalorder %s23, 1
    %p275 = por %p273, %p274
    %p277 = scmp.ne.s32.totalorder %s260, %s276
    %p278 = scmp.eq.s32.totalorder %s23, 0
    %p279 = por %p277, %p278
    %s280 = ssub.s32 %s17, %s24
    %p281 = scmp.eq.s32.totalorder %s280, 0
    %s283 = sadd.s32 %s282, 1
    %s284 = scalar_select %p281, %s282, %s283
    %p287 = pneg %p281
    %p288 = scmp.eq.s32.totalorder %s17, 1
    %p289 = por %p287, %p288
    %p290 = scmp.ne.s32.totalorder %s282, %s285
    %p291 = scmp.eq.s32.totalorder %s17, 0
    %p292 = por %p290, %p291
    %p293 = scmp.ne.s32.totalorder %s282, %s285
    %p294 = scmp.eq.s32.totalorder %s22, 1
    %p295 = por %p293, %p294
    %p296 = scmp.ne.s32.totalorder %s285, %s286
    %p297 = scmp.eq.s32.totalorder %s22, 0
    %p298 = por %p296, %p297
    %p299 = scmp.ne.s32.totalorder %s285, %s286
    %p300 = scmp.eq.s32.totalorder %s23, 1
    %p301 = por %p299, %p300
    %p303 = scmp.ne.s32.totalorder %s286, %s302
    %p304 = scmp.eq.s32.totalorder %s23, 0
    %p305 = por %p303, %p304
    %p306 = scmp.le.s32.totalorder 1, %s17
    %p307 = scmp.lt.s32.totalorder %s17, 3
    %p308 = pnand %p306, %p307
    %p309 = pneg %p308
    // Predicated region
    $region9: #{globalnet_forward.2} parent=5 // pred_check
      _
    $region10: #{globalnet_forward.2} parent=5 // pred_check_branch
      %311 = sbr.rel (%p308) target = $region12
    $region11: #{globalnet_forward.2} parent=5 // pred_region
      %s312 = ssub.s32 %s17, 1
      // Predicated region
      $region13: #{globalnet_forward.2} parent=11 // pred_check
        %p313 = pneg %p38
      $region14: #{globalnet_forward.2} parent=11 // pred_check_branch
        %315 = sbr.rel (%p313) target = $region16
      $region15: #{globalnet_forward.2} parent=11 // pred_region
        _
      $region16: #{globalnet_forward.2} parent=11 // pred_fallthru
        _
    $region12: #{globalnet_forward.2} parent=5 // pred_fallthru
      _
    %p316 = scmp.lt.s32.totalorder %s17, 2
    // Predicated region
    $region17: #{globalnet_forward.2} parent=5 // pred_check
      %p317 = pneg %p316
    $region18: #{globalnet_forward.2} parent=5 // pred_check_branch
      %319 = sbr.rel (%p317) target = $region20
    $region19: #{globalnet_forward.2} parent=5 // pred_region
      // Predicated region
      $region21: #{globalnet_forward.2} parent=19 // pred_check
        %p320 = pneg %p58
      $region22: #{globalnet_forward.2} parent=19 // pred_check_branch
        %322 = sbr.rel (%p320) target = $region24
      $region23: #{globalnet_forward.2} parent=19 // pred_region
        %p323 = scmp.lt.s32.totalorder %s17, 1
        %s324 = scalar_select %p323, %s17, 1
        %s325 = smul.addr %s324, 4
        %s326 = smul.addr %s325, 4
        %s327 = scalar_lea.vmem %s1, %s326
      $region24: #{globalnet_forward.2} parent=19 // pred_fallthru
        _
      // Predicated region
      $region25: #{globalnet_forward.2} parent=19 // pred_check
        %p328 = pneg %p84
      $region26: #{globalnet_forward.2} parent=19 // pred_check_branch
        %330 = sbr.rel (%p328) target = $region28
      $region27: #{globalnet_forward.2} parent=19 // pred_region
        %p331 = scmp.lt.s32.totalorder %s17, 1
        %s332 = scalar_select %p331, %s17, 1
        %s333 = scalar_lea.vmem %s2, %s332
      $region28: #{globalnet_forward.2} parent=19 // pred_fallthru
        _
      // Predicated region
      $region29: #{globalnet_forward.2} parent=19 // pred_check
        %p334 = pneg %p110
      $region30: #{globalnet_forward.2} parent=19 // pred_check_branch
        %336 = sbr.rel (%p334) target = $region32
      $region31: #{globalnet_forward.2} parent=19 // pred_region
        %p337 = scmp.lt.s32.totalorder %s17, 1
        %s338 = scalar_select %p337, %s17, 1
        %s339 = smul.addr %s338, 4
        %s340 = smul.addr %s339, 4
        %s341 = scalar_lea.vmem %s3, %s340
      $region32: #{globalnet_forward.2} parent=19 // pred_fallthru
        _
      // Predicated region
      $region33: #{globalnet_forward.2} parent=19 // pred_check
        %p342 = pneg %p136
      $region34: #{globalnet_forward.2} parent=19 // pred_check_branch
        %344 = sbr.rel (%p342) target = $region36
      $region35: #{globalnet_forward.2} parent=19 // pred_region
        %p345 = scmp.lt.s32.totalorder %s17, 1
        %s346 = scalar_select %p345, %s17, 1
        %s347 = smul.addr %s346, 4
        %s348 = smul.addr %s347, 4
        %s349 = scalar_lea.vmem %s4, %s348
      $region36: #{globalnet_forward.2} parent=19 // pred_fallthru
        _
      // Predicated region
      $region37: #{globalnet_forward.2} parent=19 // pred_check
        %p350 = pneg %p162
      $region38: #{globalnet_forward.2} parent=19 // pred_check_branch
        %352 = sbr.rel (%p350) target = $region40
      $region39: #{globalnet_forward.2} parent=19 // pred_region
        %p353 = scmp.lt.s32.totalorder %s17, 1
        %s354 = scalar_select %p353, %s17, 1
        %s355 = scalar_lea.vmem %s5, %s354
      $region40: #{globalnet_forward.2} parent=19 // pred_fallthru
        _
      // Predicated region
      $region41: #{globalnet_forward.2} parent=19 // pred_check
        %p356 = pneg %p188
      $region42: #{globalnet_forward.2} parent=19 // pred_check_branch
        %358 = sbr.rel (%p356) target = $region44
      $region43: #{globalnet_forward.2} parent=19 // pred_region
        %p359 = scmp.lt.s32.totalorder %s17, 1
        %s360 = scalar_select %p359, %s17, 1
        %s361 = smul.addr %s360, 4
        %s362 = smul.addr %s361, 4
        %s363 = scalar_lea.vmem %s6, %s362
      $region44: #{globalnet_forward.2} parent=19 // pred_fallthru
        _
      // Predicated region
      $region45: #{globalnet_forward.2} parent=19 // pred_check
        %p364 = pneg %p214
      $region46: #{globalnet_forward.2} parent=19 // pred_check_branch
        %366 = sbr.rel (%p364) target = $region48
      $region47: #{globalnet_forward.2} parent=19 // pred_region
        %p367 = scmp.lt.s32.totalorder %s17, 1
        %s368 = scalar_select %p367, %s17, 1
        %s369 = smul.addr %s368, 4
        %s370 = smul.addr %s369, 4
        %s371 = scalar_lea.vmem %s7, %s370
      $region48: #{globalnet_forward.2} parent=19 // pred_fallthru
        _
      // Predicated region
      $region49: #{globalnet_forward.2} parent=19 // pred_check
        %p372 = pneg %p240
      $region50: #{globalnet_forward.2} parent=19 // pred_check_branch
        %374 = sbr.rel (%p372) target = $region52
      $region51: #{globalnet_forward.2} parent=19 // pred_region
        %p375 = scmp.lt.s32.totalorder %s17, 1
        %s376 = scalar_select %p375, %s17, 1
        %s377 = smul.addr %s376, 4
        %s378 = smul.addr %s377, 4
        %s379 = scalar_lea.vmem %s8, %s378
      $region52: #{globalnet_forward.2} parent=19 // pred_fallthru
        _
      // Predicated region
      $region53: #{globalnet_forward.2} parent=19 // pred_check
        %p380 = pneg %p266
      $region54: #{globalnet_forward.2} parent=19 // pred_check_branch
        %382 = sbr.rel (%p380) target = $region56
      $region55: #{globalnet_forward.2} parent=19 // pred_region
        %p383 = scmp.lt.s32.totalorder %s17, 1
        %s384 = scalar_select %p383, %s17, 1
        %s385 = scalar_lea.vmem %s9, %s384
      $region56: #{globalnet_forward.2} parent=19 // pred_fallthru
        _
    $region20: #{globalnet_forward.2} parent=5 // pred_fallthru
      _
    %p386 = scmp.le.s32.totalorder 1, %s17
    %p387 = scmp.lt.s32.totalorder %s17, 3
    %p388 = pnand %p386, %p387
    %p389 = pneg %p388
    // Predicated region
    $region57: #{globalnet_forward.2} parent=5 // pred_check
      _
    $region58: #{globalnet_forward.2} parent=5 // pred_check_branch
      %391 = sbr.rel (%p388) target = $region60
    $region59: #{globalnet_forward.2} parent=5 // pred_region
      %s392 = ssub.s32 %s17, 1
      %p393 = pneg %p38
      %p394 = pneg %p35
      %p395 = scmp.lt.s32.totalorder %s22, 1
      %s396 = scalar_select %p395, %s22, 1
      %s397 = smul.addr %s396, 4
      %s398 = smul.addr %s397, 4
      %s399 = scalar_lea.vmem %s1, %s398
      %p400 = pneg %p64
      %p401 = pneg %p61
      %p402 = scmp.lt.s32.totalorder %s22, 1
      %s403 = scalar_select %p402, %s22, 1
      %s404 = scalar_lea.vmem %s2, %s403
      %p405 = pneg %p90
      %p406 = pneg %p87
      %p407 = scmp.lt.s32.totalorder %s22, 1
      %s408 = scalar_select %p407, %s22, 1
      %s409 = smul.addr %s408, 4
      %s410 = smul.addr %s409, 4
      %s411 = scalar_lea.vmem %s3, %s410
      %p412 = pneg %p116
      %p413 = pneg %p113
      %p414 = scmp.lt.s32.totalorder %s22, 1
      %s415 = scalar_select %p414, %s22, 1
      %s416 = smul.addr %s415, 4
      %s417 = smul.addr %s416, 4
      %s418 = scalar_lea.vmem %s4, %s417
      %p419 = pneg %p142
      %p420 = pneg %p139
      %p421 = scmp.lt.s32.totalorder %s22, 1
      %s422 = scalar_select %p421, %s22, 1
      %s423 = scalar_lea.vmem %s5, %s422
      %p424 = pneg %p168
      %p425 = pneg %p165
      %p426 = scmp.lt.s32.totalorder %s22, 1
      %s427 = scalar_select %p426, %s22, 1
      %s428 = smul.addr %s427, 4
      %s429 = smul.addr %s428, 4
      %s430 = scalar_lea.vmem %s6, %s429
      %p431 = pneg %p194
      %p432 = pneg %p191
      %p433 = scmp.lt.s32.totalorder %s22, 1
      %s434 = scalar_select %p433, %s22, 1
      %s435 = smul.addr %s434, 4
      %s436 = smul.addr %s435, 4
      %s437 = scalar_lea.vmem %s7, %s436
      %p438 = pneg %p220
      %p439 = pneg %p217
      %p440 = scmp.lt.s32.totalorder %s22, 1
      %s441 = scalar_select %p440, %s22, 1
      %s442 = smul.addr %s441, 4
      %s443 = smul.addr %s442, 4
      %s444 = scalar_lea.vmem %s8, %s443
      %p445 = pneg %p246
      %p446 = pneg %p243
      %p447 = scmp.lt.s32.totalorder %s22, 1
      %s448 = scalar_select %p447, %s22, 1
      %s449 = scalar_lea.vmem %s9, %s448
      %p450 = pneg %p272
      %p451 = pneg %p269
      %p452 = pneg %p298
      %p453 = pneg %p295
      %p454 = scmp.lt.s32.totalorder %s22, 1
      %s455 = scalar_select %p454, %s22, 1
      %s456 = smul.addr %s455, 32
      %s457 = smul.addr %s456, 8
      %s458 = scalar_lea.vmem %s11, %s457
      %p459 = scmp.lt.s32.totalorder %s22, 1
      %s460 = scalar_select %p459, %s22, 1
      %s461 = smul.addr %s460, 4
      %s462 = smul.addr %s461, 4
      %s463 = scalar_lea.vmem %s1, %s462
      %p464 = scmp.lt.s32.totalorder %s22, 1
      %s465 = scalar_select %p464, %s22, 1
      %s466 = scalar_lea.vmem %s2, %s465
      %p467 = scmp.lt.s32.totalorder %s22, 1
      %s468 = scalar_select %p467, %s22, 1
      %s469 = smul.addr %s468, 4
      %s470 = smul.addr %s469, 4
      %s471 = scalar_lea.vmem %s3, %s470
      %p472 = scmp.lt.s32.totalorder %s22, 1
      %s473 = scalar_select %p472, %s22, 1
      %s474 = smul.addr %s473, 4
      %s475 = smul.addr %s474, 4
      %s476 = scalar_lea.vmem %s4, %s475
      %p477 = scmp.lt.s32.totalorder %s22, 1
      %s478 = scalar_select %p477, %s22, 1
      %s479 = scalar_lea.vmem %s5, %s478
      %p480 = scmp.lt.s32.totalorder %s22, 1
      %s481 = scalar_select %p480, %s22, 1
      %s482 = smul.addr %s481, 4
      %s483 = smul.addr %s482, 4
      %s484 = scalar_lea.vmem %s6, %s483
      %p485 = scmp.lt.s32.totalorder %s22, 1
      %s486 = scalar_select %p485, %s22, 1
      %s487 = smul.addr %s486, 4
      %s488 = smul.addr %s487, 4
      %s489 = scalar_lea.vmem %s7, %s488
      %p490 = scmp.lt.s32.totalorder %s22, 1
      %s491 = scalar_select %p490, %s22, 1
      %s492 = smul.addr %s491, 4
      %s493 = smul.addr %s492, 4
      %s494 = scalar_lea.vmem %s8, %s493
      %p495 = scmp.lt.s32.totalorder %s22, 1
      %s496 = scalar_select %p495, %s22, 1
      %s497 = scalar_lea.vmem %s9, %s496
      %p498 = scmp.lt.s32.totalorder %s22, 1
      %s499 = scalar_select %p498, %s22, 1
      %s500 = smul.addr %s499, 32
      %s501 = smul.addr %s500, 8
      %s502 = scalar_lea.vmem %s11, %s501
      %v504 = vld [vmem:[%s0] sm:$0xf]
      %v505 = vld [vmem:[%s0 + $0x4] sm:$0xf]
      %v506 = vld [vmem:[%s0 + $0x8] sm:$0xf]
      %v507 = vld [vmem:[%s0 + $0xc] sm:$0xf]
      %v508 = vld [vmem:[%s0 + $0x10] sm:$0xf]
      %v509 = vld [vmem:[%s0 + $0x14] sm:$0xf]
      %v510 = vld [vmem:[%s0 + $0x18] sm:$0xf]
      %v511 = vld [vmem:[%s0 + $0x1c] sm:$0xf]
      %v512 = vld [vmem:[%s0 + $0x20] sm:$0xf]
      %v513 = vld [vmem:[%s0 + $0x24] sm:$0xf]
      %v514 = vld [vmem:[%s0 + $0x28] sm:$0xf]
      %v515 = vld [vmem:[%s0 + $0x2c] sm:$0xf]
      %v516 = vld [vmem:[%s0 + $0x30] sm:$0xf]
      %v517 = vld [vmem:[%s0 + $0x34] sm:$0xf]
      %v518 = vld [vmem:[%s0 + $0x38] sm:$0xf]
      %v519 = vld [vmem:[%s0 + $0x3c] sm:$0xf]
      %v520 = vld [vmem:[%s0 + $0x40] sm:$0xf]
      %v521 = vld [vmem:[%s0 + $0x44] sm:$0xf]
      %v522 = vld [vmem:[%s0 + $0x48] sm:$0xf]
      %v523 = vld [vmem:[%s0 + $0x4c] sm:$0xf]
      %v524 = vld [vmem:[%s0 + $0x50] sm:$0xf]
      %v525 = vld [vmem:[%s0 + $0x54] sm:$0xf]
      %v526 = vld [vmem:[%s0 + $0x58] sm:$0xf]
      %v527 = vld [vmem:[%s0 + $0x5c] sm:$0xf]
      %v528 = vld [vmem:[%s0 + $0x60] sm:$0xf]
      %v529 = vld [vmem:[%s0 + $0x64] sm:$0xf]
      %v530 = vld [vmem:[%s0 + $0x68] sm:$0xf]
      %v531 = vld [vmem:[%s0 + $0x6c] sm:$0xf]
      %v532 = vld [vmem:[%s0 + $0x70] sm:$0xf]
      %v533 = vld [vmem:[%s0 + $0x74] sm:$0xf]
      %v534 = vld [vmem:[%s0 + $0x78] sm:$0xf]
      %v535 = vld [vmem:[%s0 + $0x7c] sm:$0xf]
      %v536 = vlaneseq
      %v537 = vand.u32 %v536, 127
      %vm538 = vcmp.lt.s32.totalorder %v537, 8
      %v539 = vld [vmem:[%s463] sm:$0xf]
      %v540 = vld [vmem:[%s463 + $0x4] sm:$0xf]
      %v541 = vld [vmem:[%s463 + $0x8] sm:$0xf]
      %v542 = vld [vmem:[%s463 + $0xc] sm:$0xf]
      %v575 = vunpack.c.l.b16 %v504
      %v576 = vunpack.c.l.b16 %v505
      %v577 = vunpack.c.l.b16 %v506
      %v578 = vunpack.c.l.b16 %v507
      %v579 = vunpack.c.l.b16 %v508
      %v580 = vunpack.c.l.b16 %v509
      %v581 = vunpack.c.l.b16 %v510
      %v582 = vunpack.c.l.b16 %v511
      %v583 = vunpack.c.l.b16 %v512
      %v584 = vunpack.c.l.b16 %v513
      %v585 = vunpack.c.l.b16 %v514
      %v586 = vunpack.c.l.b16 %v515
      %v587 = vunpack.c.l.b16 %v516
      %v588 = vunpack.c.l.b16 %v517
      %v589 = vunpack.c.l.b16 %v518
      %v590 = vunpack.c.l.b16 %v519
      %v591 = vunpack.c.l.b16 %v520
      %v592 = vunpack.c.l.b16 %v521
      %v593 = vunpack.c.l.b16 %v522
      %v594 = vunpack.c.l.b16 %v523
      %v595 = vunpack.c.l.b16 %v524
      %v596 = vunpack.c.l.b16 %v525
      %v597 = vunpack.c.l.b16 %v526
      %v598 = vunpack.c.l.b16 %v527
      %v599 = vunpack.c.l.b16 %v528
      %v600 = vunpack.c.l.b16 %v529
      %v601 = vunpack.c.l.b16 %v530
      %v602 = vunpack.c.l.b16 %v531
      %v603 = vunpack.c.l.b16 %v532
      %v604 = vunpack.c.l.b16 %v533
      %v605 = vunpack.c.l.b16 %v534
      %v606 = vunpack.c.l.b16 %v535
      %v607 = vpack.c.b16 %v576, %v575
      %v608 = vpack.c.b16 %v578, %v577
      %v609 = vpack.c.b16 %v580, %v579
      %v610 = vpack.c.b16 %v582, %v581
      %v611 = vpack.c.b16 %v584, %v583
      %v612 = vpack.c.b16 %v586, %v585
      %v613 = vpack.c.b16 %v588, %v587
      %v614 = vpack.c.b16 %v590, %v589
      %v615 = vpack.c.b16 %v592, %v591
      %v616 = vpack.c.b16 %v594, %v593
      %v617 = vpack.c.b16 %v596, %v595
      %v618 = vpack.c.b16 %v598, %v597
      %v619 = vpack.c.b16 %v600, %v599
      %v620 = vpack.c.b16 %v602, %v601
      %v621 = vpack.c.b16 %v604, %v603
      %v622 = vpack.c.b16 %v606, %v605
      %v627 = vunpack.c.l.b16 %v539
      %v628 = vunpack.c.l.b16 %v540
      %v629 = vunpack.c.l.b16 %v541
      %v630 = vunpack.c.l.b16 %v542
      %v631 = vpack.c.b16 %v628, %v627
      %v632 = vpack.c.b16 %v630, %v629
      %vm635 = vcmask 261120
      %v637 = vsel %vm635, %v607, 0
      %v640 = vsel %vm635, %v608, 0
      %v643 = vsel %vm635, %v609, 0
      %v646 = vsel %vm635, %v610, 0
      %v649 = vsel %vm635, %v611, 0
      %v652 = vsel %vm635, %v612, 0
      %v655 = vsel %vm635, %v613, 0
      %v658 = vsel %vm635, %v614, 0
      %v661 = vsel %vm635, %v615, 0
      %v664 = vsel %vm635, %v616, 0
      %v667 = vsel %vm635, %v617, 0
      %v670 = vsel %vm635, %v618, 0
      %v673 = vsel %vm635, %v619, 0
      %v676 = vsel %vm635, %v620, 0
      %v679 = vsel %vm635, %v621, 0
      %v682 = vsel %vm635, %v622, 0
      %684 = vmatprep.subr.bf16.mxu0 0
      %685 = vmatpush1.bf16.msra.mxu0 0
      %686 = vmatprep.subr.bf16.mxu0 0
      %687 = vmatpush1.bf16.msra.mxu0 0
      %688 = vmatprep.subr.bf16.mxu0 0
      %689 = vmatpush1.bf16.msra.mxu0 0
      %690 = vmatprep.subr.bf16.mxu0 0
      %691 = vmatpush1.bf16.msra.mxu0 0
      %692 = vmatprep.subr.bf16.mxu0 0
      %693 = vmatpush1.bf16.msra.mxu0 0
      %694 = vmatprep.subr.bf16.mxu0 0
      %695 = vmatpush1.bf16.msra.mxu0 0
      %696 = vmatprep.subr.bf16.mxu0 0
      %697 = vmatpush1.bf16.msra.mxu0 %v632
      %698 = vmatprep.subr.bf16.mxu0 0
      %699 = vmatpush1.bf16.msra.mxu0 %v631
      %700 = vmatprep.subr.bf16.mxu0 0
      %701 = vmatpush2.bf16.msra.mxu0 0
      %702 = vmatprep.subr.bf16.mxu0 0
      %703 = vmatpush2.bf16.msra.mxu0 0
      %704 = vmatprep.subr.bf16.mxu0 0
      %705 = vmatpush2.bf16.msra.mxu0 0
      %706 = vmatprep.subr.bf16.mxu0 0
      %707 = vmatpush2.bf16.msra.mxu0 0
      %708 = vmatprep.subr.bf16.mxu0 0
      %709 = vmatpush2.bf16.msra.mxu0 0
      %710 = vmatprep.subr.bf16.mxu0 0
      %711 = vmatpush2.bf16.msra.mxu0 0
      %712 = vmatprep.subr.bf16.mxu0 0
      %713 = vmatpush2.bf16.msra.mxu0 0
      %714 = vmatprep.subr.bf16.mxu0 0
      %715 = vmatpush2.bf16.msra.mxu0 0
      %716 = vmatprep.mubr.bf16.mxu0 0
      %717 = vmatmul.mubr.bf16.gmra.mxu0 %v637
      %v718 = vpop.f32.mrf.mxu0
      %v719 = vadd.f32 0.0, %v718
      %v720 = vpop.f32.mrf.mxu0
      %v721 = vpop.f32.mrf.mxu0
      %v722 = vadd.f32 0.0, %v721
      %v723 = vpop.f32.mrf.mxu0
      %724 = vmatprep.mubr.bf16.mxu0 0
      %725 = vmatmul.mubr.bf16.gmra.mxu0 %v640
      %v726 = vpop.f32.mrf.mxu0
      %v727 = vadd.f32 0.0, %v726
      %v728 = vpop.f32.mrf.mxu0
      %v729 = vpop.f32.mrf.mxu0
      %v730 = vadd.f32 0.0, %v729
      %v731 = vpop.f32.mrf.mxu0
      %732 = vmatprep.mubr.bf16.mxu0 0
      %733 = vmatmul.mubr.bf16.gmra.mxu0 %v643
      %v734 = vpop.f32.mrf.mxu0
      %v735 = vadd.f32 0.0, %v734
      %v736 = vpop.f32.mrf.mxu0
      %v737 = vpop.f32.mrf.mxu0
      %v738 = vadd.f32 0.0, %v737
      %v739 = vpop.f32.mrf.mxu0
      %740 = vmatprep.mubr.bf16.mxu0 0
      %741 = vmatmul.mubr.bf16.gmra.mxu0 %v646
      %v742 = vpop.f32.mrf.mxu0
      %v743 = vadd.f32 0.0, %v742
      %v744 = vpop.f32.mrf.mxu0
      %v745 = vpop.f32.mrf.mxu0
      %v746 = vadd.f32 0.0, %v745
      %v747 = vpop.f32.mrf.mxu0
      %748 = vmatprep.mubr.bf16.mxu0 0
      %749 = vmatmul.mubr.bf16.gmra.mxu0 %v649
      %v750 = vpop.f32.mrf.mxu0
      %v751 = vadd.f32 0.0, %v750
      %v752 = vpop.f32.mrf.mxu0
      %v753 = vpop.f32.mrf.mxu0
      %v754 = vadd.f32 0.0, %v753
      %v755 = vpop.f32.mrf.mxu0
      %756 = vmatprep.mubr.bf16.mxu0 0
      %757 = vmatmul.mubr.bf16.gmra.mxu0 %v652
      %v758 = vpop.f32.mrf.mxu0
      %v759 = vadd.f32 0.0, %v758
      %v760 = vpop.f32.mrf.mxu0
      %v761 = vpop.f32.mrf.mxu0
      %v762 = vadd.f32 0.0, %v761
      %v763 = vpop.f32.mrf.mxu0
      %764 = vmatprep.mubr.bf16.mxu0 0
      %765 = vmatmul.mubr.bf16.gmra.mxu0 %v655
      %v766 = vpop.f32.mrf.mxu0
      %v767 = vadd.f32 0.0, %v766
      %v768 = vpop.f32.mrf.mxu0
      %v769 = vpop.f32.mrf.mxu0
      %v770 = vadd.f32 0.0, %v769
      %v771 = vpop.f32.mrf.mxu0
      %772 = vmatprep.mubr.bf16.mxu0 0
      %773 = vmatmul.mubr.bf16.gmra.mxu0 %v658
      %v774 = vpop.f32.mrf.mxu0
      %v775 = vadd.f32 0.0, %v774
      %v776 = vpop.f32.mrf.mxu0
      %v777 = vpop.f32.mrf.mxu0
      %v778 = vadd.f32 0.0, %v777
      %v779 = vpop.f32.mrf.mxu0
      %780 = vmatprep.mubr.bf16.mxu0 0
      %781 = vmatmul.mubr.bf16.gmra.mxu0 %v661
      %v782 = vpop.f32.mrf.mxu0
      %v783 = vadd.f32 0.0, %v782
      %v784 = vpop.f32.mrf.mxu0
      %v785 = vpop.f32.mrf.mxu0
      %v786 = vadd.f32 0.0, %v785
      %v787 = vpop.f32.mrf.mxu0
      %788 = vmatprep.mubr.bf16.mxu0 0
      %789 = vmatmul.mubr.bf16.gmra.mxu0 %v664
      %v790 = vpop.f32.mrf.mxu0
      %v791 = vadd.f32 0.0, %v790
      %v792 = vpop.f32.mrf.mxu0
      %v793 = vpop.f32.mrf.mxu0
      %v794 = vadd.f32 0.0, %v793
      %v795 = vpop.f32.mrf.mxu0
      %796 = vmatprep.mubr.bf16.mxu0 0
      %797 = vmatmul.mubr.bf16.gmra.mxu0 %v667
      %v798 = vpop.f32.mrf.mxu0
      %v799 = vadd.f32 0.0, %v798
      %v800 = vpop.f32.mrf.mxu0
      %v801 = vpop.f32.mrf.mxu0
      %v802 = vadd.f32 0.0, %v801
      %v803 = vpop.f32.mrf.mxu0
      %804 = vmatprep.mubr.bf16.mxu0 0
      %805 = vmatmul.mubr.bf16.gmra.mxu0 %v670
      %v806 = vpop.f32.mrf.mxu0
      %v807 = vadd.f32 0.0, %v806
      %v808 = vpop.f32.mrf.mxu0
      %v809 = vpop.f32.mrf.mxu0
      %v810 = vadd.f32 0.0, %v809
      %v811 = vpop.f32.mrf.mxu0
      %812 = vmatprep.mubr.bf16.mxu0 0
      %813 = vmatmul.mubr.bf16.gmra.mxu0 %v673
      %v814 = vpop.f32.mrf.mxu0
      %v815 = vadd.f32 0.0, %v814
      %v816 = vpop.f32.mrf.mxu0
      %v817 = vpop.f32.mrf.mxu0
      %v818 = vadd.f32 0.0, %v817
      %v819 = vpop.f32.mrf.mxu0
      %820 = vmatprep.mubr.bf16.mxu0 0
      %821 = vmatmul.mubr.bf16.gmra.mxu0 %v676
      %v822 = vpop.f32.mrf.mxu0
      %v823 = vadd.f32 0.0, %v822
      %v824 = vpop.f32.mrf.mxu0
      %v825 = vpop.f32.mrf.mxu0
      %v826 = vadd.f32 0.0, %v825
      %v827 = vpop.f32.mrf.mxu0
      %828 = vmatprep.mubr.bf16.mxu0 0
      %829 = vmatmul.mubr.bf16.gmra.mxu0 %v679
      %v830 = vpop.f32.mrf.mxu0
      %v831 = vadd.f32 0.0, %v830
      %v832 = vpop.f32.mrf.mxu0
      %v833 = vpop.f32.mrf.mxu0
      %v834 = vadd.f32 0.0, %v833
      %v835 = vpop.f32.mrf.mxu0
      %836 = vmatprep.mubr.bf16.mxu0 0
      %837 = vmatmul.mubr.bf16.gmra.mxu0 %v682
      %v838 = vpop.f32.mrf.mxu0
      %v839 = vadd.f32 0.0, %v838
      %v840 = vpop.f32.mrf.mxu0
      %v841 = vpop.f32.mrf.mxu0
      %v842 = vadd.f32 0.0, %v841
      %v843 = vpop.f32.mrf.mxu0
      %844 = vdwg.mxu0
      %v845 = vpack.c.bf16 %v722, %v719
      %v846 = vpack.c.bf16 %v730, %v727
      %v847 = vpack.c.bf16 %v738, %v735
      %v848 = vpack.c.bf16 %v746, %v743
      %v849 = vpack.c.bf16 %v754, %v751
      %v850 = vpack.c.bf16 %v762, %v759
      %v851 = vpack.c.bf16 %v770, %v767
      %v852 = vpack.c.bf16 %v778, %v775
      %v853 = vpack.c.bf16 %v786, %v783
      %v854 = vpack.c.bf16 %v794, %v791
      %v855 = vpack.c.bf16 %v802, %v799
      %v856 = vpack.c.bf16 %v810, %v807
      %v857 = vpack.c.bf16 %v818, %v815
      %v858 = vpack.c.bf16 %v826, %v823
      %v859 = vpack.c.bf16 %v834, %v831
      %v860 = vpack.c.bf16 %v842, %v839
      %v877 = vunpack.c.l.b16 %v845
      %v878 = vunpack.c.h.b16 %v845
      %v879 = vunpack.c.l.b16 %v846
      %v880 = vunpack.c.h.b16 %v846
      %v881 = vunpack.c.l.b16 %v847
      %v882 = vunpack.c.h.b16 %v847
      %v883 = vunpack.c.l.b16 %v848
      %v884 = vunpack.c.h.b16 %v848
      %v885 = vunpack.c.l.b16 %v849
      %v886 = vunpack.c.h.b16 %v849
      %v887 = vunpack.c.l.b16 %v850
      %v888 = vunpack.c.h.b16 %v850
      %v889 = vunpack.c.l.b16 %v851
      %v890 = vunpack.c.h.b16 %v851
      %v891 = vunpack.c.l.b16 %v852
      %v892 = vunpack.c.h.b16 %v852
      %v893 = vunpack.c.l.b16 %v853
      %v894 = vunpack.c.h.b16 %v853
      %v895 = vunpack.c.l.b16 %v854
      %v896 = vunpack.c.h.b16 %v854
      %v897 = vunpack.c.l.b16 %v855
      %v898 = vunpack.c.h.b16 %v855
      %v899 = vunpack.c.l.b16 %v856
      %v900 = vunpack.c.h.b16 %v856
      %v901 = vunpack.c.l.b16 %v857
      %v902 = vunpack.c.h.b16 %v857
      %v903 = vunpack.c.l.b16 %v858
      %v904 = vunpack.c.h.b16 %v858
      %v905 = vunpack.c.l.b16 %v859
      %v906 = vunpack.c.h.b16 %v859
      %v907 = vunpack.c.l.b16 %v860
      %v908 = vunpack.c.h.b16 %v860
      %v909 = vpack.c.b16 %v877, %v877
      %v910 = vpack.c.b16 %v878, %v878
      %v911 = vpack.c.b16 %v879, %v879
      %v912 = vpack.c.b16 %v880, %v880
      %v913 = vpack.c.b16 %v881, %v881
      %v914 = vpack.c.b16 %v882, %v882
      %v915 = vpack.c.b16 %v883, %v883
      %v916 = vpack.c.b16 %v884, %v884
      %v917 = vpack.c.b16 %v885, %v885
      %v918 = vpack.c.b16 %v886, %v886
      %v919 = vpack.c.b16 %v887, %v887
      %v920 = vpack.c.b16 %v888, %v888
      %v921 = vpack.c.b16 %v889, %v889
      %v922 = vpack.c.b16 %v890, %v890
      %v923 = vpack.c.b16 %v891, %v891
      %v924 = vpack.c.b16 %v892, %v892
      %v925 = vpack.c.b16 %v893, %v893
      %v926 = vpack.c.b16 %v894, %v894
      %v927 = vpack.c.b16 %v895, %v895
      %v928 = vpack.c.b16 %v896, %v896
      %v929 = vpack.c.b16 %v897, %v897
      %v930 = vpack.c.b16 %v898, %v898
      %v931 = vpack.c.b16 %v899, %v899
      %v932 = vpack.c.b16 %v900, %v900
      %v933 = vpack.c.b16 %v901, %v901
      %v934 = vpack.c.b16 %v902, %v902
      %v935 = vpack.c.b16 %v903, %v903
      %v936 = vpack.c.b16 %v904, %v904
      %v937 = vpack.c.b16 %v905, %v905
      %v938 = vpack.c.b16 %v906, %v906
      %v939 = vpack.c.b16 %v907, %v907
      %v940 = vpack.c.b16 %v908, %v908
      %vm973 = vcmask 257024
      %974 = vst.msk [vmem:[#allocation4] sm:$0xf] %vm973, %v909
      %975 = vst.msk [vmem:[#allocation4 + $0x4] sm:$0xf] %vm973, %v910
      %976 = vst.msk [vmem:[#allocation4 + $0x8] sm:$0xf] %vm973, %v911
      %977 = vst.msk [vmem:[#allocation4 + $0xc] sm:$0xf] %vm973, %v912
      %978 = vst.msk [vmem:[#allocation4 + $0x10] sm:$0xf] %vm973, %v913
      %979 = vst.msk [vmem:[#allocation4 + $0x14] sm:$0xf] %vm973, %v914
      %980 = vst.msk [vmem:[#allocation4 + $0x18] sm:$0xf] %vm973, %v915
      %981 = vst.msk [vmem:[#allocation4 + $0x1c] sm:$0xf] %vm973, %v916
      %982 = vst.msk [vmem:[#allocation4 + $0x20] sm:$0xf] %vm973, %v917
      %983 = vst.msk [vmem:[#allocation4 + $0x24] sm:$0xf] %vm973, %v918
      %984 = vst.msk [vmem:[#allocation4 + $0x28] sm:$0xf] %vm973, %v919
      %985 = vst.msk [vmem:[#allocation4 + $0x2c] sm:$0xf] %vm973, %v920
      %986 = vst.msk [vmem:[#allocation4 + $0x30] sm:$0xf] %vm973, %v921
      %987 = vst.msk [vmem:[#allocation4 + $0x34] sm:$0xf] %vm973, %v922
      %988 = vst.msk [vmem:[#allocation4 + $0x38] sm:$0xf] %vm973, %v923
      %989 = vst.msk [vmem:[#allocation4 + $0x3c] sm:$0xf] %vm973, %v924
      %990 = vst.msk [vmem:[#allocation4 + $0x40] sm:$0xf] %vm973, %v925
      %991 = vst.msk [vmem:[#allocation4 + $0x44] sm:$0xf] %vm973, %v926
      %992 = vst.msk [vmem:[#allocation4 + $0x48] sm:$0xf] %vm973, %v927
      %993 = vst.msk [vmem:[#allocation4 + $0x4c] sm:$0xf] %vm973, %v928
      %994 = vst.msk [vmem:[#allocation4 + $0x50] sm:$0xf] %vm973, %v929
      %995 = vst.msk [vmem:[#allocation4 + $0x54] sm:$0xf] %vm973, %v930
      %996 = vst.msk [vmem:[#allocation4 + $0x58] sm:$0xf] %vm973, %v931
      %997 = vst.msk [vmem:[#allocation4 + $0x5c] sm:$0xf] %vm973, %v932
      %998 = vst.msk [vmem:[#allocation4 + $0x60] sm:$0xf] %vm973, %v933
      %999 = vst.msk [vmem:[#allocation4 + $0x64] sm:$0xf] %vm973, %v934
      %1000 = vst.msk [vmem:[#allocation4 + $0x68] sm:$0xf] %vm973, %v935
      %1001 = vst.msk [vmem:[#allocation4 + $0x6c] sm:$0xf] %vm973, %v936
      %1002 = vst.msk [vmem:[#allocation4 + $0x70] sm:$0xf] %vm973, %v937
      %1003 = vst.msk [vmem:[#allocation4 + $0x74] sm:$0xf] %vm973, %v938
      %1004 = vst.msk [vmem:[#allocation4 + $0x78] sm:$0xf] %vm973, %v939
      %1005 = vst.msk [vmem:[#allocation4 + $0x7c] sm:$0xf] %vm973, %v940
      %v1006 = vld [vmem:[%s466] sm:$0x1]
      %v1008 = vlaneseq
      %v1009 = vshrl.u32 %v1008, 7
      %v1010 = vsub.s32 0, %v1009
      %v1011 = vrot.slane %v1006, %v1010
      %v1013 = vld [vmem:[#allocation4] sm:$0xf]
      %v1014 = vld [vmem:[#allocation4 + $0x4] sm:$0xf]
      %v1015 = vld [vmem:[#allocation4 + $0x8] sm:$0xf]
      %v1016 = vld [vmem:[#allocation4 + $0xc] sm:$0xf]
      %v1017 = vld [vmem:[#allocation4 + $0x10] sm:$0xf]
      %v1018 = vld [vmem:[#allocation4 + $0x14] sm:$0xf]
      %v1019 = vld [vmem:[#allocation4 + $0x18] sm:$0xf]
      %v1020 = vld [vmem:[#allocation4 + $0x1c] sm:$0xf]
      %v1021 = vld [vmem:[#allocation4 + $0x20] sm:$0xf]
      %v1022 = vld [vmem:[#allocation4 + $0x24] sm:$0xf]
      %v1023 = vld [vmem:[#allocation4 + $0x28] sm:$0xf]
      %v1024 = vld [vmem:[#allocation4 + $0x2c] sm:$0xf]
      %v1025 = vld [vmem:[#allocation4 + $0x30] sm:$0xf]
      %v1026 = vld [vmem:[#allocation4 + $0x34] sm:$0xf]
      %v1027 = vld [vmem:[#allocation4 + $0x38] sm:$0xf]
      %v1028 = vld [vmem:[#allocation4 + $0x3c] sm:$0xf]
      %v1029 = vld [vmem:[#allocation4 + $0x40] sm:$0xf]
      %v1030 = vld [vmem:[#allocation4 + $0x44] sm:$0xf]
      %v1031 = vld [vmem:[#allocation4 + $0x48] sm:$0xf]
      %v1032 = vld [vmem:[#allocation4 + $0x4c] sm:$0xf]
      %v1033 = vld [vmem:[#allocation4 + $0x50] sm:$0xf]
      %v1034 = vld [vmem:[#allocation4 + $0x54] sm:$0xf]
      %v1035 = vld [vmem:[#allocation4 + $0x58] sm:$0xf]
      %v1036 = vld [vmem:[#allocation4 + $0x5c] sm:$0xf]
      %v1037 = vld [vmem:[#allocation4 + $0x60] sm:$0xf]
      %v1038 = vld [vmem:[#allocation4 + $0x64] sm:$0xf]
      %v1039 = vld [vmem:[#allocation4 + $0x68] sm:$0xf]
      %v1040 = vld [vmem:[#allocation4 + $0x6c] sm:$0xf]
      %v1041 = vld [vmem:[#allocation4 + $0x70] sm:$0xf]
      %v1042 = vld [vmem:[#allocation4 + $0x74] sm:$0xf]
      %v1043 = vld [vmem:[#allocation4 + $0x78] sm:$0xf]
      %v1044 = vld [vmem:[#allocation4 + $0x7c] sm:$0xf]
      %s1045 = smul.u32 0, 2
      %s1046 = smul.u32 %s22, 64
      %s1047 = sadd.s32 %s1045, %s1046
      %s1048 = smul.addr %s1047, 4
      %s1049 = scalar_lea.vmem %s10, %s1048
      %p1051 = scmp.lt.u32.totalorder 256, 8
      %p1052 = pneg %p1051
      // Predicated region
      $region61: #{globalnet_forward.2} parent=59 // pred_check
        _
      $region62: #{globalnet_forward.2} parent=59 // pred_check_branch
        %1054 = sbr.rel (%p1051) target = $region64
      $region63: #{globalnet_forward.2} parent=59 // pred_region
        %s1070 = sand.u32 256, 7
        %p1071 = scmp.eq.s32.totalorder %s1070, 0
        // Predicated region
        $region76: #{globalnet_forward.2} parent=63 // pred_check
          %p1072 = pneg %p1071
        $region77: #{globalnet_forward.2} parent=63 // pred_check_branch
          %1074 = sbr.rel (%p1072) target = $region79
        $region78: #{globalnet_forward.2} parent=63 // pred_region
          loop: start=0, step=1, limit=1
          $region80: #{globalnet_forward.2} parent=78 // loop_pre_header
            _
          $region81: #{globalnet_forward.2} parent=78 // loop_header
            %s1076 = sphi 0, %s1080
            %p1077 = scmp.ge.s32.totalorder %s1076, 1
            %s1081 = sphi %s1049, %s1049
            %s1082 = sphi [#allocation2], [#allocation2]
          $region82: #{globalnet_forward.2} parent=78 // loop_header_branch
            %1079 = sbr.rel (%p1077) target = $region86
          $region83: #{globalnet_forward.2} parent=78 // loop_body
            %v1083 = vld [vmem:[%s1081] sm:$0xff]
            %1084 = vst [vmem:[%s1082] sm:$0xff] %v1083
            %v1085 = vld [vmem:[%s1081 + $0x8] sm:$0xff]
            %1086 = vst [vmem:[%s1082 + $0x8] sm:$0xff] %v1085
            %v1087 = vld [vmem:[%s1081 + $0x10] sm:$0xff]
            %1088 = vst [vmem:[%s1082 + $0x10] sm:$0xff] %v1087
            %v1089 = vld [vmem:[%s1081 + $0x18] sm:$0xff]
            %1090 = vst [vmem:[%s1082 + $0x18] sm:$0xff] %v1089
            %v1091 = vld [vmem:[%s1081 + $0x20] sm:$0xff]
            %1092 = vst [vmem:[%s1082 + $0x20] sm:$0xff] %v1091
            %v1093 = vld [vmem:[%s1081 + $0x28] sm:$0xff]
            %1094 = vst [vmem:[%s1082 + $0x28] sm:$0xff] %v1093
            %v1095 = vld [vmem:[%s1081 + $0x30] sm:$0xff]
            %1096 = vst [vmem:[%s1082 + $0x30] sm:$0xff] %v1095
            %v1097 = vld [vmem:[%s1081 + $0x38] sm:$0xff]
            %1098 = vst [vmem:[%s1082 + $0x38] sm:$0xff] %v1097
            %v1099 = vld [vmem:[%s1081 + $0x40] sm:$0xff]
            %1100 = vst [vmem:[%s1082 + $0x40] sm:$0xff] %v1099
            %v1101 = vld [vmem:[%s1081 + $0x48] sm:$0xff]
            %1102 = vst [vmem:[%s1082 + $0x48] sm:$0xff] %v1101
            %v1103 = vld [vmem:[%s1081 + $0x50] sm:$0xff]
            %1104 = vst [vmem:[%s1082 + $0x50] sm:$0xff] %v1103
            %v1105 = vld [vmem:[%s1081 + $0x58] sm:$0xff]
            %1106 = vst [vmem:[%s1082 + $0x58] sm:$0xff] %v1105
            %v1107 = vld [vmem:[%s1081 + $0x60] sm:$0xff]
            %1108 = vst [vmem:[%s1082 + $0x60] sm:$0xff] %v1107
            %v1109 = vld [vmem:[%s1081 + $0x68] sm:$0xff]
            %1110 = vst [vmem:[%s1082 + $0x68] sm:$0xff] %v1109
            %v1111 = vld [vmem:[%s1081 + $0x70] sm:$0xff]
            %1112 = vst [vmem:[%s1082 + $0x70] sm:$0xff] %v1111
            %v1113 = vld [vmem:[%s1081 + $0x78] sm:$0xff]
            %1114 = vst [vmem:[%s1082 + $0x78] sm:$0xff] %v1113
            %v1115 = vld [vmem:[%s1081 + $0x80] sm:$0xff]
            %1116 = vst [vmem:[%s1082 + $0x80] sm:$0xff] %v1115
            %v1117 = vld [vmem:[%s1081 + $0x88] sm:$0xff]
            %1118 = vst [vmem:[%s1082 + $0x88] sm:$0xff] %v1117
            %v1119 = vld [vmem:[%s1081 + $0x90] sm:$0xff]
            %1120 = vst [vmem:[%s1082 + $0x90] sm:$0xff] %v1119
            %v1121 = vld [vmem:[%s1081 + $0x98] sm:$0xff]
            %1122 = vst [vmem:[%s1082 + $0x98] sm:$0xff] %v1121
            %v1123 = vld [vmem:[%s1081 + $0xa0] sm:$0xff]
            %1124 = vst [vmem:[%s1082 + $0xa0] sm:$0xff] %v1123
            %v1125 = vld [vmem:[%s1081 + $0xa8] sm:$0xff]
            %1126 = vst [vmem:[%s1082 + $0xa8] sm:$0xff] %v1125
            %v1127 = vld [vmem:[%s1081 + $0xb0] sm:$0xff]
            %1128 = vst [vmem:[%s1082 + $0xb0] sm:$0xff] %v1127
            %v1129 = vld [vmem:[%s1081 + $0xb8] sm:$0xff]
            %1130 = vst [vmem:[%s1082 + $0xb8] sm:$0xff] %v1129
            %v1131 = vld [vmem:[%s1081 + $0xc0] sm:$0xff]
            %1132 = vst [vmem:[%s1082 + $0xc0] sm:$0xff] %v1131
            %v1133 = vld [vmem:[%s1081 + $0xc8] sm:$0xff]
            %1134 = vst [vmem:[%s1082 + $0xc8] sm:$0xff] %v1133
            %v1135 = vld [vmem:[%s1081 + $0xd0] sm:$0xff]
            %1136 = vst [vmem:[%s1082 + $0xd0] sm:$0xff] %v1135
            %v1137 = vld [vmem:[%s1081 + $0xd8] sm:$0xff]
            %1138 = vst [vmem:[%s1082 + $0xd8] sm:$0xff] %v1137
            %v1139 = vld [vmem:[%s1081 + $0xe0] sm:$0xff]
            %1140 = vst [vmem:[%s1082 + $0xe0] sm:$0xff] %v1139
            %v1141 = vld [vmem:[%s1081 + $0xe8] sm:$0xff]
            %1142 = vst [vmem:[%s1082 + $0xe8] sm:$0xff] %v1141
            %v1143 = vld [vmem:[%s1081 + $0xf0] sm:$0xff]
            %1144 = vst [vmem:[%s1082 + $0xf0] sm:$0xff] %v1143
            %v1145 = vld [vmem:[%s1081 + $0xf8] sm:$0xff]
            %1146 = vst [vmem:[%s1082 + $0xf8] sm:$0xff] %v1145
          $region84: #{globalnet_forward.2} parent=78 // loop_footer
            %s1080 = sadd.s32 1, %s1076
          $region85: #{globalnet_forward.2} parent=78 // loop_footer_branch
            %1075 = sbr.rel target = $region81
          $region86: #{globalnet_forward.2} parent=78 // loop_exit
            _
        $region79: #{globalnet_forward.2} parent=63 // pred_fallthru
          _
        %p1147 = pneg %p1071
        // Predicated region
        $region87: #{globalnet_forward.2} parent=63 // pred_check
          _
        $region88: #{globalnet_forward.2} parent=63 // pred_check_branch
          %1149 = sbr.rel (%p1071) target = $region90
        $region89: #{globalnet_forward.2} parent=63 // pred_region
          %s1150 = sand.u32 256, 7
        $region90: #{globalnet_forward.2} parent=63 // pred_fallthru
          _
      $region64: #{globalnet_forward.2} parent=59 // pred_fallthru
        _
      // Predicated region
      $region65: #{globalnet_forward.2} parent=59 // pred_check
        %p1055 = pneg %p1051
      $region66: #{globalnet_forward.2} parent=59 // pred_check_branch
        %1057 = sbr.rel (%p1055) target = $region68
      $region67: #{globalnet_forward.2} parent=59 // pred_region
        %s1058 = sshll.u32 1, 256
        %s1059 = ssub.s32 %s1058, 1
        loop: start=0, step=1, limit=1
        $region69: #{globalnet_forward.2} parent=67 // loop_pre_header
          _
        $region70: #{globalnet_forward.2} parent=67 // loop_header
          %s1061 = sphi 0, %s1065
          %p1062 = scmp.ge.s32.totalorder %s1061, 1
          %s1066 = sphi %s1049, %s1049
          %s1067 = sphi [#allocation2], [#allocation2]
        $region71: #{globalnet_forward.2} parent=67 // loop_header_branch
          %1064 = sbr.rel (%p1062) target = $region75
        $region72: #{globalnet_forward.2} parent=67 // loop_body
          %v1068 = vld [vmem:[%s1066] sm:%s1059]
          %1069 = vst [vmem:[%s1067] sm:%s1059] %v1068
        $region73: #{globalnet_forward.2} parent=67 // loop_footer
          %s1065 = sadd.s32 1, %s1061
        $region74: #{globalnet_forward.2} parent=67 // loop_footer_branch
          %1060 = sbr.rel target = $region70
        $region75: #{globalnet_forward.2} parent=67 // loop_exit
          _
      $region68: #{globalnet_forward.2} parent=59 // pred_fallthru
        _
      // Predicated region
      $region91: #{globalnet_forward.2} parent=59 // pred_check
        _
      $region92: #{globalnet_forward.2} parent=59 // pred_check_branch
        %1153 = sbr.rel (0) target = $region94
      $region93: #{globalnet_forward.2} parent=59 // pred_region
        %1154 = vsyncadd [#allocation3], 4096
      $region94: #{globalnet_forward.2} parent=59 // pred_fallthru
        _
      %s1155 = smul.u32 4, 32
      %s1156 = smul.u32 %s1155, 2
      %s1157 = sshll.u32 %s1156, 4
      %1158 = dma.done [#allocation3], %s1157
      %v1159 = vld [vmem:[#allocation2] sm:$0xff]
      %v1160 = vld [vmem:[#allocation2 + $0x8] sm:$0xff]
      %v1161 = vld [vmem:[#allocation2 + $0x10] sm:$0xff]
      %v1162 = vld [vmem:[#allocation2 + $0x18] sm:$0xff]
      %v1163 = vld [vmem:[#allocation2 + $0x20] sm:$0xff]
      %v1164 = vld [vmem:[#allocation2 + $0x28] sm:$0xff]
      %v1165 = vld [vmem:[#allocation2 + $0x30] sm:$0xff]
      %v1166 = vld [vmem:[#allocation2 + $0x38] sm:$0xff]
      %v1167 = vld [vmem:[#allocation2 + $0x40] sm:$0xff]
      %v1168 = vld [vmem:[#allocation2 + $0x48] sm:$0xff]
      %v1169 = vld [vmem:[#allocation2 + $0x50] sm:$0xff]
      %v1170 = vld [vmem:[#allocation2 + $0x58] sm:$0xff]
      %v1171 = vld [vmem:[#allocation2 + $0x60] sm:$0xff]
      %v1172 = vld [vmem:[#allocation2 + $0x68] sm:$0xff]
      %v1173 = vld [vmem:[#allocation2 + $0x70] sm:$0xff]
      %v1174 = vld [vmem:[#allocation2 + $0x78] sm:$0xff]
      %v1175 = vld [vmem:[#allocation2 + $0x80] sm:$0xff]
      %v1176 = vld [vmem:[#allocation2 + $0x88] sm:$0xff]
      %v1177 = vld [vmem:[#allocation2 + $0x90] sm:$0xff]
      %v1178 = vld [vmem:[#allocation2 + $0x98] sm:$0xff]
      %v1179 = vld [vmem:[#allocation2 + $0xa0] sm:$0xff]
      %v1180 = vld [vmem:[#allocation2 + $0xa8] sm:$0xff]
      %v1181 = vld [vmem:[#allocation2 + $0xb0] sm:$0xff]
      %v1182 = vld [vmem:[#allocation2 + $0xb8] sm:$0xff]
      %v1183 = vld [vmem:[#allocation2 + $0xc0] sm:$0xff]
      %v1184 = vld [vmem:[#allocation2 + $0xc8] sm:$0xff]
      %v1185 = vld [vmem:[#allocation2 + $0xd0] sm:$0xff]
      %v1186 = vld [vmem:[#allocation2 + $0xd8] sm:$0xff]
      %v1187 = vld [vmem:[#allocation2 + $0xe0] sm:$0xff]
      %v1188 = vld [vmem:[#allocation2 + $0xe8] sm:$0xff]
      %v1189 = vld [vmem:[#allocation2 + $0xf0] sm:$0xff]
      %v1190 = vld [vmem:[#allocation2 + $0xf8] sm:$0xff]
      %v1223 = vunpack.c.l.b16 %v1159
      %v1224 = vunpack.c.h.b16 %v1159
      %v1225 = vunpack.c.l.b16 %v1160
      %v1226 = vunpack.c.h.b16 %v1160
      %v1227 = vunpack.c.l.b16 %v1161
      %v1228 = vunpack.c.h.b16 %v1161
      %v1229 = vunpack.c.l.b16 %v1162
      %v1230 = vunpack.c.h.b16 %v1162
      %v1231 = vunpack.c.l.b16 %v1163
      %v1232 = vunpack.c.h.b16 %v1163
      %v1233 = vunpack.c.l.b16 %v1164
      %v1234 = vunpack.c.h.b16 %v1164
      %v1235 = vunpack.c.l.b16 %v1165
      %v1236 = vunpack.c.h.b16 %v1165
      %v1237 = vunpack.c.l.b16 %v1166
      %v1238 = vunpack.c.h.b16 %v1166
      %v1239 = vunpack.c.l.b16 %v1167
      %v1240 = vunpack.c.h.b16 %v1167
      %v1241 = vunpack.c.l.b16 %v1168
      %v1242 = vunpack.c.h.b16 %v1168
      %v1243 = vunpack.c.l.b16 %v1169
      %v1244 = vunpack.c.h.b16 %v1169
      %v1245 = vunpack.c.l.b16 %v1170
      %v1246 = vunpack.c.h.b16 %v1170
      %v1247 = vunpack.c.l.b16 %v1171
      %v1248 = vunpack.c.h.b16 %v1171
      %v1249 = vunpack.c.l.b16 %v1172
      %v1250 = vunpack.c.h.b16 %v1172
      %v1251 = vunpack.c.l.b16 %v1173
      %v1252 = vunpack.c.h.b16 %v1173
      %v1253 = vunpack.c.l.b16 %v1174
      %v1254 = vunpack.c.h.b16 %v1174
      %v1255 = vunpack.c.l.b16 %v1175
      %v1256 = vunpack.c.h.b16 %v1175
      %v1257 = vunpack.c.l.b16 %v1176
      %v1258 = vunpack.c.h.b16 %v1176
      %v1259 = vunpack.c.l.b16 %v1177
      %v1260 = vunpack.c.h.b16 %v1177
      %v1261 = vunpack.c.l.b16 %v1178
      %v1262 = vunpack.c.h.b16 %v1178
      %v1263 = vunpack.c.l.b16 %v1179
      %v1264 = vunpack.c.h.b16 %v1179
      %v1265 = vunpack.c.l.b16 %v1180
      %v1266 = vunpack.c.h.b16 %v1180
      %v1267 = vunpack.c.l.b16 %v1181
      %v1268 = vunpack.c.h.b16 %v1181
      %v1269 = vunpack.c.l.b16 %v1182
      %v1270 = vunpack.c.h.b16 %v1182
      %v1271 = vunpack.c.l.b16 %v1183
      %v1272 = vunpack.c.h.b16 %v1183
      %v1273 = vunpack.c.l.b16 %v1184
      %v1274 = vunpack.c.h.b16 %v1184
      %v1275 = vunpack.c.l.b16 %v1185
      %v1276 = vunpack.c.h.b16 %v1185
      %v1277 = vunpack.c.l.b16 %v1186
      %v1278 = vunpack.c.h.b16 %v1186
      %v1279 = vunpack.c.l.b16 %v1187
      %v1280 = vunpack.c.h.b16 %v1187
      %v1281 = vunpack.c.l.b16 %v1188
      %v1282 = vunpack.c.h.b16 %v1188
      %v1283 = vunpack.c.l.b16 %v1189
      %v1284 = vunpack.c.h.b16 %v1189
      %v1285 = vunpack.c.l.b16 %v1190
      %v1286 = vunpack.c.h.b16 %v1190
      %v1287 = vpack.c.b16 %v1225, %v1223
      %v1288 = vpack.c.b16 %v1226, %v1224
      %v1289 = vpack.c.b16 %v1229, %v1227
      %v1290 = vpack.c.b16 %v1230, %v1228
      %v1291 = vpack.c.b16 %v1233, %v1231
      %v1292 = vpack.c.b16 %v1234, %v1232
      %v1293 = vpack.c.b16 %v1237, %v1235
      %v1294 = vpack.c.b16 %v1238, %v1236
      %v1295 = vpack.c.b16 %v1241, %v1239
      %v1296 = vpack.c.b16 %v1242, %v1240
      %v1297 = vpack.c.b16 %v1245, %v1243
      %v1298 = vpack.c.b16 %v1246, %v1244
      %v1299 = vpack.c.b16 %v1249, %v1247
      %v1300 = vpack.c.b16 %v1250, %v1248
      %v1301 = vpack.c.b16 %v1253, %v1251
      %v1302 = vpack.c.b16 %v1254, %v1252
      %v1303 = vpack.c.b16 %v1257, %v1255
      %v1304 = vpack.c.b16 %v1258, %v1256
      %v1305 = vpack.c.b16 %v1261, %v1259
      %v1306 = vpack.c.b16 %v1262, %v1260
      %v1307 = vpack.c.b16 %v1265, %v1263
      %v1308 = vpack.c.b16 %v1266, %v1264
      %v1309 = vpack.c.b16 %v1269, %v1267
      %v1310 = vpack.c.b16 %v1270, %v1268
      %v1311 = vpack.c.b16 %v1273, %v1271
      %v1312 = vpack.c.b16 %v1274, %v1272
      %v1313 = vpack.c.b16 %v1277, %v1275
      %v1314 = vpack.c.b16 %v1278, %v1276
      %v1315 = vpack.c.b16 %v1281, %v1279
      %v1316 = vpack.c.b16 %v1282, %v1280
      %v1317 = vpack.c.b16 %v1285, %v1283
      %v1318 = vpack.c.b16 %v1286, %v1284
      %v1383 = vunpack.c.l.b16 %v1013
      %v1384 = vunpack.c.l.b16 %v1014
      %v1385 = vunpack.c.l.b16 %v1015
      %v1386 = vunpack.c.l.b16 %v1016
      %v1387 = vunpack.c.l.b16 %v1017
      %v1388 = vunpack.c.l.b16 %v1018
      %v1389 = vunpack.c.l.b16 %v1019
      %v1390 = vunpack.c.l.b16 %v1020
      %v1391 = vunpack.c.l.b16 %v1021
      %v1392 = vunpack.c.l.b16 %v1022
      %v1393 = vunpack.c.l.b16 %v1023
      %v1394 = vunpack.c.l.b16 %v1024
      %v1395 = vunpack.c.l.b16 %v1025
      %v1396 = vunpack.c.l.b16 %v1026
      %v1397 = vunpack.c.l.b16 %v1027
      %v1398 = vunpack.c.l.b16 %v1028
      %v1399 = vunpack.c.l.b16 %v1029
      %v1400 = vunpack.c.l.b16 %v1030
      %v1401 = vunpack.c.l.b16 %v1031
      %v1402 = vunpack.c.l.b16 %v1032
      %v1403 = vunpack.c.l.b16 %v1033
      %v1404 = vunpack.c.l.b16 %v1034
      %v1405 = vunpack.c.l.b16 %v1035
      %v1406 = vunpack.c.l.b16 %v1036
      %v1407 = vunpack.c.l.b16 %v1037
      %v1408 = vunpack.c.l.b16 %v1038
      %v1409 = vunpack.c.l.b16 %v1039
      %v1410 = vunpack.c.l.b16 %v1040
      %v1411 = vunpack.c.l.b16 %v1041
      %v1412 = vunpack.c.l.b16 %v1042
      %v1413 = vunpack.c.l.b16 %v1043
      %v1414 = vunpack.c.l.b16 %v1044
      %v1415 = vpack.c.b16 %v1384, %v1383
      %v1416 = vpack.c.b16 %v1386, %v1385
      %v1417 = vpack.c.b16 %v1388, %v1387
      %v1418 = vpack.c.b16 %v1390, %v1389
      %v1419 = vpack.c.b16 %v1392, %v1391
      %v1420 = vpack.c.b16 %v1394, %v1393
      %v1421 = vpack.c.b16 %v1396, %v1395
      %v1422 = vpack.c.b16 %v1398, %v1397
      %v1423 = vpack.c.b16 %v1400, %v1399
      %v1424 = vpack.c.b16 %v1402, %v1401
      %v1425 = vpack.c.b16 %v1404, %v1403
      %v1426 = vpack.c.b16 %v1406, %v1405
      %v1427 = vpack.c.b16 %v1408, %v1407
      %v1428 = vpack.c.b16 %v1410, %v1409
      %v1429 = vpack.c.b16 %v1412, %v1411
      %v1430 = vpack.c.b16 %v1414, %v1413
      %1447 = vmatprep.subr.bf16.mxu0 0
      %1448 = vmatpush1.bf16.msra.mxu0 %v1422
      %1449 = vmatprep.subr.bf16.mxu0 0
      %1450 = vmatpush1.bf16.msra.mxu0 %v1421
      %1451 = vmatprep.subr.bf16.mxu0 0
      %1452 = vmatpush1.bf16.msra.mxu0 %v1420
      %1453 = vmatprep.subr.bf16.mxu0 0
      %1454 = vmatpush1.bf16.msra.mxu0 %v1419
      %1455 = vmatprep.subr.bf16.mxu0 0
      %1456 = vmatpush1.bf16.msra.mxu0 %v1418
      %1457 = vmatprep.subr.bf16.mxu0 0
      %1458 = vmatpush1.bf16.msra.mxu0 %v1417
      %1459 = vmatprep.subr.bf16.mxu0 0
      %1460 = vmatpush1.bf16.msra.mxu0 %v1416
      %1461 = vmatprep.subr.bf16.mxu0 0
      %1462 = vmatpush1.bf16.msra.mxu0 %v1415
      %1463 = vmatprep.subr.bf16.mxu0 0
      %1464 = vmatpush2.bf16.msra.mxu0 %v1430
      %1465 = vmatprep.subr.bf16.mxu0 0
      %1466 = vmatpush2.bf16.msra.mxu0 %v1429
      %1467 = vmatprep.subr.bf16.mxu0 0
      %1468 = vmatpush2.bf16.msra.mxu0 %v1428
      %1469 = vmatprep.subr.bf16.mxu0 0
      %1470 = vmatpush2.bf16.msra.mxu0 %v1427
      %1471 = vmatprep.subr.bf16.mxu0 0
      %1472 = vmatpush2.bf16.msra.mxu0 %v1426
      %1473 = vmatprep.subr.bf16.mxu0 0
      %1474 = vmatpush2.bf16.msra.mxu0 %v1425
      %1475 = vmatprep.subr.bf16.mxu0 0
      %1476 = vmatpush2.bf16.msra.mxu0 %v1424
      %1477 = vmatprep.subr.bf16.mxu0 0
      %1478 = vmatpush2.bf16.msra.mxu0 %v1423
      %1479 = vmatprep.mubr.bf16.mxu0 %v1288
      %1480 = vmatmul.mubr.bf16.gmra.mxu0 %v1287
      %v1481 = vpop.f32.mrf.mxu0
      %v1482 = vadd.f32 %v1011, %v1481
      %v1483 = vpop.f32.mrf.mxu0
      %v1484 = vpop.f32.mrf.mxu0
      %v1485 = vadd.f32 %v1011, %v1484
      %v1486 = vpop.f32.mrf.mxu0
      %1487 = vmatprep.mubr.bf16.mxu0 %v1290
      %1488 = vmatmul.mubr.bf16.gmra.mxu0 %v1289
      %v1489 = vpop.f32.mrf.mxu0
      %v1490 = vadd.f32 %v1011, %v1489
      %v1491 = vpop.f32.mrf.mxu0
      %v1492 = vpop.f32.mrf.mxu0
      %v1493 = vadd.f32 %v1011, %v1492
      %v1494 = vpop.f32.mrf.mxu0
      %1495 = vmatprep.mubr.bf16.mxu0 %v1292
      %1496 = vmatmul.mubr.bf16.gmra.mxu0 %v1291
      %v1497 = vpop.f32.mrf.mxu0
      %v1498 = vadd.f32 %v1011, %v1497
      %v1499 = vpop.f32.mrf.mxu0
      %v1500 = vpop.f32.mrf.mxu0
      %v1501 = vadd.f32 %v1011, %v1500
      %v1502 = vpop.f32.mrf.mxu0
      %1503 = vmatprep.mubr.bf16.mxu0 %v1294
      %1504 = vmatmul.mubr.bf16.gmra.mxu0 %v1293
      %v1505 = vpop.f32.mrf.mxu0
      %v1506 = vadd.f32 %v1011, %v1505
      %v1507 = vpop.f32.mrf.mxu0
      %v1508 = vpop.f32.mrf.mxu0
      %v1509 = vadd.f32 %v1011, %v1508
      %v1510 = vpop.f32.mrf.mxu0
      %1511 = vmatprep.mubr.bf16.mxu0 %v1296
      %1512 = vmatmul.mubr.bf16.gmra.mxu0 %v1295
      %v1513 = vpop.f32.mrf.mxu0
      %v1514 = vadd.f32 %v1011, %v1513
      %v1515 = vpop.f32.mrf.mxu0
      %v1516 = vpop.f32.mrf.mxu0
      %v1517 = vadd.f32 %v1011, %v1516
      %v1518 = vpop.f32.mrf.mxu0
      %1519 = vmatprep.mubr.bf16.mxu0 %v1298
      %1520 = vmatmul.mubr.bf16.gmra.mxu0 %v1297
      %v1521 = vpop.f32.mrf.mxu0
      %v1522 = vadd.f32 %v1011, %v1521
      %v1523 = vpop.f32.mrf.mxu0
      %v1524 = vpop.f32.mrf.mxu0
      %v1525 = vadd.f32 %v1011, %v1524
      %v1526 = vpop.f32.mrf.mxu0
      %1527 = vmatprep.mubr.bf16.mxu0 %v1300
      %1528 = vmatmul.mubr.bf16.gmra.mxu0 %v1299
      %v1529 = vpop.f32.mrf.mxu0
      %v1530 = vadd.f32 %v1011, %v1529
      %v1531 = vpop.f32.mrf.mxu0
      %v1532 = vpop.f32.mrf.mxu0
      %v1533 = vadd.f32 %v1011, %v1532
      %v1534 = vpop.f32.mrf.mxu0
      %1535 = vmatprep.mubr.bf16.mxu0 %v1302
      %1536 = vmatmul.mubr.bf16.gmra.mxu0 %v1301
      %v1537 = vpop.f32.mrf.mxu0
      %v1538 = vadd.f32 %v1011, %v1537
      %v1539 = vpop.f32.mrf.mxu0
      %v1540 = vpop.f32.mrf.mxu0
      %v1541 = vadd.f32 %v1011, %v1540
      %v1542 = vpop.f32.mrf.mxu0
      %1543 = vmatprep.mubr.bf16.mxu0 %v1304
      %1544 = vmatmul.mubr.bf16.gmra.mxu0 %v1303
      %v1545 = vpop.f32.mrf.mxu0
      %v1546 = vadd.f32 %v1011, %v1545
      %v1547 = vpop.f32.mrf.mxu0
      %v1548 = vpop.f32.mrf.mxu0
      %v1549 = vadd.f32 %v1011, %v1548
      %v1550 = vpop.f32.mrf.mxu0
      %1551 = vmatprep.mubr.bf16.mxu0 %v1306
      %1552 = vmatmul.mubr.bf16.gmra.mxu0 %v1305
      %v1553 = vpop.f32.mrf.mxu0
      %v1554 = vadd.f32 %v1011, %v1553
      %v1555 = vpop.f32.mrf.mxu0
      %v1556 = vpop.f32.mrf.mxu0
      %v1557 = vadd.f32 %v1011, %v1556
      %v1558 = vpop.f32.mrf.mxu0
      %1559 = vmatprep.mubr.bf16.mxu0 %v1308
      %1560 = vmatmul.mubr.bf16.gmra.mxu0 %v1307
      %v1561 = vpop.f32.mrf.mxu0
      %v1562 = vadd.f32 %v1011, %v1561
      %v1563 = vpop.f32.mrf.mxu0
      %v1564 = vpop.f32.mrf.mxu0
      %v1565 = vadd.f32 %v1011, %v1564
      %v1566 = vpop.f32.mrf.mxu0
      %1567 = vmatprep.mubr.bf16.mxu0 %v1310
      %1568 = vmatmul.mubr.bf16.gmra.mxu0 %v1309
      %v1569 = vpop.f32.mrf.mxu0
      %v1570 = vadd.f32 %v1011, %v1569
      %v1571 = vpop.f32.mrf.mxu0
      %v1572 = vpop.f32.mrf.mxu0
      %v1573 = vadd.f32 %v1011, %v1572
      %v1574 = vpop.f32.mrf.mxu0
      %1575 = vmatprep.mubr.bf16.mxu0 %v1312
      %1576 = vmatmul.mubr.bf16.gmra.mxu0 %v1311
      %v1577 = vpop.f32.mrf.mxu0
      %v1578 = vadd.f32 %v1011, %v1577
      %v1579 = vpop.f32.mrf.mxu0
      %v1580 = vpop.f32.mrf.mxu0
      %v1581 = vadd.f32 %v1011, %v1580
      %v1582 = vpop.f32.mrf.mxu0
      %1583 = vmatprep.mubr.bf16.mxu0 %v1314
      %1584 = vmatmul.mubr.bf16.gmra.mxu0 %v1313
      %v1585 = vpop.f32.mrf.mxu0
      %v1586 = vadd.f32 %v1011, %v1585
      %v1587 = vpop.f32.mrf.mxu0
      %v1588 = vpop.f32.mrf.mxu0
      %v1589 = vadd.f32 %v1011, %v1588
      %v1590 = vpop.f32.mrf.mxu0
      %1591 = vmatprep.mubr.bf16.mxu0 %v1316
      %1592 = vmatmul.mubr.bf16.gmra.mxu0 %v1315
      %v1593 = vpop.f32.mrf.mxu0
      %v1594 = vadd.f32 %v1011, %v1593
      %v1595 = vpop.f32.mrf.mxu0
      %v1596 = vpop.f32.mrf.mxu0
      %v1597 = vadd.f32 %v1011, %v1596
      %v1598 = vpop.f32.mrf.mxu0
      %1599 = vmatprep.mubr.bf16.mxu0 %v1318
      %1600 = vmatmul.mubr.bf16.gmra.mxu0 %v1317
      %v1601 = vpop.f32.mrf.mxu0
      %v1602 = vadd.f32 %v1011, %v1601
      %v1603 = vpop.f32.mrf.mxu0
      %v1604 = vpop.f32.mrf.mxu0
      %v1605 = vadd.f32 %v1011, %v1604
      %v1606 = vpop.f32.mrf.mxu0
      %1607 = vdwg.mxu0
      %1608 = vst.msk [vmem:[#allocation6] sm:$0xff] %vm635, %v1482
      %1609 = vst.msk [vmem:[#allocation6 + $0x8] sm:$0xff] %vm635, %v1485
      %1610 = vst.msk [vmem:[#allocation6 + $0x10] sm:$0xff] %vm635, %v1490
      %1611 = vst.msk [vmem:[#allocation6 + $0x18] sm:$0xff] %vm635, %v1493
      %1612 = vst.msk [vmem:[#allocation6 + $0x20] sm:$0xff] %vm635, %v1498
      %1613 = vst.msk [vmem:[#allocation6 + $0x28] sm:$0xff] %vm635, %v1501
      %1614 = vst.msk [vmem:[#allocation6 + $0x30] sm:$0xff] %vm635, %v1506
      %1615 = vst.msk [vmem:[#allocation6 + $0x38] sm:$0xff] %vm635, %v1509
      %1616 = vst.msk [vmem:[#allocation6 + $0x40] sm:$0xff] %vm635, %v1514
      %1617 = vst.msk [vmem:[#allocation6 + $0x48] sm:$0xff] %vm635, %v1517
      %1618 = vst.msk [vmem:[#allocation6 + $0x50] sm:$0xff] %vm635, %v1522
      %1619 = vst.msk [vmem:[#allocation6 + $0x58] sm:$0xff] %vm635, %v1525
      %1620 = vst.msk [vmem:[#allocation6 + $0x60] sm:$0xff] %vm635, %v1530
      %1621 = vst.msk [vmem:[#allocation6 + $0x68] sm:$0xff] %vm635, %v1533
      %1622 = vst.msk [vmem:[#allocation6 + $0x70] sm:$0xff] %vm635, %v1538
      %1623 = vst.msk [vmem:[#allocation6 + $0x78] sm:$0xff] %vm635, %v1541
      %1624 = vst.msk [vmem:[#allocation6 + $0x80] sm:$0xff] %vm635, %v1546
      %1625 = vst.msk [vmem:[#allocation6 + $0x88] sm:$0xff] %vm635, %v1549
      %1626 = vst.msk [vmem:[#allocation6 + $0x90] sm:$0xff] %vm635, %v1554
      %1627 = vst.msk [vmem:[#allocation6 + $0x98] sm:$0xff] %vm635, %v1557
      %1628 = vst.msk [vmem:[#allocation6 + $0xa0] sm:$0xff] %vm635, %v1562
      %1629 = vst.msk [vmem:[#allocation6 + $0xa8] sm:$0xff] %vm635, %v1565
      %1630 = vst.msk [vmem:[#allocation6 + $0xb0] sm:$0xff] %vm635, %v1570
      %1631 = vst.msk [vmem:[#allocation6 + $0xb8] sm:$0xff] %vm635, %v1573
      %1632 = vst.msk [vmem:[#allocation6 + $0xc0] sm:$0xff] %vm635, %v1578
      %1633 = vst.msk [vmem:[#allocation6 + $0xc8] sm:$0xff] %vm635, %v1581
      %1634 = vst.msk [vmem:[#allocation6 + $0xd0] sm:$0xff] %vm635, %v1586
      %1635 = vst.msk [vmem:[#allocation6 + $0xd8] sm:$0xff] %vm635, %v1589
      %1636 = vst.msk [vmem:[#allocation6 + $0xe0] sm:$0xff] %vm635, %v1594
      %1637 = vst.msk [vmem:[#allocation6 + $0xe8] sm:$0xff] %vm635, %v1597
      %1638 = vst.msk [vmem:[#allocation6 + $0xf0] sm:$0xff] %vm635, %v1602
      %1639 = vst.msk [vmem:[#allocation6 + $0xf8] sm:$0xff] %vm635, %v1605
      %v1640 = vsel %vm635, %v1482, 0.0
      %v1641 = vsel %vm635, %v1485, 0.0
      %v1642 = vadd.f32 %v1640, %v1641
      %v1643 = vsel %vm635, %v1490, 0.0
      %v1644 = vadd.f32 %v1642, %v1643
      %v1645 = vsel %vm635, %v1493, 0.0
      %v1646 = vadd.f32 %v1644, %v1645
      %v1647 = vsel %vm635, %v1498, 0.0
      %v1648 = vadd.f32 %v1646, %v1647
      %v1649 = vsel %vm635, %v1501, 0.0
      %v1650 = vadd.f32 %v1648, %v1649
      %v1651 = vsel %vm635, %v1506, 0.0
      %v1652 = vadd.f32 %v1650, %v1651
      %v1653 = vsel %vm635, %v1509, 0.0
      %v1654 = vadd.f32 %v1652, %v1653
      %v1655 = vsel %vm635, %v1514, 0.0
      %v1656 = vadd.f32 %v1654, %v1655
      %v1657 = vsel %vm635, %v1517, 0.0
      %v1658 = vadd.f32 %v1656, %v1657
      %v1659 = vsel %vm635, %v1522, 0.0
      %v1660 = vadd.f32 %v1658, %v1659
      %v1661 = vsel %vm635, %v1525, 0.0
      %v1662 = vadd.f32 %v1660, %v1661
      %v1663 = vsel %vm635, %v1530, 0.0
      %v1664 = vadd.f32 %v1662, %v1663
      %v1665 = vsel %vm635, %v1533, 0.0
      %v1666 = vadd.f32 %v1664, %v1665
      %v1667 = vsel %vm635, %v1538, 0.0
      %v1668 = vadd.f32 %v1666, %v1667
      %v1669 = vsel %vm635, %v1541, 0.0
      %v1670 = vadd.f32 %v1668, %v1669
      %v1671 = vsel %vm635, %v1546, 0.0
      %v1672 = vadd.f32 %v1670, %v1671
      %v1673 = vsel %vm635, %v1549, 0.0
      %v1674 = vadd.f32 %v1672, %v1673
      %v1675 = vsel %vm635, %v1554, 0.0
      %v1676 = vadd.f32 %v1674, %v1675
      %v1677 = vsel %vm635, %v1557, 0.0
      %v1678 = vadd.f32 %v1676, %v1677
      %v1679 = vsel %vm635, %v1562, 0.0
      %v1680 = vadd.f32 %v1678, %v1679
      %v1681 = vsel %vm635, %v1565, 0.0
      %v1682 = vadd.f32 %v1680, %v1681
      %v1683 = vsel %vm635, %v1570, 0.0
      %v1684 = vadd.f32 %v1682, %v1683
      %v1685 = vsel %vm635, %v1573, 0.0
      %v1686 = vadd.f32 %v1684, %v1685
      %v1687 = vsel %vm635, %v1578, 0.0
      %v1688 = vadd.f32 %v1686, %v1687
      %v1689 = vsel %vm635, %v1581, 0.0
      %v1690 = vadd.f32 %v1688, %v1689
      %v1691 = vsel %vm635, %v1586, 0.0
      %v1692 = vadd.f32 %v1690, %v1691
      %v1693 = vsel %vm635, %v1589, 0.0
      %v1694 = vadd.f32 %v1692, %v1693
      %v1695 = vsel %vm635, %v1594, 0.0
      %v1696 = vadd.f32 %v1694, %v1695
      %v1697 = vsel %vm635, %v1597, 0.0
      %v1698 = vadd.f32 %v1696, %v1697
      %v1699 = vsel %vm635, %v1602, 0.0
      %v1700 = vadd.f32 %v1698, %v1699
      %v1701 = vsel %vm635, %v1605, 0.0
      %v1702 = vadd.f32 %v1700, %v1701
      %v1703 = vrot.slane %v1702, 4
      %v1704 = vadd.f32 %v1702, %v1703
      %v1705 = vrot.slane %v1704, 2
      %v1706 = vadd.f32 %v1704, %v1705
      %v1707 = vrot.slane %v1706, 1
      %v1708 = vadd.f32 %v1706, %v1707
      %v1709 = vadd.f32 %v1708, 0.0
      %v1710 = vmul.f32 %v1482, %v1482
      %v1711 = vmul.f32 %v1485, %v1485
      %v1712 = vmul.f32 %v1490, %v1490
      %v1713 = vmul.f32 %v1493, %v1493
      %v1714 = vmul.f32 %v1498, %v1498
      %v1715 = vmul.f32 %v1501, %v1501
      %v1716 = vmul.f32 %v1506, %v1506
      %v1717 = vmul.f32 %v1509, %v1509
      %v1718 = vmul.f32 %v1514, %v1514
      %v1719 = vmul.f32 %v1517, %v1517
      %v1720 = vmul.f32 %v1522, %v1522
      %v1721 = vmul.f32 %v1525, %v1525
      %v1722 = vmul.f32 %v1530, %v1530
      %v1723 = vmul.f32 %v1533, %v1533
      %v1724 = vmul.f32 %v1538, %v1538
      %v1725 = vmul.f32 %v1541, %v1541
      %v1726 = vmul.f32 %v1546, %v1546
      %v1727 = vmul.f32 %v1549, %v1549
      %v1728 = vmul.f32 %v1554, %v1554
      %v1729 = vmul.f32 %v1557, %v1557
      %v1730 = vmul.f32 %v1562, %v1562
      %v1731 = vmul.f32 %v1565, %v1565
      %v1732 = vmul.f32 %v1570, %v1570
      %v1733 = vmul.f32 %v1573, %v1573
      %v1734 = vmul.f32 %v1578, %v1578
      %v1735 = vmul.f32 %v1581, %v1581
      %v1736 = vmul.f32 %v1586, %v1586
      %v1737 = vmul.f32 %v1589, %v1589
      %v1738 = vmul.f32 %v1594, %v1594
      %v1739 = vmul.f32 %v1597, %v1597
      %v1740 = vmul.f32 %v1602, %v1602
      %v1741 = vmul.f32 %v1605, %v1605
      %v1742 = vsel %vm635, %v1710, 0.0
      %v1743 = vsel %vm635, %v1711, 0.0
      %v1744 = vadd.f32 %v1742, %v1743
      %v1745 = vsel %vm635, %v1712, 0.0
      %v1746 = vadd.f32 %v1744, %v1745
      %v1747 = vsel %vm635, %v1713, 0.0
      %v1748 = vadd.f32 %v1746, %v1747
      %v1749 = vsel %vm635, %v1714, 0.0
      %v1750 = vadd.f32 %v1748, %v1749
      %v1751 = vsel %vm635, %v1715, 0.0
      %v1752 = vadd.f32 %v1750, %v1751
      %v1753 = vsel %vm635, %v1716, 0.0
      %v1754 = vadd.f32 %v1752, %v1753
      %v1755 = vsel %vm635, %v1717, 0.0
      %v1756 = vadd.f32 %v1754, %v1755
      %v1757 = vsel %vm635, %v1718, 0.0
      %v1758 = vadd.f32 %v1756, %v1757
      %v1759 = vsel %vm635, %v1719, 0.0
      %v1760 = vadd.f32 %v1758, %v1759
      %v1761 = vsel %vm635, %v1720, 0.0
      %v1762 = vadd.f32 %v1760, %v1761
      %v1763 = vsel %vm635, %v1721, 0.0
      %v1764 = vadd.f32 %v1762, %v1763
      %v1765 = vsel %vm635, %v1722, 0.0
      %v1766 = vadd.f32 %v1764, %v1765
      %v1767 = vsel %vm635, %v1723, 0.0
      %v1768 = vadd.f32 %v1766, %v1767
      %v1769 = vsel %vm635, %v1724, 0.0
      %v1770 = vadd.f32 %v1768, %v1769
      %v1771 = vsel %vm635, %v1725, 0.0
      %v1772 = vadd.f32 %v1770, %v1771
      %v1773 = vsel %vm635, %v1726, 0.0
      %v1774 = vadd.f32 %v1772, %v1773
      %v1775 = vsel %vm635, %v1727, 0.0
      %v1776 = vadd.f32 %v1774, %v1775
      %v1777 = vsel %vm635, %v1728, 0.0
      %v1778 = vadd.f32 %v1776, %v1777
      %v1779 = vsel %vm635, %v1729, 0.0
      %v1780 = vadd.f32 %v1778, %v1779
      %v1781 = vsel %vm635, %v1730, 0.0
      %v1782 = vadd.f32 %v1780, %v1781
      %v1783 = vsel %vm635, %v1731, 0.0
      %v1784 = vadd.f32 %v1782, %v1783
      %v1785 = vsel %vm635, %v1732, 0.0
      %v1786 = vadd.f32 %v1784, %v1785
      %v1787 = vsel %vm635, %v1733, 0.0
      %v1788 = vadd.f32 %v1786, %v1787
      %v1789 = vsel %vm635, %v1734, 0.0
      %v1790 = vadd.f32 %v1788, %v1789
      %v1791 = vsel %vm635, %v1735, 0.0
      %v1792 = vadd.f32 %v1790, %v1791
      %v1793 = vsel %vm635, %v1736, 0.0
      %v1794 = vadd.f32 %v1792, %v1793
      %v1795 = vsel %vm635, %v1737, 0.0
      %v1796 = vadd.f32 %v1794, %v1795
      %v1797 = vsel %vm635, %v1738, 0.0
      %v1798 = vadd.f32 %v1796, %v1797
      %v1799 = vsel %vm635, %v1739, 0.0
      %v1800 = vadd.f32 %v1798, %v1799
      %v1801 = vsel %vm635, %v1740, 0.0
      %v1802 = vadd.f32 %v1800, %v1801
      %v1803 = vsel %vm635, %v1741, 0.0
      %v1804 = vadd.f32 %v1802, %v1803
      %v1805 = vrot.slane %v1804, 4
      %v1806 = vadd.f32 %v1804, %v1805
      %v1807 = vrot.slane %v1806, 2
      %v1808 = vadd.f32 %v1806, %v1807
      %v1809 = vrot.slane %v1808, 1
      %v1810 = vadd.f32 %v1808, %v1809
      %v1811 = vadd.f32 %v1810, 0.0
      %v1812 = vmul.f32 %v1709, 0.00390625
      %v1813 = vmul.f32 %v1811, 0.00390625
      %v1814 = vmul.f32 %v1812, %v1812
      %v1815 = vsub.f32 %v1813, %v1814
      %v1816 = vmax.f32 %v1815, 0.0
      %vm1817 = vcmp.lt.s32.totalorder %v537, 16
      %v1818 = vsel %vm1817, %v1816, 0.0
      %vm1819 = vcmask 253952
      %v1820 = vsel %vm1819, %v1818, 0.0
      %1821 = vadd.xlane.f32.xlu0 %v1820
      %v1822 = vpop.xlane.xlu0 %1821
      %v1823 = vrot.slane %v1822, 4
      %v1824 = vadd.f32 %v1822, %v1823
      %v1825 = vrot.slane %v1824, 2
      %v1826 = vadd.f32 %v1824, %v1825
      %v1827 = vrot.slane %v1826, 1
      %v1828 = vadd.f32 %v1826, %v1827
      %s1829 = vtos %v1828
      %v1830 = vsel %vm1819, %v1816, 0.0
      %1831 = vadd.xlane.f32.xlu0 %v1830
      %v1832 = vpop.xlane.xlu0 %1831
      %v1833 = vrot.slane %v1832, 4
      %v1834 = vadd.f32 %v1832, %v1833
      %v1835 = vrot.slane %v1834, 2
      %v1836 = vadd.f32 %v1834, %v1835
      %v1837 = vrot.slane %v1836, 1
      %v1838 = vadd.f32 %v1836, %v1837
      %s1839 = vtos %v1838
      %s1840 = ssub.f32 %s1839, %s1829
      %s1841 = sadd.f32 %s1829, 1e-06
      %v1842 = vstv %s1841
      %v1843 = vrsqrt.pop %v1842
      %s1844 = vtos %v1843
      %s1845 = sadd.f32 %s1840, 1e-06
      %v1846 = vstv %s1845
      %v1847 = vrsqrt.pop %v1846
      %s1848 = vtos %v1847
      %v1849 = vstv %s1844
      %v1850 = vstv %s1848
      %v1851 = vsel %vm1817, %v1849, %v1850
      %v1852 = vld [vmem:[#allocation6] sm:$0xff]
      %v1853 = vld [vmem:[#allocation6 + $0x8] sm:$0xff]
      %v1854 = vld [vmem:[#allocation6 + $0x10] sm:$0xff]
      %v1855 = vld [vmem:[#allocation6 + $0x18] sm:$0xff]
      %v1856 = vld [vmem:[#allocation6 + $0x20] sm:$0xff]
      %v1857 = vld [vmem:[#allocation6 + $0x28] sm:$0xff]
      %v1858 = vld [vmem:[#allocation6 + $0x30] sm:$0xff]
      %v1859 = vld [vmem:[#allocation6 + $0x38] sm:$0xff]
      %v1860 = vld [vmem:[#allocation6 + $0x40] sm:$0xff]
      %v1861 = vld [vmem:[#allocation6 + $0x48] sm:$0xff]
      %v1862 = vld [vmem:[#allocation6 + $0x50] sm:$0xff]
      %v1863 = vld [vmem:[#allocation6 + $0x58] sm:$0xff]
      %v1864 = vld [vmem:[#allocation6 + $0x60] sm:$0xff]
      %v1865 = vld [vmem:[#allocation6 + $0x68] sm:$0xff]
      %v1866 = vld [vmem:[#allocation6 + $0x70] sm:$0xff]
      %v1867 = vld [vmem:[#allocation6 + $0x78] sm:$0xff]
      %v1868 = vld [vmem:[#allocation6 + $0x80] sm:$0xff]
      %v1869 = vld [vmem:[#allocation6 + $0x88] sm:$0xff]
      %v1870 = vld [vmem:[#allocation6 + $0x90] sm:$0xff]
      %v1871 = vld [vmem:[#allocation6 + $0x98] sm:$0xff]
      %v1872 = vld [vmem:[#allocation6 + $0xa0] sm:$0xff]
      %v1873 = vld [vmem:[#allocation6 + $0xa8] sm:$0xff]
      %v1874 = vld [vmem:[#allocation6 + $0xb0] sm:$0xff]
      %v1875 = vld [vmem:[#allocation6 + $0xb8] sm:$0xff]
      %v1876 = vld [vmem:[#allocation6 + $0xc0] sm:$0xff]
      %v1877 = vld [vmem:[#allocation6 + $0xc8] sm:$0xff]
      %v1878 = vld [vmem:[#allocation6 + $0xd0] sm:$0xff]
      %v1879 = vld [vmem:[#allocation6 + $0xd8] sm:$0xff]
      %v1880 = vld [vmem:[#allocation6 + $0xe0] sm:$0xff]
      %v1881 = vld [vmem:[#allocation6 + $0xe8] sm:$0xff]
      %v1882 = vld [vmem:[#allocation6 + $0xf0] sm:$0xff]
      %v1883 = vld [vmem:[#allocation6 + $0xf8] sm:$0xff]
      %v1884 = vsub.f32 %v1852, %v1812
      %v1885 = vsub.f32 %v1853, %v1812
      %v1886 = vsub.f32 %v1854, %v1812
      %v1887 = vsub.f32 %v1855, %v1812
      %v1888 = vsub.f32 %v1856, %v1812
      %v1889 = vsub.f32 %v1857, %v1812
      %v1890 = vsub.f32 %v1858, %v1812
      %v1891 = vsub.f32 %v1859, %v1812
      %v1892 = vsub.f32 %v1860, %v1812
      %v1893 = vsub.f32 %v1861, %v1812
      %v1894 = vsub.f32 %v1862, %v1812
      %v1895 = vsub.f32 %v1863, %v1812
      %v1896 = vsub.f32 %v1864, %v1812
      %v1897 = vsub.f32 %v1865, %v1812
      %v1898 = vsub.f32 %v1866, %v1812
      %v1899 = vsub.f32 %v1867, %v1812
      %v1900 = vsub.f32 %v1868, %v1812
      %v1901 = vsub.f32 %v1869, %v1812
      %v1902 = vsub.f32 %v1870, %v1812
      %v1903 = vsub.f32 %v1871, %v1812
      %v1904 = vsub.f32 %v1872, %v1812
      %v1905 = vsub.f32 %v1873, %v1812
      %v1906 = vsub.f32 %v1874, %v1812
      %v1907 = vsub.f32 %v1875, %v1812
      %v1908 = vsub.f32 %v1876, %v1812
      %v1909 = vsub.f32 %v1877, %v1812
      %v1910 = vsub.f32 %v1878, %v1812
      %v1911 = vsub.f32 %v1879, %v1812
      %v1912 = vsub.f32 %v1880, %v1812
      %v1913 = vsub.f32 %v1881, %v1812
      %v1914 = vsub.f32 %v1882, %v1812
      %v1915 = vsub.f32 %v1883, %v1812
      %v1916 = vmul.f32 %v1884, %v1851
      %v1917 = vmul.f32 %v1885, %v1851
      %v1918 = vmul.f32 %v1886, %v1851
      %v1919 = vmul.f32 %v1887, %v1851
      %v1920 = vmul.f32 %v1888, %v1851
      %v1921 = vmul.f32 %v1889, %v1851
      %v1922 = vmul.f32 %v1890, %v1851
      %v1923 = vmul.f32 %v1891, %v1851
      %v1924 = vmul.f32 %v1892, %v1851
      %v1925 = vmul.f32 %v1893, %v1851
      %v1926 = vmul.f32 %v1894, %v1851
      %v1927 = vmul.f32 %v1895, %v1851
      %v1928 = vmul.f32 %v1896, %v1851
      %v1929 = vmul.f32 %v1897, %v1851
      %v1930 = vmul.f32 %v1898, %v1851
      %v1931 = vmul.f32 %v1899, %v1851
      %v1932 = vmul.f32 %v1900, %v1851
      %v1933 = vmul.f32 %v1901, %v1851
      %v1934 = vmul.f32 %v1902, %v1851
      %v1935 = vmul.f32 %v1903, %v1851
      %v1936 = vmul.f32 %v1904, %v1851
      %v1937 = vmul.f32 %v1905, %v1851
      %v1938 = vmul.f32 %v1906, %v1851
      %v1939 = vmul.f32 %v1907, %v1851
      %v1940 = vmul.f32 %v1908, %v1851
      %v1941 = vmul.f32 %v1909, %v1851
      %v1942 = vmul.f32 %v1910, %v1851
      %v1943 = vmul.f32 %v1911, %v1851
      %v1944 = vmul.f32 %v1912, %v1851
      %v1945 = vmul.f32 %v1913, %v1851
      %v1946 = vmul.f32 %v1914, %v1851
      %v1947 = vmul.f32 %v1915, %v1851
      %v1948 = vtanh.pop %v1916
      %v1949 = vtanh.pop %v1917
      %v1950 = vtanh.pop %v1918
      %v1951 = vtanh.pop %v1919
      %v1952 = vtanh.pop %v1920
      %v1953 = vtanh.pop %v1921
      %v1954 = vtanh.pop %v1922
      %v1955 = vtanh.pop %v1923
      %v1956 = vtanh.pop %v1924
      %v1957 = vtanh.pop %v1925
      %v1958 = vtanh.pop %v1926
      %v1959 = vtanh.pop %v1927
      %v1960 = vtanh.pop %v1928
      %v1961 = vtanh.pop %v1929
      %v1962 = vtanh.pop %v1930
      %v1963 = vtanh.pop %v1931
      %v1964 = vtanh.pop %v1932
      %v1965 = vtanh.pop %v1933
      %v1966 = vtanh.pop %v1934
      %v1967 = vtanh.pop %v1935
      %v1968 = vtanh.pop %v1936
      %v1969 = vtanh.pop %v1937
      %v1970 = vtanh.pop %v1938
      %v1971 = vtanh.pop %v1939
      %v1972 = vtanh.pop %v1940
      %v1973 = vtanh.pop %v1941
      %v1974 = vtanh.pop %v1942
      %v1975 = vtanh.pop %v1943
      %v1976 = vtanh.pop %v1944
      %v1977 = vtanh.pop %v1945
      %v1978 = vtanh.pop %v1946
      %v1979 = vtanh.pop %v1947
      %v1980 = vpack.c.bf16 %v1949, %v1948
      %v1981 = vpack.c.bf16 %v1951, %v1950
      %v1982 = vpack.c.bf16 %v1953, %v1952
      %v1983 = vpack.c.bf16 %v1955, %v1954
      %v1984 = vpack.c.bf16 %v1957, %v1956
      %v1985 = vpack.c.bf16 %v1959, %v1958
      %v1986 = vpack.c.bf16 %v1961, %v1960
      %v1987 = vpack.c.bf16 %v1963, %v1962
      %v1988 = vpack.c.bf16 %v1965, %v1964
      %v1989 = vpack.c.bf16 %v1967, %v1966
      %v1990 = vpack.c.bf16 %v1969, %v1968
      %v1991 = vpack.c.bf16 %v1971, %v1970
      %v1992 = vpack.c.bf16 %v1973, %v1972
      %v1993 = vpack.c.bf16 %v1975, %v1974
      %v1994 = vpack.c.bf16 %v1977, %v1976
      %v1995 = vpack.c.bf16 %v1979, %v1978
      %v2012 = vunpack.c.l.b16 %v1980
      %v2013 = vunpack.c.h.b16 %v1980
      %v2014 = vunpack.c.l.b16 %v1981
      %v2015 = vunpack.c.h.b16 %v1981
      %v2016 = vunpack.c.l.b16 %v1982
      %v2017 = vunpack.c.h.b16 %v1982
      %v2018 = vunpack.c.l.b16 %v1983
      %v2019 = vunpack.c.h.b16 %v1983
      %v2020 = vunpack.c.l.b16 %v1984
      %v2021 = vunpack.c.h.b16 %v1984
      %v2022 = vunpack.c.l.b16 %v1985
      %v2023 = vunpack.c.h.b16 %v1985
      %v2024 = vunpack.c.l.b16 %v1986
      %v2025 = vunpack.c.h.b16 %v1986
      %v2026 = vunpack.c.l.b16 %v1987
      %v2027 = vunpack.c.h.b16 %v1987
      %v2028 = vunpack.c.l.b16 %v1988
      %v2029 = vunpack.c.h.b16 %v1988
      %v2030 = vunpack.c.l.b16 %v1989
      %v2031 = vunpack.c.h.b16 %v1989
      %v2032 = vunpack.c.l.b16 %v1990
      %v2033 = vunpack.c.h.b16 %v1990
      %v2034 = vunpack.c.l.b16 %v1991
      %v2035 = vunpack.c.h.b16 %v1991
      %v2036 = vunpack.c.l.b16 %v1992
      %v2037 = vunpack.c.h.b16 %v1992
      %v2038 = vunpack.c.l.b16 %v1993
      %v2039 = vunpack.c.h.b16 %v1993
      %v2040 = vunpack.c.l.b16 %v1994
      %v2041 = vunpack.c.h.b16 %v1994
      %v2042 = vunpack.c.l.b16 %v1995
      %v2043 = vunpack.c.h.b16 %v1995
      %v2044 = vpack.c.b16 %v2012, %v2012
      %v2045 = vpack.c.b16 %v2013, %v2013
      %v2046 = vpack.c.b16 %v2014, %v2014
      %v2047 = vpack.c.b16 %v2015, %v2015
      %v2048 = vpack.c.b16 %v2016, %v2016
      %v2049 = vpack.c.b16 %v2017, %v2017
      %v2050 = vpack.c.b16 %v2018, %v2018
      %v2051 = vpack.c.b16 %v2019, %v2019
      %v2052 = vpack.c.b16 %v2020, %v2020
      %v2053 = vpack.c.b16 %v2021, %v2021
      %v2054 = vpack.c.b16 %v2022, %v2022
      %v2055 = vpack.c.b16 %v2023, %v2023
      %v2056 = vpack.c.b16 %v2024, %v2024
      %v2057 = vpack.c.b16 %v2025, %v2025
      %v2058 = vpack.c.b16 %v2026, %v2026
      %v2059 = vpack.c.b16 %v2027, %v2027
      %v2060 = vpack.c.b16 %v2028, %v2028
      %v2061 = vpack.c.b16 %v2029, %v2029
      %v2062 = vpack.c.b16 %v2030, %v2030
      %v2063 = vpack.c.b16 %v2031, %v2031
      %v2064 = vpack.c.b16 %v2032, %v2032
      %v2065 = vpack.c.b16 %v2033, %v2033
      %v2066 = vpack.c.b16 %v2034, %v2034
      %v2067 = vpack.c.b16 %v2035, %v2035
      %v2068 = vpack.c.b16 %v2036, %v2036
      %v2069 = vpack.c.b16 %v2037, %v2037
      %v2070 = vpack.c.b16 %v2038, %v2038
      %v2071 = vpack.c.b16 %v2039, %v2039
      %v2072 = vpack.c.b16 %v2040, %v2040
      %v2073 = vpack.c.b16 %v2041, %v2041
      %v2074 = vpack.c.b16 %v2042, %v2042
      %v2075 = vpack.c.b16 %v2043, %v2043
      %2108 = vst.msk [vmem:[#allocation7] sm:$0xf] %vm973, %v2044
      %2109 = vst.msk [vmem:[#allocation7 + $0x4] sm:$0xf] %vm973, %v2045
      %2110 = vst.msk [vmem:[#allocation7 + $0x8] sm:$0xf] %vm973, %v2046
      %2111 = vst.msk [vmem:[#allocation7 + $0xc] sm:$0xf] %vm973, %v2047
      %2112 = vst.msk [vmem:[#allocation7 + $0x10] sm:$0xf] %vm973, %v2048
      %2113 = vst.msk [vmem:[#allocation7 + $0x14] sm:$0xf] %vm973, %v2049
      %2114 = vst.msk [vmem:[#allocation7 + $0x18] sm:$0xf] %vm973, %v2050
      %2115 = vst.msk [vmem:[#allocation7 + $0x1c] sm:$0xf] %vm973, %v2051
      %2116 = vst.msk [vmem:[#allocation7 + $0x20] sm:$0xf] %vm973, %v2052
      %2117 = vst.msk [vmem:[#allocation7 + $0x24] sm:$0xf] %vm973, %v2053
      %2118 = vst.msk [vmem:[#allocation7 + $0x28] sm:$0xf] %vm973, %v2054
      %2119 = vst.msk [vmem:[#allocation7 + $0x2c] sm:$0xf] %vm973, %v2055
      %2120 = vst.msk [vmem:[#allocation7 + $0x30] sm:$0xf] %vm973, %v2056
      %2121 = vst.msk [vmem:[#allocation7 + $0x34] sm:$0xf] %vm973, %v2057
      %2122 = vst.msk [vmem:[#allocation7 + $0x38] sm:$0xf] %vm973, %v2058
      %2123 = vst.msk [vmem:[#allocation7 + $0x3c] sm:$0xf] %vm973, %v2059
      %2124 = vst.msk [vmem:[#allocation7 + $0x40] sm:$0xf] %vm973, %v2060
      %2125 = vst.msk [vmem:[#allocation7 + $0x44] sm:$0xf] %vm973, %v2061
      %2126 = vst.msk [vmem:[#allocation7 + $0x48] sm:$0xf] %vm973, %v2062
      %2127 = vst.msk [vmem:[#allocation7 + $0x4c] sm:$0xf] %vm973, %v2063
      %2128 = vst.msk [vmem:[#allocation7 + $0x50] sm:$0xf] %vm973, %v2064
      %2129 = vst.msk [vmem:[#allocation7 + $0x54] sm:$0xf] %vm973, %v2065
      %2130 = vst.msk [vmem:[#allocation7 + $0x58] sm:$0xf] %vm973, %v2066
      %2131 = vst.msk [vmem:[#allocation7 + $0x5c] sm:$0xf] %vm973, %v2067
      %2132 = vst.msk [vmem:[#allocation7 + $0x60] sm:$0xf] %vm973, %v2068
      %2133 = vst.msk [vmem:[#allocation7 + $0x64] sm:$0xf] %vm973, %v2069
      %2134 = vst.msk [vmem:[#allocation7 + $0x68] sm:$0xf] %vm973, %v2070
      %2135 = vst.msk [vmem:[#allocation7 + $0x6c] sm:$0xf] %vm973, %v2071
      %2136 = vst.msk [vmem:[#allocation7 + $0x70] sm:$0xf] %vm973, %v2072
      %2137 = vst.msk [vmem:[#allocation7 + $0x74] sm:$0xf] %vm973, %v2073
      %2138 = vst.msk [vmem:[#allocation7 + $0x78] sm:$0xf] %vm973, %v2074
      %2139 = vst.msk [vmem:[#allocation7 + $0x7c] sm:$0xf] %vm973, %v2075
      %v2140 = vld [vmem:[%s471] sm:$0xf]
      %v2141 = vld [vmem:[%s471 + $0x4] sm:$0xf]
      %v2142 = vld [vmem:[%s471 + $0x8] sm:$0xf]
      %v2143 = vld [vmem:[%s471 + $0xc] sm:$0xf]
      %v2144 = vld [vmem:[#allocation7] sm:$0xf]
      %v2145 = vld [vmem:[#allocation7 + $0x4] sm:$0xf]
      %v2146 = vld [vmem:[#allocation7 + $0x8] sm:$0xf]
      %v2147 = vld [vmem:[#allocation7 + $0xc] sm:$0xf]
      %v2148 = vld [vmem:[#allocation7 + $0x10] sm:$0xf]
      %v2149 = vld [vmem:[#allocation7 + $0x14] sm:$0xf]
      %v2150 = vld [vmem:[#allocation7 + $0x18] sm:$0xf]
      %v2151 = vld [vmem:[#allocation7 + $0x1c] sm:$0xf]
      %v2152 = vld [vmem:[#allocation7 + $0x20] sm:$0xf]
      %v2153 = vld [vmem:[#allocation7 + $0x24] sm:$0xf]
      %v2154 = vld [vmem:[#allocation7 + $0x28] sm:$0xf]
      %v2155 = vld [vmem:[#allocation7 + $0x2c] sm:$0xf]
      %v2156 = vld [vmem:[#allocation7 + $0x30] sm:$0xf]
      %v2157 = vld [vmem:[#allocation7 + $0x34] sm:$0xf]
      %v2158 = vld [vmem:[#allocation7 + $0x38] sm:$0xf]
      %v2159 = vld [vmem:[#allocation7 + $0x3c] sm:$0xf]
      %v2160 = vld [vmem:[#allocation7 + $0x40] sm:$0xf]
      %v2161 = vld [vmem:[#allocation7 + $0x44] sm:$0xf]
      %v2162 = vld [vmem:[#allocation7 + $0x48] sm:$0xf]
      %v2163 = vld [vmem:[#allocation7 + $0x4c] sm:$0xf]
      %v2164 = vld [vmem:[#allocation7 + $0x50] sm:$0xf]
      %v2165 = vld [vmem:[#allocation7 + $0x54] sm:$0xf]
      %v2166 = vld [vmem:[#allocation7 + $0x58] sm:$0xf]
      %v2167 = vld [vmem:[#allocation7 + $0x5c] sm:$0xf]
      %v2168 = vld [vmem:[#allocation7 + $0x60] sm:$0xf]
      %v2169 = vld [vmem:[#allocation7 + $0x64] sm:$0xf]
      %v2170 = vld [vmem:[#allocation7 + $0x68] sm:$0xf]
      %v2171 = vld [vmem:[#allocation7 + $0x6c] sm:$0xf]
      %v2172 = vld [vmem:[#allocation7 + $0x70] sm:$0xf]
      %v2173 = vld [vmem:[#allocation7 + $0x74] sm:$0xf]
      %v2174 = vld [vmem:[#allocation7 + $0x78] sm:$0xf]
      %v2175 = vld [vmem:[#allocation7 + $0x7c] sm:$0xf]
      %v2176 = vld [vmem:[%s476] sm:$0xf]
      %v2177 = vld [vmem:[%s476 + $0x4] sm:$0xf]
      %v2178 = vld [vmem:[%s476 + $0x8] sm:$0xf]
      %v2179 = vld [vmem:[%s476 + $0xc] sm:$0xf]
      %v2212 = vunpack.c.l.b16 %v2144
      %v2213 = vunpack.c.l.b16 %v2145
      %v2214 = vunpack.c.l.b16 %v2146
      %v2215 = vunpack.c.l.b16 %v2147
      %v2216 = vunpack.c.l.b16 %v2148
      %v2217 = vunpack.c.l.b16 %v2149
      %v2218 = vunpack.c.l.b16 %v2150
      %v2219 = vunpack.c.l.b16 %v2151
      %v2220 = vunpack.c.l.b16 %v2152
      %v2221 = vunpack.c.l.b16 %v2153
      %v2222 = vunpack.c.l.b16 %v2154
      %v2223 = vunpack.c.l.b16 %v2155
      %v2224 = vunpack.c.l.b16 %v2156
      %v2225 = vunpack.c.l.b16 %v2157
      %v2226 = vunpack.c.l.b16 %v2158
      %v2227 = vunpack.c.l.b16 %v2159
      %v2228 = vunpack.c.l.b16 %v2160
      %v2229 = vunpack.c.l.b16 %v2161
      %v2230 = vunpack.c.l.b16 %v2162
      %v2231 = vunpack.c.l.b16 %v2163
      %v2232 = vunpack.c.l.b16 %v2164
      %v2233 = vunpack.c.l.b16 %v2165
      %v2234 = vunpack.c.l.b16 %v2166
      %v2235 = vunpack.c.l.b16 %v2167
      %v2236 = vunpack.c.l.b16 %v2168
      %v2237 = vunpack.c.l.b16 %v2169
      %v2238 = vunpack.c.l.b16 %v2170
      %v2239 = vunpack.c.l.b16 %v2171
      %v2240 = vunpack.c.l.b16 %v2172
      %v2241 = vunpack.c.l.b16 %v2173
      %v2242 = vunpack.c.l.b16 %v2174
      %v2243 = vunpack.c.l.b16 %v2175
      %v2244 = vpack.c.b16 %v2213, %v2212
      %v2245 = vpack.c.b16 %v2215, %v2214
      %v2246 = vpack.c.b16 %v2217, %v2216
      %v2247 = vpack.c.b16 %v2219, %v2218
      %v2248 = vpack.c.b16 %v2221, %v2220
      %v2249 = vpack.c.b16 %v2223, %v2222
      %v2250 = vpack.c.b16 %v2225, %v2224
      %v2251 = vpack.c.b16 %v2227, %v2226
      %v2252 = vpack.c.b16 %v2229, %v2228
      %v2253 = vpack.c.b16 %v2231, %v2230
      %v2254 = vpack.c.b16 %v2233, %v2232
      %v2255 = vpack.c.b16 %v2235, %v2234
      %v2256 = vpack.c.b16 %v2237, %v2236
      %v2257 = vpack.c.b16 %v2239, %v2238
      %v2258 = vpack.c.b16 %v2241, %v2240
      %v2259 = vpack.c.b16 %v2243, %v2242
      %v2264 = vunpack.c.l.b16 %v2176
      %v2265 = vunpack.c.l.b16 %v2177
      %v2266 = vunpack.c.l.b16 %v2178
      %v2267 = vunpack.c.l.b16 %v2179
      %v2268 = vpack.c.b16 %v2265, %v2264
      %v2269 = vpack.c.b16 %v2267, %v2266
      %v2273 = vsel %vm635, %v2244, 0
      %v2276 = vsel %vm635, %v2245, 0
      %v2279 = vsel %vm635, %v2246, 0
      %v2282 = vsel %vm635, %v2247, 0
      %v2285 = vsel %vm635, %v2248, 0
      %v2288 = vsel %vm635, %v2249, 0
      %v2291 = vsel %vm635, %v2250, 0
      %v2294 = vsel %vm635, %v2251, 0
      %v2297 = vsel %vm635, %v2252, 0
      %v2300 = vsel %vm635, %v2253, 0
      %v2303 = vsel %vm635, %v2254, 0
      %v2306 = vsel %vm635, %v2255, 0
      %v2309 = vsel %vm635, %v2256, 0
      %v2312 = vsel %vm635, %v2257, 0
      %v2315 = vsel %vm635, %v2258, 0
      %v2318 = vsel %vm635, %v2259, 0
      %2320 = vmatprep.subr.bf16.mxu0 0
      %2321 = vmatpush1.bf16.msra.mxu0 0
      %2322 = vmatprep.subr.bf16.mxu0 0
      %2323 = vmatpush1.bf16.msra.mxu0 0
      %2324 = vmatprep.subr.bf16.mxu0 0
      %2325 = vmatpush1.bf16.msra.mxu0 0
      %2326 = vmatprep.subr.bf16.mxu0 0
      %2327 = vmatpush1.bf16.msra.mxu0 0
      %2328 = vmatprep.subr.bf16.mxu0 0
      %2329 = vmatpush1.bf16.msra.mxu0 0
      %2330 = vmatprep.subr.bf16.mxu0 0
      %2331 = vmatpush1.bf16.msra.mxu0 0
      %2332 = vmatprep.subr.bf16.mxu0 0
      %2333 = vmatpush1.bf16.msra.mxu0 %v2269
      %2334 = vmatprep.subr.bf16.mxu0 0
      %2335 = vmatpush1.bf16.msra.mxu0 %v2268
      %2336 = vmatprep.subr.bf16.mxu0 0
      %2337 = vmatpush2.bf16.msra.mxu0 0
      %2338 = vmatprep.subr.bf16.mxu0 0
      %2339 = vmatpush2.bf16.msra.mxu0 0
      %2340 = vmatprep.subr.bf16.mxu0 0
      %2341 = vmatpush2.bf16.msra.mxu0 0
      %2342 = vmatprep.subr.bf16.mxu0 0
      %2343 = vmatpush2.bf16.msra.mxu0 0
      %2344 = vmatprep.subr.bf16.mxu0 0
      %2345 = vmatpush2.bf16.msra.mxu0 0
      %2346 = vmatprep.subr.bf16.mxu0 0
      %2347 = vmatpush2.bf16.msra.mxu0 0
      %2348 = vmatprep.subr.bf16.mxu0 0
      %2349 = vmatpush2.bf16.msra.mxu0 0
      %2350 = vmatprep.subr.bf16.mxu0 0
      %2351 = vmatpush2.bf16.msra.mxu0 0
      %2352 = vmatprep.mubr.bf16.mxu0 0
      %2353 = vmatmul.mubr.bf16.gmra.mxu0 %v2273
      %v2354 = vpop.f32.mrf.mxu0
      %v2355 = vadd.f32 0.0, %v2354
      %v2356 = vpop.f32.mrf.mxu0
      %v2357 = vpop.f32.mrf.mxu0
      %v2358 = vadd.f32 0.0, %v2357
      %v2359 = vpop.f32.mrf.mxu0
      %2360 = vmatprep.mubr.bf16.mxu0 0
      %2361 = vmatmul.mubr.bf16.gmra.mxu0 %v2276
      %v2362 = vpop.f32.mrf.mxu0
      %v2363 = vadd.f32 0.0, %v2362
      %v2364 = vpop.f32.mrf.mxu0
      %v2365 = vpop.f32.mrf.mxu0
      %v2366 = vadd.f32 0.0, %v2365
      %v2367 = vpop.f32.mrf.mxu0
      %2368 = vmatprep.mubr.bf16.mxu0 0
      %2369 = vmatmul.mubr.bf16.gmra.mxu0 %v2279
      %v2370 = vpop.f32.mrf.mxu0
      %v2371 = vadd.f32 0.0, %v2370
      %v2372 = vpop.f32.mrf.mxu0
      %v2373 = vpop.f32.mrf.mxu0
      %v2374 = vadd.f32 0.0, %v2373
      %v2375 = vpop.f32.mrf.mxu0
      %2376 = vmatprep.mubr.bf16.mxu0 0
      %2377 = vmatmul.mubr.bf16.gmra.mxu0 %v2282
      %v2378 = vpop.f32.mrf.mxu0
      %v2379 = vadd.f32 0.0, %v2378
      %v2380 = vpop.f32.mrf.mxu0
      %v2381 = vpop.f32.mrf.mxu0
      %v2382 = vadd.f32 0.0, %v2381
      %v2383 = vpop.f32.mrf.mxu0
      %2384 = vmatprep.mubr.bf16.mxu0 0
      %2385 = vmatmul.mubr.bf16.gmra.mxu0 %v2285
      %v2386 = vpop.f32.mrf.mxu0
      %v2387 = vadd.f32 0.0, %v2386
      %v2388 = vpop.f32.mrf.mxu0
      %v2389 = vpop.f32.mrf.mxu0
      %v2390 = vadd.f32 0.0, %v2389
      %v2391 = vpop.f32.mrf.mxu0
      %2392 = vmatprep.mubr.bf16.mxu0 0
      %2393 = vmatmul.mubr.bf16.gmra.mxu0 %v2288
      %v2394 = vpop.f32.mrf.mxu0
      %v2395 = vadd.f32 0.0, %v2394
      %v2396 = vpop.f32.mrf.mxu0
      %v2397 = vpop.f32.mrf.mxu0
      %v2398 = vadd.f32 0.0, %v2397
      %v2399 = vpop.f32.mrf.mxu0
      %2400 = vmatprep.mubr.bf16.mxu0 0
      %2401 = vmatmul.mubr.bf16.gmra.mxu0 %v2291
      %v2402 = vpop.f32.mrf.mxu0
      %v2403 = vadd.f32 0.0, %v2402
      %v2404 = vpop.f32.mrf.mxu0
      %v2405 = vpop.f32.mrf.mxu0
      %v2406 = vadd.f32 0.0, %v2405
      %v2407 = vpop.f32.mrf.mxu0
      %2408 = vmatprep.mubr.bf16.mxu0 0
      %2409 = vmatmul.mubr.bf16.gmra.mxu0 %v2294
      %v2410 = vpop.f32.mrf.mxu0
      %v2411 = vadd.f32 0.0, %v2410
      %v2412 = vpop.f32.mrf.mxu0
      %v2413 = vpop.f32.mrf.mxu0
      %v2414 = vadd.f32 0.0, %v2413
      %v2415 = vpop.f32.mrf.mxu0
      %2416 = vmatprep.mubr.bf16.mxu0 0
      %2417 = vmatmul.mubr.bf16.gmra.mxu0 %v2297
      %v2418 = vpop.f32.mrf.mxu0
      %v2419 = vadd.f32 0.0, %v2418
      %v2420 = vpop.f32.mrf.mxu0
      %v2421 = vpop.f32.mrf.mxu0
      %v2422 = vadd.f32 0.0, %v2421
      %v2423 = vpop.f32.mrf.mxu0
      %2424 = vmatprep.mubr.bf16.mxu0 0
      %2425 = vmatmul.mubr.bf16.gmra.mxu0 %v2300
      %v2426 = vpop.f32.mrf.mxu0
      %v2427 = vadd.f32 0.0, %v2426
      %v2428 = vpop.f32.mrf.mxu0
      %v2429 = vpop.f32.mrf.mxu0
      %v2430 = vadd.f32 0.0, %v2429
      %v2431 = vpop.f32.mrf.mxu0
      %2432 = vmatprep.mubr.bf16.mxu0 0
      %2433 = vmatmul.mubr.bf16.gmra.mxu0 %v2303
      %v2434 = vpop.f32.mrf.mxu0
      %v2435 = vadd.f32 0.0, %v2434
      %v2436 = vpop.f32.mrf.mxu0
      %v2437 = vpop.f32.mrf.mxu0
      %v2438 = vadd.f32 0.0, %v2437
      %v2439 = vpop.f32.mrf.mxu0
      %2440 = vmatprep.mubr.bf16.mxu0 0
      %2441 = vmatmul.mubr.bf16.gmra.mxu0 %v2306
      %v2442 = vpop.f32.mrf.mxu0
      %v2443 = vadd.f32 0.0, %v2442
      %v2444 = vpop.f32.mrf.mxu0
      %v2445 = vpop.f32.mrf.mxu0
      %v2446 = vadd.f32 0.0, %v2445
      %v2447 = vpop.f32.mrf.mxu0
      %2448 = vmatprep.mubr.bf16.mxu0 0
      %2449 = vmatmul.mubr.bf16.gmra.mxu0 %v2309
      %v2450 = vpop.f32.mrf.mxu0
      %v2451 = vadd.f32 0.0, %v2450
      %v2452 = vpop.f32.mrf.mxu0
      %v2453 = vpop.f32.mrf.mxu0
      %v2454 = vadd.f32 0.0, %v2453
      %v2455 = vpop.f32.mrf.mxu0
      %2456 = vmatprep.mubr.bf16.mxu0 0
      %2457 = vmatmul.mubr.bf16.gmra.mxu0 %v2312
      %v2458 = vpop.f32.mrf.mxu0
      %v2459 = vadd.f32 0.0, %v2458
      %v2460 = vpop.f32.mrf.mxu0
      %v2461 = vpop.f32.mrf.mxu0
      %v2462 = vadd.f32 0.0, %v2461
      %v2463 = vpop.f32.mrf.mxu0
      %2464 = vmatprep.mubr.bf16.mxu0 0
      %2465 = vmatmul.mubr.bf16.gmra.mxu0 %v2315
      %v2466 = vpop.f32.mrf.mxu0
      %v2467 = vadd.f32 0.0, %v2466
      %v2468 = vpop.f32.mrf.mxu0
      %v2469 = vpop.f32.mrf.mxu0
      %v2470 = vadd.f32 0.0, %v2469
      %v2471 = vpop.f32.mrf.mxu0
      %2472 = vmatprep.mubr.bf16.mxu0 0
      %2473 = vmatmul.mubr.bf16.gmra.mxu0 %v2318
      %v2474 = vpop.f32.mrf.mxu0
      %v2475 = vadd.f32 0.0, %v2474
      %v2476 = vpop.f32.mrf.mxu0
      %v2477 = vpop.f32.mrf.mxu0
      %v2478 = vadd.f32 0.0, %v2477
      %v2479 = vpop.f32.mrf.mxu0
      %2480 = vdwg.mxu0
      %v2485 = vunpack.c.l.b16 %v2140
      %v2486 = vunpack.c.l.b16 %v2141
      %v2487 = vunpack.c.l.b16 %v2142
      %v2488 = vunpack.c.l.b16 %v2143
      %v2489 = vpack.c.b16 %v2486, %v2485
      %v2490 = vpack.c.b16 %v2488, %v2487
      %2493 = vmatprep.subr.bf16.mxu0 0
      %2494 = vmatpush1.bf16.msra.mxu0 0
      %2495 = vmatprep.subr.bf16.mxu0 0
      %2496 = vmatpush1.bf16.msra.mxu0 0
      %2497 = vmatprep.subr.bf16.mxu0 0
      %2498 = vmatpush1.bf16.msra.mxu0 0
      %2499 = vmatprep.subr.bf16.mxu0 0
      %2500 = vmatpush1.bf16.msra.mxu0 0
      %2501 = vmatprep.subr.bf16.mxu0 0
      %2502 = vmatpush1.bf16.msra.mxu0 0
      %2503 = vmatprep.subr.bf16.mxu0 0
      %2504 = vmatpush1.bf16.msra.mxu0 0
      %2505 = vmatprep.subr.bf16.mxu0 0
      %2506 = vmatpush1.bf16.msra.mxu0 %v2490
      %2507 = vmatprep.subr.bf16.mxu0 0
      %2508 = vmatpush1.bf16.msra.mxu0 %v2489
      %2509 = vmatprep.subr.bf16.mxu0 0
      %2510 = vmatpush2.bf16.msra.mxu0 0
      %2511 = vmatprep.subr.bf16.mxu0 0
      %2512 = vmatpush2.bf16.msra.mxu0 0
      %2513 = vmatprep.subr.bf16.mxu0 0
      %2514 = vmatpush2.bf16.msra.mxu0 0
      %2515 = vmatprep.subr.bf16.mxu0 0
      %2516 = vmatpush2.bf16.msra.mxu0 0
      %2517 = vmatprep.subr.bf16.mxu0 0
      %2518 = vmatpush2.bf16.msra.mxu0 0
      %2519 = vmatprep.subr.bf16.mxu0 0
      %2520 = vmatpush2.bf16.msra.mxu0 0
      %2521 = vmatprep.subr.bf16.mxu0 0
      %2522 = vmatpush2.bf16.msra.mxu0 0
      %2523 = vmatprep.subr.bf16.mxu0 0
      %2524 = vmatpush2.bf16.msra.mxu0 0
      %2525 = vmatprep.mubr.bf16.mxu0 0
      %2526 = vmatmul.mubr.bf16.gmra.mxu0 %v637
      %v2527 = vpop.f32.mrf.mxu0
      %v2528 = vadd.f32 %v2355, %v2527
      %v2529 = vpop.f32.mrf.mxu0
      %v2530 = vpop.f32.mrf.mxu0
      %v2531 = vadd.f32 %v2358, %v2530
      %v2532 = vpop.f32.mrf.mxu0
      %2533 = vmatprep.mubr.bf16.mxu0 0
      %2534 = vmatmul.mubr.bf16.gmra.mxu0 %v640
      %v2535 = vpop.f32.mrf.mxu0
      %v2536 = vadd.f32 %v2363, %v2535
      %v2537 = vpop.f32.mrf.mxu0
      %v2538 = vpop.f32.mrf.mxu0
      %v2539 = vadd.f32 %v2366, %v2538
      %v2540 = vpop.f32.mrf.mxu0
      %2541 = vmatprep.mubr.bf16.mxu0 0
      %2542 = vmatmul.mubr.bf16.gmra.mxu0 %v643
      %v2543 = vpop.f32.mrf.mxu0
      %v2544 = vadd.f32 %v2371, %v2543
      %v2545 = vpop.f32.mrf.mxu0
      %v2546 = vpop.f32.mrf.mxu0
      %v2547 = vadd.f32 %v2374, %v2546
      %v2548 = vpop.f32.mrf.mxu0
      %2549 = vmatprep.mubr.bf16.mxu0 0
      %2550 = vmatmul.mubr.bf16.gmra.mxu0 %v646
      %v2551 = vpop.f32.mrf.mxu0
      %v2552 = vadd.f32 %v2379, %v2551
      %v2553 = vpop.f32.mrf.mxu0
      %v2554 = vpop.f32.mrf.mxu0
      %v2555 = vadd.f32 %v2382, %v2554
      %v2556 = vpop.f32.mrf.mxu0
      %2557 = vmatprep.mubr.bf16.mxu0 0
      %2558 = vmatmul.mubr.bf16.gmra.mxu0 %v649
      %v2559 = vpop.f32.mrf.mxu0
      %v2560 = vadd.f32 %v2387, %v2559
      %v2561 = vpop.f32.mrf.mxu0
      %v2562 = vpop.f32.mrf.mxu0
      %v2563 = vadd.f32 %v2390, %v2562
      %v2564 = vpop.f32.mrf.mxu0
      %2565 = vmatprep.mubr.bf16.mxu0 0
      %2566 = vmatmul.mubr.bf16.gmra.mxu0 %v652
      %v2567 = vpop.f32.mrf.mxu0
      %v2568 = vadd.f32 %v2395, %v2567
      %v2569 = vpop.f32.mrf.mxu0
      %v2570 = vpop.f32.mrf.mxu0
      %v2571 = vadd.f32 %v2398, %v2570
      %v2572 = vpop.f32.mrf.mxu0
      %2573 = vmatprep.mubr.bf16.mxu0 0
      %2574 = vmatmul.mubr.bf16.gmra.mxu0 %v655
      %v2575 = vpop.f32.mrf.mxu0
      %v2576 = vadd.f32 %v2403, %v2575
      %v2577 = vpop.f32.mrf.mxu0
      %v2578 = vpop.f32.mrf.mxu0
      %v2579 = vadd.f32 %v2406, %v2578
      %v2580 = vpop.f32.mrf.mxu0
      %2581 = vmatprep.mubr.bf16.mxu0 0
      %2582 = vmatmul.mubr.bf16.gmra.mxu0 %v658
      %v2583 = vpop.f32.mrf.mxu0
      %v2584 = vadd.f32 %v2411, %v2583
      %v2585 = vpop.f32.mrf.mxu0
      %v2586 = vpop.f32.mrf.mxu0
      %v2587 = vadd.f32 %v2414, %v2586
      %v2588 = vpop.f32.mrf.mxu0
      %2589 = vmatprep.mubr.bf16.mxu0 0
      %2590 = vmatmul.mubr.bf16.gmra.mxu0 %v661
      %v2591 = vpop.f32.mrf.mxu0
      %v2592 = vadd.f32 %v2419, %v2591
      %v2593 = vpop.f32.mrf.mxu0
      %v2594 = vpop.f32.mrf.mxu0
      %v2595 = vadd.f32 %v2422, %v2594
      %v2596 = vpop.f32.mrf.mxu0
      %2597 = vmatprep.mubr.bf16.mxu0 0
      %2598 = vmatmul.mubr.bf16.gmra.mxu0 %v664
      %v2599 = vpop.f32.mrf.mxu0
      %v2600 = vadd.f32 %v2427, %v2599
      %v2601 = vpop.f32.mrf.mxu0
      %v2602 = vpop.f32.mrf.mxu0
      %v2603 = vadd.f32 %v2430, %v2602
      %v2604 = vpop.f32.mrf.mxu0
      %2605 = vmatprep.mubr.bf16.mxu0 0
      %2606 = vmatmul.mubr.bf16.gmra.mxu0 %v667
      %v2607 = vpop.f32.mrf.mxu0
      %v2608 = vadd.f32 %v2435, %v2607
      %v2609 = vpop.f32.mrf.mxu0
      %v2610 = vpop.f32.mrf.mxu0
      %v2611 = vadd.f32 %v2438, %v2610
      %v2612 = vpop.f32.mrf.mxu0
      %2613 = vmatprep.mubr.bf16.mxu0 0
      %2614 = vmatmul.mubr.bf16.gmra.mxu0 %v670
      %v2615 = vpop.f32.mrf.mxu0
      %v2616 = vadd.f32 %v2443, %v2615
      %v2617 = vpop.f32.mrf.mxu0
      %v2618 = vpop.f32.mrf.mxu0
      %v2619 = vadd.f32 %v2446, %v2618
      %v2620 = vpop.f32.mrf.mxu0
      %2621 = vmatprep.mubr.bf16.mxu0 0
      %2622 = vmatmul.mubr.bf16.gmra.mxu0 %v673
      %v2623 = vpop.f32.mrf.mxu0
      %v2624 = vadd.f32 %v2451, %v2623
      %v2625 = vpop.f32.mrf.mxu0
      %v2626 = vpop.f32.mrf.mxu0
      %v2627 = vadd.f32 %v2454, %v2626
      %v2628 = vpop.f32.mrf.mxu0
      %2629 = vmatprep.mubr.bf16.mxu0 0
      %2630 = vmatmul.mubr.bf16.gmra.mxu0 %v676
      %v2631 = vpop.f32.mrf.mxu0
      %v2632 = vadd.f32 %v2459, %v2631
      %v2633 = vpop.f32.mrf.mxu0
      %v2634 = vpop.f32.mrf.mxu0
      %v2635 = vadd.f32 %v2462, %v2634
      %v2636 = vpop.f32.mrf.mxu0
      %2637 = vmatprep.mubr.bf16.mxu0 0
      %2638 = vmatmul.mubr.bf16.gmra.mxu0 %v679
      %v2639 = vpop.f32.mrf.mxu0
      %v2640 = vadd.f32 %v2467, %v2639
      %v2641 = vpop.f32.mrf.mxu0
      %v2642 = vpop.f32.mrf.mxu0
      %v2643 = vadd.f32 %v2470, %v2642
      %v2644 = vpop.f32.mrf.mxu0
      %2645 = vmatprep.mubr.bf16.mxu0 0
      %2646 = vmatmul.mubr.bf16.gmra.mxu0 %v682
      %v2647 = vpop.f32.mrf.mxu0
      %v2648 = vadd.f32 %v2475, %v2647
      %v2649 = vpop.f32.mrf.mxu0
      %v2650 = vpop.f32.mrf.mxu0
      %v2651 = vadd.f32 %v2478, %v2650
      %v2652 = vpop.f32.mrf.mxu0
      %2653 = vdwg.mxu0
      %v2654 = vpack.c.bf16 %v2531, %v2528
      %v2655 = vpack.c.bf16 %v2539, %v2536
      %v2656 = vpack.c.bf16 %v2547, %v2544
      %v2657 = vpack.c.bf16 %v2555, %v2552
      %v2658 = vpack.c.bf16 %v2563, %v2560
      %v2659 = vpack.c.bf16 %v2571, %v2568
      %v2660 = vpack.c.bf16 %v2579, %v2576
      %v2661 = vpack.c.bf16 %v2587, %v2584
      %v2662 = vpack.c.bf16 %v2595, %v2592
      %v2663 = vpack.c.bf16 %v2603, %v2600
      %v2664 = vpack.c.bf16 %v2611, %v2608
      %v2665 = vpack.c.bf16 %v2619, %v2616
      %v2666 = vpack.c.bf16 %v2627, %v2624
      %v2667 = vpack.c.bf16 %v2635, %v2632
      %v2668 = vpack.c.bf16 %v2643, %v2640
      %v2669 = vpack.c.bf16 %v2651, %v2648
      %v2686 = vunpack.c.l.b16 %v2654
      %v2687 = vunpack.c.h.b16 %v2654
      %v2688 = vunpack.c.l.b16 %v2655
      %v2689 = vunpack.c.h.b16 %v2655
      %v2690 = vunpack.c.l.b16 %v2656
      %v2691 = vunpack.c.h.b16 %v2656
      %v2692 = vunpack.c.l.b16 %v2657
      %v2693 = vunpack.c.h.b16 %v2657
      %v2694 = vunpack.c.l.b16 %v2658
      %v2695 = vunpack.c.h.b16 %v2658
      %v2696 = vunpack.c.l.b16 %v2659
      %v2697 = vunpack.c.h.b16 %v2659
      %v2698 = vunpack.c.l.b16 %v2660
      %v2699 = vunpack.c.h.b16 %v2660
      %v2700 = vunpack.c.l.b16 %v2661
      %v2701 = vunpack.c.h.b16 %v2661
      %v2702 = vunpack.c.l.b16 %v2662
      %v2703 = vunpack.c.h.b16 %v2662
      %v2704 = vunpack.c.l.b16 %v2663
      %v2705 = vunpack.c.h.b16 %v2663
      %v2706 = vunpack.c.l.b16 %v2664
      %v2707 = vunpack.c.h.b16 %v2664
      %v2708 = vunpack.c.l.b16 %v2665
      %v2709 = vunpack.c.h.b16 %v2665
      %v2710 = vunpack.c.l.b16 %v2666
      %v2711 = vunpack.c.h.b16 %v2666
      %v2712 = vunpack.c.l.b16 %v2667
      %v2713 = vunpack.c.h.b16 %v2667
      %v2714 = vunpack.c.l.b16 %v2668
      %v2715 = vunpack.c.h.b16 %v2668
      %v2716 = vunpack.c.l.b16 %v2669
      %v2717 = vunpack.c.h.b16 %v2669
      %v2718 = vpack.c.b16 %v2686, %v2686
      %v2719 = vpack.c.b16 %v2687, %v2687
      %v2720 = vpack.c.b16 %v2688, %v2688
      %v2721 = vpack.c.b16 %v2689, %v2689
      %v2722 = vpack.c.b16 %v2690, %v2690
      %v2723 = vpack.c.b16 %v2691, %v2691
      %v2724 = vpack.c.b16 %v2692, %v2692
      %v2725 = vpack.c.b16 %v2693, %v2693
      %v2726 = vpack.c.b16 %v2694, %v2694
      %v2727 = vpack.c.b16 %v2695, %v2695
      %v2728 = vpack.c.b16 %v2696, %v2696
      %v2729 = vpack.c.b16 %v2697, %v2697
      %v2730 = vpack.c.b16 %v2698, %v2698
      %v2731 = vpack.c.b16 %v2699, %v2699
      %v2732 = vpack.c.b16 %v2700, %v2700
      %v2733 = vpack.c.b16 %v2701, %v2701
      %v2734 = vpack.c.b16 %v2702, %v2702
      %v2735 = vpack.c.b16 %v2703, %v2703
      %v2736 = vpack.c.b16 %v2704, %v2704
      %v2737 = vpack.c.b16 %v2705, %v2705
      %v2738 = vpack.c.b16 %v2706, %v2706
      %v2739 = vpack.c.b16 %v2707, %v2707
      %v2740 = vpack.c.b16 %v2708, %v2708
      %v2741 = vpack.c.b16 %v2709, %v2709
      %v2742 = vpack.c.b16 %v2710, %v2710
      %v2743 = vpack.c.b16 %v2711, %v2711
      %v2744 = vpack.c.b16 %v2712, %v2712
      %v2745 = vpack.c.b16 %v2713, %v2713
      %v2746 = vpack.c.b16 %v2714, %v2714
      %v2747 = vpack.c.b16 %v2715, %v2715
      %v2748 = vpack.c.b16 %v2716, %v2716
      %v2749 = vpack.c.b16 %v2717, %v2717
      %2782 = vst.msk [vmem:[#allocation4] sm:$0xf] %vm973, %v2718
      %2783 = vst.msk [vmem:[#allocation4 + $0x4] sm:$0xf] %vm973, %v2719
      %2784 = vst.msk [vmem:[#allocation4 + $0x8] sm:$0xf] %vm973, %v2720
      %2785 = vst.msk [vmem:[#allocation4 + $0xc] sm:$0xf] %vm973, %v2721
      %2786 = vst.msk [vmem:[#allocation4 + $0x10] sm:$0xf] %vm973, %v2722
      %2787 = vst.msk [vmem:[#allocation4 + $0x14] sm:$0xf] %vm973, %v2723
      %2788 = vst.msk [vmem:[#allocation4 + $0x18] sm:$0xf] %vm973, %v2724
      %2789 = vst.msk [vmem:[#allocation4 + $0x1c] sm:$0xf] %vm973, %v2725
      %2790 = vst.msk [vmem:[#allocation4 + $0x20] sm:$0xf] %vm973, %v2726
      %2791 = vst.msk [vmem:[#allocation4 + $0x24] sm:$0xf] %vm973, %v2727
      %2792 = vst.msk [vmem:[#allocation4 + $0x28] sm:$0xf] %vm973, %v2728
      %2793 = vst.msk [vmem:[#allocation4 + $0x2c] sm:$0xf] %vm973, %v2729
      %2794 = vst.msk [vmem:[#allocation4 + $0x30] sm:$0xf] %vm973, %v2730
      %2795 = vst.msk [vmem:[#allocation4 + $0x34] sm:$0xf] %vm973, %v2731
      %2796 = vst.msk [vmem:[#allocation4 + $0x38] sm:$0xf] %vm973, %v2732
      %2797 = vst.msk [vmem:[#allocation4 + $0x3c] sm:$0xf] %vm973, %v2733
      %2798 = vst.msk [vmem:[#allocation4 + $0x40] sm:$0xf] %vm973, %v2734
      %2799 = vst.msk [vmem:[#allocation4 + $0x44] sm:$0xf] %vm973, %v2735
      %2800 = vst.msk [vmem:[#allocation4 + $0x48] sm:$0xf] %vm973, %v2736
      %2801 = vst.msk [vmem:[#allocation4 + $0x4c] sm:$0xf] %vm973, %v2737
      %2802 = vst.msk [vmem:[#allocation4 + $0x50] sm:$0xf] %vm973, %v2738
      %2803 = vst.msk [vmem:[#allocation4 + $0x54] sm:$0xf] %vm973, %v2739
      %2804 = vst.msk [vmem:[#allocation4 + $0x58] sm:$0xf] %vm973, %v2740
      %2805 = vst.msk [vmem:[#allocation4 + $0x5c] sm:$0xf] %vm973, %v2741
      %2806 = vst.msk [vmem:[#allocation4 + $0x60] sm:$0xf] %vm973, %v2742
      %2807 = vst.msk [vmem:[#allocation4 + $0x64] sm:$0xf] %vm973, %v2743
      %2808 = vst.msk [vmem:[#allocation4 + $0x68] sm:$0xf] %vm973, %v2744
      %2809 = vst.msk [vmem:[#allocation4 + $0x6c] sm:$0xf] %vm973, %v2745
      %2810 = vst.msk [vmem:[#allocation4 + $0x70] sm:$0xf] %vm973, %v2746
      %2811 = vst.msk [vmem:[#allocation4 + $0x74] sm:$0xf] %vm973, %v2747
      %2812 = vst.msk [vmem:[#allocation4 + $0x78] sm:$0xf] %vm973, %v2748
      %2813 = vst.msk [vmem:[#allocation4 + $0x7c] sm:$0xf] %vm973, %v2749
      %v2814 = vld [vmem:[%s479] sm:$0x1]
      %v2816 = vlaneseq
      %v2817 = vshrl.u32 %v2816, 7
      %v2818 = vsub.s32 0, %v2817
      %v2819 = vrot.slane %v2814, %v2818
      %v2821 = vld [vmem:[#allocation4] sm:$0xf]
      %v2822 = vld [vmem:[#allocation4 + $0x4] sm:$0xf]
      %v2823 = vld [vmem:[#allocation4 + $0x8] sm:$0xf]
      %v2824 = vld [vmem:[#allocation4 + $0xc] sm:$0xf]
      %v2825 = vld [vmem:[#allocation4 + $0x10] sm:$0xf]
      %v2826 = vld [vmem:[#allocation4 + $0x14] sm:$0xf]
      %v2827 = vld [vmem:[#allocation4 + $0x18] sm:$0xf]
      %v2828 = vld [vmem:[#allocation4 + $0x1c] sm:$0xf]
      %v2829 = vld [vmem:[#allocation4 + $0x20] sm:$0xf]
      %v2830 = vld [vmem:[#allocation4 + $0x24] sm:$0xf]
      %v2831 = vld [vmem:[#allocation4 + $0x28] sm:$0xf]
      %v2832 = vld [vmem:[#allocation4 + $0x2c] sm:$0xf]
      %v2833 = vld [vmem:[#allocation4 + $0x30] sm:$0xf]
      %v2834 = vld [vmem:[#allocation4 + $0x34] sm:$0xf]
      %v2835 = vld [vmem:[#allocation4 + $0x38] sm:$0xf]
      %v2836 = vld [vmem:[#allocation4 + $0x3c] sm:$0xf]
      %v2837 = vld [vmem:[#allocation4 + $0x40] sm:$0xf]
      %v2838 = vld [vmem:[#allocation4 + $0x44] sm:$0xf]
      %v2839 = vld [vmem:[#allocation4 + $0x48] sm:$0xf]
      %v2840 = vld [vmem:[#allocation4 + $0x4c] sm:$0xf]
      %v2841 = vld [vmem:[#allocation4 + $0x50] sm:$0xf]
      %v2842 = vld [vmem:[#allocation4 + $0x54] sm:$0xf]
      %v2843 = vld [vmem:[#allocation4 + $0x58] sm:$0xf]
      %v2844 = vld [vmem:[#allocation4 + $0x5c] sm:$0xf]
      %v2845 = vld [vmem:[#allocation4 + $0x60] sm:$0xf]
      %v2846 = vld [vmem:[#allocation4 + $0x64] sm:$0xf]
      %v2847 = vld [vmem:[#allocation4 + $0x68] sm:$0xf]
      %v2848 = vld [vmem:[#allocation4 + $0x6c] sm:$0xf]
      %v2849 = vld [vmem:[#allocation4 + $0x70] sm:$0xf]
      %v2850 = vld [vmem:[#allocation4 + $0x74] sm:$0xf]
      %v2851 = vld [vmem:[#allocation4 + $0x78] sm:$0xf]
      %v2852 = vld [vmem:[#allocation4 + $0x7c] sm:$0xf]
      %p2854 = scmp.lt.u32.totalorder 256, 8
      %p2855 = pneg %p2854
      // Predicated region
      $region95: #{globalnet_forward.2} parent=59 // pred_check
        _
      $region96: #{globalnet_forward.2} parent=59 // pred_check_branch
        %2857 = sbr.rel (%p2854) target = $region98
      $region97: #{globalnet_forward.2} parent=59 // pred_region
        %s2873 = sand.u32 256, 7
        %p2874 = scmp.eq.s32.totalorder %s2873, 0
        // Predicated region
        $region110: #{globalnet_forward.2} parent=97 // pred_check
          %p2875 = pneg %p2874
        $region111: #{globalnet_forward.2} parent=97 // pred_check_branch
          %2877 = sbr.rel (%p2875) target = $region113
        $region112: #{globalnet_forward.2} parent=97 // pred_region
          loop: start=0, step=1, limit=1
          $region114: #{globalnet_forward.2} parent=112 // loop_pre_header
            _
          $region115: #{globalnet_forward.2} parent=112 // loop_header
            %s2879 = sphi 0, %s2883
            %p2880 = scmp.ge.s32.totalorder %s2879, 1
            %s2884 = sphi %s1049, %s1049
            %s2885 = sphi [#allocation2], [#allocation2]
          $region116: #{globalnet_forward.2} parent=112 // loop_header_branch
            %2882 = sbr.rel (%p2880) target = $region120
          $region117: #{globalnet_forward.2} parent=112 // loop_body
            %v2886 = vld [vmem:[%s2884] sm:$0xff]
            %2887 = vst [vmem:[%s2885] sm:$0xff] %v2886
            %v2888 = vld [vmem:[%s2884 + $0x8] sm:$0xff]
            %2889 = vst [vmem:[%s2885 + $0x8] sm:$0xff] %v2888
            %v2890 = vld [vmem:[%s2884 + $0x10] sm:$0xff]
            %2891 = vst [vmem:[%s2885 + $0x10] sm:$0xff] %v2890
            %v2892 = vld [vmem:[%s2884 + $0x18] sm:$0xff]
            %2893 = vst [vmem:[%s2885 + $0x18] sm:$0xff] %v2892
            %v2894 = vld [vmem:[%s2884 + $0x20] sm:$0xff]
            %2895 = vst [vmem:[%s2885 + $0x20] sm:$0xff] %v2894
            %v2896 = vld [vmem:[%s2884 + $0x28] sm:$0xff]
            %2897 = vst [vmem:[%s2885 + $0x28] sm:$0xff] %v2896
            %v2898 = vld [vmem:[%s2884 + $0x30] sm:$0xff]
            %2899 = vst [vmem:[%s2885 + $0x30] sm:$0xff] %v2898
            %v2900 = vld [vmem:[%s2884 + $0x38] sm:$0xff]
            %2901 = vst [vmem:[%s2885 + $0x38] sm:$0xff] %v2900
            %v2902 = vld [vmem:[%s2884 + $0x40] sm:$0xff]
            %2903 = vst [vmem:[%s2885 + $0x40] sm:$0xff] %v2902
            %v2904 = vld [vmem:[%s2884 + $0x48] sm:$0xff]
            %2905 = vst [vmem:[%s2885 + $0x48] sm:$0xff] %v2904
            %v2906 = vld [vmem:[%s2884 + $0x50] sm:$0xff]
            %2907 = vst [vmem:[%s2885 + $0x50] sm:$0xff] %v2906
            %v2908 = vld [vmem:[%s2884 + $0x58] sm:$0xff]
            %2909 = vst [vmem:[%s2885 + $0x58] sm:$0xff] %v2908
            %v2910 = vld [vmem:[%s2884 + $0x60] sm:$0xff]
            %2911 = vst [vmem:[%s2885 + $0x60] sm:$0xff] %v2910
            %v2912 = vld [vmem:[%s2884 + $0x68] sm:$0xff]
            %2913 = vst [vmem:[%s2885 + $0x68] sm:$0xff] %v2912
            %v2914 = vld [vmem:[%s2884 + $0x70] sm:$0xff]
            %2915 = vst [vmem:[%s2885 + $0x70] sm:$0xff] %v2914
            %v2916 = vld [vmem:[%s2884 + $0x78] sm:$0xff]
            %2917 = vst [vmem:[%s2885 + $0x78] sm:$0xff] %v2916
            %v2918 = vld [vmem:[%s2884 + $0x80] sm:$0xff]
            %2919 = vst [vmem:[%s2885 + $0x80] sm:$0xff] %v2918
            %v2920 = vld [vmem:[%s2884 + $0x88] sm:$0xff]
            %2921 = vst [vmem:[%s2885 + $0x88] sm:$0xff] %v2920
            %v2922 = vld [vmem:[%s2884 + $0x90] sm:$0xff]
            %2923 = vst [vmem:[%s2885 + $0x90] sm:$0xff] %v2922
            %v2924 = vld [vmem:[%s2884 + $0x98] sm:$0xff]
            %2925 = vst [vmem:[%s2885 + $0x98] sm:$0xff] %v2924
            %v2926 = vld [vmem:[%s2884 + $0xa0] sm:$0xff]
            %2927 = vst [vmem:[%s2885 + $0xa0] sm:$0xff] %v2926
            %v2928 = vld [vmem:[%s2884 + $0xa8] sm:$0xff]
            %2929 = vst [vmem:[%s2885 + $0xa8] sm:$0xff] %v2928
            %v2930 = vld [vmem:[%s2884 + $0xb0] sm:$0xff]
            %2931 = vst [vmem:[%s2885 + $0xb0] sm:$0xff] %v2930
            %v2932 = vld [vmem:[%s2884 + $0xb8] sm:$0xff]
            %2933 = vst [vmem:[%s2885 + $0xb8] sm:$0xff] %v2932
            %v2934 = vld [vmem:[%s2884 + $0xc0] sm:$0xff]
            %2935 = vst [vmem:[%s2885 + $0xc0] sm:$0xff] %v2934
            %v2936 = vld [vmem:[%s2884 + $0xc8] sm:$0xff]
            %2937 = vst [vmem:[%s2885 + $0xc8] sm:$0xff] %v2936
            %v2938 = vld [vmem:[%s2884 + $0xd0] sm:$0xff]
            %2939 = vst [vmem:[%s2885 + $0xd0] sm:$0xff] %v2938
            %v2940 = vld [vmem:[%s2884 + $0xd8] sm:$0xff]
            %2941 = vst [vmem:[%s2885 + $0xd8] sm:$0xff] %v2940
            %v2942 = vld [vmem:[%s2884 + $0xe0] sm:$0xff]
            %2943 = vst [vmem:[%s2885 + $0xe0] sm:$0xff] %v2942
            %v2944 = vld [vmem:[%s2884 + $0xe8] sm:$0xff]
            %2945 = vst [vmem:[%s2885 + $0xe8] sm:$0xff] %v2944
            %v2946 = vld [vmem:[%s2884 + $0xf0] sm:$0xff]
            %2947 = vst [vmem:[%s2885 + $0xf0] sm:$0xff] %v2946
            %v2948 = vld [vmem:[%s2884 + $0xf8] sm:$0xff]
            %2949 = vst [vmem:[%s2885 + $0xf8] sm:$0xff] %v2948
          $region118: #{globalnet_forward.2} parent=112 // loop_footer
            %s2883 = sadd.s32 1, %s2879
          $region119: #{globalnet_forward.2} parent=112 // loop_footer_branch
            %2878 = sbr.rel target = $region115
          $region120: #{globalnet_forward.2} parent=112 // loop_exit
            _
        $region113: #{globalnet_forward.2} parent=97 // pred_fallthru
          _
        %p2950 = pneg %p2874
        // Predicated region
        $region121: #{globalnet_forward.2} parent=97 // pred_check
          _
        $region122: #{globalnet_forward.2} parent=97 // pred_check_branch
          %2952 = sbr.rel (%p2874) target = $region124
        $region123: #{globalnet_forward.2} parent=97 // pred_region
          %s2953 = sand.u32 256, 7
        $region124: #{globalnet_forward.2} parent=97 // pred_fallthru
          _
      $region98: #{globalnet_forward.2} parent=59 // pred_fallthru
        _
      // Predicated region
      $region99: #{globalnet_forward.2} parent=59 // pred_check
        %p2858 = pneg %p2854
      $region100: #{globalnet_forward.2} parent=59 // pred_check_branch
        %2860 = sbr.rel (%p2858) target = $region102
      $region101: #{globalnet_forward.2} parent=59 // pred_region
        %s2861 = sshll.u32 1, 256
        %s2862 = ssub.s32 %s2861, 1
        loop: start=0, step=1, limit=1
        $region103: #{globalnet_forward.2} parent=101 // loop_pre_header
          _
        $region104: #{globalnet_forward.2} parent=101 // loop_header
          %s2864 = sphi 0, %s2868
          %p2865 = scmp.ge.s32.totalorder %s2864, 1
          %s2869 = sphi %s1049, %s1049
          %s2870 = sphi [#allocation2], [#allocation2]
        $region105: #{globalnet_forward.2} parent=101 // loop_header_branch
          %2867 = sbr.rel (%p2865) target = $region109
        $region106: #{globalnet_forward.2} parent=101 // loop_body
          %v2871 = vld [vmem:[%s2869] sm:%s2862]
          %2872 = vst [vmem:[%s2870] sm:%s2862] %v2871
        $region107: #{globalnet_forward.2} parent=101 // loop_footer
          %s2868 = sadd.s32 1, %s2864
        $region108: #{globalnet_forward.2} parent=101 // loop_footer_branch
          %2863 = sbr.rel target = $region104
        $region109: #{globalnet_forward.2} parent=101 // loop_exit
          _
      $region102: #{globalnet_forward.2} parent=59 // pred_fallthru
        _
      // Predicated region
      $region125: #{globalnet_forward.2} parent=59 // pred_check
        _
      $region126: #{globalnet_forward.2} parent=59 // pred_check_branch
        %2956 = sbr.rel (0) target = $region128
      $region127: #{globalnet_forward.2} parent=59 // pred_region
        %2957 = vsyncadd [#allocation3], 4096
      $region128: #{globalnet_forward.2} parent=59 // pred_fallthru
        _
      %s2958 = sshll.u32 %s1156, 4
      %2959 = dma.done [#allocation3], %s2958
      %v2960 = vld [vmem:[#allocation2] sm:$0xff]
      %v2961 = vld [vmem:[#allocation2 + $0x8] sm:$0xff]
      %v2962 = vld [vmem:[#allocation2 + $0x10] sm:$0xff]
      %v2963 = vld [vmem:[#allocation2 + $0x18] sm:$0xff]
      %v2964 = vld [vmem:[#allocation2 + $0x20] sm:$0xff]
      %v2965 = vld [vmem:[#allocation2 + $0x28] sm:$0xff]
      %v2966 = vld [vmem:[#allocation2 + $0x30] sm:$0xff]
      %v2967 = vld [vmem:[#allocation2 + $0x38] sm:$0xff]
      %v2968 = vld [vmem:[#allocation2 + $0x40] sm:$0xff]
      %v2969 = vld [vmem:[#allocation2 + $0x48] sm:$0xff]
      %v2970 = vld [vmem:[#allocation2 + $0x50] sm:$0xff]
      %v2971 = vld [vmem:[#allocation2 + $0x58] sm:$0xff]
      %v2972 = vld [vmem:[#allocation2 + $0x60] sm:$0xff]
      %v2973 = vld [vmem:[#allocation2 + $0x68] sm:$0xff]
      %v2974 = vld [vmem:[#allocation2 + $0x70] sm:$0xff]
      %v2975 = vld [vmem:[#allocation2 + $0x78] sm:$0xff]
      %v2976 = vld [vmem:[#allocation2 + $0x80] sm:$0xff]
      %v2977 = vld [vmem:[#allocation2 + $0x88] sm:$0xff]
      %v2978 = vld [vmem:[#allocation2 + $0x90] sm:$0xff]
      %v2979 = vld [vmem:[#allocation2 + $0x98] sm:$0xff]
      %v2980 = vld [vmem:[#allocation2 + $0xa0] sm:$0xff]
      %v2981 = vld [vmem:[#allocation2 + $0xa8] sm:$0xff]
      %v2982 = vld [vmem:[#allocation2 + $0xb0] sm:$0xff]
      %v2983 = vld [vmem:[#allocation2 + $0xb8] sm:$0xff]
      %v2984 = vld [vmem:[#allocation2 + $0xc0] sm:$0xff]
      %v2985 = vld [vmem:[#allocation2 + $0xc8] sm:$0xff]
      %v2986 = vld [vmem:[#allocation2 + $0xd0] sm:$0xff]
      %v2987 = vld [vmem:[#allocation2 + $0xd8] sm:$0xff]
      %v2988 = vld [vmem:[#allocation2 + $0xe0] sm:$0xff]
      %v2989 = vld [vmem:[#allocation2 + $0xe8] sm:$0xff]
      %v2990 = vld [vmem:[#allocation2 + $0xf0] sm:$0xff]
      %v2991 = vld [vmem:[#allocation2 + $0xf8] sm:$0xff]
      %v3024 = vunpack.c.l.b16 %v2960
      %v3025 = vunpack.c.h.b16 %v2960
      %v3026 = vunpack.c.l.b16 %v2961
      %v3027 = vunpack.c.h.b16 %v2961
      %v3028 = vunpack.c.l.b16 %v2962
      %v3029 = vunpack.c.h.b16 %v2962
      %v3030 = vunpack.c.l.b16 %v2963
      %v3031 = vunpack.c.h.b16 %v2963
      %v3032 = vunpack.c.l.b16 %v2964
      %v3033 = vunpack.c.h.b16 %v2964
      %v3034 = vunpack.c.l.b16 %v2965
      %v3035 = vunpack.c.h.b16 %v2965
      %v3036 = vunpack.c.l.b16 %v2966
      %v3037 = vunpack.c.h.b16 %v2966
      %v3038 = vunpack.c.l.b16 %v2967
      %v3039 = vunpack.c.h.b16 %v2967
      %v3040 = vunpack.c.l.b16 %v2968
      %v3041 = vunpack.c.h.b16 %v2968
      %v3042 = vunpack.c.l.b16 %v2969
      %v3043 = vunpack.c.h.b16 %v2969
      %v3044 = vunpack.c.l.b16 %v2970
      %v3045 = vunpack.c.h.b16 %v2970
      %v3046 = vunpack.c.l.b16 %v2971
      %v3047 = vunpack.c.h.b16 %v2971
      %v3048 = vunpack.c.l.b16 %v2972
      %v3049 = vunpack.c.h.b16 %v2972
      %v3050 = vunpack.c.l.b16 %v2973
      %v3051 = vunpack.c.h.b16 %v2973
      %v3052 = vunpack.c.l.b16 %v2974
      %v3053 = vunpack.c.h.b16 %v2974
      %v3054 = vunpack.c.l.b16 %v2975
      %v3055 = vunpack.c.h.b16 %v2975
      %v3056 = vunpack.c.l.b16 %v2976
      %v3057 = vunpack.c.h.b16 %v2976
      %v3058 = vunpack.c.l.b16 %v2977
      %v3059 = vunpack.c.h.b16 %v2977
      %v3060 = vunpack.c.l.b16 %v2978
      %v3061 = vunpack.c.h.b16 %v2978
      %v3062 = vunpack.c.l.b16 %v2979
      %v3063 = vunpack.c.h.b16 %v2979
      %v3064 = vunpack.c.l.b16 %v2980
      %v3065 = vunpack.c.h.b16 %v2980
      %v3066 = vunpack.c.l.b16 %v2981
      %v3067 = vunpack.c.h.b16 %v2981
      %v3068 = vunpack.c.l.b16 %v2982
      %v3069 = vunpack.c.h.b16 %v2982
      %v3070 = vunpack.c.l.b16 %v2983
      %v3071 = vunpack.c.h.b16 %v2983
      %v3072 = vunpack.c.l.b16 %v2984
      %v3073 = vunpack.c.h.b16 %v2984
      %v3074 = vunpack.c.l.b16 %v2985
      %v3075 = vunpack.c.h.b16 %v2985
      %v3076 = vunpack.c.l.b16 %v2986
      %v3077 = vunpack.c.h.b16 %v2986
      %v3078 = vunpack.c.l.b16 %v2987
      %v3079 = vunpack.c.h.b16 %v2987
      %v3080 = vunpack.c.l.b16 %v2988
      %v3081 = vunpack.c.h.b16 %v2988
      %v3082 = vunpack.c.l.b16 %v2989
      %v3083 = vunpack.c.h.b16 %v2989
      %v3084 = vunpack.c.l.b16 %v2990
      %v3085 = vunpack.c.h.b16 %v2990
      %v3086 = vunpack.c.l.b16 %v2991
      %v3087 = vunpack.c.h.b16 %v2991
      %v3088 = vpack.c.b16 %v3026, %v3024
      %v3089 = vpack.c.b16 %v3027, %v3025
      %v3090 = vpack.c.b16 %v3030, %v3028
      %v3091 = vpack.c.b16 %v3031, %v3029
      %v3092 = vpack.c.b16 %v3034, %v3032
      %v3093 = vpack.c.b16 %v3035, %v3033
      %v3094 = vpack.c.b16 %v3038, %v3036
      %v3095 = vpack.c.b16 %v3039, %v3037
      %v3096 = vpack.c.b16 %v3042, %v3040
      %v3097 = vpack.c.b16 %v3043, %v3041
      %v3098 = vpack.c.b16 %v3046, %v3044
      %v3099 = vpack.c.b16 %v3047, %v3045
      %v3100 = vpack.c.b16 %v3050, %v3048
      %v3101 = vpack.c.b16 %v3051, %v3049
      %v3102 = vpack.c.b16 %v3054, %v3052
      %v3103 = vpack.c.b16 %v3055, %v3053
      %v3104 = vpack.c.b16 %v3058, %v3056
      %v3105 = vpack.c.b16 %v3059, %v3057
      %v3106 = vpack.c.b16 %v3062, %v3060
      %v3107 = vpack.c.b16 %v3063, %v3061
      %v3108 = vpack.c.b16 %v3066, %v3064
      %v3109 = vpack.c.b16 %v3067, %v3065
      %v3110 = vpack.c.b16 %v3070, %v3068
      %v3111 = vpack.c.b16 %v3071, %v3069
      %v3112 = vpack.c.b16 %v3074, %v3072
      %v3113 = vpack.c.b16 %v3075, %v3073
      %v3114 = vpack.c.b16 %v3078, %v3076
      %v3115 = vpack.c.b16 %v3079, %v3077
      %v3116 = vpack.c.b16 %v3082, %v3080
      %v3117 = vpack.c.b16 %v3083, %v3081
      %v3118 = vpack.c.b16 %v3086, %v3084
      %v3119 = vpack.c.b16 %v3087, %v3085
      %v3184 = vunpack.c.l.b16 %v2821
      %v3185 = vunpack.c.l.b16 %v2822
      %v3186 = vunpack.c.l.b16 %v2823
      %v3187 = vunpack.c.l.b16 %v2824
      %v3188 = vunpack.c.l.b16 %v2825
      %v3189 = vunpack.c.l.b16 %v2826
      %v3190 = vunpack.c.l.b16 %v2827
      %v3191 = vunpack.c.l.b16 %v2828
      %v3192 = vunpack.c.l.b16 %v2829
      %v3193 = vunpack.c.l.b16 %v2830
      %v3194 = vunpack.c.l.b16 %v2831
      %v3195 = vunpack.c.l.b16 %v2832
      %v3196 = vunpack.c.l.b16 %v2833
      %v3197 = vunpack.c.l.b16 %v2834
      %v3198 = vunpack.c.l.b16 %v2835
      %v3199 = vunpack.c.l.b16 %v2836
      %v3200 = vunpack.c.l.b16 %v2837
      %v3201 = vunpack.c.l.b16 %v2838
      %v3202 = vunpack.c.l.b16 %v2839
      %v3203 = vunpack.c.l.b16 %v2840
      %v3204 = vunpack.c.l.b16 %v2841
      %v3205 = vunpack.c.l.b16 %v2842
      %v3206 = vunpack.c.l.b16 %v2843
      %v3207 = vunpack.c.l.b16 %v2844
      %v3208 = vunpack.c.l.b16 %v2845
      %v3209 = vunpack.c.l.b16 %v2846
      %v3210 = vunpack.c.l.b16 %v2847
      %v3211 = vunpack.c.l.b16 %v2848
      %v3212 = vunpack.c.l.b16 %v2849
      %v3213 = vunpack.c.l.b16 %v2850
      %v3214 = vunpack.c.l.b16 %v2851
      %v3215 = vunpack.c.l.b16 %v2852
      %v3216 = vpack.c.b16 %v3185, %v3184
      %v3217 = vpack.c.b16 %v3187, %v3186
      %v3218 = vpack.c.b16 %v3189, %v3188
      %v3219 = vpack.c.b16 %v3191, %v3190
      %v3220 = vpack.c.b16 %v3193, %v3192
      %v3221 = vpack.c.b16 %v3195, %v3194
      %v3222 = vpack.c.b16 %v3197, %v3196
      %v3223 = vpack.c.b16 %v3199, %v3198
      %v3224 = vpack.c.b16 %v3201, %v3200
      %v3225 = vpack.c.b16 %v3203, %v3202
      %v3226 = vpack.c.b16 %v3205, %v3204
      %v3227 = vpack.c.b16 %v3207, %v3206
      %v3228 = vpack.c.b16 %v3209, %v3208
      %v3229 = vpack.c.b16 %v3211, %v3210
      %v3230 = vpack.c.b16 %v3213, %v3212
      %v3231 = vpack.c.b16 %v3215, %v3214
      %3248 = vmatprep.subr.bf16.mxu0 0
      %3249 = vmatpush1.bf16.msra.mxu0 %v3223
      %3250 = vmatprep.subr.bf16.mxu0 0
      %3251 = vmatpush1.bf16.msra.mxu0 %v3222
      %3252 = vmatprep.subr.bf16.mxu0 0
      %3253 = vmatpush1.bf16.msra.mxu0 %v3221
      %3254 = vmatprep.subr.bf16.mxu0 0
      %3255 = vmatpush1.bf16.msra.mxu0 %v3220
      %3256 = vmatprep.subr.bf16.mxu0 0
      %3257 = vmatpush1.bf16.msra.mxu0 %v3219
      %3258 = vmatprep.subr.bf16.mxu0 0
      %3259 = vmatpush1.bf16.msra.mxu0 %v3218
      %3260 = vmatprep.subr.bf16.mxu0 0
      %3261 = vmatpush1.bf16.msra.mxu0 %v3217
      %3262 = vmatprep.subr.bf16.mxu0 0
      %3263 = vmatpush1.bf16.msra.mxu0 %v3216
      %3264 = vmatprep.subr.bf16.mxu0 0
      %3265 = vmatpush2.bf16.msra.mxu0 %v3231
      %3266 = vmatprep.subr.bf16.mxu0 0
      %3267 = vmatpush2.bf16.msra.mxu0 %v3230
      %3268 = vmatprep.subr.bf16.mxu0 0
      %3269 = vmatpush2.bf16.msra.mxu0 %v3229
      %3270 = vmatprep.subr.bf16.mxu0 0
      %3271 = vmatpush2.bf16.msra.mxu0 %v3228
      %3272 = vmatprep.subr.bf16.mxu0 0
      %3273 = vmatpush2.bf16.msra.mxu0 %v3227
      %3274 = vmatprep.subr.bf16.mxu0 0
      %3275 = vmatpush2.bf16.msra.mxu0 %v3226
      %3276 = vmatprep.subr.bf16.mxu0 0
      %3277 = vmatpush2.bf16.msra.mxu0 %v3225
      %3278 = vmatprep.subr.bf16.mxu0 0
      %3279 = vmatpush2.bf16.msra.mxu0 %v3224
      %3280 = vmatprep.mubr.bf16.mxu0 %v3089
      %3281 = vmatmul.mubr.bf16.gmra.mxu0 %v3088
      %v3282 = vpop.f32.mrf.mxu0
      %v3283 = vadd.f32 %v2819, %v3282
      %v3284 = vpop.f32.mrf.mxu0
      %v3285 = vpop.f32.mrf.mxu0
      %v3286 = vadd.f32 %v2819, %v3285
      %v3287 = vpop.f32.mrf.mxu0
      %3288 = vmatprep.mubr.bf16.mxu0 %v3091
      %3289 = vmatmul.mubr.bf16.gmra.mxu0 %v3090
      %v3290 = vpop.f32.mrf.mxu0
      %v3291 = vadd.f32 %v2819, %v3290
      %v3292 = vpop.f32.mrf.mxu0
      %v3293 = vpop.f32.mrf.mxu0
      %v3294 = vadd.f32 %v2819, %v3293
      %v3295 = vpop.f32.mrf.mxu0
      %3296 = vmatprep.mubr.bf16.mxu0 %v3093
      %3297 = vmatmul.mubr.bf16.gmra.mxu0 %v3092
      %v3298 = vpop.f32.mrf.mxu0
      %v3299 = vadd.f32 %v2819, %v3298
      %v3300 = vpop.f32.mrf.mxu0
      %v3301 = vpop.f32.mrf.mxu0
      %v3302 = vadd.f32 %v2819, %v3301
      %v3303 = vpop.f32.mrf.mxu0
      %3304 = vmatprep.mubr.bf16.mxu0 %v3095
      %3305 = vmatmul.mubr.bf16.gmra.mxu0 %v3094
      %v3306 = vpop.f32.mrf.mxu0
      %v3307 = vadd.f32 %v2819, %v3306
      %v3308 = vpop.f32.mrf.mxu0
      %v3309 = vpop.f32.mrf.mxu0
      %v3310 = vadd.f32 %v2819, %v3309
      %v3311 = vpop.f32.mrf.mxu0
      %3312 = vmatprep.mubr.bf16.mxu0 %v3097
      %3313 = vmatmul.mubr.bf16.gmra.mxu0 %v3096
      %v3314 = vpop.f32.mrf.mxu0
      %v3315 = vadd.f32 %v2819, %v3314
      %v3316 = vpop.f32.mrf.mxu0
      %v3317 = vpop.f32.mrf.mxu0
      %v3318 = vadd.f32 %v2819, %v3317
      %v3319 = vpop.f32.mrf.mxu0
      %3320 = vmatprep.mubr.bf16.mxu0 %v3099
      %3321 = vmatmul.mubr.bf16.gmra.mxu0 %v3098
      %v3322 = vpop.f32.mrf.mxu0
      %v3323 = vadd.f32 %v2819, %v3322
      %v3324 = vpop.f32.mrf.mxu0
      %v3325 = vpop.f32.mrf.mxu0
      %v3326 = vadd.f32 %v2819, %v3325
      %v3327 = vpop.f32.mrf.mxu0
      %3328 = vmatprep.mubr.bf16.mxu0 %v3101
      %3329 = vmatmul.mubr.bf16.gmra.mxu0 %v3100
      %v3330 = vpop.f32.mrf.mxu0
      %v3331 = vadd.f32 %v2819, %v3330
      %v3332 = vpop.f32.mrf.mxu0
      %v3333 = vpop.f32.mrf.mxu0
      %v3334 = vadd.f32 %v2819, %v3333
      %v3335 = vpop.f32.mrf.mxu0
      %3336 = vmatprep.mubr.bf16.mxu0 %v3103
      %3337 = vmatmul.mubr.bf16.gmra.mxu0 %v3102
      %v3338 = vpop.f32.mrf.mxu0
      %v3339 = vadd.f32 %v2819, %v3338
      %v3340 = vpop.f32.mrf.mxu0
      %v3341 = vpop.f32.mrf.mxu0
      %v3342 = vadd.f32 %v2819, %v3341
      %v3343 = vpop.f32.mrf.mxu0
      %3344 = vmatprep.mubr.bf16.mxu0 %v3105
      %3345 = vmatmul.mubr.bf16.gmra.mxu0 %v3104
      %v3346 = vpop.f32.mrf.mxu0
      %v3347 = vadd.f32 %v2819, %v3346
      %v3348 = vpop.f32.mrf.mxu0
      %v3349 = vpop.f32.mrf.mxu0
      %v3350 = vadd.f32 %v2819, %v3349
      %v3351 = vpop.f32.mrf.mxu0
      %3352 = vmatprep.mubr.bf16.mxu0 %v3107
      %3353 = vmatmul.mubr.bf16.gmra.mxu0 %v3106
      %v3354 = vpop.f32.mrf.mxu0
      %v3355 = vadd.f32 %v2819, %v3354
      %v3356 = vpop.f32.mrf.mxu0
      %v3357 = vpop.f32.mrf.mxu0
      %v3358 = vadd.f32 %v2819, %v3357
      %v3359 = vpop.f32.mrf.mxu0
      %3360 = vmatprep.mubr.bf16.mxu0 %v3109
      %3361 = vmatmul.mubr.bf16.gmra.mxu0 %v3108
      %v3362 = vpop.f32.mrf.mxu0
      %v3363 = vadd.f32 %v2819, %v3362
      %v3364 = vpop.f32.mrf.mxu0
      %v3365 = vpop.f32.mrf.mxu0
      %v3366 = vadd.f32 %v2819, %v3365
      %v3367 = vpop.f32.mrf.mxu0
      %3368 = vmatprep.mubr.bf16.mxu0 %v3111
      %3369 = vmatmul.mubr.bf16.gmra.mxu0 %v3110
      %v3370 = vpop.f32.mrf.mxu0
      %v3371 = vadd.f32 %v2819, %v3370
      %v3372 = vpop.f32.mrf.mxu0
      %v3373 = vpop.f32.mrf.mxu0
      %v3374 = vadd.f32 %v2819, %v3373
      %v3375 = vpop.f32.mrf.mxu0
      %3376 = vmatprep.mubr.bf16.mxu0 %v3113
      %3377 = vmatmul.mubr.bf16.gmra.mxu0 %v3112
      %v3378 = vpop.f32.mrf.mxu0
      %v3379 = vadd.f32 %v2819, %v3378
      %v3380 = vpop.f32.mrf.mxu0
      %v3381 = vpop.f32.mrf.mxu0
      %v3382 = vadd.f32 %v2819, %v3381
      %v3383 = vpop.f32.mrf.mxu0
      %3384 = vmatprep.mubr.bf16.mxu0 %v3115
      %3385 = vmatmul.mubr.bf16.gmra.mxu0 %v3114
      %v3386 = vpop.f32.mrf.mxu0
      %v3387 = vadd.f32 %v2819, %v3386
      %v3388 = vpop.f32.mrf.mxu0
      %v3389 = vpop.f32.mrf.mxu0
      %v3390 = vadd.f32 %v2819, %v3389
      %v3391 = vpop.f32.mrf.mxu0
      %3392 = vmatprep.mubr.bf16.mxu0 %v3117
      %3393 = vmatmul.mubr.bf16.gmra.mxu0 %v3116
      %v3394 = vpop.f32.mrf.mxu0
      %v3395 = vadd.f32 %v2819, %v3394
      %v3396 = vpop.f32.mrf.mxu0
      %v3397 = vpop.f32.mrf.mxu0
      %v3398 = vadd.f32 %v2819, %v3397
      %v3399 = vpop.f32.mrf.mxu0
      %3400 = vmatprep.mubr.bf16.mxu0 %v3119
      %3401 = vmatmul.mubr.bf16.gmra.mxu0 %v3118
      %v3402 = vpop.f32.mrf.mxu0
      %v3403 = vadd.f32 %v2819, %v3402
      %v3404 = vpop.f32.mrf.mxu0
      %v3405 = vpop.f32.mrf.mxu0
      %v3406 = vadd.f32 %v2819, %v3405
      %v3407 = vpop.f32.mrf.mxu0
      %3408 = vdwg.mxu0
      %3409 = vst.msk [vmem:[#allocation6] sm:$0xff] %vm635, %v3283
      %3410 = vst.msk [vmem:[#allocation6 + $0x8] sm:$0xff] %vm635, %v3286
      %3411 = vst.msk [vmem:[#allocation6 + $0x10] sm:$0xff] %vm635, %v3291
      %3412 = vst.msk [vmem:[#allocation6 + $0x18] sm:$0xff] %vm635, %v3294
      %3413 = vst.msk [vmem:[#allocation6 + $0x20] sm:$0xff] %vm635, %v3299
      %3414 = vst.msk [vmem:[#allocation6 + $0x28] sm:$0xff] %vm635, %v3302
      %3415 = vst.msk [vmem:[#allocation6 + $0x30] sm:$0xff] %vm635, %v3307
      %3416 = vst.msk [vmem:[#allocation6 + $0x38] sm:$0xff] %vm635, %v3310
      %3417 = vst.msk [vmem:[#allocation6 + $0x40] sm:$0xff] %vm635, %v3315
      %3418 = vst.msk [vmem:[#allocation6 + $0x48] sm:$0xff] %vm635, %v3318
      %3419 = vst.msk [vmem:[#allocation6 + $0x50] sm:$0xff] %vm635, %v3323
      %3420 = vst.msk [vmem:[#allocation6 + $0x58] sm:$0xff] %vm635, %v3326
      %3421 = vst.msk [vmem:[#allocation6 + $0x60] sm:$0xff] %vm635, %v3331
      %3422 = vst.msk [vmem:[#allocation6 + $0x68] sm:$0xff] %vm635, %v3334
      %3423 = vst.msk [vmem:[#allocation6 + $0x70] sm:$0xff] %vm635, %v3339
      %3424 = vst.msk [vmem:[#allocation6 + $0x78] sm:$0xff] %vm635, %v3342
      %3425 = vst.msk [vmem:[#allocation6 + $0x80] sm:$0xff] %vm635, %v3347
      %3426 = vst.msk [vmem:[#allocation6 + $0x88] sm:$0xff] %vm635, %v3350
      %3427 = vst.msk [vmem:[#allocation6 + $0x90] sm:$0xff] %vm635, %v3355
      %3428 = vst.msk [vmem:[#allocation6 + $0x98] sm:$0xff] %vm635, %v3358
      %3429 = vst.msk [vmem:[#allocation6 + $0xa0] sm:$0xff] %vm635, %v3363
      %3430 = vst.msk [vmem:[#allocation6 + $0xa8] sm:$0xff] %vm635, %v3366
      %3431 = vst.msk [vmem:[#allocation6 + $0xb0] sm:$0xff] %vm635, %v3371
      %3432 = vst.msk [vmem:[#allocation6 + $0xb8] sm:$0xff] %vm635, %v3374
      %3433 = vst.msk [vmem:[#allocation6 + $0xc0] sm:$0xff] %vm635, %v3379
      %3434 = vst.msk [vmem:[#allocation6 + $0xc8] sm:$0xff] %vm635, %v3382
      %3435 = vst.msk [vmem:[#allocation6 + $0xd0] sm:$0xff] %vm635, %v3387
      %3436 = vst.msk [vmem:[#allocation6 + $0xd8] sm:$0xff] %vm635, %v3390
      %3437 = vst.msk [vmem:[#allocation6 + $0xe0] sm:$0xff] %vm635, %v3395
      %3438 = vst.msk [vmem:[#allocation6 + $0xe8] sm:$0xff] %vm635, %v3398
      %3439 = vst.msk [vmem:[#allocation6 + $0xf0] sm:$0xff] %vm635, %v3403
      %3440 = vst.msk [vmem:[#allocation6 + $0xf8] sm:$0xff] %vm635, %v3406
      %v3441 = vsel %vm635, %v3283, 0.0
      %v3442 = vsel %vm635, %v3286, 0.0
      %v3443 = vadd.f32 %v3441, %v3442
      %v3444 = vsel %vm635, %v3291, 0.0
      %v3445 = vadd.f32 %v3443, %v3444
      %v3446 = vsel %vm635, %v3294, 0.0
      %v3447 = vadd.f32 %v3445, %v3446
      %v3448 = vsel %vm635, %v3299, 0.0
      %v3449 = vadd.f32 %v3447, %v3448
      %v3450 = vsel %vm635, %v3302, 0.0
      %v3451 = vadd.f32 %v3449, %v3450
      %v3452 = vsel %vm635, %v3307, 0.0
      %v3453 = vadd.f32 %v3451, %v3452
      %v3454 = vsel %vm635, %v3310, 0.0
      %v3455 = vadd.f32 %v3453, %v3454
      %v3456 = vsel %vm635, %v3315, 0.0
      %v3457 = vadd.f32 %v3455, %v3456
      %v3458 = vsel %vm635, %v3318, 0.0
      %v3459 = vadd.f32 %v3457, %v3458
      %v3460 = vsel %vm635, %v3323, 0.0
      %v3461 = vadd.f32 %v3459, %v3460
      %v3462 = vsel %vm635, %v3326, 0.0
      %v3463 = vadd.f32 %v3461, %v3462
      %v3464 = vsel %vm635, %v3331, 0.0
      %v3465 = vadd.f32 %v3463, %v3464
      %v3466 = vsel %vm635, %v3334, 0.0
      %v3467 = vadd.f32 %v3465, %v3466
      %v3468 = vsel %vm635, %v3339, 0.0
      %v3469 = vadd.f32 %v3467, %v3468
      %v3470 = vsel %vm635, %v3342, 0.0
      %v3471 = vadd.f32 %v3469, %v3470
      %v3472 = vsel %vm635, %v3347, 0.0
      %v3473 = vadd.f32 %v3471, %v3472
      %v3474 = vsel %vm635, %v3350, 0.0
      %v3475 = vadd.f32 %v3473, %v3474
      %v3476 = vsel %vm635, %v3355, 0.0
      %v3477 = vadd.f32 %v3475, %v3476
      %v3478 = vsel %vm635, %v3358, 0.0
      %v3479 = vadd.f32 %v3477, %v3478
      %v3480 = vsel %vm635, %v3363, 0.0
      %v3481 = vadd.f32 %v3479, %v3480
      %v3482 = vsel %vm635, %v3366, 0.0
      %v3483 = vadd.f32 %v3481, %v3482
      %v3484 = vsel %vm635, %v3371, 0.0
      %v3485 = vadd.f32 %v3483, %v3484
      %v3486 = vsel %vm635, %v3374, 0.0
      %v3487 = vadd.f32 %v3485, %v3486
      %v3488 = vsel %vm635, %v3379, 0.0
      %v3489 = vadd.f32 %v3487, %v3488
      %v3490 = vsel %vm635, %v3382, 0.0
      %v3491 = vadd.f32 %v3489, %v3490
      %v3492 = vsel %vm635, %v3387, 0.0
      %v3493 = vadd.f32 %v3491, %v3492
      %v3494 = vsel %vm635, %v3390, 0.0
      %v3495 = vadd.f32 %v3493, %v3494
      %v3496 = vsel %vm635, %v3395, 0.0
      %v3497 = vadd.f32 %v3495, %v3496
      %v3498 = vsel %vm635, %v3398, 0.0
      %v3499 = vadd.f32 %v3497, %v3498
      %v3500 = vsel %vm635, %v3403, 0.0
      %v3501 = vadd.f32 %v3499, %v3500
      %v3502 = vsel %vm635, %v3406, 0.0
      %v3503 = vadd.f32 %v3501, %v3502
      %v3504 = vrot.slane %v3503, 4
      %v3505 = vadd.f32 %v3503, %v3504
      %v3506 = vrot.slane %v3505, 2
      %v3507 = vadd.f32 %v3505, %v3506
      %v3508 = vrot.slane %v3507, 1
      %v3509 = vadd.f32 %v3507, %v3508
      %v3510 = vadd.f32 %v3509, 0.0
      %v3511 = vmul.f32 %v3283, %v3283
      %v3512 = vmul.f32 %v3286, %v3286
      %v3513 = vmul.f32 %v3291, %v3291
      %v3514 = vmul.f32 %v3294, %v3294
      %v3515 = vmul.f32 %v3299, %v3299
      %v3516 = vmul.f32 %v3302, %v3302
      %v3517 = vmul.f32 %v3307, %v3307
      %v3518 = vmul.f32 %v3310, %v3310
      %v3519 = vmul.f32 %v3315, %v3315
      %v3520 = vmul.f32 %v3318, %v3318
      %v3521 = vmul.f32 %v3323, %v3323
      %v3522 = vmul.f32 %v3326, %v3326
      %v3523 = vmul.f32 %v3331, %v3331
      %v3524 = vmul.f32 %v3334, %v3334
      %v3525 = vmul.f32 %v3339, %v3339
      %v3526 = vmul.f32 %v3342, %v3342
      %v3527 = vmul.f32 %v3347, %v3347
      %v3528 = vmul.f32 %v3350, %v3350
      %v3529 = vmul.f32 %v3355, %v3355
      %v3530 = vmul.f32 %v3358, %v3358
      %v3531 = vmul.f32 %v3363, %v3363
      %v3532 = vmul.f32 %v3366, %v3366
      %v3533 = vmul.f32 %v3371, %v3371
      %v3534 = vmul.f32 %v3374, %v3374
      %v3535 = vmul.f32 %v3379, %v3379
      %v3536 = vmul.f32 %v3382, %v3382
      %v3537 = vmul.f32 %v3387, %v3387
      %v3538 = vmul.f32 %v3390, %v3390
      %v3539 = vmul.f32 %v3395, %v3395
      %v3540 = vmul.f32 %v3398, %v3398
      %v3541 = vmul.f32 %v3403, %v3403
      %v3542 = vmul.f32 %v3406, %v3406
      %v3543 = vsel %vm635, %v3511, 0.0
      %v3544 = vsel %vm635, %v3512, 0.0
      %v3545 = vadd.f32 %v3543, %v3544
      %v3546 = vsel %vm635, %v3513, 0.0
      %v3547 = vadd.f32 %v3545, %v3546
      %v3548 = vsel %vm635, %v3514, 0.0
      %v3549 = vadd.f32 %v3547, %v3548
      %v3550 = vsel %vm635, %v3515, 0.0
      %v3551 = vadd.f32 %v3549, %v3550
      %v3552 = vsel %vm635, %v3516, 0.0
      %v3553 = vadd.f32 %v3551, %v3552
      %v3554 = vsel %vm635, %v3517, 0.0
      %v3555 = vadd.f32 %v3553, %v3554
      %v3556 = vsel %vm635, %v3518, 0.0
      %v3557 = vadd.f32 %v3555, %v3556
      %v3558 = vsel %vm635, %v3519, 0.0
      %v3559 = vadd.f32 %v3557, %v3558
      %v3560 = vsel %vm635, %v3520, 0.0
      %v3561 = vadd.f32 %v3559, %v3560
      %v3562 = vsel %vm635, %v3521, 0.0
      %v3563 = vadd.f32 %v3561, %v3562
      %v3564 = vsel %vm635, %v3522, 0.0
      %v3565 = vadd.f32 %v3563, %v3564
      %v3566 = vsel %vm635, %v3523, 0.0
      %v3567 = vadd.f32 %v3565, %v3566
      %v3568 = vsel %vm635, %v3524, 0.0
      %v3569 = vadd.f32 %v3567, %v3568
      %v3570 = vsel %vm635, %v3525, 0.0
      %v3571 = vadd.f32 %v3569, %v3570
      %v3572 = vsel %vm635, %v3526, 0.0
      %v3573 = vadd.f32 %v3571, %v3572
      %v3574 = vsel %vm635, %v3527, 0.0
      %v3575 = vadd.f32 %v3573, %v3574
      %v3576 = vsel %vm635, %v3528, 0.0
      %v3577 = vadd.f32 %v3575, %v3576
      %v3578 = vsel %vm635, %v3529, 0.0
      %v3579 = vadd.f32 %v3577, %v3578
      %v3580 = vsel %vm635, %v3530, 0.0
      %v3581 = vadd.f32 %v3579, %v3580
      %v3582 = vsel %vm635, %v3531, 0.0
      %v3583 = vadd.f32 %v3581, %v3582
      %v3584 = vsel %vm635, %v3532, 0.0
      %v3585 = vadd.f32 %v3583, %v3584
      %v3586 = vsel %vm635, %v3533, 0.0
      %v3587 = vadd.f32 %v3585, %v3586
      %v3588 = vsel %vm635, %v3534, 0.0
      %v3589 = vadd.f32 %v3587, %v3588
      %v3590 = vsel %vm635, %v3535, 0.0
      %v3591 = vadd.f32 %v3589, %v3590
      %v3592 = vsel %vm635, %v3536, 0.0
      %v3593 = vadd.f32 %v3591, %v3592
      %v3594 = vsel %vm635, %v3537, 0.0
      %v3595 = vadd.f32 %v3593, %v3594
      %v3596 = vsel %vm635, %v3538, 0.0
      %v3597 = vadd.f32 %v3595, %v3596
      %v3598 = vsel %vm635, %v3539, 0.0
      %v3599 = vadd.f32 %v3597, %v3598
      %v3600 = vsel %vm635, %v3540, 0.0
      %v3601 = vadd.f32 %v3599, %v3600
      %v3602 = vsel %vm635, %v3541, 0.0
      %v3603 = vadd.f32 %v3601, %v3602
      %v3604 = vsel %vm635, %v3542, 0.0
      %v3605 = vadd.f32 %v3603, %v3604
      %v3606 = vrot.slane %v3605, 4
      %v3607 = vadd.f32 %v3605, %v3606
      %v3608 = vrot.slane %v3607, 2
      %v3609 = vadd.f32 %v3607, %v3608
      %v3610 = vrot.slane %v3609, 1
      %v3611 = vadd.f32 %v3609, %v3610
      %v3612 = vadd.f32 %v3611, 0.0
      %v3613 = vmul.f32 %v3510, 0.00390625
      %v3614 = vmul.f32 %v3612, 0.00390625
      %v3615 = vmul.f32 %v3613, %v3613
      %v3616 = vsub.f32 %v3614, %v3615
      %v3617 = vmax.f32 %v3616, 0.0
      %v3618 = vsel %vm1817, %v3617, 0.0
      %v3619 = vsel %vm1819, %v3618, 0.0
      %3620 = vadd.xlane.f32.xlu0 %v3619
      %v3621 = vpop.xlane.xlu0 %3620
      %v3622 = vrot.slane %v3621, 4
      %v3623 = vadd.f32 %v3621, %v3622
      %v3624 = vrot.slane %v3623, 2
      %v3625 = vadd.f32 %v3623, %v3624
      %v3626 = vrot.slane %v3625, 1
      %v3627 = vadd.f32 %v3625, %v3626
      %s3628 = vtos %v3627
      %v3629 = vsel %vm1819, %v3617, 0.0
      %3630 = vadd.xlane.f32.xlu0 %v3629
      %v3631 = vpop.xlane.xlu0 %3630
      %v3632 = vrot.slane %v3631, 4
      %v3633 = vadd.f32 %v3631, %v3632
      %v3634 = vrot.slane %v3633, 2
      %v3635 = vadd.f32 %v3633, %v3634
      %v3636 = vrot.slane %v3635, 1
      %v3637 = vadd.f32 %v3635, %v3636
      %s3638 = vtos %v3637
      %s3639 = ssub.f32 %s3638, %s3628
      %s3640 = sadd.f32 %s3628, 1e-06
      %v3641 = vstv %s3640
      %v3642 = vrsqrt.pop %v3641
      %s3643 = vtos %v3642
      %s3644 = sadd.f32 %s3639, 1e-06
      %v3645 = vstv %s3644
      %v3646 = vrsqrt.pop %v3645
      %s3647 = vtos %v3646
      %v3648 = vstv %s3643
      %v3649 = vstv %s3647
      %v3650 = vsel %vm1817, %v3648, %v3649
      %v3651 = vld [vmem:[#allocation6] sm:$0xff]
      %v3652 = vld [vmem:[#allocation6 + $0x8] sm:$0xff]
      %v3653 = vld [vmem:[#allocation6 + $0x10] sm:$0xff]
      %v3654 = vld [vmem:[#allocation6 + $0x18] sm:$0xff]
      %v3655 = vld [vmem:[#allocation6 + $0x20] sm:$0xff]
      %v3656 = vld [vmem:[#allocation6 + $0x28] sm:$0xff]
      %v3657 = vld [vmem:[#allocation6 + $0x30] sm:$0xff]
      %v3658 = vld [vmem:[#allocation6 + $0x38] sm:$0xff]
      %v3659 = vld [vmem:[#allocation6 + $0x40] sm:$0xff]
      %v3660 = vld [vmem:[#allocation6 + $0x48] sm:$0xff]
      %v3661 = vld [vmem:[#allocation6 + $0x50] sm:$0xff]
      %v3662 = vld [vmem:[#allocation6 + $0x58] sm:$0xff]
      %v3663 = vld [vmem:[#allocation6 + $0x60] sm:$0xff]
      %v3664 = vld [vmem:[#allocation6 + $0x68] sm:$0xff]
      %v3665 = vld [vmem:[#allocation6 + $0x70] sm:$0xff]
      %v3666 = vld [vmem:[#allocation6 + $0x78] sm:$0xff]
      %v3667 = vld [vmem:[#allocation6 + $0x80] sm:$0xff]
      %v3668 = vld [vmem:[#allocation6 + $0x88] sm:$0xff]
      %v3669 = vld [vmem:[#allocation6 + $0x90] sm:$0xff]
      %v3670 = vld [vmem:[#allocation6 + $0x98] sm:$0xff]
      %v3671 = vld [vmem:[#allocation6 + $0xa0] sm:$0xff]
      %v3672 = vld [vmem:[#allocation6 + $0xa8] sm:$0xff]
      %v3673 = vld [vmem:[#allocation6 + $0xb0] sm:$0xff]
      %v3674 = vld [vmem:[#allocation6 + $0xb8] sm:$0xff]
      %v3675 = vld [vmem:[#allocation6 + $0xc0] sm:$0xff]
      %v3676 = vld [vmem:[#allocation6 + $0xc8] sm:$0xff]
      %v3677 = vld [vmem:[#allocation6 + $0xd0] sm:$0xff]
      %v3678 = vld [vmem:[#allocation6 + $0xd8] sm:$0xff]
      %v3679 = vld [vmem:[#allocation6 + $0xe0] sm:$0xff]
      %v3680 = vld [vmem:[#allocation6 + $0xe8] sm:$0xff]
      %v3681 = vld [vmem:[#allocation6 + $0xf0] sm:$0xff]
      %v3682 = vld [vmem:[#allocation6 + $0xf8] sm:$0xff]
      %v3683 = vsub.f32 %v3651, %v3613
      %v3684 = vsub.f32 %v3652, %v3613
      %v3685 = vsub.f32 %v3653, %v3613
      %v3686 = vsub.f32 %v3654, %v3613
      %v3687 = vsub.f32 %v3655, %v3613
      %v3688 = vsub.f32 %v3656, %v3613
      %v3689 = vsub.f32 %v3657, %v3613
      %v3690 = vsub.f32 %v3658, %v3613
      %v3691 = vsub.f32 %v3659, %v3613
      %v3692 = vsub.f32 %v3660, %v3613
      %v3693 = vsub.f32 %v3661, %v3613
      %v3694 = vsub.f32 %v3662, %v3613
      %v3695 = vsub.f32 %v3663, %v3613
      %v3696 = vsub.f32 %v3664, %v3613
      %v3697 = vsub.f32 %v3665, %v3613
      %v3698 = vsub.f32 %v3666, %v3613
      %v3699 = vsub.f32 %v3667, %v3613
      %v3700 = vsub.f32 %v3668, %v3613
      %v3701 = vsub.f32 %v3669, %v3613
      %v3702 = vsub.f32 %v3670, %v3613
      %v3703 = vsub.f32 %v3671, %v3613
      %v3704 = vsub.f32 %v3672, %v3613
      %v3705 = vsub.f32 %v3673, %v3613
      %v3706 = vsub.f32 %v3674, %v3613
      %v3707 = vsub.f32 %v3675, %v3613
      %v3708 = vsub.f32 %v3676, %v3613
      %v3709 = vsub.f32 %v3677, %v3613
      %v3710 = vsub.f32 %v3678, %v3613
      %v3711 = vsub.f32 %v3679, %v3613
      %v3712 = vsub.f32 %v3680, %v3613
      %v3713 = vsub.f32 %v3681, %v3613
      %v3714 = vsub.f32 %v3682, %v3613
      %v3715 = vmul.f32 %v3683, %v3650
      %v3716 = vmul.f32 %v3684, %v3650
      %v3717 = vmul.f32 %v3685, %v3650
      %v3718 = vmul.f32 %v3686, %v3650
      %v3719 = vmul.f32 %v3687, %v3650
      %v3720 = vmul.f32 %v3688, %v3650
      %v3721 = vmul.f32 %v3689, %v3650
      %v3722 = vmul.f32 %v3690, %v3650
      %v3723 = vmul.f32 %v3691, %v3650
      %v3724 = vmul.f32 %v3692, %v3650
      %v3725 = vmul.f32 %v3693, %v3650
      %v3726 = vmul.f32 %v3694, %v3650
      %v3727 = vmul.f32 %v3695, %v3650
      %v3728 = vmul.f32 %v3696, %v3650
      %v3729 = vmul.f32 %v3697, %v3650
      %v3730 = vmul.f32 %v3698, %v3650
      %v3731 = vmul.f32 %v3699, %v3650
      %v3732 = vmul.f32 %v3700, %v3650
      %v3733 = vmul.f32 %v3701, %v3650
      %v3734 = vmul.f32 %v3702, %v3650
      %v3735 = vmul.f32 %v3703, %v3650
      %v3736 = vmul.f32 %v3704, %v3650
      %v3737 = vmul.f32 %v3705, %v3650
      %v3738 = vmul.f32 %v3706, %v3650
      %v3739 = vmul.f32 %v3707, %v3650
      %v3740 = vmul.f32 %v3708, %v3650
      %v3741 = vmul.f32 %v3709, %v3650
      %v3742 = vmul.f32 %v3710, %v3650
      %v3743 = vmul.f32 %v3711, %v3650
      %v3744 = vmul.f32 %v3712, %v3650
      %v3745 = vmul.f32 %v3713, %v3650
      %v3746 = vmul.f32 %v3714, %v3650
      %v3747 = vtanh.pop %v3715
      %v3748 = vtanh.pop %v3716
      %v3749 = vtanh.pop %v3717
      %v3750 = vtanh.pop %v3718
      %v3751 = vtanh.pop %v3719
      %v3752 = vtanh.pop %v3720
      %v3753 = vtanh.pop %v3721
      %v3754 = vtanh.pop %v3722
      %v3755 = vtanh.pop %v3723
      %v3756 = vtanh.pop %v3724
      %v3757 = vtanh.pop %v3725
      %v3758 = vtanh.pop %v3726
      %v3759 = vtanh.pop %v3727
      %v3760 = vtanh.pop %v3728
      %v3761 = vtanh.pop %v3729
      %v3762 = vtanh.pop %v3730
      %v3763 = vtanh.pop %v3731
      %v3764 = vtanh.pop %v3732
      %v3765 = vtanh.pop %v3733
      %v3766 = vtanh.pop %v3734
      %v3767 = vtanh.pop %v3735
      %v3768 = vtanh.pop %v3736
      %v3769 = vtanh.pop %v3737
      %v3770 = vtanh.pop %v3738
      %v3771 = vtanh.pop %v3739
      %v3772 = vtanh.pop %v3740
      %v3773 = vtanh.pop %v3741
      %v3774 = vtanh.pop %v3742
      %v3775 = vtanh.pop %v3743
      %v3776 = vtanh.pop %v3744
      %v3777 = vtanh.pop %v3745
      %v3778 = vtanh.pop %v3746
      %v3779 = vpack.c.bf16 %v3748, %v3747
      %v3780 = vpack.c.bf16 %v3750, %v3749
      %v3781 = vpack.c.bf16 %v3752, %v3751
      %v3782 = vpack.c.bf16 %v3754, %v3753
      %v3783 = vpack.c.bf16 %v3756, %v3755
      %v3784 = vpack.c.bf16 %v3758, %v3757
      %v3785 = vpack.c.bf16 %v3760, %v3759
      %v3786 = vpack.c.bf16 %v3762, %v3761
      %v3787 = vpack.c.bf16 %v3764, %v3763
      %v3788 = vpack.c.bf16 %v3766, %v3765
      %v3789 = vpack.c.bf16 %v3768, %v3767
      %v3790 = vpack.c.bf16 %v3770, %v3769
      %v3791 = vpack.c.bf16 %v3772, %v3771
      %v3792 = vpack.c.bf16 %v3774, %v3773
      %v3793 = vpack.c.bf16 %v3776, %v3775
      %v3794 = vpack.c.bf16 %v3778, %v3777
      %v3811 = vunpack.c.l.b16 %v3779
      %v3812 = vunpack.c.h.b16 %v3779
      %v3813 = vunpack.c.l.b16 %v3780
      %v3814 = vunpack.c.h.b16 %v3780
      %v3815 = vunpack.c.l.b16 %v3781
      %v3816 = vunpack.c.h.b16 %v3781
      %v3817 = vunpack.c.l.b16 %v3782
      %v3818 = vunpack.c.h.b16 %v3782
      %v3819 = vunpack.c.l.b16 %v3783
      %v3820 = vunpack.c.h.b16 %v3783
      %v3821 = vunpack.c.l.b16 %v3784
      %v3822 = vunpack.c.h.b16 %v3784
      %v3823 = vunpack.c.l.b16 %v3785
      %v3824 = vunpack.c.h.b16 %v3785
      %v3825 = vunpack.c.l.b16 %v3786
      %v3826 = vunpack.c.h.b16 %v3786
      %v3827 = vunpack.c.l.b16 %v3787
      %v3828 = vunpack.c.h.b16 %v3787
      %v3829 = vunpack.c.l.b16 %v3788
      %v3830 = vunpack.c.h.b16 %v3788
      %v3831 = vunpack.c.l.b16 %v3789
      %v3832 = vunpack.c.h.b16 %v3789
      %v3833 = vunpack.c.l.b16 %v3790
      %v3834 = vunpack.c.h.b16 %v3790
      %v3835 = vunpack.c.l.b16 %v3791
      %v3836 = vunpack.c.h.b16 %v3791
      %v3837 = vunpack.c.l.b16 %v3792
      %v3838 = vunpack.c.h.b16 %v3792
      %v3839 = vunpack.c.l.b16 %v3793
      %v3840 = vunpack.c.h.b16 %v3793
      %v3841 = vunpack.c.l.b16 %v3794
      %v3842 = vunpack.c.h.b16 %v3794
      %v3843 = vpack.c.b16 %v3811, %v3811
      %v3844 = vpack.c.b16 %v3812, %v3812
      %v3845 = vpack.c.b16 %v3813, %v3813
      %v3846 = vpack.c.b16 %v3814, %v3814
      %v3847 = vpack.c.b16 %v3815, %v3815
      %v3848 = vpack.c.b16 %v3816, %v3816
      %v3849 = vpack.c.b16 %v3817, %v3817
      %v3850 = vpack.c.b16 %v3818, %v3818
      %v3851 = vpack.c.b16 %v3819, %v3819
      %v3852 = vpack.c.b16 %v3820, %v3820
      %v3853 = vpack.c.b16 %v3821, %v3821
      %v3854 = vpack.c.b16 %v3822, %v3822
      %v3855 = vpack.c.b16 %v3823, %v3823
      %v3856 = vpack.c.b16 %v3824, %v3824
      %v3857 = vpack.c.b16 %v3825, %v3825
      %v3858 = vpack.c.b16 %v3826, %v3826
      %v3859 = vpack.c.b16 %v3827, %v3827
      %v3860 = vpack.c.b16 %v3828, %v3828
      %v3861 = vpack.c.b16 %v3829, %v3829
      %v3862 = vpack.c.b16 %v3830, %v3830
      %v3863 = vpack.c.b16 %v3831, %v3831
      %v3864 = vpack.c.b16 %v3832, %v3832
      %v3865 = vpack.c.b16 %v3833, %v3833
      %v3866 = vpack.c.b16 %v3834, %v3834
      %v3867 = vpack.c.b16 %v3835, %v3835
      %v3868 = vpack.c.b16 %v3836, %v3836
      %v3869 = vpack.c.b16 %v3837, %v3837
      %v3870 = vpack.c.b16 %v3838, %v3838
      %v3871 = vpack.c.b16 %v3839, %v3839
      %v3872 = vpack.c.b16 %v3840, %v3840
      %v3873 = vpack.c.b16 %v3841, %v3841
      %v3874 = vpack.c.b16 %v3842, %v3842
      %3907 = vst.msk [vmem:[#allocation8] sm:$0xf] %vm973, %v3843
      %3908 = vst.msk [vmem:[#allocation8 + $0x4] sm:$0xf] %vm973, %v3844
      %3909 = vst.msk [vmem:[#allocation8 + $0x8] sm:$0xf] %vm973, %v3845
      %3910 = vst.msk [vmem:[#allocation8 + $0xc] sm:$0xf] %vm973, %v3846
      %3911 = vst.msk [vmem:[#allocation8 + $0x10] sm:$0xf] %vm973, %v3847
      %3912 = vst.msk [vmem:[#allocation8 + $0x14] sm:$0xf] %vm973, %v3848
      %3913 = vst.msk [vmem:[#allocation8 + $0x18] sm:$0xf] %vm973, %v3849
      %3914 = vst.msk [vmem:[#allocation8 + $0x1c] sm:$0xf] %vm973, %v3850
      %3915 = vst.msk [vmem:[#allocation8 + $0x20] sm:$0xf] %vm973, %v3851
      %3916 = vst.msk [vmem:[#allocation8 + $0x24] sm:$0xf] %vm973, %v3852
      %3917 = vst.msk [vmem:[#allocation8 + $0x28] sm:$0xf] %vm973, %v3853
      %3918 = vst.msk [vmem:[#allocation8 + $0x2c] sm:$0xf] %vm973, %v3854
      %3919 = vst.msk [vmem:[#allocation8 + $0x30] sm:$0xf] %vm973, %v3855
      %3920 = vst.msk [vmem:[#allocation8 + $0x34] sm:$0xf] %vm973, %v3856
      %3921 = vst.msk [vmem:[#allocation8 + $0x38] sm:$0xf] %vm973, %v3857
      %3922 = vst.msk [vmem:[#allocation8 + $0x3c] sm:$0xf] %vm973, %v3858
      %3923 = vst.msk [vmem:[#allocation8 + $0x40] sm:$0xf] %vm973, %v3859
      %3924 = vst.msk [vmem:[#allocation8 + $0x44] sm:$0xf] %vm973, %v3860
      %3925 = vst.msk [vmem:[#allocation8 + $0x48] sm:$0xf] %vm973, %v3861
      %3926 = vst.msk [vmem:[#allocation8 + $0x4c] sm:$0xf] %vm973, %v3862
      %3927 = vst.msk [vmem:[#allocation8 + $0x50] sm:$0xf] %vm973, %v3863
      %3928 = vst.msk [vmem:[#allocation8 + $0x54] sm:$0xf] %vm973, %v3864
      %3929 = vst.msk [vmem:[#allocation8 + $0x58] sm:$0xf] %vm973, %v3865
      %3930 = vst.msk [vmem:[#allocation8 + $0x5c] sm:$0xf] %vm973, %v3866
      %3931 = vst.msk [vmem:[#allocation8 + $0x60] sm:$0xf] %vm973, %v3867
      %3932 = vst.msk [vmem:[#allocation8 + $0x64] sm:$0xf] %vm973, %v3868
      %3933 = vst.msk [vmem:[#allocation8 + $0x68] sm:$0xf] %vm973, %v3869
      %3934 = vst.msk [vmem:[#allocation8 + $0x6c] sm:$0xf] %vm973, %v3870
      %3935 = vst.msk [vmem:[#allocation8 + $0x70] sm:$0xf] %vm973, %v3871
      %3936 = vst.msk [vmem:[#allocation8 + $0x74] sm:$0xf] %vm973, %v3872
      %3937 = vst.msk [vmem:[#allocation8 + $0x78] sm:$0xf] %vm973, %v3873
      %3938 = vst.msk [vmem:[#allocation8 + $0x7c] sm:$0xf] %vm973, %v3874
      %v3939 = vld [vmem:[%s484] sm:$0xf]
      %v3940 = vld [vmem:[%s484 + $0x4] sm:$0xf]
      %v3941 = vld [vmem:[%s484 + $0x8] sm:$0xf]
      %v3942 = vld [vmem:[%s484 + $0xc] sm:$0xf]
      %v3943 = vld [vmem:[#allocation7] sm:$0xf]
      %v3944 = vld [vmem:[#allocation7 + $0x4] sm:$0xf]
      %v3945 = vld [vmem:[#allocation7 + $0x8] sm:$0xf]
      %v3946 = vld [vmem:[#allocation7 + $0xc] sm:$0xf]
      %v3947 = vld [vmem:[#allocation7 + $0x10] sm:$0xf]
      %v3948 = vld [vmem:[#allocation7 + $0x14] sm:$0xf]
      %v3949 = vld [vmem:[#allocation7 + $0x18] sm:$0xf]
      %v3950 = vld [vmem:[#allocation7 + $0x1c] sm:$0xf]
      %v3951 = vld [vmem:[#allocation7 + $0x20] sm:$0xf]
      %v3952 = vld [vmem:[#allocation7 + $0x24] sm:$0xf]
      %v3953 = vld [vmem:[#allocation7 + $0x28] sm:$0xf]
      %v3954 = vld [vmem:[#allocation7 + $0x2c] sm:$0xf]
      %v3955 = vld [vmem:[#allocation7 + $0x30] sm:$0xf]
      %v3956 = vld [vmem:[#allocation7 + $0x34] sm:$0xf]
      %v3957 = vld [vmem:[#allocation7 + $0x38] sm:$0xf]
      %v3958 = vld [vmem:[#allocation7 + $0x3c] sm:$0xf]
      %v3959 = vld [vmem:[#allocation7 + $0x40] sm:$0xf]
      %v3960 = vld [vmem:[#allocation7 + $0x44] sm:$0xf]
      %v3961 = vld [vmem:[#allocation7 + $0x48] sm:$0xf]
      %v3962 = vld [vmem:[#allocation7 + $0x4c] sm:$0xf]
      %v3963 = vld [vmem:[#allocation7 + $0x50] sm:$0xf]
      %v3964 = vld [vmem:[#allocation7 + $0x54] sm:$0xf]
      %v3965 = vld [vmem:[#allocation7 + $0x58] sm:$0xf]
      %v3966 = vld [vmem:[#allocation7 + $0x5c] sm:$0xf]
      %v3967 = vld [vmem:[#allocation7 + $0x60] sm:$0xf]
      %v3968 = vld [vmem:[#allocation7 + $0x64] sm:$0xf]
      %v3969 = vld [vmem:[#allocation7 + $0x68] sm:$0xf]
      %v3970 = vld [vmem:[#allocation7 + $0x6c] sm:$0xf]
      %v3971 = vld [vmem:[#allocation7 + $0x70] sm:$0xf]
      %v3972 = vld [vmem:[#allocation7 + $0x74] sm:$0xf]
      %v3973 = vld [vmem:[#allocation7 + $0x78] sm:$0xf]
      %v3974 = vld [vmem:[#allocation7 + $0x7c] sm:$0xf]
      %v3975 = vld [vmem:[%s489] sm:$0xf]
      %v3976 = vld [vmem:[%s489 + $0x4] sm:$0xf]
      %v3977 = vld [vmem:[%s489 + $0x8] sm:$0xf]
      %v3978 = vld [vmem:[%s489 + $0xc] sm:$0xf]
      %v4011 = vunpack.c.l.b16 %v3943
      %v4012 = vunpack.c.l.b16 %v3944
      %v4013 = vunpack.c.l.b16 %v3945
      %v4014 = vunpack.c.l.b16 %v3946
      %v4015 = vunpack.c.l.b16 %v3947
      %v4016 = vunpack.c.l.b16 %v3948
      %v4017 = vunpack.c.l.b16 %v3949
      %v4018 = vunpack.c.l.b16 %v3950
      %v4019 = vunpack.c.l.b16 %v3951
      %v4020 = vunpack.c.l.b16 %v3952
      %v4021 = vunpack.c.l.b16 %v3953
      %v4022 = vunpack.c.l.b16 %v3954
      %v4023 = vunpack.c.l.b16 %v3955
      %v4024 = vunpack.c.l.b16 %v3956
      %v4025 = vunpack.c.l.b16 %v3957
      %v4026 = vunpack.c.l.b16 %v3958
      %v4027 = vunpack.c.l.b16 %v3959
      %v4028 = vunpack.c.l.b16 %v3960
      %v4029 = vunpack.c.l.b16 %v3961
      %v4030 = vunpack.c.l.b16 %v3962
      %v4031 = vunpack.c.l.b16 %v3963
      %v4032 = vunpack.c.l.b16 %v3964
      %v4033 = vunpack.c.l.b16 %v3965
      %v4034 = vunpack.c.l.b16 %v3966
      %v4035 = vunpack.c.l.b16 %v3967
      %v4036 = vunpack.c.l.b16 %v3968
      %v4037 = vunpack.c.l.b16 %v3969
      %v4038 = vunpack.c.l.b16 %v3970
      %v4039 = vunpack.c.l.b16 %v3971
      %v4040 = vunpack.c.l.b16 %v3972
      %v4041 = vunpack.c.l.b16 %v3973
      %v4042 = vunpack.c.l.b16 %v3974
      %v4043 = vpack.c.b16 %v4012, %v4011
      %v4044 = vpack.c.b16 %v4014, %v4013
      %v4045 = vpack.c.b16 %v4016, %v4015
      %v4046 = vpack.c.b16 %v4018, %v4017
      %v4047 = vpack.c.b16 %v4020, %v4019
      %v4048 = vpack.c.b16 %v4022, %v4021
      %v4049 = vpack.c.b16 %v4024, %v4023
      %v4050 = vpack.c.b16 %v4026, %v4025
      %v4051 = vpack.c.b16 %v4028, %v4027
      %v4052 = vpack.c.b16 %v4030, %v4029
      %v4053 = vpack.c.b16 %v4032, %v4031
      %v4054 = vpack.c.b16 %v4034, %v4033
      %v4055 = vpack.c.b16 %v4036, %v4035
      %v4056 = vpack.c.b16 %v4038, %v4037
      %v4057 = vpack.c.b16 %v4040, %v4039
      %v4058 = vpack.c.b16 %v4042, %v4041
      %v4063 = vunpack.c.l.b16 %v3975
      %v4064 = vunpack.c.l.b16 %v3976
      %v4065 = vunpack.c.l.b16 %v3977
      %v4066 = vunpack.c.l.b16 %v3978
      %v4067 = vpack.c.b16 %v4064, %v4063
      %v4068 = vpack.c.b16 %v4066, %v4065
      %v4072 = vsel %vm635, %v4043, 0
      %v4075 = vsel %vm635, %v4044, 0
      %v4078 = vsel %vm635, %v4045, 0
      %v4081 = vsel %vm635, %v4046, 0
      %v4084 = vsel %vm635, %v4047, 0
      %v4087 = vsel %vm635, %v4048, 0
      %v4090 = vsel %vm635, %v4049, 0
      %v4093 = vsel %vm635, %v4050, 0
      %v4096 = vsel %vm635, %v4051, 0
      %v4099 = vsel %vm635, %v4052, 0
      %v4102 = vsel %vm635, %v4053, 0
      %v4105 = vsel %vm635, %v4054, 0
      %v4108 = vsel %vm635, %v4055, 0
      %v4111 = vsel %vm635, %v4056, 0
      %v4114 = vsel %vm635, %v4057, 0
      %v4117 = vsel %vm635, %v4058, 0
      %4119 = vmatprep.subr.bf16.mxu0 0
      %4120 = vmatpush1.bf16.msra.mxu0 0
      %4121 = vmatprep.subr.bf16.mxu0 0
      %4122 = vmatpush1.bf16.msra.mxu0 0
      %4123 = vmatprep.subr.bf16.mxu0 0
      %4124 = vmatpush1.bf16.msra.mxu0 0
      %4125 = vmatprep.subr.bf16.mxu0 0
      %4126 = vmatpush1.bf16.msra.mxu0 0
      %4127 = vmatprep.subr.bf16.mxu0 0
      %4128 = vmatpush1.bf16.msra.mxu0 0
      %4129 = vmatprep.subr.bf16.mxu0 0
      %4130 = vmatpush1.bf16.msra.mxu0 0
      %4131 = vmatprep.subr.bf16.mxu0 0
      %4132 = vmatpush1.bf16.msra.mxu0 %v4068
      %4133 = vmatprep.subr.bf16.mxu0 0
      %4134 = vmatpush1.bf16.msra.mxu0 %v4067
      %4135 = vmatprep.subr.bf16.mxu0 0
      %4136 = vmatpush2.bf16.msra.mxu0 0
      %4137 = vmatprep.subr.bf16.mxu0 0
      %4138 = vmatpush2.bf16.msra.mxu0 0
      %4139 = vmatprep.subr.bf16.mxu0 0
      %4140 = vmatpush2.bf16.msra.mxu0 0
      %4141 = vmatprep.subr.bf16.mxu0 0
      %4142 = vmatpush2.bf16.msra.mxu0 0
      %4143 = vmatprep.subr.bf16.mxu0 0
      %4144 = vmatpush2.bf16.msra.mxu0 0
      %4145 = vmatprep.subr.bf16.mxu0 0
      %4146 = vmatpush2.bf16.msra.mxu0 0
      %4147 = vmatprep.subr.bf16.mxu0 0
      %4148 = vmatpush2.bf16.msra.mxu0 0
      %4149 = vmatprep.subr.bf16.mxu0 0
      %4150 = vmatpush2.bf16.msra.mxu0 0
      %4151 = vmatprep.mubr.bf16.mxu0 0
      %4152 = vmatmul.mubr.bf16.gmra.mxu0 %v4072
      %v4153 = vpop.f32.mrf.mxu0
      %v4154 = vadd.f32 0.0, %v4153
      %v4155 = vpop.f32.mrf.mxu0
      %v4156 = vpop.f32.mrf.mxu0
      %v4157 = vadd.f32 0.0, %v4156
      %v4158 = vpop.f32.mrf.mxu0
      %4159 = vmatprep.mubr.bf16.mxu0 0
      %4160 = vmatmul.mubr.bf16.gmra.mxu0 %v4075
      %v4161 = vpop.f32.mrf.mxu0
      %v4162 = vadd.f32 0.0, %v4161
      %v4163 = vpop.f32.mrf.mxu0
      %v4164 = vpop.f32.mrf.mxu0
      %v4165 = vadd.f32 0.0, %v4164
      %v4166 = vpop.f32.mrf.mxu0
      %4167 = vmatprep.mubr.bf16.mxu0 0
      %4168 = vmatmul.mubr.bf16.gmra.mxu0 %v4078
      %v4169 = vpop.f32.mrf.mxu0
      %v4170 = vadd.f32 0.0, %v4169
      %v4171 = vpop.f32.mrf.mxu0
      %v4172 = vpop.f32.mrf.mxu0
      %v4173 = vadd.f32 0.0, %v4172
      %v4174 = vpop.f32.mrf.mxu0
      %4175 = vmatprep.mubr.bf16.mxu0 0
      %4176 = vmatmul.mubr.bf16.gmra.mxu0 %v4081
      %v4177 = vpop.f32.mrf.mxu0
      %v4178 = vadd.f32 0.0, %v4177
      %v4179 = vpop.f32.mrf.mxu0
      %v4180 = vpop.f32.mrf.mxu0
      %v4181 = vadd.f32 0.0, %v4180
      %v4182 = vpop.f32.mrf.mxu0
      %4183 = vmatprep.mubr.bf16.mxu0 0
      %4184 = vmatmul.mubr.bf16.gmra.mxu0 %v4084
      %v4185 = vpop.f32.mrf.mxu0
      %v4186 = vadd.f32 0.0, %v4185
      %v4187 = vpop.f32.mrf.mxu0
      %v4188 = vpop.f32.mrf.mxu0
      %v4189 = vadd.f32 0.0, %v4188
      %v4190 = vpop.f32.mrf.mxu0
      %4191 = vmatprep.mubr.bf16.mxu0 0
      %4192 = vmatmul.mubr.bf16.gmra.mxu0 %v4087
      %v4193 = vpop.f32.mrf.mxu0
      %v4194 = vadd.f32 0.0, %v4193
      %v4195 = vpop.f32.mrf.mxu0
      %v4196 = vpop.f32.mrf.mxu0
      %v4197 = vadd.f32 0.0, %v4196
      %v4198 = vpop.f32.mrf.mxu0
      %4199 = vmatprep.mubr.bf16.mxu0 0
      %4200 = vmatmul.mubr.bf16.gmra.mxu0 %v4090
      %v4201 = vpop.f32.mrf.mxu0
      %v4202 = vadd.f32 0.0, %v4201
      %v4203 = vpop.f32.mrf.mxu0
      %v4204 = vpop.f32.mrf.mxu0
      %v4205 = vadd.f32 0.0, %v4204
      %v4206 = vpop.f32.mrf.mxu0
      %4207 = vmatprep.mubr.bf16.mxu0 0
      %4208 = vmatmul.mubr.bf16.gmra.mxu0 %v4093
      %v4209 = vpop.f32.mrf.mxu0
      %v4210 = vadd.f32 0.0, %v4209
      %v4211 = vpop.f32.mrf.mxu0
      %v4212 = vpop.f32.mrf.mxu0
      %v4213 = vadd.f32 0.0, %v4212
      %v4214 = vpop.f32.mrf.mxu0
      %4215 = vmatprep.mubr.bf16.mxu0 0
      %4216 = vmatmul.mubr.bf16.gmra.mxu0 %v4096
      %v4217 = vpop.f32.mrf.mxu0
      %v4218 = vadd.f32 0.0, %v4217
      %v4219 = vpop.f32.mrf.mxu0
      %v4220 = vpop.f32.mrf.mxu0
      %v4221 = vadd.f32 0.0, %v4220
      %v4222 = vpop.f32.mrf.mxu0
      %4223 = vmatprep.mubr.bf16.mxu0 0
      %4224 = vmatmul.mubr.bf16.gmra.mxu0 %v4099
      %v4225 = vpop.f32.mrf.mxu0
      %v4226 = vadd.f32 0.0, %v4225
      %v4227 = vpop.f32.mrf.mxu0
      %v4228 = vpop.f32.mrf.mxu0
      %v4229 = vadd.f32 0.0, %v4228
      %v4230 = vpop.f32.mrf.mxu0
      %4231 = vmatprep.mubr.bf16.mxu0 0
      %4232 = vmatmul.mubr.bf16.gmra.mxu0 %v4102
      %v4233 = vpop.f32.mrf.mxu0
      %v4234 = vadd.f32 0.0, %v4233
      %v4235 = vpop.f32.mrf.mxu0
      %v4236 = vpop.f32.mrf.mxu0
      %v4237 = vadd.f32 0.0, %v4236
      %v4238 = vpop.f32.mrf.mxu0
      %4239 = vmatprep.mubr.bf16.mxu0 0
      %4240 = vmatmul.mubr.bf16.gmra.mxu0 %v4105
      %v4241 = vpop.f32.mrf.mxu0
      %v4242 = vadd.f32 0.0, %v4241
      %v4243 = vpop.f32.mrf.mxu0
      %v4244 = vpop.f32.mrf.mxu0
      %v4245 = vadd.f32 0.0, %v4244
      %v4246 = vpop.f32.mrf.mxu0
      %4247 = vmatprep.mubr.bf16.mxu0 0
      %4248 = vmatmul.mubr.bf16.gmra.mxu0 %v4108
      %v4249 = vpop.f32.mrf.mxu0
      %v4250 = vadd.f32 0.0, %v4249
      %v4251 = vpop.f32.mrf.mxu0
      %v4252 = vpop.f32.mrf.mxu0
      %v4253 = vadd.f32 0.0, %v4252
      %v4254 = vpop.f32.mrf.mxu0
      %4255 = vmatprep.mubr.bf16.mxu0 0
      %4256 = vmatmul.mubr.bf16.gmra.mxu0 %v4111
      %v4257 = vpop.f32.mrf.mxu0
      %v4258 = vadd.f32 0.0, %v4257
      %v4259 = vpop.f32.mrf.mxu0
      %v4260 = vpop.f32.mrf.mxu0
      %v4261 = vadd.f32 0.0, %v4260
      %v4262 = vpop.f32.mrf.mxu0
      %4263 = vmatprep.mubr.bf16.mxu0 0
      %4264 = vmatmul.mubr.bf16.gmra.mxu0 %v4114
      %v4265 = vpop.f32.mrf.mxu0
      %v4266 = vadd.f32 0.0, %v4265
      %v4267 = vpop.f32.mrf.mxu0
      %v4268 = vpop.f32.mrf.mxu0
      %v4269 = vadd.f32 0.0, %v4268
      %v4270 = vpop.f32.mrf.mxu0
      %4271 = vmatprep.mubr.bf16.mxu0 0
      %4272 = vmatmul.mubr.bf16.gmra.mxu0 %v4117
      %v4273 = vpop.f32.mrf.mxu0
      %v4274 = vadd.f32 0.0, %v4273
      %v4275 = vpop.f32.mrf.mxu0
      %v4276 = vpop.f32.mrf.mxu0
      %v4277 = vadd.f32 0.0, %v4276
      %v4278 = vpop.f32.mrf.mxu0
      %4279 = vdwg.mxu0
      %v4284 = vunpack.c.l.b16 %v3939
      %v4285 = vunpack.c.l.b16 %v3940
      %v4286 = vunpack.c.l.b16 %v3941
      %v4287 = vunpack.c.l.b16 %v3942
      %v4288 = vpack.c.b16 %v4285, %v4284
      %v4289 = vpack.c.b16 %v4287, %v4286
      %4292 = vmatprep.subr.bf16.mxu0 0
      %4293 = vmatpush1.bf16.msra.mxu0 0
      %4294 = vmatprep.subr.bf16.mxu0 0
      %4295 = vmatpush1.bf16.msra.mxu0 0
      %4296 = vmatprep.subr.bf16.mxu0 0
      %4297 = vmatpush1.bf16.msra.mxu0 0
      %4298 = vmatprep.subr.bf16.mxu0 0
      %4299 = vmatpush1.bf16.msra.mxu0 0
      %4300 = vmatprep.subr.bf16.mxu0 0
      %4301 = vmatpush1.bf16.msra.mxu0 0
      %4302 = vmatprep.subr.bf16.mxu0 0
      %4303 = vmatpush1.bf16.msra.mxu0 0
      %4304 = vmatprep.subr.bf16.mxu0 0
      %4305 = vmatpush1.bf16.msra.mxu0 %v4289
      %4306 = vmatprep.subr.bf16.mxu0 0
      %4307 = vmatpush1.bf16.msra.mxu0 %v4288
      %4308 = vmatprep.subr.bf16.mxu0 0
      %4309 = vmatpush2.bf16.msra.mxu0 0
      %4310 = vmatprep.subr.bf16.mxu0 0
      %4311 = vmatpush2.bf16.msra.mxu0 0
      %4312 = vmatprep.subr.bf16.mxu0 0
      %4313 = vmatpush2.bf16.msra.mxu0 0
      %4314 = vmatprep.subr.bf16.mxu0 0
      %4315 = vmatpush2.bf16.msra.mxu0 0
      %4316 = vmatprep.subr.bf16.mxu0 0
      %4317 = vmatpush2.bf16.msra.mxu0 0
      %4318 = vmatprep.subr.bf16.mxu0 0
      %4319 = vmatpush2.bf16.msra.mxu0 0
      %4320 = vmatprep.subr.bf16.mxu0 0
      %4321 = vmatpush2.bf16.msra.mxu0 0
      %4322 = vmatprep.subr.bf16.mxu0 0
      %4323 = vmatpush2.bf16.msra.mxu0 0
      %4324 = vmatprep.mubr.bf16.mxu0 0
      %4325 = vmatmul.mubr.bf16.gmra.mxu0 %v637
      %v4326 = vpop.f32.mrf.mxu0
      %v4327 = vadd.f32 %v4154, %v4326
      %v4328 = vpop.f32.mrf.mxu0
      %v4329 = vpop.f32.mrf.mxu0
      %v4330 = vadd.f32 %v4157, %v4329
      %v4331 = vpop.f32.mrf.mxu0
      %4332 = vmatprep.mubr.bf16.mxu0 0
      %4333 = vmatmul.mubr.bf16.gmra.mxu0 %v640
      %v4334 = vpop.f32.mrf.mxu0
      %v4335 = vadd.f32 %v4162, %v4334
      %v4336 = vpop.f32.mrf.mxu0
      %v4337 = vpop.f32.mrf.mxu0
      %v4338 = vadd.f32 %v4165, %v4337
      %v4339 = vpop.f32.mrf.mxu0
      %4340 = vmatprep.mubr.bf16.mxu0 0
      %4341 = vmatmul.mubr.bf16.gmra.mxu0 %v643
      %v4342 = vpop.f32.mrf.mxu0
      %v4343 = vadd.f32 %v4170, %v4342
      %v4344 = vpop.f32.mrf.mxu0
      %v4345 = vpop.f32.mrf.mxu0
      %v4346 = vadd.f32 %v4173, %v4345
      %v4347 = vpop.f32.mrf.mxu0
      %4348 = vmatprep.mubr.bf16.mxu0 0
      %4349 = vmatmul.mubr.bf16.gmra.mxu0 %v646
      %v4350 = vpop.f32.mrf.mxu0
      %v4351 = vadd.f32 %v4178, %v4350
      %v4352 = vpop.f32.mrf.mxu0
      %v4353 = vpop.f32.mrf.mxu0
      %v4354 = vadd.f32 %v4181, %v4353
      %v4355 = vpop.f32.mrf.mxu0
      %4356 = vmatprep.mubr.bf16.mxu0 0
      %4357 = vmatmul.mubr.bf16.gmra.mxu0 %v649
      %v4358 = vpop.f32.mrf.mxu0
      %v4359 = vadd.f32 %v4186, %v4358
      %v4360 = vpop.f32.mrf.mxu0
      %v4361 = vpop.f32.mrf.mxu0
      %v4362 = vadd.f32 %v4189, %v4361
      %v4363 = vpop.f32.mrf.mxu0
      %4364 = vmatprep.mubr.bf16.mxu0 0
      %4365 = vmatmul.mubr.bf16.gmra.mxu0 %v652
      %v4366 = vpop.f32.mrf.mxu0
      %v4367 = vadd.f32 %v4194, %v4366
      %v4368 = vpop.f32.mrf.mxu0
      %v4369 = vpop.f32.mrf.mxu0
      %v4370 = vadd.f32 %v4197, %v4369
      %v4371 = vpop.f32.mrf.mxu0
      %4372 = vmatprep.mubr.bf16.mxu0 0
      %4373 = vmatmul.mubr.bf16.gmra.mxu0 %v655
      %v4374 = vpop.f32.mrf.mxu0
      %v4375 = vadd.f32 %v4202, %v4374
      %v4376 = vpop.f32.mrf.mxu0
      %v4377 = vpop.f32.mrf.mxu0
      %v4378 = vadd.f32 %v4205, %v4377
      %v4379 = vpop.f32.mrf.mxu0
      %4380 = vmatprep.mubr.bf16.mxu0 0
      %4381 = vmatmul.mubr.bf16.gmra.mxu0 %v658
      %v4382 = vpop.f32.mrf.mxu0
      %v4383 = vadd.f32 %v4210, %v4382
      %v4384 = vpop.f32.mrf.mxu0
      %v4385 = vpop.f32.mrf.mxu0
      %v4386 = vadd.f32 %v4213, %v4385
      %v4387 = vpop.f32.mrf.mxu0
      %4388 = vmatprep.mubr.bf16.mxu0 0
      %4389 = vmatmul.mubr.bf16.gmra.mxu0 %v661
      %v4390 = vpop.f32.mrf.mxu0
      %v4391 = vadd.f32 %v4218, %v4390
      %v4392 = vpop.f32.mrf.mxu0
      %v4393 = vpop.f32.mrf.mxu0
      %v4394 = vadd.f32 %v4221, %v4393
      %v4395 = vpop.f32.mrf.mxu0
      %4396 = vmatprep.mubr.bf16.mxu0 0
      %4397 = vmatmul.mubr.bf16.gmra.mxu0 %v664
      %v4398 = vpop.f32.mrf.mxu0
      %v4399 = vadd.f32 %v4226, %v4398
      %v4400 = vpop.f32.mrf.mxu0
      %v4401 = vpop.f32.mrf.mxu0
      %v4402 = vadd.f32 %v4229, %v4401
      %v4403 = vpop.f32.mrf.mxu0
      %4404 = vmatprep.mubr.bf16.mxu0 0
      %4405 = vmatmul.mubr.bf16.gmra.mxu0 %v667
      %v4406 = vpop.f32.mrf.mxu0
      %v4407 = vadd.f32 %v4234, %v4406
      %v4408 = vpop.f32.mrf.mxu0
      %v4409 = vpop.f32.mrf.mxu0
      %v4410 = vadd.f32 %v4237, %v4409
      %v4411 = vpop.f32.mrf.mxu0
      %4412 = vmatprep.mubr.bf16.mxu0 0
      %4413 = vmatmul.mubr.bf16.gmra.mxu0 %v670
      %v4414 = vpop.f32.mrf.mxu0
      %v4415 = vadd.f32 %v4242, %v4414
      %v4416 = vpop.f32.mrf.mxu0
      %v4417 = vpop.f32.mrf.mxu0
      %v4418 = vadd.f32 %v4245, %v4417
      %v4419 = vpop.f32.mrf.mxu0
      %4420 = vmatprep.mubr.bf16.mxu0 0
      %4421 = vmatmul.mubr.bf16.gmra.mxu0 %v673
      %v4422 = vpop.f32.mrf.mxu0
      %v4423 = vadd.f32 %v4250, %v4422
      %v4424 = vpop.f32.mrf.mxu0
      %v4425 = vpop.f32.mrf.mxu0
      %v4426 = vadd.f32 %v4253, %v4425
      %v4427 = vpop.f32.mrf.mxu0
      %4428 = vmatprep.mubr.bf16.mxu0 0
      %4429 = vmatmul.mubr.bf16.gmra.mxu0 %v676
      %v4430 = vpop.f32.mrf.mxu0
      %v4431 = vadd.f32 %v4258, %v4430
      %v4432 = vpop.f32.mrf.mxu0
      %v4433 = vpop.f32.mrf.mxu0
      %v4434 = vadd.f32 %v4261, %v4433
      %v4435 = vpop.f32.mrf.mxu0
      %4436 = vmatprep.mubr.bf16.mxu0 0
      %4437 = vmatmul.mubr.bf16.gmra.mxu0 %v679
      %v4438 = vpop.f32.mrf.mxu0
      %v4439 = vadd.f32 %v4266, %v4438
      %v4440 = vpop.f32.mrf.mxu0
      %v4441 = vpop.f32.mrf.mxu0
      %v4442 = vadd.f32 %v4269, %v4441
      %v4443 = vpop.f32.mrf.mxu0
      %4444 = vmatprep.mubr.bf16.mxu0 0
      %4445 = vmatmul.mubr.bf16.gmra.mxu0 %v682
      %v4446 = vpop.f32.mrf.mxu0
      %v4447 = vadd.f32 %v4274, %v4446
      %v4448 = vpop.f32.mrf.mxu0
      %v4449 = vpop.f32.mrf.mxu0
      %v4450 = vadd.f32 %v4277, %v4449
      %v4451 = vpop.f32.mrf.mxu0
      %4452 = vdwg.mxu0
      %v4453 = vld [vmem:[#allocation8] sm:$0xf]
      %v4454 = vld [vmem:[#allocation8 + $0x4] sm:$0xf]
      %v4455 = vld [vmem:[#allocation8 + $0x8] sm:$0xf]
      %v4456 = vld [vmem:[#allocation8 + $0xc] sm:$0xf]
      %v4457 = vld [vmem:[#allocation8 + $0x10] sm:$0xf]
      %v4458 = vld [vmem:[#allocation8 + $0x14] sm:$0xf]
      %v4459 = vld [vmem:[#allocation8 + $0x18] sm:$0xf]
      %v4460 = vld [vmem:[#allocation8 + $0x1c] sm:$0xf]
      %v4461 = vld [vmem:[#allocation8 + $0x20] sm:$0xf]
      %v4462 = vld [vmem:[#allocation8 + $0x24] sm:$0xf]
      %v4463 = vld [vmem:[#allocation8 + $0x28] sm:$0xf]
      %v4464 = vld [vmem:[#allocation8 + $0x2c] sm:$0xf]
      %v4465 = vld [vmem:[#allocation8 + $0x30] sm:$0xf]
      %v4466 = vld [vmem:[#allocation8 + $0x34] sm:$0xf]
      %v4467 = vld [vmem:[#allocation8 + $0x38] sm:$0xf]
      %v4468 = vld [vmem:[#allocation8 + $0x3c] sm:$0xf]
      %v4469 = vld [vmem:[#allocation8 + $0x40] sm:$0xf]
      %v4470 = vld [vmem:[#allocation8 + $0x44] sm:$0xf]
      %v4471 = vld [vmem:[#allocation8 + $0x48] sm:$0xf]
      %v4472 = vld [vmem:[#allocation8 + $0x4c] sm:$0xf]
      %v4473 = vld [vmem:[#allocation8 + $0x50] sm:$0xf]
      %v4474 = vld [vmem:[#allocation8 + $0x54] sm:$0xf]
      %v4475 = vld [vmem:[#allocation8 + $0x58] sm:$0xf]
      %v4476 = vld [vmem:[#allocation8 + $0x5c] sm:$0xf]
      %v4477 = vld [vmem:[#allocation8 + $0x60] sm:$0xf]
      %v4478 = vld [vmem:[#allocation8 + $0x64] sm:$0xf]
      %v4479 = vld [vmem:[#allocation8 + $0x68] sm:$0xf]
      %v4480 = vld [vmem:[#allocation8 + $0x6c] sm:$0xf]
      %v4481 = vld [vmem:[#allocation8 + $0x70] sm:$0xf]
      %v4482 = vld [vmem:[#allocation8 + $0x74] sm:$0xf]
      %v4483 = vld [vmem:[#allocation8 + $0x78] sm:$0xf]
      %v4484 = vld [vmem:[#allocation8 + $0x7c] sm:$0xf]
      %v4485 = vld [vmem:[%s494] sm:$0xf]
      %v4486 = vld [vmem:[%s494 + $0x4] sm:$0xf]
      %v4487 = vld [vmem:[%s494 + $0x8] sm:$0xf]
      %v4488 = vld [vmem:[%s494 + $0xc] sm:$0xf]
      %v4521 = vunpack.c.l.b16 %v4453
      %v4522 = vunpack.c.l.b16 %v4454
      %v4523 = vunpack.c.l.b16 %v4455
      %v4524 = vunpack.c.l.b16 %v4456
      %v4525 = vunpack.c.l.b16 %v4457
      %v4526 = vunpack.c.l.b16 %v4458
      %v4527 = vunpack.c.l.b16 %v4459
      %v4528 = vunpack.c.l.b16 %v4460
      %v4529 = vunpack.c.l.b16 %v4461
      %v4530 = vunpack.c.l.b16 %v4462
      %v4531 = vunpack.c.l.b16 %v4463
      %v4532 = vunpack.c.l.b16 %v4464
      %v4533 = vunpack.c.l.b16 %v4465
      %v4534 = vunpack.c.l.b16 %v4466
      %v4535 = vunpack.c.l.b16 %v4467
      %v4536 = vunpack.c.l.b16 %v4468
      %v4537 = vunpack.c.l.b16 %v4469
      %v4538 = vunpack.c.l.b16 %v4470
      %v4539 = vunpack.c.l.b16 %v4471
      %v4540 = vunpack.c.l.b16 %v4472
      %v4541 = vunpack.c.l.b16 %v4473
      %v4542 = vunpack.c.l.b16 %v4474
      %v4543 = vunpack.c.l.b16 %v4475
      %v4544 = vunpack.c.l.b16 %v4476
      %v4545 = vunpack.c.l.b16 %v4477
      %v4546 = vunpack.c.l.b16 %v4478
      %v4547 = vunpack.c.l.b16 %v4479
      %v4548 = vunpack.c.l.b16 %v4480
      %v4549 = vunpack.c.l.b16 %v4481
      %v4550 = vunpack.c.l.b16 %v4482
      %v4551 = vunpack.c.l.b16 %v4483
      %v4552 = vunpack.c.l.b16 %v4484
      %v4553 = vpack.c.b16 %v4522, %v4521
      %v4554 = vpack.c.b16 %v4524, %v4523
      %v4555 = vpack.c.b16 %v4526, %v4525
      %v4556 = vpack.c.b16 %v4528, %v4527
      %v4557 = vpack.c.b16 %v4530, %v4529
      %v4558 = vpack.c.b16 %v4532, %v4531
      %v4559 = vpack.c.b16 %v4534, %v4533
      %v4560 = vpack.c.b16 %v4536, %v4535
      %v4561 = vpack.c.b16 %v4538, %v4537
      %v4562 = vpack.c.b16 %v4540, %v4539
      %v4563 = vpack.c.b16 %v4542, %v4541
      %v4564 = vpack.c.b16 %v4544, %v4543
      %v4565 = vpack.c.b16 %v4546, %v4545
      %v4566 = vpack.c.b16 %v4548, %v4547
      %v4567 = vpack.c.b16 %v4550, %v4549
      %v4568 = vpack.c.b16 %v4552, %v4551
      %v4573 = vunpack.c.l.b16 %v4485
      %v4574 = vunpack.c.l.b16 %v4486
      %v4575 = vunpack.c.l.b16 %v4487
      %v4576 = vunpack.c.l.b16 %v4488
      %v4577 = vpack.c.b16 %v4574, %v4573
      %v4578 = vpack.c.b16 %v4576, %v4575
      %v4582 = vsel %vm635, %v4553, 0
      %v4585 = vsel %vm635, %v4554, 0
      %v4588 = vsel %vm635, %v4555, 0
      %v4591 = vsel %vm635, %v4556, 0
      %v4594 = vsel %vm635, %v4557, 0
      %v4597 = vsel %vm635, %v4558, 0
      %v4600 = vsel %vm635, %v4559, 0
      %v4603 = vsel %vm635, %v4560, 0
      %v4606 = vsel %vm635, %v4561, 0
      %v4609 = vsel %vm635, %v4562, 0
      %v4612 = vsel %vm635, %v4563, 0
      %v4615 = vsel %vm635, %v4564, 0
      %v4618 = vsel %vm635, %v4565, 0
      %v4621 = vsel %vm635, %v4566, 0
      %v4624 = vsel %vm635, %v4567, 0
      %v4627 = vsel %vm635, %v4568, 0
      %4629 = vmatprep.subr.bf16.mxu0 0
      %4630 = vmatpush1.bf16.msra.mxu0 0
      %4631 = vmatprep.subr.bf16.mxu0 0
      %4632 = vmatpush1.bf16.msra.mxu0 0
      %4633 = vmatprep.subr.bf16.mxu0 0
      %4634 = vmatpush1.bf16.msra.mxu0 0
      %4635 = vmatprep.subr.bf16.mxu0 0
      %4636 = vmatpush1.bf16.msra.mxu0 0
      %4637 = vmatprep.subr.bf16.mxu0 0
      %4638 = vmatpush1.bf16.msra.mxu0 0
      %4639 = vmatprep.subr.bf16.mxu0 0
      %4640 = vmatpush1.bf16.msra.mxu0 0
      %4641 = vmatprep.subr.bf16.mxu0 0
      %4642 = vmatpush1.bf16.msra.mxu0 %v4578
      %4643 = vmatprep.subr.bf16.mxu0 0
      %4644 = vmatpush1.bf16.msra.mxu0 %v4577
      %4645 = vmatprep.subr.bf16.mxu0 0
      %4646 = vmatpush2.bf16.msra.mxu0 0
      %4647 = vmatprep.subr.bf16.mxu0 0
      %4648 = vmatpush2.bf16.msra.mxu0 0
      %4649 = vmatprep.subr.bf16.mxu0 0
      %4650 = vmatpush2.bf16.msra.mxu0 0
      %4651 = vmatprep.subr.bf16.mxu0 0
      %4652 = vmatpush2.bf16.msra.mxu0 0
      %4653 = vmatprep.subr.bf16.mxu0 0
      %4654 = vmatpush2.bf16.msra.mxu0 0
      %4655 = vmatprep.subr.bf16.mxu0 0
      %4656 = vmatpush2.bf16.msra.mxu0 0
      %4657 = vmatprep.subr.bf16.mxu0 0
      %4658 = vmatpush2.bf16.msra.mxu0 0
      %4659 = vmatprep.subr.bf16.mxu0 0
      %4660 = vmatpush2.bf16.msra.mxu0 0
      %4661 = vmatprep.mubr.bf16.mxu0 0
      %4662 = vmatmul.mubr.bf16.gmra.mxu0 %v4582
      %v4663 = vpop.f32.mrf.mxu0
      %v4664 = vadd.f32 0.0, %v4663
      %v4665 = vpop.f32.mrf.mxu0
      %v4666 = vpop.f32.mrf.mxu0
      %v4667 = vadd.f32 0.0, %v4666
      %v4668 = vpop.f32.mrf.mxu0
      %4669 = vmatprep.mubr.bf16.mxu0 0
      %4670 = vmatmul.mubr.bf16.gmra.mxu0 %v4585
      %v4671 = vpop.f32.mrf.mxu0
      %v4672 = vadd.f32 0.0, %v4671
      %v4673 = vpop.f32.mrf.mxu0
      %v4674 = vpop.f32.mrf.mxu0
      %v4675 = vadd.f32 0.0, %v4674
      %v4676 = vpop.f32.mrf.mxu0
      %4677 = vmatprep.mubr.bf16.mxu0 0
      %4678 = vmatmul.mubr.bf16.gmra.mxu0 %v4588
      %v4679 = vpop.f32.mrf.mxu0
      %v4680 = vadd.f32 0.0, %v4679
      %v4681 = vpop.f32.mrf.mxu0
      %v4682 = vpop.f32.mrf.mxu0
      %v4683 = vadd.f32 0.0, %v4682
      %v4684 = vpop.f32.mrf.mxu0
      %4685 = vmatprep.mubr.bf16.mxu0 0
      %4686 = vmatmul.mubr.bf16.gmra.mxu0 %v4591
      %v4687 = vpop.f32.mrf.mxu0
      %v4688 = vadd.f32 0.0, %v4687
      %v4689 = vpop.f32.mrf.mxu0
      %v4690 = vpop.f32.mrf.mxu0
      %v4691 = vadd.f32 0.0, %v4690
      %v4692 = vpop.f32.mrf.mxu0
      %4693 = vmatprep.mubr.bf16.mxu0 0
      %4694 = vmatmul.mubr.bf16.gmra.mxu0 %v4594
      %v4695 = vpop.f32.mrf.mxu0
      %v4696 = vadd.f32 0.0, %v4695
      %v4697 = vpop.f32.mrf.mxu0
      %v4698 = vpop.f32.mrf.mxu0
      %v4699 = vadd.f32 0.0, %v4698
      %v4700 = vpop.f32.mrf.mxu0
      %4701 = vmatprep.mubr.bf16.mxu0 0
      %4702 = vmatmul.mubr.bf16.gmra.mxu0 %v4597
      %v4703 = vpop.f32.mrf.mxu0
      %v4704 = vadd.f32 0.0, %v4703
      %v4705 = vpop.f32.mrf.mxu0
      %v4706 = vpop.f32.mrf.mxu0
      %v4707 = vadd.f32 0.0, %v4706
      %v4708 = vpop.f32.mrf.mxu0
      %4709 = vmatprep.mubr.bf16.mxu0 0
      %4710 = vmatmul.mubr.bf16.gmra.mxu0 %v4600
      %v4711 = vpop.f32.mrf.mxu0
      %v4712 = vadd.f32 0.0, %v4711
      %v4713 = vpop.f32.mrf.mxu0
      %v4714 = vpop.f32.mrf.mxu0
      %v4715 = vadd.f32 0.0, %v4714
      %v4716 = vpop.f32.mrf.mxu0
      %4717 = vmatprep.mubr.bf16.mxu0 0
      %4718 = vmatmul.mubr.bf16.gmra.mxu0 %v4603
      %v4719 = vpop.f32.mrf.mxu0
      %v4720 = vadd.f32 0.0, %v4719
      %v4721 = vpop.f32.mrf.mxu0
      %v4722 = vpop.f32.mrf.mxu0
      %v4723 = vadd.f32 0.0, %v4722
      %v4724 = vpop.f32.mrf.mxu0
      %4725 = vmatprep.mubr.bf16.mxu0 0
      %4726 = vmatmul.mubr.bf16.gmra.mxu0 %v4606
      %v4727 = vpop.f32.mrf.mxu0
      %v4728 = vadd.f32 0.0, %v4727
      %v4729 = vpop.f32.mrf.mxu0
      %v4730 = vpop.f32.mrf.mxu0
      %v4731 = vadd.f32 0.0, %v4730
      %v4732 = vpop.f32.mrf.mxu0
      %4733 = vmatprep.mubr.bf16.mxu0 0
      %4734 = vmatmul.mubr.bf16.gmra.mxu0 %v4609
      %v4735 = vpop.f32.mrf.mxu0
      %v4736 = vadd.f32 0.0, %v4735
      %v4737 = vpop.f32.mrf.mxu0
      %v4738 = vpop.f32.mrf.mxu0
      %v4739 = vadd.f32 0.0, %v4738
      %v4740 = vpop.f32.mrf.mxu0
      %4741 = vmatprep.mubr.bf16.mxu0 0
      %4742 = vmatmul.mubr.bf16.gmra.mxu0 %v4612
      %v4743 = vpop.f32.mrf.mxu0
      %v4744 = vadd.f32 0.0, %v4743
      %v4745 = vpop.f32.mrf.mxu0
      %v4746 = vpop.f32.mrf.mxu0
      %v4747 = vadd.f32 0.0, %v4746
      %v4748 = vpop.f32.mrf.mxu0
      %4749 = vmatprep.mubr.bf16.mxu0 0
      %4750 = vmatmul.mubr.bf16.gmra.mxu0 %v4615
      %v4751 = vpop.f32.mrf.mxu0
      %v4752 = vadd.f32 0.0, %v4751
      %v4753 = vpop.f32.mrf.mxu0
      %v4754 = vpop.f32.mrf.mxu0
      %v4755 = vadd.f32 0.0, %v4754
      %v4756 = vpop.f32.mrf.mxu0
      %4757 = vmatprep.mubr.bf16.mxu0 0
      %4758 = vmatmul.mubr.bf16.gmra.mxu0 %v4618
      %v4759 = vpop.f32.mrf.mxu0
      %v4760 = vadd.f32 0.0, %v4759
      %v4761 = vpop.f32.mrf.mxu0
      %v4762 = vpop.f32.mrf.mxu0
      %v4763 = vadd.f32 0.0, %v4762
      %v4764 = vpop.f32.mrf.mxu0
      %4765 = vmatprep.mubr.bf16.mxu0 0
      %4766 = vmatmul.mubr.bf16.gmra.mxu0 %v4621
      %v4767 = vpop.f32.mrf.mxu0
      %v4768 = vadd.f32 0.0, %v4767
      %v4769 = vpop.f32.mrf.mxu0
      %v4770 = vpop.f32.mrf.mxu0
      %v4771 = vadd.f32 0.0, %v4770
      %v4772 = vpop.f32.mrf.mxu0
      %4773 = vmatprep.mubr.bf16.mxu0 0
      %4774 = vmatmul.mubr.bf16.gmra.mxu0 %v4624
      %v4775 = vpop.f32.mrf.mxu0
      %v4776 = vadd.f32 0.0, %v4775
      %v4777 = vpop.f32.mrf.mxu0
      %v4778 = vpop.f32.mrf.mxu0
      %v4779 = vadd.f32 0.0, %v4778
      %v4780 = vpop.f32.mrf.mxu0
      %4781 = vmatprep.mubr.bf16.mxu0 0
      %4782 = vmatmul.mubr.bf16.gmra.mxu0 %v4627
      %v4783 = vpop.f32.mrf.mxu0
      %v4784 = vadd.f32 0.0, %v4783
      %v4785 = vpop.f32.mrf.mxu0
      %v4786 = vpop.f32.mrf.mxu0
      %v4787 = vadd.f32 0.0, %v4786
      %v4788 = vpop.f32.mrf.mxu0
      %4789 = vdwg.mxu0
      %v4790 = vadd.f32 %v4327, %v4664
      %v4791 = vadd.f32 %v4330, %v4667
      %v4792 = vadd.f32 %v4335, %v4672
      %v4793 = vadd.f32 %v4338, %v4675
      %v4794 = vadd.f32 %v4343, %v4680
      %v4795 = vadd.f32 %v4346, %v4683
      %v4796 = vadd.f32 %v4351, %v4688
      %v4797 = vadd.f32 %v4354, %v4691
      %v4798 = vadd.f32 %v4359, %v4696
      %v4799 = vadd.f32 %v4362, %v4699
      %v4800 = vadd.f32 %v4367, %v4704
      %v4801 = vadd.f32 %v4370, %v4707
      %v4802 = vadd.f32 %v4375, %v4712
      %v4803 = vadd.f32 %v4378, %v4715
      %v4804 = vadd.f32 %v4383, %v4720
      %v4805 = vadd.f32 %v4386, %v4723
      %v4806 = vadd.f32 %v4391, %v4728
      %v4807 = vadd.f32 %v4394, %v4731
      %v4808 = vadd.f32 %v4399, %v4736
      %v4809 = vadd.f32 %v4402, %v4739
      %v4810 = vadd.f32 %v4407, %v4744
      %v4811 = vadd.f32 %v4410, %v4747
      %v4812 = vadd.f32 %v4415, %v4752
      %v4813 = vadd.f32 %v4418, %v4755
      %v4814 = vadd.f32 %v4423, %v4760
      %v4815 = vadd.f32 %v4426, %v4763
      %v4816 = vadd.f32 %v4431, %v4768
      %v4817 = vadd.f32 %v4434, %v4771
      %v4818 = vadd.f32 %v4439, %v4776
      %v4819 = vadd.f32 %v4442, %v4779
      %v4820 = vadd.f32 %v4447, %v4784
      %v4821 = vadd.f32 %v4450, %v4787
      %v4822 = vpack.c.bf16 %v4791, %v4790
      %v4823 = vpack.c.bf16 %v4793, %v4792
      %v4824 = vpack.c.bf16 %v4795, %v4794
      %v4825 = vpack.c.bf16 %v4797, %v4796
      %v4826 = vpack.c.bf16 %v4799, %v4798
      %v4827 = vpack.c.bf16 %v4801, %v4800
      %v4828 = vpack.c.bf16 %v4803, %v4802
      %v4829 = vpack.c.bf16 %v4805, %v4804
      %v4830 = vpack.c.bf16 %v4807, %v4806
      %v4831 = vpack.c.bf16 %v4809, %v4808
      %v4832 = vpack.c.bf16 %v4811, %v4810
      %v4833 = vpack.c.bf16 %v4813, %v4812
      %v4834 = vpack.c.bf16 %v4815, %v4814
      %v4835 = vpack.c.bf16 %v4817, %v4816
      %v4836 = vpack.c.bf16 %v4819, %v4818
      %v4837 = vpack.c.bf16 %v4821, %v4820
      %v4854 = vunpack.c.l.b16 %v4822
      %v4855 = vunpack.c.h.b16 %v4822
      %v4856 = vunpack.c.l.b16 %v4823
      %v4857 = vunpack.c.h.b16 %v4823
      %v4858 = vunpack.c.l.b16 %v4824
      %v4859 = vunpack.c.h.b16 %v4824
      %v4860 = vunpack.c.l.b16 %v4825
      %v4861 = vunpack.c.h.b16 %v4825
      %v4862 = vunpack.c.l.b16 %v4826
      %v4863 = vunpack.c.h.b16 %v4826
      %v4864 = vunpack.c.l.b16 %v4827
      %v4865 = vunpack.c.h.b16 %v4827
      %v4866 = vunpack.c.l.b16 %v4828
      %v4867 = vunpack.c.h.b16 %v4828
      %v4868 = vunpack.c.l.b16 %v4829
      %v4869 = vunpack.c.h.b16 %v4829
      %v4870 = vunpack.c.l.b16 %v4830
      %v4871 = vunpack.c.h.b16 %v4830
      %v4872 = vunpack.c.l.b16 %v4831
      %v4873 = vunpack.c.h.b16 %v4831
      %v4874 = vunpack.c.l.b16 %v4832
      %v4875 = vunpack.c.h.b16 %v4832
      %v4876 = vunpack.c.l.b16 %v4833
      %v4877 = vunpack.c.h.b16 %v4833
      %v4878 = vunpack.c.l.b16 %v4834
      %v4879 = vunpack.c.h.b16 %v4834
      %v4880 = vunpack.c.l.b16 %v4835
      %v4881 = vunpack.c.h.b16 %v4835
      %v4882 = vunpack.c.l.b16 %v4836
      %v4883 = vunpack.c.h.b16 %v4836
      %v4884 = vunpack.c.l.b16 %v4837
      %v4885 = vunpack.c.h.b16 %v4837
      %v4886 = vpack.c.b16 %v4854, %v4854
      %v4887 = vpack.c.b16 %v4855, %v4855
      %v4888 = vpack.c.b16 %v4856, %v4856
      %v4889 = vpack.c.b16 %v4857, %v4857
      %v4890 = vpack.c.b16 %v4858, %v4858
      %v4891 = vpack.c.b16 %v4859, %v4859
      %v4892 = vpack.c.b16 %v4860, %v4860
      %v4893 = vpack.c.b16 %v4861, %v4861
      %v4894 = vpack.c.b16 %v4862, %v4862
      %v4895 = vpack.c.b16 %v4863, %v4863
      %v4896 = vpack.c.b16 %v4864, %v4864
      %v4897 = vpack.c.b16 %v4865, %v4865
      %v4898 = vpack.c.b16 %v4866, %v4866
      %v4899 = vpack.c.b16 %v4867, %v4867
      %v4900 = vpack.c.b16 %v4868, %v4868
      %v4901 = vpack.c.b16 %v4869, %v4869
      %v4902 = vpack.c.b16 %v4870, %v4870
      %v4903 = vpack.c.b16 %v4871, %v4871
      %v4904 = vpack.c.b16 %v4872, %v4872
      %v4905 = vpack.c.b16 %v4873, %v4873
      %v4906 = vpack.c.b16 %v4874, %v4874
      %v4907 = vpack.c.b16 %v4875, %v4875
      %v4908 = vpack.c.b16 %v4876, %v4876
      %v4909 = vpack.c.b16 %v4877, %v4877
      %v4910 = vpack.c.b16 %v4878, %v4878
      %v4911 = vpack.c.b16 %v4879, %v4879
      %v4912 = vpack.c.b16 %v4880, %v4880
      %v4913 = vpack.c.b16 %v4881, %v4881
      %v4914 = vpack.c.b16 %v4882, %v4882
      %v4915 = vpack.c.b16 %v4883, %v4883
      %v4916 = vpack.c.b16 %v4884, %v4884
      %v4917 = vpack.c.b16 %v4885, %v4885
      %vm4950 = vcmask 125952
      %4951 = vst.msk [vmem:[#allocation5] sm:$0xf] %vm4950, %v4886
      %4952 = vst.msk [vmem:[#allocation5 + $0x4] sm:$0xf] %vm4950, %v4887
      %4953 = vst.msk [vmem:[#allocation5 + $0x8] sm:$0xf] %vm4950, %v4888
      %4954 = vst.msk [vmem:[#allocation5 + $0xc] sm:$0xf] %vm4950, %v4889
      %4955 = vst.msk [vmem:[#allocation5 + $0x10] sm:$0xf] %vm4950, %v4890
      %4956 = vst.msk [vmem:[#allocation5 + $0x14] sm:$0xf] %vm4950, %v4891
      %4957 = vst.msk [vmem:[#allocation5 + $0x18] sm:$0xf] %vm4950, %v4892
      %4958 = vst.msk [vmem:[#allocation5 + $0x1c] sm:$0xf] %vm4950, %v4893
      %4959 = vst.msk [vmem:[#allocation5 + $0x20] sm:$0xf] %vm4950, %v4894
      %4960 = vst.msk [vmem:[#allocation5 + $0x24] sm:$0xf] %vm4950, %v4895
      %4961 = vst.msk [vmem:[#allocation5 + $0x28] sm:$0xf] %vm4950, %v4896
      %4962 = vst.msk [vmem:[#allocation5 + $0x2c] sm:$0xf] %vm4950, %v4897
      %4963 = vst.msk [vmem:[#allocation5 + $0x30] sm:$0xf] %vm4950, %v4898
      %4964 = vst.msk [vmem:[#allocation5 + $0x34] sm:$0xf] %vm4950, %v4899
      %4965 = vst.msk [vmem:[#allocation5 + $0x38] sm:$0xf] %vm4950, %v4900
      %4966 = vst.msk [vmem:[#allocation5 + $0x3c] sm:$0xf] %vm4950, %v4901
      %4967 = vst.msk [vmem:[#allocation5 + $0x40] sm:$0xf] %vm4950, %v4902
      %4968 = vst.msk [vmem:[#allocation5 + $0x44] sm:$0xf] %vm4950, %v4903
      %4969 = vst.msk [vmem:[#allocation5 + $0x48] sm:$0xf] %vm4950, %v4904
      %4970 = vst.msk [vmem:[#allocation5 + $0x4c] sm:$0xf] %vm4950, %v4905
      %4971 = vst.msk [vmem:[#allocation5 + $0x50] sm:$0xf] %vm4950, %v4906
      %4972 = vst.msk [vmem:[#allocation5 + $0x54] sm:$0xf] %vm4950, %v4907
      %4973 = vst.msk [vmem:[#allocation5 + $0x58] sm:$0xf] %vm4950, %v4908
      %4974 = vst.msk [vmem:[#allocation5 + $0x5c] sm:$0xf] %vm4950, %v4909
      %4975 = vst.msk [vmem:[#allocation5 + $0x60] sm:$0xf] %vm4950, %v4910
      %4976 = vst.msk [vmem:[#allocation5 + $0x64] sm:$0xf] %vm4950, %v4911
      %4977 = vst.msk [vmem:[#allocation5 + $0x68] sm:$0xf] %vm4950, %v4912
      %4978 = vst.msk [vmem:[#allocation5 + $0x6c] sm:$0xf] %vm4950, %v4913
      %4979 = vst.msk [vmem:[#allocation5 + $0x70] sm:$0xf] %vm4950, %v4914
      %4980 = vst.msk [vmem:[#allocation5 + $0x74] sm:$0xf] %vm4950, %v4915
      %4981 = vst.msk [vmem:[#allocation5 + $0x78] sm:$0xf] %vm4950, %v4916
      %4982 = vst.msk [vmem:[#allocation5 + $0x7c] sm:$0xf] %vm4950, %v4917
      %v4983 = vld [vmem:[%s497] sm:$0x1]
      %v4985 = vlaneseq
      %v4986 = vshrl.u32 %v4985, 7
      %v4987 = vsub.s32 0, %v4986
      %v4988 = vrot.slane %v4983, %v4987
      %v4990 = vld [vmem:[#allocation5] sm:$0xf]
      %v4991 = vld [vmem:[#allocation5 + $0x4] sm:$0xf]
      %v4992 = vld [vmem:[#allocation5 + $0x8] sm:$0xf]
      %v4993 = vld [vmem:[#allocation5 + $0xc] sm:$0xf]
      %v4994 = vld [vmem:[#allocation5 + $0x10] sm:$0xf]
      %v4995 = vld [vmem:[#allocation5 + $0x14] sm:$0xf]
      %v4996 = vld [vmem:[#allocation5 + $0x18] sm:$0xf]
      %v4997 = vld [vmem:[#allocation5 + $0x1c] sm:$0xf]
      %v4998 = vld [vmem:[#allocation5 + $0x20] sm:$0xf]
      %v4999 = vld [vmem:[#allocation5 + $0x24] sm:$0xf]
      %v5000 = vld [vmem:[#allocation5 + $0x28] sm:$0xf]
      %v5001 = vld [vmem:[#allocation5 + $0x2c] sm:$0xf]
      %v5002 = vld [vmem:[#allocation5 + $0x30] sm:$0xf]
      %v5003 = vld [vmem:[#allocation5 + $0x34] sm:$0xf]
      %v5004 = vld [vmem:[#allocation5 + $0x38] sm:$0xf]
      %v5005 = vld [vmem:[#allocation5 + $0x3c] sm:$0xf]
      %v5006 = vld [vmem:[#allocation5 + $0x40] sm:$0xf]
      %v5007 = vld [vmem:[#allocation5 + $0x44] sm:$0xf]
      %v5008 = vld [vmem:[#allocation5 + $0x48] sm:$0xf]
      %v5009 = vld [vmem:[#allocation5 + $0x4c] sm:$0xf]
      %v5010 = vld [vmem:[#allocation5 + $0x50] sm:$0xf]
      %v5011 = vld [vmem:[#allocation5 + $0x54] sm:$0xf]
      %v5012 = vld [vmem:[#allocation5 + $0x58] sm:$0xf]
      %v5013 = vld [vmem:[#allocation5 + $0x5c] sm:$0xf]
      %v5014 = vld [vmem:[#allocation5 + $0x60] sm:$0xf]
      %v5015 = vld [vmem:[#allocation5 + $0x64] sm:$0xf]
      %v5016 = vld [vmem:[#allocation5 + $0x68] sm:$0xf]
      %v5017 = vld [vmem:[#allocation5 + $0x6c] sm:$0xf]
      %v5018 = vld [vmem:[#allocation5 + $0x70] sm:$0xf]
      %v5019 = vld [vmem:[#allocation5 + $0x74] sm:$0xf]
      %v5020 = vld [vmem:[#allocation5 + $0x78] sm:$0xf]
      %v5021 = vld [vmem:[#allocation5 + $0x7c] sm:$0xf]
      %p5023 = scmp.lt.u32.totalorder 256, 8
      %p5024 = pneg %p5023
      // Predicated region
      $region129: #{globalnet_forward.2} parent=59 // pred_check
        _
      $region130: #{globalnet_forward.2} parent=59 // pred_check_branch
        %5026 = sbr.rel (%p5023) target = $region132
      $region131: #{globalnet_forward.2} parent=59 // pred_region
        %s5042 = sand.u32 256, 7
        %p5043 = scmp.eq.s32.totalorder %s5042, 0
        // Predicated region
        $region144: #{globalnet_forward.2} parent=131 // pred_check
          %p5044 = pneg %p5043
        $region145: #{globalnet_forward.2} parent=131 // pred_check_branch
          %5046 = sbr.rel (%p5044) target = $region147
        $region146: #{globalnet_forward.2} parent=131 // pred_region
          loop: start=0, step=1, limit=1
          $region148: #{globalnet_forward.2} parent=146 // loop_pre_header
            _
          $region149: #{globalnet_forward.2} parent=146 // loop_header
            %s5048 = sphi 0, %s5052
            %p5049 = scmp.ge.s32.totalorder %s5048, 1
            %s5053 = sphi %s1049, %s1049
            %s5054 = sphi [#allocation2], [#allocation2]
          $region150: #{globalnet_forward.2} parent=146 // loop_header_branch
            %5051 = sbr.rel (%p5049) target = $region154
          $region151: #{globalnet_forward.2} parent=146 // loop_body
            %v5055 = vld [vmem:[%s5053] sm:$0xff]
            %5056 = vst [vmem:[%s5054] sm:$0xff] %v5055
            %v5057 = vld [vmem:[%s5053 + $0x8] sm:$0xff]
            %5058 = vst [vmem:[%s5054 + $0x8] sm:$0xff] %v5057
            %v5059 = vld [vmem:[%s5053 + $0x10] sm:$0xff]
            %5060 = vst [vmem:[%s5054 + $0x10] sm:$0xff] %v5059
            %v5061 = vld [vmem:[%s5053 + $0x18] sm:$0xff]
            %5062 = vst [vmem:[%s5054 + $0x18] sm:$0xff] %v5061
            %v5063 = vld [vmem:[%s5053 + $0x20] sm:$0xff]
            %5064 = vst [vmem:[%s5054 + $0x20] sm:$0xff] %v5063
            %v5065 = vld [vmem:[%s5053 + $0x28] sm:$0xff]
            %5066 = vst [vmem:[%s5054 + $0x28] sm:$0xff] %v5065
            %v5067 = vld [vmem:[%s5053 + $0x30] sm:$0xff]
            %5068 = vst [vmem:[%s5054 + $0x30] sm:$0xff] %v5067
            %v5069 = vld [vmem:[%s5053 + $0x38] sm:$0xff]
            %5070 = vst [vmem:[%s5054 + $0x38] sm:$0xff] %v5069
            %v5071 = vld [vmem:[%s5053 + $0x40] sm:$0xff]
            %5072 = vst [vmem:[%s5054 + $0x40] sm:$0xff] %v5071
            %v5073 = vld [vmem:[%s5053 + $0x48] sm:$0xff]
            %5074 = vst [vmem:[%s5054 + $0x48] sm:$0xff] %v5073
            %v5075 = vld [vmem:[%s5053 + $0x50] sm:$0xff]
            %5076 = vst [vmem:[%s5054 + $0x50] sm:$0xff] %v5075
            %v5077 = vld [vmem:[%s5053 + $0x58] sm:$0xff]
            %5078 = vst [vmem:[%s5054 + $0x58] sm:$0xff] %v5077
            %v5079 = vld [vmem:[%s5053 + $0x60] sm:$0xff]
            %5080 = vst [vmem:[%s5054 + $0x60] sm:$0xff] %v5079
            %v5081 = vld [vmem:[%s5053 + $0x68] sm:$0xff]
            %5082 = vst [vmem:[%s5054 + $0x68] sm:$0xff] %v5081
            %v5083 = vld [vmem:[%s5053 + $0x70] sm:$0xff]
            %5084 = vst [vmem:[%s5054 + $0x70] sm:$0xff] %v5083
            %v5085 = vld [vmem:[%s5053 + $0x78] sm:$0xff]
            %5086 = vst [vmem:[%s5054 + $0x78] sm:$0xff] %v5085
            %v5087 = vld [vmem:[%s5053 + $0x80] sm:$0xff]
            %5088 = vst [vmem:[%s5054 + $0x80] sm:$0xff] %v5087
            %v5089 = vld [vmem:[%s5053 + $0x88] sm:$0xff]
            %5090 = vst [vmem:[%s5054 + $0x88] sm:$0xff] %v5089
            %v5091 = vld [vmem:[%s5053 + $0x90] sm:$0xff]
            %5092 = vst [vmem:[%s5054 + $0x90] sm:$0xff] %v5091
            %v5093 = vld [vmem:[%s5053 + $0x98] sm:$0xff]
            %5094 = vst [vmem:[%s5054 + $0x98] sm:$0xff] %v5093
            %v5095 = vld [vmem:[%s5053 + $0xa0] sm:$0xff]
            %5096 = vst [vmem:[%s5054 + $0xa0] sm:$0xff] %v5095
            %v5097 = vld [vmem:[%s5053 + $0xa8] sm:$0xff]
            %5098 = vst [vmem:[%s5054 + $0xa8] sm:$0xff] %v5097
            %v5099 = vld [vmem:[%s5053 + $0xb0] sm:$0xff]
            %5100 = vst [vmem:[%s5054 + $0xb0] sm:$0xff] %v5099
            %v5101 = vld [vmem:[%s5053 + $0xb8] sm:$0xff]
            %5102 = vst [vmem:[%s5054 + $0xb8] sm:$0xff] %v5101
            %v5103 = vld [vmem:[%s5053 + $0xc0] sm:$0xff]
            %5104 = vst [vmem:[%s5054 + $0xc0] sm:$0xff] %v5103
            %v5105 = vld [vmem:[%s5053 + $0xc8] sm:$0xff]
            %5106 = vst [vmem:[%s5054 + $0xc8] sm:$0xff] %v5105
            %v5107 = vld [vmem:[%s5053 + $0xd0] sm:$0xff]
            %5108 = vst [vmem:[%s5054 + $0xd0] sm:$0xff] %v5107
            %v5109 = vld [vmem:[%s5053 + $0xd8] sm:$0xff]
            %5110 = vst [vmem:[%s5054 + $0xd8] sm:$0xff] %v5109
            %v5111 = vld [vmem:[%s5053 + $0xe0] sm:$0xff]
            %5112 = vst [vmem:[%s5054 + $0xe0] sm:$0xff] %v5111
            %v5113 = vld [vmem:[%s5053 + $0xe8] sm:$0xff]
            %5114 = vst [vmem:[%s5054 + $0xe8] sm:$0xff] %v5113
            %v5115 = vld [vmem:[%s5053 + $0xf0] sm:$0xff]
            %5116 = vst [vmem:[%s5054 + $0xf0] sm:$0xff] %v5115
            %v5117 = vld [vmem:[%s5053 + $0xf8] sm:$0xff]
            %5118 = vst [vmem:[%s5054 + $0xf8] sm:$0xff] %v5117
          $region152: #{globalnet_forward.2} parent=146 // loop_footer
            %s5052 = sadd.s32 1, %s5048
          $region153: #{globalnet_forward.2} parent=146 // loop_footer_branch
            %5047 = sbr.rel target = $region149
          $region154: #{globalnet_forward.2} parent=146 // loop_exit
            _
        $region147: #{globalnet_forward.2} parent=131 // pred_fallthru
          _
        %p5119 = pneg %p5043
        // Predicated region
        $region155: #{globalnet_forward.2} parent=131 // pred_check
          _
        $region156: #{globalnet_forward.2} parent=131 // pred_check_branch
          %5121 = sbr.rel (%p5043) target = $region158
        $region157: #{globalnet_forward.2} parent=131 // pred_region
          %s5122 = sand.u32 256, 7
        $region158: #{globalnet_forward.2} parent=131 // pred_fallthru
          _
      $region132: #{globalnet_forward.2} parent=59 // pred_fallthru
        _
      // Predicated region
      $region133: #{globalnet_forward.2} parent=59 // pred_check
        %p5027 = pneg %p5023
      $region134: #{globalnet_forward.2} parent=59 // pred_check_branch
        %5029 = sbr.rel (%p5027) target = $region136
      $region135: #{globalnet_forward.2} parent=59 // pred_region
        %s5030 = sshll.u32 1, 256
        %s5031 = ssub.s32 %s5030, 1
        loop: start=0, step=1, limit=1
        $region137: #{globalnet_forward.2} parent=135 // loop_pre_header
          _
        $region138: #{globalnet_forward.2} parent=135 // loop_header
          %s5033 = sphi 0, %s5037
          %p5034 = scmp.ge.s32.totalorder %s5033, 1
          %s5038 = sphi %s1049, %s1049
          %s5039 = sphi [#allocation2], [#allocation2]
        $region139: #{globalnet_forward.2} parent=135 // loop_header_branch
          %5036 = sbr.rel (%p5034) target = $region143
        $region140: #{globalnet_forward.2} parent=135 // loop_body
          %v5040 = vld [vmem:[%s5038] sm:%s5031]
          %5041 = vst [vmem:[%s5039] sm:%s5031] %v5040
        $region141: #{globalnet_forward.2} parent=135 // loop_footer
          %s5037 = sadd.s32 1, %s5033
        $region142: #{globalnet_forward.2} parent=135 // loop_footer_branch
          %5032 = sbr.rel target = $region138
        $region143: #{globalnet_forward.2} parent=135 // loop_exit
          _
      $region136: #{globalnet_forward.2} parent=59 // pred_fallthru
        _
      // Predicated region
      $region159: #{globalnet_forward.2} parent=59 // pred_check
        _
      $region160: #{globalnet_forward.2} parent=59 // pred_check_branch
        %5125 = sbr.rel (0) target = $region162
      $region161: #{globalnet_forward.2} parent=59 // pred_region
        %5126 = vsyncadd [#allocation3], 4096
      $region162: #{globalnet_forward.2} parent=59 // pred_fallthru
        _
      %s5127 = sshll.u32 %s1156, 4
      %5128 = dma.done [#allocation3], %s5127
      %v5129 = vld [vmem:[#allocation2] sm:$0xff]
      %v5130 = vld [vmem:[#allocation2 + $0x8] sm:$0xff]
      %v5131 = vld [vmem:[#allocation2 + $0x10] sm:$0xff]
      %v5132 = vld [vmem:[#allocation2 + $0x18] sm:$0xff]
      %v5133 = vld [vmem:[#allocation2 + $0x20] sm:$0xff]
      %v5134 = vld [vmem:[#allocation2 + $0x28] sm:$0xff]
      %v5135 = vld [vmem:[#allocation2 + $0x30] sm:$0xff]
      %v5136 = vld [vmem:[#allocation2 + $0x38] sm:$0xff]
      %v5137 = vld [vmem:[#allocation2 + $0x40] sm:$0xff]
      %v5138 = vld [vmem:[#allocation2 + $0x48] sm:$0xff]
      %v5139 = vld [vmem:[#allocation2 + $0x50] sm:$0xff]
      %v5140 = vld [vmem:[#allocation2 + $0x58] sm:$0xff]
      %v5141 = vld [vmem:[#allocation2 + $0x60] sm:$0xff]
      %v5142 = vld [vmem:[#allocation2 + $0x68] sm:$0xff]
      %v5143 = vld [vmem:[#allocation2 + $0x70] sm:$0xff]
      %v5144 = vld [vmem:[#allocation2 + $0x78] sm:$0xff]
      %v5145 = vld [vmem:[#allocation2 + $0x80] sm:$0xff]
      %v5146 = vld [vmem:[#allocation2 + $0x88] sm:$0xff]
      %v5147 = vld [vmem:[#allocation2 + $0x90] sm:$0xff]
      %v5148 = vld [vmem:[#allocation2 + $0x98] sm:$0xff]
      %v5149 = vld [vmem:[#allocation2 + $0xa0] sm:$0xff]
      %v5150 = vld [vmem:[#allocation2 + $0xa8] sm:$0xff]
      %v5151 = vld [vmem:[#allocation2 + $0xb0] sm:$0xff]
      %v5152 = vld [vmem:[#allocation2 + $0xb8] sm:$0xff]
      %v5153 = vld [vmem:[#allocation2 + $0xc0] sm:$0xff]
      %v5154 = vld [vmem:[#allocation2 + $0xc8] sm:$0xff]
      %v5155 = vld [vmem:[#allocation2 + $0xd0] sm:$0xff]
      %v5156 = vld [vmem:[#allocation2 + $0xd8] sm:$0xff]
      %v5157 = vld [vmem:[#allocation2 + $0xe0] sm:$0xff]
      %v5158 = vld [vmem:[#allocation2 + $0xe8] sm:$0xff]
      %v5159 = vld [vmem:[#allocation2 + $0xf0] sm:$0xff]
      %v5160 = vld [vmem:[#allocation2 + $0xf8] sm:$0xff]
      %v5193 = vunpack.c.l.b16 %v5129
      %v5194 = vunpack.c.h.b16 %v5129
      %v5195 = vunpack.c.l.b16 %v5130
      %v5196 = vunpack.c.h.b16 %v5130
      %v5197 = vunpack.c.l.b16 %v5131
      %v5198 = vunpack.c.h.b16 %v5131
      %v5199 = vunpack.c.l.b16 %v5132
      %v5200 = vunpack.c.h.b16 %v5132
      %v5201 = vunpack.c.l.b16 %v5133
      %v5202 = vunpack.c.h.b16 %v5133
      %v5203 = vunpack.c.l.b16 %v5134
      %v5204 = vunpack.c.h.b16 %v5134
      %v5205 = vunpack.c.l.b16 %v5135
      %v5206 = vunpack.c.h.b16 %v5135
      %v5207 = vunpack.c.l.b16 %v5136
      %v5208 = vunpack.c.h.b16 %v5136
      %v5209 = vunpack.c.l.b16 %v5137
      %v5210 = vunpack.c.h.b16 %v5137
      %v5211 = vunpack.c.l.b16 %v5138
      %v5212 = vunpack.c.h.b16 %v5138
      %v5213 = vunpack.c.l.b16 %v5139
      %v5214 = vunpack.c.h.b16 %v5139
      %v5215 = vunpack.c.l.b16 %v5140
      %v5216 = vunpack.c.h.b16 %v5140
      %v5217 = vunpack.c.l.b16 %v5141
      %v5218 = vunpack.c.h.b16 %v5141
      %v5219 = vunpack.c.l.b16 %v5142
      %v5220 = vunpack.c.h.b16 %v5142
      %v5221 = vunpack.c.l.b16 %v5143
      %v5222 = vunpack.c.h.b16 %v5143
      %v5223 = vunpack.c.l.b16 %v5144
      %v5224 = vunpack.c.h.b16 %v5144
      %v5225 = vunpack.c.l.b16 %v5145
      %v5226 = vunpack.c.h.b16 %v5145
      %v5227 = vunpack.c.l.b16 %v5146
      %v5228 = vunpack.c.h.b16 %v5146
      %v5229 = vunpack.c.l.b16 %v5147
      %v5230 = vunpack.c.h.b16 %v5147
      %v5231 = vunpack.c.l.b16 %v5148
      %v5232 = vunpack.c.h.b16 %v5148
      %v5233 = vunpack.c.l.b16 %v5149
      %v5234 = vunpack.c.h.b16 %v5149
      %v5235 = vunpack.c.l.b16 %v5150
      %v5236 = vunpack.c.h.b16 %v5150
      %v5237 = vunpack.c.l.b16 %v5151
      %v5238 = vunpack.c.h.b16 %v5151
      %v5239 = vunpack.c.l.b16 %v5152
      %v5240 = vunpack.c.h.b16 %v5152
      %v5241 = vunpack.c.l.b16 %v5153
      %v5242 = vunpack.c.h.b16 %v5153
      %v5243 = vunpack.c.l.b16 %v5154
      %v5244 = vunpack.c.h.b16 %v5154
      %v5245 = vunpack.c.l.b16 %v5155
      %v5246 = vunpack.c.h.b16 %v5155
      %v5247 = vunpack.c.l.b16 %v5156
      %v5248 = vunpack.c.h.b16 %v5156
      %v5249 = vunpack.c.l.b16 %v5157
      %v5250 = vunpack.c.h.b16 %v5157
      %v5251 = vunpack.c.l.b16 %v5158
      %v5252 = vunpack.c.h.b16 %v5158
      %v5253 = vunpack.c.l.b16 %v5159
      %v5254 = vunpack.c.h.b16 %v5159
      %v5255 = vunpack.c.l.b16 %v5160
      %v5256 = vunpack.c.h.b16 %v5160
      %v5257 = vpack.c.b16 %v5195, %v5193
      %v5258 = vpack.c.b16 %v5196, %v5194
      %v5259 = vpack.c.b16 %v5199, %v5197
      %v5260 = vpack.c.b16 %v5200, %v5198
      %v5261 = vpack.c.b16 %v5203, %v5201
      %v5262 = vpack.c.b16 %v5204, %v5202
      %v5263 = vpack.c.b16 %v5207, %v5205
      %v5264 = vpack.c.b16 %v5208, %v5206
      %v5265 = vpack.c.b16 %v5211, %v5209
      %v5266 = vpack.c.b16 %v5212, %v5210
      %v5267 = vpack.c.b16 %v5215, %v5213
      %v5268 = vpack.c.b16 %v5216, %v5214
      %v5269 = vpack.c.b16 %v5219, %v5217
      %v5270 = vpack.c.b16 %v5220, %v5218
      %v5271 = vpack.c.b16 %v5223, %v5221
      %v5272 = vpack.c.b16 %v5224, %v5222
      %v5273 = vpack.c.b16 %v5227, %v5225
      %v5274 = vpack.c.b16 %v5228, %v5226
      %v5275 = vpack.c.b16 %v5231, %v5229
      %v5276 = vpack.c.b16 %v5232, %v5230
      %v5277 = vpack.c.b16 %v5235, %v5233
      %v5278 = vpack.c.b16 %v5236, %v5234
      %v5279 = vpack.c.b16 %v5239, %v5237
      %v5280 = vpack.c.b16 %v5240, %v5238
      %v5281 = vpack.c.b16 %v5243, %v5241
      %v5282 = vpack.c.b16 %v5244, %v5242
      %v5283 = vpack.c.b16 %v5247, %v5245
      %v5284 = vpack.c.b16 %v5248, %v5246
      %v5285 = vpack.c.b16 %v5251, %v5249
      %v5286 = vpack.c.b16 %v5252, %v5250
      %v5287 = vpack.c.b16 %v5255, %v5253
      %v5288 = vpack.c.b16 %v5256, %v5254
      %v5353 = vunpack.c.l.b16 %v4990
      %v5354 = vunpack.c.l.b16 %v4991
      %v5355 = vunpack.c.l.b16 %v4992
      %v5356 = vunpack.c.l.b16 %v4993
      %v5357 = vunpack.c.l.b16 %v4994
      %v5358 = vunpack.c.l.b16 %v4995
      %v5359 = vunpack.c.l.b16 %v4996
      %v5360 = vunpack.c.l.b16 %v4997
      %v5361 = vunpack.c.l.b16 %v4998
      %v5362 = vunpack.c.l.b16 %v4999
      %v5363 = vunpack.c.l.b16 %v5000
      %v5364 = vunpack.c.l.b16 %v5001
      %v5365 = vunpack.c.l.b16 %v5002
      %v5366 = vunpack.c.l.b16 %v5003
      %v5367 = vunpack.c.l.b16 %v5004
      %v5368 = vunpack.c.l.b16 %v5005
      %v5369 = vunpack.c.l.b16 %v5006
      %v5370 = vunpack.c.l.b16 %v5007
      %v5371 = vunpack.c.l.b16 %v5008
      %v5372 = vunpack.c.l.b16 %v5009
      %v5373 = vunpack.c.l.b16 %v5010
      %v5374 = vunpack.c.l.b16 %v5011
      %v5375 = vunpack.c.l.b16 %v5012
      %v5376 = vunpack.c.l.b16 %v5013
      %v5377 = vunpack.c.l.b16 %v5014
      %v5378 = vunpack.c.l.b16 %v5015
      %v5379 = vunpack.c.l.b16 %v5016
      %v5380 = vunpack.c.l.b16 %v5017
      %v5381 = vunpack.c.l.b16 %v5018
      %v5382 = vunpack.c.l.b16 %v5019
      %v5383 = vunpack.c.l.b16 %v5020
      %v5384 = vunpack.c.l.b16 %v5021
      %v5385 = vpack.c.b16 %v5354, %v5353
      %v5386 = vpack.c.b16 %v5356, %v5355
      %v5387 = vpack.c.b16 %v5358, %v5357
      %v5388 = vpack.c.b16 %v5360, %v5359
      %v5389 = vpack.c.b16 %v5362, %v5361
      %v5390 = vpack.c.b16 %v5364, %v5363
      %v5391 = vpack.c.b16 %v5366, %v5365
      %v5392 = vpack.c.b16 %v5368, %v5367
      %v5393 = vpack.c.b16 %v5370, %v5369
      %v5394 = vpack.c.b16 %v5372, %v5371
      %v5395 = vpack.c.b16 %v5374, %v5373
      %v5396 = vpack.c.b16 %v5376, %v5375
      %v5397 = vpack.c.b16 %v5378, %v5377
      %v5398 = vpack.c.b16 %v5380, %v5379
      %v5399 = vpack.c.b16 %v5382, %v5381
      %v5400 = vpack.c.b16 %v5384, %v5383
      %5417 = vmatprep.subr.bf16.mxu0 0
      %5418 = vmatpush1.bf16.msra.mxu0 %v5392
      %5419 = vmatprep.subr.bf16.mxu0 0
      %5420 = vmatpush1.bf16.msra.mxu0 %v5391
      %5421 = vmatprep.subr.bf16.mxu0 0
      %5422 = vmatpush1.bf16.msra.mxu0 %v5390
      %5423 = vmatprep.subr.bf16.mxu0 0
      %5424 = vmatpush1.bf16.msra.mxu0 %v5389
      %5425 = vmatprep.subr.bf16.mxu0 0
      %5426 = vmatpush1.bf16.msra.mxu0 %v5388
      %5427 = vmatprep.subr.bf16.mxu0 0
      %5428 = vmatpush1.bf16.msra.mxu0 %v5387
      %5429 = vmatprep.subr.bf16.mxu0 0
      %5430 = vmatpush1.bf16.msra.mxu0 %v5386
      %5431 = vmatprep.subr.bf16.mxu0 0
      %5432 = vmatpush1.bf16.msra.mxu0 %v5385
      %5433 = vmatprep.subr.bf16.mxu0 0
      %5434 = vmatpush2.bf16.msra.mxu0 %v5400
      %5435 = vmatprep.subr.bf16.mxu0 0
      %5436 = vmatpush2.bf16.msra.mxu0 %v5399
      %5437 = vmatprep.subr.bf16.mxu0 0
      %5438 = vmatpush2.bf16.msra.mxu0 %v5398
      %5439 = vmatprep.subr.bf16.mxu0 0
      %5440 = vmatpush2.bf16.msra.mxu0 %v5397
      %5441 = vmatprep.subr.bf16.mxu0 0
      %5442 = vmatpush2.bf16.msra.mxu0 %v5396
      %5443 = vmatprep.subr.bf16.mxu0 0
      %5444 = vmatpush2.bf16.msra.mxu0 %v5395
      %5445 = vmatprep.subr.bf16.mxu0 0
      %5446 = vmatpush2.bf16.msra.mxu0 %v5394
      %5447 = vmatprep.subr.bf16.mxu0 0
      %5448 = vmatpush2.bf16.msra.mxu0 %v5393
      %5449 = vmatprep.mubr.bf16.mxu0 %v5258
      %5450 = vmatmul.mubr.bf16.gmra.mxu0 %v5257
      %v5451 = vpop.f32.mrf.mxu0
      %v5452 = vadd.f32 %v4988, %v5451
      %v5453 = vpop.f32.mrf.mxu0
      %v5454 = vpop.f32.mrf.mxu0
      %v5455 = vadd.f32 %v4988, %v5454
      %v5456 = vpop.f32.mrf.mxu0
      %5457 = vmatprep.mubr.bf16.mxu0 %v5260
      %5458 = vmatmul.mubr.bf16.gmra.mxu0 %v5259
      %v5459 = vpop.f32.mrf.mxu0
      %v5460 = vadd.f32 %v4988, %v5459
      %v5461 = vpop.f32.mrf.mxu0
      %v5462 = vpop.f32.mrf.mxu0
      %v5463 = vadd.f32 %v4988, %v5462
      %v5464 = vpop.f32.mrf.mxu0
      %5465 = vmatprep.mubr.bf16.mxu0 %v5262
      %5466 = vmatmul.mubr.bf16.gmra.mxu0 %v5261
      %v5467 = vpop.f32.mrf.mxu0
      %v5468 = vadd.f32 %v4988, %v5467
      %v5469 = vpop.f32.mrf.mxu0
      %v5470 = vpop.f32.mrf.mxu0
      %v5471 = vadd.f32 %v4988, %v5470
      %v5472 = vpop.f32.mrf.mxu0
      %5473 = vmatprep.mubr.bf16.mxu0 %v5264
      %5474 = vmatmul.mubr.bf16.gmra.mxu0 %v5263
      %v5475 = vpop.f32.mrf.mxu0
      %v5476 = vadd.f32 %v4988, %v5475
      %v5477 = vpop.f32.mrf.mxu0
      %v5478 = vpop.f32.mrf.mxu0
      %v5479 = vadd.f32 %v4988, %v5478
      %v5480 = vpop.f32.mrf.mxu0
      %5481 = vmatprep.mubr.bf16.mxu0 %v5266
      %5482 = vmatmul.mubr.bf16.gmra.mxu0 %v5265
      %v5483 = vpop.f32.mrf.mxu0
      %v5484 = vadd.f32 %v4988, %v5483
      %v5485 = vpop.f32.mrf.mxu0
      %v5486 = vpop.f32.mrf.mxu0
      %v5487 = vadd.f32 %v4988, %v5486
      %v5488 = vpop.f32.mrf.mxu0
      %5489 = vmatprep.mubr.bf16.mxu0 %v5268
      %5490 = vmatmul.mubr.bf16.gmra.mxu0 %v5267
      %v5491 = vpop.f32.mrf.mxu0
      %v5492 = vadd.f32 %v4988, %v5491
      %v5493 = vpop.f32.mrf.mxu0
      %v5494 = vpop.f32.mrf.mxu0
      %v5495 = vadd.f32 %v4988, %v5494
      %v5496 = vpop.f32.mrf.mxu0
      %5497 = vmatprep.mubr.bf16.mxu0 %v5270
      %5498 = vmatmul.mubr.bf16.gmra.mxu0 %v5269
      %v5499 = vpop.f32.mrf.mxu0
      %v5500 = vadd.f32 %v4988, %v5499
      %v5501 = vpop.f32.mrf.mxu0
      %v5502 = vpop.f32.mrf.mxu0
      %v5503 = vadd.f32 %v4988, %v5502
      %v5504 = vpop.f32.mrf.mxu0
      %5505 = vmatprep.mubr.bf16.mxu0 %v5272
      %5506 = vmatmul.mubr.bf16.gmra.mxu0 %v5271
      %v5507 = vpop.f32.mrf.mxu0
      %v5508 = vadd.f32 %v4988, %v5507
      %v5509 = vpop.f32.mrf.mxu0
      %v5510 = vpop.f32.mrf.mxu0
      %v5511 = vadd.f32 %v4988, %v5510
      %v5512 = vpop.f32.mrf.mxu0
      %5513 = vmatprep.mubr.bf16.mxu0 %v5274
      %5514 = vmatmul.mubr.bf16.gmra.mxu0 %v5273
      %v5515 = vpop.f32.mrf.mxu0
      %v5516 = vadd.f32 %v4988, %v5515
      %v5517 = vpop.f32.mrf.mxu0
      %v5518 = vpop.f32.mrf.mxu0
      %v5519 = vadd.f32 %v4988, %v5518
      %v5520 = vpop.f32.mrf.mxu0
      %5521 = vmatprep.mubr.bf16.mxu0 %v5276
      %5522 = vmatmul.mubr.bf16.gmra.mxu0 %v5275
      %v5523 = vpop.f32.mrf.mxu0
      %v5524 = vadd.f32 %v4988, %v5523
      %v5525 = vpop.f32.mrf.mxu0
      %v5526 = vpop.f32.mrf.mxu0
      %v5527 = vadd.f32 %v4988, %v5526
      %v5528 = vpop.f32.mrf.mxu0
      %5529 = vmatprep.mubr.bf16.mxu0 %v5278
      %5530 = vmatmul.mubr.bf16.gmra.mxu0 %v5277
      %v5531 = vpop.f32.mrf.mxu0
      %v5532 = vadd.f32 %v4988, %v5531
      %v5533 = vpop.f32.mrf.mxu0
      %v5534 = vpop.f32.mrf.mxu0
      %v5535 = vadd.f32 %v4988, %v5534
      %v5536 = vpop.f32.mrf.mxu0
      %5537 = vmatprep.mubr.bf16.mxu0 %v5280
      %5538 = vmatmul.mubr.bf16.gmra.mxu0 %v5279
      %v5539 = vpop.f32.mrf.mxu0
      %v5540 = vadd.f32 %v4988, %v5539
      %v5541 = vpop.f32.mrf.mxu0
      %v5542 = vpop.f32.mrf.mxu0
      %v5543 = vadd.f32 %v4988, %v5542
      %v5544 = vpop.f32.mrf.mxu0
      %5545 = vmatprep.mubr.bf16.mxu0 %v5282
      %5546 = vmatmul.mubr.bf16.gmra.mxu0 %v5281
      %v5547 = vpop.f32.mrf.mxu0
      %v5548 = vadd.f32 %v4988, %v5547
      %v5549 = vpop.f32.mrf.mxu0
      %v5550 = vpop.f32.mrf.mxu0
      %v5551 = vadd.f32 %v4988, %v5550
      %v5552 = vpop.f32.mrf.mxu0
      %5553 = vmatprep.mubr.bf16.mxu0 %v5284
      %5554 = vmatmul.mubr.bf16.gmra.mxu0 %v5283
      %v5555 = vpop.f32.mrf.mxu0
      %v5556 = vadd.f32 %v4988, %v5555
      %v5557 = vpop.f32.mrf.mxu0
      %v5558 = vpop.f32.mrf.mxu0
      %v5559 = vadd.f32 %v4988, %v5558
      %v5560 = vpop.f32.mrf.mxu0
      %5561 = vmatprep.mubr.bf16.mxu0 %v5286
      %5562 = vmatmul.mubr.bf16.gmra.mxu0 %v5285
      %v5563 = vpop.f32.mrf.mxu0
      %v5564 = vadd.f32 %v4988, %v5563
      %v5565 = vpop.f32.mrf.mxu0
      %v5566 = vpop.f32.mrf.mxu0
      %v5567 = vadd.f32 %v4988, %v5566
      %v5568 = vpop.f32.mrf.mxu0
      %5569 = vmatprep.mubr.bf16.mxu0 %v5288
      %5570 = vmatmul.mubr.bf16.gmra.mxu0 %v5287
      %v5571 = vpop.f32.mrf.mxu0
      %v5572 = vadd.f32 %v4988, %v5571
      %v5573 = vpop.f32.mrf.mxu0
      %v5574 = vpop.f32.mrf.mxu0
      %v5575 = vadd.f32 %v4988, %v5574
      %v5576 = vpop.f32.mrf.mxu0
      %5577 = vdwg.mxu0
      %v5578 = vmul.f32 %v5452, %v5452
      %v5579 = vmul.f32 %v5455, %v5455
      %v5580 = vmul.f32 %v5460, %v5460
      %v5581 = vmul.f32 %v5463, %v5463
      %v5582 = vmul.f32 %v5468, %v5468
      %v5583 = vmul.f32 %v5471, %v5471
      %v5584 = vmul.f32 %v5476, %v5476
      %v5585 = vmul.f32 %v5479, %v5479
      %v5586 = vmul.f32 %v5484, %v5484
      %v5587 = vmul.f32 %v5487, %v5487
      %v5588 = vmul.f32 %v5492, %v5492
      %v5589 = vmul.f32 %v5495, %v5495
      %v5590 = vmul.f32 %v5500, %v5500
      %v5591 = vmul.f32 %v5503, %v5503
      %v5592 = vmul.f32 %v5508, %v5508
      %v5593 = vmul.f32 %v5511, %v5511
      %v5594 = vmul.f32 %v5516, %v5516
      %v5595 = vmul.f32 %v5519, %v5519
      %v5596 = vmul.f32 %v5524, %v5524
      %v5597 = vmul.f32 %v5527, %v5527
      %v5598 = vmul.f32 %v5532, %v5532
      %v5599 = vmul.f32 %v5535, %v5535
      %v5600 = vmul.f32 %v5540, %v5540
      %v5601 = vmul.f32 %v5543, %v5543
      %v5602 = vmul.f32 %v5548, %v5548
      %v5603 = vmul.f32 %v5551, %v5551
      %v5604 = vmul.f32 %v5556, %v5556
      %v5605 = vmul.f32 %v5559, %v5559
      %v5606 = vmul.f32 %v5564, %v5564
      %v5607 = vmul.f32 %v5567, %v5567
      %v5608 = vmul.f32 %v5572, %v5572
      %v5609 = vmul.f32 %v5575, %v5575
      %v5610 = vsel %vm538, 1, 0
      %vm5611 = vcmp.eq.s32.totalorder %v5610, 1
      %v5612 = vsel %vm5611, %v5578, 0.0
      %v5613 = vsel %vm5611, %v5579, 0.0
      %v5614 = vsel %vm5611, %v5580, 0.0
      %v5615 = vsel %vm5611, %v5581, 0.0
      %v5616 = vsel %vm5611, %v5582, 0.0
      %v5617 = vsel %vm5611, %v5583, 0.0
      %v5618 = vsel %vm5611, %v5584, 0.0
      %v5619 = vsel %vm5611, %v5585, 0.0
      %v5620 = vsel %vm5611, %v5586, 0.0
      %v5621 = vsel %vm5611, %v5587, 0.0
      %v5622 = vsel %vm5611, %v5588, 0.0
      %v5623 = vsel %vm5611, %v5589, 0.0
      %v5624 = vsel %vm5611, %v5590, 0.0
      %v5625 = vsel %vm5611, %v5591, 0.0
      %v5626 = vsel %vm5611, %v5592, 0.0
      %v5627 = vsel %vm5611, %v5593, 0.0
      %v5628 = vsel %vm5611, %v5594, 0.0
      %v5629 = vsel %vm5611, %v5595, 0.0
      %v5630 = vsel %vm5611, %v5596, 0.0
      %v5631 = vsel %vm5611, %v5597, 0.0
      %v5632 = vsel %vm5611, %v5598, 0.0
      %v5633 = vsel %vm5611, %v5599, 0.0
      %v5634 = vsel %vm5611, %v5600, 0.0
      %v5635 = vsel %vm5611, %v5601, 0.0
      %v5636 = vsel %vm5611, %v5602, 0.0
      %v5637 = vsel %vm5611, %v5603, 0.0
      %v5638 = vsel %vm5611, %v5604, 0.0
      %v5639 = vsel %vm5611, %v5605, 0.0
      %v5640 = vsel %vm5611, %v5606, 0.0
      %v5641 = vsel %vm5611, %v5607, 0.0
      %v5642 = vsel %vm5611, %v5608, 0.0
      %v5643 = vsel %vm5611, %v5609, 0.0
      %vm5644 = vcmask 130048
      %v5645 = vsel %vm5644, %v5612, 0.0
      %5646 = vadd.xlane.f32.xlu0 %v5645
      %v5647 = vpop.xlane.xlu0 %5646
      %v5648 = vsel %vm5644, %v5613, 0.0
      %5649 = vadd.xlane.f32.xlu0 %v5648
      %v5650 = vpop.xlane.xlu0 %5649
      %v5651 = vsel %vm5644, %v5614, 0.0
      %5652 = vadd.xlane.f32.xlu0 %v5651
      %v5653 = vpop.xlane.xlu0 %5652
      %v5654 = vsel %vm5644, %v5615, 0.0
      %5655 = vadd.xlane.f32.xlu0 %v5654
      %v5656 = vpop.xlane.xlu0 %5655
      %v5657 = vsel %vm5644, %v5616, 0.0
      %5658 = vadd.xlane.f32.xlu0 %v5657
      %v5659 = vpop.xlane.xlu0 %5658
      %v5660 = vsel %vm5644, %v5617, 0.0
      %5661 = vadd.xlane.f32.xlu0 %v5660
      %v5662 = vpop.xlane.xlu0 %5661
      %v5663 = vsel %vm5644, %v5618, 0.0
      %5664 = vadd.xlane.f32.xlu0 %v5663
      %v5665 = vpop.xlane.xlu0 %5664
      %v5666 = vsel %vm5644, %v5619, 0.0
      %5667 = vadd.xlane.f32.xlu0 %v5666
      %v5668 = vpop.xlane.xlu0 %5667
      %v5669 = vsel %vm5644, %v5620, 0.0
      %5670 = vadd.xlane.f32.xlu0 %v5669
      %v5671 = vpop.xlane.xlu0 %5670
      %v5672 = vsel %vm5644, %v5621, 0.0
      %5673 = vadd.xlane.f32.xlu0 %v5672
      %v5674 = vpop.xlane.xlu0 %5673
      %v5675 = vsel %vm5644, %v5622, 0.0
      %5676 = vadd.xlane.f32.xlu0 %v5675
      %v5677 = vpop.xlane.xlu0 %5676
      %v5678 = vsel %vm5644, %v5623, 0.0
      %5679 = vadd.xlane.f32.xlu0 %v5678
      %v5680 = vpop.xlane.xlu0 %5679
      %v5681 = vsel %vm5644, %v5624, 0.0
      %5682 = vadd.xlane.f32.xlu0 %v5681
      %v5683 = vpop.xlane.xlu0 %5682
      %v5684 = vsel %vm5644, %v5625, 0.0
      %5685 = vadd.xlane.f32.xlu0 %v5684
      %v5686 = vpop.xlane.xlu0 %5685
      %v5687 = vsel %vm5644, %v5626, 0.0
      %5688 = vadd.xlane.f32.xlu0 %v5687
      %v5689 = vpop.xlane.xlu0 %5688
      %v5690 = vsel %vm5644, %v5627, 0.0
      %5691 = vadd.xlane.f32.xlu0 %v5690
      %v5692 = vpop.xlane.xlu0 %5691
      %v5693 = vsel %vm5644, %v5628, 0.0
      %5694 = vadd.xlane.f32.xlu0 %v5693
      %v5695 = vpop.xlane.xlu0 %5694
      %v5696 = vsel %vm5644, %v5629, 0.0
      %5697 = vadd.xlane.f32.xlu0 %v5696
      %v5698 = vpop.xlane.xlu0 %5697
      %v5699 = vsel %vm5644, %v5630, 0.0
      %5700 = vadd.xlane.f32.xlu0 %v5699
      %v5701 = vpop.xlane.xlu0 %5700
      %v5702 = vsel %vm5644, %v5631, 0.0
      %5703 = vadd.xlane.f32.xlu0 %v5702
      %v5704 = vpop.xlane.xlu0 %5703
      %v5705 = vsel %vm5644, %v5632, 0.0
      %5706 = vadd.xlane.f32.xlu0 %v5705
      %v5707 = vpop.xlane.xlu0 %5706
      %v5708 = vsel %vm5644, %v5633, 0.0
      %5709 = vadd.xlane.f32.xlu0 %v5708
      %v5710 = vpop.xlane.xlu0 %5709
      %v5711 = vsel %vm5644, %v5634, 0.0
      %5712 = vadd.xlane.f32.xlu0 %v5711
      %v5713 = vpop.xlane.xlu0 %5712
      %v5714 = vsel %vm5644, %v5635, 0.0
      %5715 = vadd.xlane.f32.xlu0 %v5714
      %v5716 = vpop.xlane.xlu0 %5715
      %v5717 = vsel %vm5644, %v5636, 0.0
      %5718 = vadd.xlane.f32.xlu0 %v5717
      %v5719 = vpop.xlane.xlu0 %5718
      %v5720 = vsel %vm5644, %v5637, 0.0
      %5721 = vadd.xlane.f32.xlu0 %v5720
      %v5722 = vpop.xlane.xlu0 %5721
      %v5723 = vsel %vm5644, %v5638, 0.0
      %5724 = vadd.xlane.f32.xlu0 %v5723
      %v5725 = vpop.xlane.xlu0 %5724
      %v5726 = vsel %vm5644, %v5639, 0.0
      %5727 = vadd.xlane.f32.xlu0 %v5726
      %v5728 = vpop.xlane.xlu0 %5727
      %v5729 = vsel %vm5644, %v5640, 0.0
      %5730 = vadd.xlane.f32.xlu0 %v5729
      %v5731 = vpop.xlane.xlu0 %5730
      %v5732 = vsel %vm5644, %v5641, 0.0
      %5733 = vadd.xlane.f32.xlu0 %v5732
      %v5734 = vpop.xlane.xlu0 %5733
      %v5735 = vsel %vm5644, %v5642, 0.0
      %5736 = vadd.xlane.f32.xlu0 %v5735
      %v5737 = vpop.xlane.xlu0 %5736
      %v5738 = vsel %vm5644, %v5643, 0.0
      %5739 = vadd.xlane.f32.xlu0 %v5738
      %v5740 = vpop.xlane.xlu0 %5739
      %v5741 = vsel %vm5644, %v5578, 0.0
      %5742 = vadd.xlane.f32.xlu0 %v5741
      %v5743 = vpop.xlane.xlu0 %5742
      %v5744 = vsel %vm5644, %v5579, 0.0
      %5745 = vadd.xlane.f32.xlu0 %v5744
      %v5746 = vpop.xlane.xlu0 %5745
      %v5747 = vsel %vm5644, %v5580, 0.0
      %5748 = vadd.xlane.f32.xlu0 %v5747
      %v5749 = vpop.xlane.xlu0 %5748
      %v5750 = vsel %vm5644, %v5581, 0.0
      %5751 = vadd.xlane.f32.xlu0 %v5750
      %v5752 = vpop.xlane.xlu0 %5751
      %v5753 = vsel %vm5644, %v5582, 0.0
      %5754 = vadd.xlane.f32.xlu0 %v5753
      %v5755 = vpop.xlane.xlu0 %5754
      %v5756 = vsel %vm5644, %v5583, 0.0
      %5757 = vadd.xlane.f32.xlu0 %v5756
      %v5758 = vpop.xlane.xlu0 %5757
      %v5759 = vsel %vm5644, %v5584, 0.0
      %5760 = vadd.xlane.f32.xlu0 %v5759
      %v5761 = vpop.xlane.xlu0 %5760
      %v5762 = vsel %vm5644, %v5585, 0.0
      %5763 = vadd.xlane.f32.xlu0 %v5762
      %v5764 = vpop.xlane.xlu0 %5763
      %v5765 = vsel %vm5644, %v5586, 0.0
      %5766 = vadd.xlane.f32.xlu0 %v5765
      %v5767 = vpop.xlane.xlu0 %5766
      %v5768 = vsel %vm5644, %v5587, 0.0
      %5769 = vadd.xlane.f32.xlu0 %v5768
      %v5770 = vpop.xlane.xlu0 %5769
      %v5771 = vsel %vm5644, %v5588, 0.0
      %5772 = vadd.xlane.f32.xlu0 %v5771
      %v5773 = vpop.xlane.xlu0 %5772
      %v5774 = vsel %vm5644, %v5589, 0.0
      %5775 = vadd.xlane.f32.xlu0 %v5774
      %v5776 = vpop.xlane.xlu0 %5775
      %v5777 = vsel %vm5644, %v5590, 0.0
      %5778 = vadd.xlane.f32.xlu0 %v5777
      %v5779 = vpop.xlane.xlu0 %5778
      %v5780 = vsel %vm5644, %v5591, 0.0
      %5781 = vadd.xlane.f32.xlu0 %v5780
      %v5782 = vpop.xlane.xlu0 %5781
      %v5783 = vsel %vm5644, %v5592, 0.0
      %5784 = vadd.xlane.f32.xlu0 %v5783
      %v5785 = vpop.xlane.xlu0 %5784
      %v5786 = vsel %vm5644, %v5593, 0.0
      %5787 = vadd.xlane.f32.xlu0 %v5786
      %v5788 = vpop.xlane.xlu0 %5787
      %v5789 = vsel %vm5644, %v5594, 0.0
      %5790 = vadd.xlane.f32.xlu0 %v5789
      %v5791 = vpop.xlane.xlu0 %5790
      %v5792 = vsel %vm5644, %v5595, 0.0
      %5793 = vadd.xlane.f32.xlu0 %v5792
      %v5794 = vpop.xlane.xlu0 %5793
      %v5795 = vsel %vm5644, %v5596, 0.0
      %5796 = vadd.xlane.f32.xlu0 %v5795
      %v5797 = vpop.xlane.xlu0 %5796
      %v5798 = vsel %vm5644, %v5597, 0.0
      %5799 = vadd.xlane.f32.xlu0 %v5798
      %v5800 = vpop.xlane.xlu0 %5799
      %v5801 = vsel %vm5644, %v5598, 0.0
      %5802 = vadd.xlane.f32.xlu0 %v5801
      %v5803 = vpop.xlane.xlu0 %5802
      %v5804 = vsel %vm5644, %v5599, 0.0
      %5805 = vadd.xlane.f32.xlu0 %v5804
      %v5806 = vpop.xlane.xlu0 %5805
      %v5807 = vsel %vm5644, %v5600, 0.0
      %5808 = vadd.xlane.f32.xlu0 %v5807
      %v5809 = vpop.xlane.xlu0 %5808
      %v5810 = vsel %vm5644, %v5601, 0.0
      %5811 = vadd.xlane.f32.xlu0 %v5810
      %v5812 = vpop.xlane.xlu0 %5811
      %v5813 = vsel %vm5644, %v5602, 0.0
      %5814 = vadd.xlane.f32.xlu0 %v5813
      %v5815 = vpop.xlane.xlu0 %5814
      %v5816 = vsel %vm5644, %v5603, 0.0
      %5817 = vadd.xlane.f32.xlu0 %v5816
      %v5818 = vpop.xlane.xlu0 %5817
      %v5819 = vsel %vm5644, %v5604, 0.0
      %5820 = vadd.xlane.f32.xlu0 %v5819
      %v5821 = vpop.xlane.xlu0 %5820
      %v5822 = vsel %vm5644, %v5605, 0.0
      %5823 = vadd.xlane.f32.xlu0 %v5822
      %v5824 = vpop.xlane.xlu0 %5823
      %v5825 = vsel %vm5644, %v5606, 0.0
      %5826 = vadd.xlane.f32.xlu0 %v5825
      %v5827 = vpop.xlane.xlu0 %5826
      %v5828 = vsel %vm5644, %v5607, 0.0
      %5829 = vadd.xlane.f32.xlu0 %v5828
      %v5830 = vpop.xlane.xlu0 %5829
      %v5831 = vsel %vm5644, %v5608, 0.0
      %5832 = vadd.xlane.f32.xlu0 %v5831
      %v5833 = vpop.xlane.xlu0 %5832
      %v5834 = vsel %vm5644, %v5609, 0.0
      %5835 = vadd.xlane.f32.xlu0 %v5834
      %v5836 = vpop.xlane.xlu0 %5835
      %v5837 = vsub.f32 %v5743, %v5647
      %v5838 = vsub.f32 %v5746, %v5650
      %v5839 = vsub.f32 %v5749, %v5653
      %v5840 = vsub.f32 %v5752, %v5656
      %v5841 = vsub.f32 %v5755, %v5659
      %v5842 = vsub.f32 %v5758, %v5662
      %v5843 = vsub.f32 %v5761, %v5665
      %v5844 = vsub.f32 %v5764, %v5668
      %v5845 = vsub.f32 %v5767, %v5671
      %v5846 = vsub.f32 %v5770, %v5674
      %v5847 = vsub.f32 %v5773, %v5677
      %v5848 = vsub.f32 %v5776, %v5680
      %v5849 = vsub.f32 %v5779, %v5683
      %v5850 = vsub.f32 %v5782, %v5686
      %v5851 = vsub.f32 %v5785, %v5689
      %v5852 = vsub.f32 %v5788, %v5692
      %v5853 = vsub.f32 %v5791, %v5695
      %v5854 = vsub.f32 %v5794, %v5698
      %v5855 = vsub.f32 %v5797, %v5701
      %v5856 = vsub.f32 %v5800, %v5704
      %v5857 = vsub.f32 %v5803, %v5707
      %v5858 = vsub.f32 %v5806, %v5710
      %v5859 = vsub.f32 %v5809, %v5713
      %v5860 = vsub.f32 %v5812, %v5716
      %v5861 = vsub.f32 %v5815, %v5719
      %v5862 = vsub.f32 %v5818, %v5722
      %v5863 = vsub.f32 %v5821, %v5725
      %v5864 = vsub.f32 %v5824, %v5728
      %v5865 = vsub.f32 %v5827, %v5731
      %v5866 = vsub.f32 %v5830, %v5734
      %v5867 = vsub.f32 %v5833, %v5737
      %v5868 = vsub.f32 %v5836, %v5740
      %v5869 = vmax.f32 %v5647, 1e-24
      %v5870 = vmax.f32 %v5650, 1e-24
      %v5871 = vmax.f32 %v5653, 1e-24
      %v5872 = vmax.f32 %v5656, 1e-24
      %v5873 = vmax.f32 %v5659, 1e-24
      %v5874 = vmax.f32 %v5662, 1e-24
      %v5875 = vmax.f32 %v5665, 1e-24
      %v5876 = vmax.f32 %v5668, 1e-24
      %v5877 = vmax.f32 %v5671, 1e-24
      %v5878 = vmax.f32 %v5674, 1e-24
      %v5879 = vmax.f32 %v5677, 1e-24
      %v5880 = vmax.f32 %v5680, 1e-24
      %v5881 = vmax.f32 %v5683, 1e-24
      %v5882 = vmax.f32 %v5686, 1e-24
      %v5883 = vmax.f32 %v5689, 1e-24
      %v5884 = vmax.f32 %v5692, 1e-24
      %v5885 = vmax.f32 %v5695, 1e-24
      %v5886 = vmax.f32 %v5698, 1e-24
      %v5887 = vmax.f32 %v5701, 1e-24
      %v5888 = vmax.f32 %v5704, 1e-24
      %v5889 = vmax.f32 %v5707, 1e-24
      %v5890 = vmax.f32 %v5710, 1e-24
      %v5891 = vmax.f32 %v5713, 1e-24
      %v5892 = vmax.f32 %v5716, 1e-24
      %v5893 = vmax.f32 %v5719, 1e-24
      %v5894 = vmax.f32 %v5722, 1e-24
      %v5895 = vmax.f32 %v5725, 1e-24
      %v5896 = vmax.f32 %v5728, 1e-24
      %v5897 = vmax.f32 %v5731, 1e-24
      %v5898 = vmax.f32 %v5734, 1e-24
      %v5899 = vmax.f32 %v5737, 1e-24
      %v5900 = vmax.f32 %v5740, 1e-24
      %v5901 = vrsqrt.pop %v5869
      %v5902 = vrsqrt.pop %v5870
      %v5903 = vrsqrt.pop %v5871
      %v5904 = vrsqrt.pop %v5872
      %v5905 = vrsqrt.pop %v5873
      %v5906 = vrsqrt.pop %v5874
      %v5907 = vrsqrt.pop %v5875
      %v5908 = vrsqrt.pop %v5876
      %v5909 = vrsqrt.pop %v5877
      %v5910 = vrsqrt.pop %v5878
      %v5911 = vrsqrt.pop %v5879
      %v5912 = vrsqrt.pop %v5880
      %v5913 = vrsqrt.pop %v5881
      %v5914 = vrsqrt.pop %v5882
      %v5915 = vrsqrt.pop %v5883
      %v5916 = vrsqrt.pop %v5884
      %v5917 = vrsqrt.pop %v5885
      %v5918 = vrsqrt.pop %v5886
      %v5919 = vrsqrt.pop %v5887
      %v5920 = vrsqrt.pop %v5888
      %v5921 = vrsqrt.pop %v5889
      %v5922 = vrsqrt.pop %v5890
      %v5923 = vrsqrt.pop %v5891
      %v5924 = vrsqrt.pop %v5892
      %v5925 = vrsqrt.pop %v5893
      %v5926 = vrsqrt.pop %v5894
      %v5927 = vrsqrt.pop %v5895
      %v5928 = vrsqrt.pop %v5896
      %v5929 = vrsqrt.pop %v5897
      %v5930 = vrsqrt.pop %v5898
      %v5931 = vrsqrt.pop %v5899
      %v5932 = vrsqrt.pop %v5900
      %v5933 = vmax.f32 %v5837, 1e-24
      %v5934 = vmax.f32 %v5838, 1e-24
      %v5935 = vmax.f32 %v5839, 1e-24
      %v5936 = vmax.f32 %v5840, 1e-24
      %v5937 = vmax.f32 %v5841, 1e-24
      %v5938 = vmax.f32 %v5842, 1e-24
      %v5939 = vmax.f32 %v5843, 1e-24
      %v5940 = vmax.f32 %v5844, 1e-24
      %v5941 = vmax.f32 %v5845, 1e-24
      %v5942 = vmax.f32 %v5846, 1e-24
      %v5943 = vmax.f32 %v5847, 1e-24
      %v5944 = vmax.f32 %v5848, 1e-24
      %v5945 = vmax.f32 %v5849, 1e-24
      %v5946 = vmax.f32 %v5850, 1e-24
      %v5947 = vmax.f32 %v5851, 1e-24
      %v5948 = vmax.f32 %v5852, 1e-24
      %v5949 = vmax.f32 %v5853, 1e-24
      %v5950 = vmax.f32 %v5854, 1e-24
      %v5951 = vmax.f32 %v5855, 1e-24
      %v5952 = vmax.f32 %v5856, 1e-24
      %v5953 = vmax.f32 %v5857, 1e-24
      %v5954 = vmax.f32 %v5858, 1e-24
      %v5955 = vmax.f32 %v5859, 1e-24
      %v5956 = vmax.f32 %v5860, 1e-24
      %v5957 = vmax.f32 %v5861, 1e-24
      %v5958 = vmax.f32 %v5862, 1e-24
      %v5959 = vmax.f32 %v5863, 1e-24
      %v5960 = vmax.f32 %v5864, 1e-24
      %v5961 = vmax.f32 %v5865, 1e-24
      %v5962 = vmax.f32 %v5866, 1e-24
      %v5963 = vmax.f32 %v5867, 1e-24
      %v5964 = vmax.f32 %v5868, 1e-24
      %v5965 = vrsqrt.pop %v5933
      %v5966 = vrsqrt.pop %v5934
      %v5967 = vrsqrt.pop %v5935
      %v5968 = vrsqrt.pop %v5936
      %v5969 = vrsqrt.pop %v5937
      %v5970 = vrsqrt.pop %v5938
      %v5971 = vrsqrt.pop %v5939
      %v5972 = vrsqrt.pop %v5940
      %v5973 = vrsqrt.pop %v5941
      %v5974 = vrsqrt.pop %v5942
      %v5975 = vrsqrt.pop %v5943
      %v5976 = vrsqrt.pop %v5944
      %v5977 = vrsqrt.pop %v5945
      %v5978 = vrsqrt.pop %v5946
      %v5979 = vrsqrt.pop %v5947
      %v5980 = vrsqrt.pop %v5948
      %v5981 = vrsqrt.pop %v5949
      %v5982 = vrsqrt.pop %v5950
      %v5983 = vrsqrt.pop %v5951
      %v5984 = vrsqrt.pop %v5952
      %v5985 = vrsqrt.pop %v5953
      %v5986 = vrsqrt.pop %v5954
      %v5987 = vrsqrt.pop %v5955
      %v5988 = vrsqrt.pop %v5956
      %v5989 = vrsqrt.pop %v5957
      %v5990 = vrsqrt.pop %v5958
      %v5991 = vrsqrt.pop %v5959
      %v5992 = vrsqrt.pop %v5960
      %v5993 = vrsqrt.pop %v5961
      %v5994 = vrsqrt.pop %v5962
      %v5995 = vrsqrt.pop %v5963
      %v5996 = vrsqrt.pop %v5964
      %v5997 = vsel %vm5611, %v5901, %v5965
      %v5998 = vsel %vm5611, %v5902, %v5966
      %v5999 = vsel %vm5611, %v5903, %v5967
      %v6000 = vsel %vm5611, %v5904, %v5968
      %v6001 = vsel %vm5611, %v5905, %v5969
      %v6002 = vsel %vm5611, %v5906, %v5970
      %v6003 = vsel %vm5611, %v5907, %v5971
      %v6004 = vsel %vm5611, %v5908, %v5972
      %v6005 = vsel %vm5611, %v5909, %v5973
      %v6006 = vsel %vm5611, %v5910, %v5974
      %v6007 = vsel %vm5611, %v5911, %v5975
      %v6008 = vsel %vm5611, %v5912, %v5976
      %v6009 = vsel %vm5611, %v5913, %v5977
      %v6010 = vsel %vm5611, %v5914, %v5978
      %v6011 = vsel %vm5611, %v5915, %v5979
      %v6012 = vsel %vm5611, %v5916, %v5980
      %v6013 = vsel %vm5611, %v5917, %v5981
      %v6014 = vsel %vm5611, %v5918, %v5982
      %v6015 = vsel %vm5611, %v5919, %v5983
      %v6016 = vsel %vm5611, %v5920, %v5984
      %v6017 = vsel %vm5611, %v5921, %v5985
      %v6018 = vsel %vm5611, %v5922, %v5986
      %v6019 = vsel %vm5611, %v5923, %v5987
      %v6020 = vsel %vm5611, %v5924, %v5988
      %v6021 = vsel %vm5611, %v5925, %v5989
      %v6022 = vsel %vm5611, %v5926, %v5990
      %v6023 = vsel %vm5611, %v5927, %v5991
      %v6024 = vsel %vm5611, %v5928, %v5992
      %v6025 = vsel %vm5611, %v5929, %v5993
      %v6026 = vsel %vm5611, %v5930, %v5994
      %v6027 = vsel %vm5611, %v5931, %v5995
      %v6028 = vsel %vm5611, %v5932, %v5996
      %v6029 = vmul.f32 %v5452, %v5997
      %v6030 = vmul.f32 %v5455, %v5998
      %v6031 = vmul.f32 %v5460, %v5999
      %v6032 = vmul.f32 %v5463, %v6000
      %v6033 = vmul.f32 %v5468, %v6001
      %v6034 = vmul.f32 %v5471, %v6002
      %v6035 = vmul.f32 %v5476, %v6003
      %v6036 = vmul.f32 %v5479, %v6004
      %v6037 = vmul.f32 %v5484, %v6005
      %v6038 = vmul.f32 %v5487, %v6006
      %v6039 = vmul.f32 %v5492, %v6007
      %v6040 = vmul.f32 %v5495, %v6008
      %v6041 = vmul.f32 %v5500, %v6009
      %v6042 = vmul.f32 %v5503, %v6010
      %v6043 = vmul.f32 %v5508, %v6011
      %v6044 = vmul.f32 %v5511, %v6012
      %v6045 = vmul.f32 %v5516, %v6013
      %v6046 = vmul.f32 %v5519, %v6014
      %v6047 = vmul.f32 %v5524, %v6015
      %v6048 = vmul.f32 %v5527, %v6016
      %v6049 = vmul.f32 %v5532, %v6017
      %v6050 = vmul.f32 %v5535, %v6018
      %v6051 = vmul.f32 %v5540, %v6019
      %v6052 = vmul.f32 %v5543, %v6020
      %v6053 = vmul.f32 %v5548, %v6021
      %v6054 = vmul.f32 %v5551, %v6022
      %v6055 = vmul.f32 %v5556, %v6023
      %v6056 = vmul.f32 %v5559, %v6024
      %v6057 = vmul.f32 %v5564, %v6025
      %v6058 = vmul.f32 %v5567, %v6026
      %v6059 = vmul.f32 %v5572, %v6027
      %v6060 = vmul.f32 %v5575, %v6028
      %6061 = vst.msk [vmem:[%s502] sm:$0xff] %vm5644, %v6029
      %6062 = vst.msk [vmem:[%s502 + $0x8] sm:$0xff] %vm5644, %v6030
      %6063 = vst.msk [vmem:[%s502 + $0x10] sm:$0xff] %vm5644, %v6031
      %6064 = vst.msk [vmem:[%s502 + $0x18] sm:$0xff] %vm5644, %v6032
      %6065 = vst.msk [vmem:[%s502 + $0x20] sm:$0xff] %vm5644, %v6033
      %6066 = vst.msk [vmem:[%s502 + $0x28] sm:$0xff] %vm5644, %v6034
      %6067 = vst.msk [vmem:[%s502 + $0x30] sm:$0xff] %vm5644, %v6035
      %6068 = vst.msk [vmem:[%s502 + $0x38] sm:$0xff] %vm5644, %v6036
      %6069 = vst.msk [vmem:[%s502 + $0x40] sm:$0xff] %vm5644, %v6037
      %6070 = vst.msk [vmem:[%s502 + $0x48] sm:$0xff] %vm5644, %v6038
      %6071 = vst.msk [vmem:[%s502 + $0x50] sm:$0xff] %vm5644, %v6039
      %6072 = vst.msk [vmem:[%s502 + $0x58] sm:$0xff] %vm5644, %v6040
      %6073 = vst.msk [vmem:[%s502 + $0x60] sm:$0xff] %vm5644, %v6041
      %6074 = vst.msk [vmem:[%s502 + $0x68] sm:$0xff] %vm5644, %v6042
      %6075 = vst.msk [vmem:[%s502 + $0x70] sm:$0xff] %vm5644, %v6043
      %6076 = vst.msk [vmem:[%s502 + $0x78] sm:$0xff] %vm5644, %v6044
      %6077 = vst.msk [vmem:[%s502 + $0x80] sm:$0xff] %vm5644, %v6045
      %6078 = vst.msk [vmem:[%s502 + $0x88] sm:$0xff] %vm5644, %v6046
      %6079 = vst.msk [vmem:[%s502 + $0x90] sm:$0xff] %vm5644, %v6047
      %6080 = vst.msk [vmem:[%s502 + $0x98] sm:$0xff] %vm5644, %v6048
      %6081 = vst.msk [vmem:[%s502 + $0xa0] sm:$0xff] %vm5644, %v6049
      %6082 = vst.msk [vmem:[%s502 + $0xa8] sm:$0xff] %vm5644, %v6050
      %6083 = vst.msk [vmem:[%s502 + $0xb0] sm:$0xff] %vm5644, %v6051
      %6084 = vst.msk [vmem:[%s502 + $0xb8] sm:$0xff] %vm5644, %v6052
      %6085 = vst.msk [vmem:[%s502 + $0xc0] sm:$0xff] %vm5644, %v6053
      %6086 = vst.msk [vmem:[%s502 + $0xc8] sm:$0xff] %vm5644, %v6054
      %6087 = vst.msk [vmem:[%s502 + $0xd0] sm:$0xff] %vm5644, %v6055
      %6088 = vst.msk [vmem:[%s502 + $0xd8] sm:$0xff] %vm5644, %v6056
      %6089 = vst.msk [vmem:[%s502 + $0xe0] sm:$0xff] %vm5644, %v6057
      %6090 = vst.msk [vmem:[%s502 + $0xe8] sm:$0xff] %vm5644, %v6058
      %6091 = vst.msk [vmem:[%s502 + $0xf0] sm:$0xff] %vm5644, %v6059
      %6092 = vst.msk [vmem:[%s502 + $0xf8] sm:$0xff] %vm5644, %v6060
      %p6093 = scmp.lt.s32.totalorder %s22, 1
      %s6094 = scalar_select %p6093, %s22, 1
      %s6095 = smul.addr %s6094, 32
      %s6096 = smul.addr %s6095, 8
      %s6097 = scalar_lea.vmem %s11, %s6096
      // Predicated region
      $region163: #{globalnet_forward.2} parent=59 // pred_check
        %p6098 = pneg %p295
      $region164: #{globalnet_forward.2} parent=59 // pred_check_branch
        %6100 = sbr.rel (%p6098) target = $region166
      $region165: #{globalnet_forward.2} parent=59 // pred_region
        _
      $region166: #{globalnet_forward.2} parent=59 // pred_fallthru
        _
    $region60: #{globalnet_forward.2} parent=5 // pred_fallthru
      _
    %p6101 = scmp.le.s32.totalorder 2, %s17
    // Predicated region
    $region167: #{globalnet_forward.2} parent=5 // pred_check
      %p6102 = pneg %p6101
    $region168: #{globalnet_forward.2} parent=5 // pred_check_branch
      %6104 = sbr.rel (%p6102) target = $region170
    $region169: #{globalnet_forward.2} parent=5 // pred_region
      %s6105 = ssub.s32 %s17, 2
      // Predicated region
      $region171: #{globalnet_forward.2} parent=169 // pred_check
        %p6106 = pneg %p301
      $region172: #{globalnet_forward.2} parent=169 // pred_check_branch
        %6108 = sbr.rel (%p6106) target = $region174
      $region173: #{globalnet_forward.2} parent=169 // pred_region
        %p6109 = scmp.lt.s32.totalorder %s23, 1
        %s6110 = scalar_select %p6109, %s23, 1
        %s6111 = smul.addr %s6110, 32
        %s6112 = smul.addr %s6111, 8
        %s6113 = scalar_lea.vmem %s11, %s6112
      $region174: #{globalnet_forward.2} parent=169 // pred_fallthru
        _
    $region170: #{globalnet_forward.2} parent=5 // pred_fallthru
      _
  $region6: #{globalnet_forward.2} parent=0 // loop_footer
    %s21 = sadd.s32 1, %s17
  $region7: #{globalnet_forward.2} parent=0 // loop_footer_branch
    %16 = sbr.rel target = $region3
  $region8: #{globalnet_forward.2} parent=0 // loop_exit
    _
  %6114 = vsyncmov [#allocation3]
  %s6115 = vpop.sfrf %6114
  %p6116 = scmp.eq.s32.totalorder %s6115, 0
  %p6117 = pneg %p6116
  %6119 = shalt.err (%p6117)
  %s6120 = scalar_lea.sflag [#allocation3], 1
  %6121 = vsyncmov %s6120
  %s6122 = vpop.sfrf %6121
  %p6123 = scmp.eq.s32.totalorder %s6122, 0
  %p6124 = pneg %p6123
  %6126 = shalt.err (%p6124)

</llo_original>
